<compile_context>
chip_gen: v5e
topology: v5e:2x2
jax: 0.10.0
libtpu: 0.0.40
codegen_flags: <defaults>
</compile_context>

<pallas_src>
import functools

import jax
import jax.numpy as jnp
from jax.experimental import pallas as pl
from jax.experimental.pallas import tpu as pltpu


def _mnist_kernel(x_ref, pta_ref, p1_ref, wfold_ref, emask_ref, sel_ref,
                  rsum_ref, b_ref, o_ref, *, tb):
    # x_ref:     (TB, 280, 1120) input dtype   TB images, (H, W*C) view of (280,280,4)
    # pta_ref:   (1120, 28)      f32  channel-3 select + column pooling + /255 folded
    # p1_ref:    (TB*28, TB*280) f32  block-diagonal row pooling (entries 0.1)
    # wfold_ref: (28, 280)       f32  Wfold[j, 10*i+o] = W[o, 28*i+j]
    # emask_ref: (TB*28, 280)    f32  Emask[r, k] = (k // 10 == r % 28)
    # sel_ref:   (280, 10)       f32  Sel[k, o] = (k % 10 == o)
    # rsum_ref:  (TB, TB*28)     f32  Rsum[b, 28*b'+j] = (b' == b)
    # b_ref:     (1, 10)         f32  bias
    # o_ref:     (TB, 10)        f32  softmax output
    #
    # Layout-free flatten (280 is a multiple of 8); cast to f32 only in VMEM.
    x = x_ref[...].reshape(tb * 280, 1120).astype(jnp.float32)

    # avg_pool2d(10,10) of channel 3, already divided by 255 (folded scales).
    col = jnp.dot(x, pta_ref[...], preferred_element_type=jnp.float32)        # (TB*280, 28)
    pooled = jnp.dot(p1_ref[...], col, preferred_element_type=jnp.float32)    # (TB*28, 28)

    # Linear(784, 10) on the row-major flatten of each image's pooled map,
    # without any in-kernel reshape:
    #   t[r, 10*(r%28) + o] = pooled[r, :] . W[o, 28*(r%28) : 28*(r%28)+28]
    t = jnp.dot(pooled, wfold_ref[...], preferred_element_type=jnp.float32)   # (TB*28, 280)
    t = t * emask_ref[...]
    per_row = jnp.dot(t, sel_ref[...], preferred_element_type=jnp.float32)    # (TB*28, 10)
    logits = jnp.dot(rsum_ref[...], per_row,
                     preferred_element_type=jnp.float32) + b_ref[...]         # (TB, 10)

    # softmax over dim=1
    m = jnp.max(logits, axis=1, keepdims=True)
    e = jnp.exp(logits - m)
    o_ref[...] = e / jnp.sum(e, axis=1, keepdims=True)


def _make_constants(weight, bias, tb):
    """Pooling / selection constants with the 0.1 * 0.1/255 scaling folded in."""
    s_row = jnp.float32(0.1)          # row-averaging factor
    s_col = jnp.float32(0.1 / 255.0)  # column-averaging factor, /255 folded in

    # Row pooling: P1[i, h] = 0.1 iff 10*i <= h < 10*(i+1); block-diag over TB.
    P1 = jnp.kron(jnp.eye(28, dtype=jnp.float32),
                  jnp.ones((1, 10), jnp.float32)) * s_row                     # (28, 280)
    P1big = jnp.kron(jnp.eye(tb, dtype=jnp.float32), P1)                      # (TB*28, TB*280)

    # Column pooling fused with channel-3 selection on the (W*C) axis:
    # PtA[4*w + 3, j] = 0.1/255 iff 10*j <= w < 10*(j+1); other channels 0.
    blk = jnp.repeat(jnp.arange(28, dtype=jnp.int32), 10)                     # (280,) w -> w//10
    Mw = jax.nn.one_hot(blk, 28, dtype=jnp.float32) * s_col                   # (280, 28)
    PtA = (jnp.zeros((280, 4, 28), jnp.float32)
           .at[:, 3, :].set(Mw)
           .reshape(1120, 28))                                                # (1120, 28)

    # Re-folded linear weight: Wfold[j, 10*i + o] = W[o, 28*i + j].
    Wfold = jnp.transpose(weight.astype(jnp.float32).reshape(10, 28, 28),
                          (2, 1, 0)).reshape(28, 280)                         # (28, 280)

    # Block mask (tiled over TB), output-class selector, per-image row reducer.
    Emask = jnp.repeat(jnp.eye(28, dtype=jnp.float32), 10, axis=1)            # (28, 280)
    Emask_big = jnp.tile(Emask, (tb, 1))                                      # (TB*28, 280)
    Sel = jnp.tile(jnp.eye(10, dtype=jnp.float32), (28, 1))                   # (280, 10)
    Rsum = jnp.kron(jnp.eye(tb, dtype=jnp.float32),
                    jnp.ones((1, 28), jnp.float32))                           # (TB, TB*28)

    b2 = bias.astype(jnp.float32).reshape(1, 10)                              # (1, 10)
    return PtA, P1big, Wfold, Emask_big, Sel, Rsum, b2


def _pallas_forward(x, consts, tb):
    """x: (Bp, 280, 1120) with Bp % tb == 0, original dtype. -> (Bp//tb, tb, 10)."""
    PtA, P1big, Wfold, Emask_big, Sel, Rsum, b2 = consts
    steps = x.shape[0] // tb

    def const_spec(shape):
        return pl.BlockSpec(shape, lambda b: (0,) * len(shape))

    return pl.pallas_call(
        functools.partial(_mnist_kernel, tb=tb),
        out_shape=jax.ShapeDtypeStruct((steps, tb, 10), jnp.float32),
        grid=(steps,),
        in_specs=[
            pl.BlockSpec((tb, 280, 1120), lambda b: (b, 0, 0)),  # TB images / grid step
            const_spec((1120, 28)),
            const_spec((tb * 28, tb * 280)),
            const_spec((28, 280)),
            const_spec((tb * 28, 280)),
            const_spec((280, 10)),
            const_spec((tb, tb * 28)),
            const_spec((1, 10)),
        ],
        out_specs=pl.BlockSpec((None, tb, 10), lambda b: (b, 0, 0)),
        compiler_params=pltpu.CompilerParams(
            dimension_semantics=("parallel",),
            vmem_limit_bytes=32 << 20,
        ),
    )(x, PtA, P1big, Wfold, Emask_big, Sel, Rsum, b2)


@functools.partial(jax.jit, static_argnames=("tb",))
def _forward_impl(x, consts, tb):
    # Keep the original dtype (no wrapper upcast) -- the kernel casts to f32.
    x = x.reshape(-1, 280, 1120)        # free, lane-contiguous view of (B,280,280,4)
    b = x.shape[0]
    steps = -(-b // tb)
    bp = steps * tb
    if bp != b:
        x = jnp.pad(x, ((0, bp - b), (0, 0), (0, 0)))
    out = _pallas_forward(x, consts, tb)                # (steps, tb, 10)
    return out.reshape(bp, 10)[:b]


def make_mnist_forward(weight, bias, tb=4):
    """Factory: precompute all constants once for fixed weight/bias and return
    a forward(x) that accepts (B, 280, 280, 4)-sized (or flat) inputs in any
    dtype (f32 / uint8 / bf16) and returns (B, 10) softmax probabilities."""
    weight = jnp.asarray(weight, jnp.float32)
    bias = jnp.asarray(bias, jnp.float32)
    tb = max(int(tb), 1)
    _cache = {}

    def _get_consts(eff_tb):
        if eff_tb not in _cache:
            _cache[eff_tb] = _make_constants(weight, bias, eff_tb)
        return _cache[eff_tb]

    def forward(x):
        x = jnp.asarray(x)
        n_img = x.size // (280 * 280 * 4)
        assert n_img * 280 * 280 * 4 == x.size, "input must be B*280*280*4 elements"
        eff_tb = min(tb, n_img)          # avoid padding waste for tiny batches
        return _forward_impl(x, _get_consts(eff_tb), eff_tb)

    return forward


def mnist_forward(x, weight, bias):
    """Single image, exactly the torch module's forward: returns (1, 10)."""
    return make_mnist_forward(weight, bias, tb=1)(x.reshape(1, 280, 280, 4))


def _reference_forward(x_img, weight, bias):
    xb = x_img.reshape(280, 280, 4)[:, :, 3].astype(jnp.float32)
    pooled = xb.reshape(28, 10, 28, 10).mean(axis=(1, 3)) / 255.0
    logits = pooled.reshape(1, 784) @ weight.T + bias
    return jax.nn.softmax(logits, axis=1)


if __name__ == "__main__":
    key = jax.random.PRNGKey(0)
    kw, kb, kx = jax.random.split(key, 3)

    # Deterministic parameters (PyTorch Linear default: U(-1/sqrt(784), 1/sqrt(784)))
    bound = 1.0 / (784.0 ** 0.5)
    weight = jax.random.uniform(kw, (10, 784), jnp.float32, -bound, bound)
    bias = jax.random.uniform(kb, (10,), jnp.float32, -bound, bound)

    # Deterministic example inputs (image-like values in [0, 255]); small batch.
    B, TB = 8, 4                        # grid of 2 steps -> both v7x TCs get work
    x = jax.random.uniform(kx, (B, 280, 280, 4), jnp.float32, 0.0, 255.0)

    forward = make_mnist_forward(weight, bias, tb=TB)

    # Batched path (TB images per grid step, parallel semantics).
    out_b = forward(x)
    jax.block_until_ready(out_b)
    assert out_b.shape == (B, 10)
    ref_b = jnp.concatenate(
        [_reference_forward(x[i], weight, bias) for i in range(B)], axis=0)
    assert jnp.allclose(out_b, ref_b, atol=1e-5, rtol=1e-5), (out_b, ref_b)
    assert jnp.allclose(jnp.sum(out_b, axis=1), 1.0, atol=1e-5)

    # Single-image path, matching the module's forward exactly.
    out1 = forward(x[0])
    jax.block_until_ready(out1)
    assert out1.shape == (1, 10)
    assert jnp.allclose(out1, _reference_forward(x[0], weight, bias),
                        atol=1e-5, rtol=1e-5)

    print("KERNEL_OK")
</pallas_src>

<mosaic_0001>
module attributes {stable_mosaic.version = 11 : i64} {
  func.func @_mnist_kernel(%arg0: i32, %arg1: memref<4x280x1120xf32, #tpu.memory_space<vmem>>, %arg2: memref<1120x28xf32, #tpu.memory_space<vmem>>, %arg3: memref<112x1120xf32, #tpu.memory_space<vmem>>, %arg4: memref<28x280xf32, #tpu.memory_space<vmem>>, %arg5: memref<112x280xf32, #tpu.memory_space<vmem>>, %arg6: memref<280x10xf32, #tpu.memory_space<vmem>>, %arg7: memref<4x112xf32, #tpu.memory_space<vmem>>, %arg8: memref<1x10xf32, #tpu.memory_space<vmem>>, %arg9: memref<1x4x10xf32, #tpu.memory_space<vmem>>) attributes {dimension_semantics = [#tpu.dimension_semantics<parallel>], iteration_bounds = array<i64: 2>, scalar_prefetch = 0 : i64, scratch_operands = 0 : i64, tpu.core_type = #tpu.core_type<tc>, window_params = [{transform_indices = @transform_0, window_bounds = array<i64: 4, 280, 1120>}, {pipeline_mode = #tpu.pipeline_mode<synchronous>, transform_indices = @transform_1, window_bounds = array<i64: 1120, 28>}, {pipeline_mode = #tpu.pipeline_mode<synchronous>, transform_indices = @transform_2, window_bounds = array<i64: 112, 1120>}, {pipeline_mode = #tpu.pipeline_mode<synchronous>, transform_indices = @transform_3, window_bounds = array<i64: 28, 280>}, {pipeline_mode = #tpu.pipeline_mode<synchronous>, transform_indices = @transform_4, window_bounds = array<i64: 112, 280>}, {pipeline_mode = #tpu.pipeline_mode<synchronous>, transform_indices = @transform_5, window_bounds = array<i64: 280, 10>}, {pipeline_mode = #tpu.pipeline_mode<synchronous>, transform_indices = @transform_6, window_bounds = array<i64: 4, 112>}, {pipeline_mode = #tpu.pipeline_mode<synchronous>, transform_indices = @transform_7, window_bounds = array<i64: 1, 10>}, {transform_indices = @transform_8, window_bounds = array<i64: 1, 4, 10>}]} {
    %c0 = arith.constant 0 : index
    %c0_0 = arith.constant 0 : index
    %c0_1 = arith.constant 0 : index
    %0 = vector.load %arg1[%c0, %c0_0, %c0_1] : memref<4x280x1120xf32, #tpu.memory_space<vmem>>, vector<4x280x1120xf32>
    %1 = vector.shape_cast %0 : vector<4x280x1120xf32> to vector<1120x1120xf32>
    %c0_2 = arith.constant 0 : index
    %c0_3 = arith.constant 0 : index
    %2 = vector.load %arg2[%c0_2, %c0_3] : memref<1120x28xf32, #tpu.memory_space<vmem>>, vector<1120x28xf32>
    %cst = arith.constant dense<0.000000e+00> : vector<1120x28xf32>
    %3 = tpu.matmul %1, %2, %cst {dimension_numbers = #tpu.dot_dimension_numbers<[1], [0], [0], [1], [0, 0, 1, 1], [], []>} : vector<1120x1120xf32>, vector<1120x28xf32>, vector<1120x28xf32> -> vector<1120x28xf32>
    %c0_4 = arith.constant 0 : index
    %c0_5 = arith.constant 0 : index
    %4 = vector.load %arg3[%c0_4, %c0_5] : memref<112x1120xf32, #tpu.memory_space<vmem>>, vector<112x1120xf32>
    %cst_6 = arith.constant dense<0.000000e+00> : vector<112x28xf32>
    %5 = tpu.matmul %4, %3, %cst_6 {dimension_numbers = #tpu.dot_dimension_numbers<[1], [0], [0], [1], [0, 0, 1, 1], [], []>} : vector<112x1120xf32>, vector<1120x28xf32>, vector<112x28xf32> -> vector<112x28xf32>
    %c0_7 = arith.constant 0 : index
    %c0_8 = arith.constant 0 : index
    %6 = vector.load %arg4[%c0_7, %c0_8] : memref<28x280xf32, #tpu.memory_space<vmem>>, vector<28x280xf32>
    %cst_9 = arith.constant dense<0.000000e+00> : vector<112x280xf32>
    %7 = tpu.matmul %5, %6, %cst_9 {dimension_numbers = #tpu.dot_dimension_numbers<[1], [0], [0], [1], [0, 0, 1, 1], [], []>} : vector<112x28xf32>, vector<28x280xf32>, vector<112x280xf32> -> vector<112x280xf32>
    %c0_10 = arith.constant 0 : index
    %c0_11 = arith.constant 0 : index
    %8 = vector.load %arg5[%c0_10, %c0_11] : memref<112x280xf32, #tpu.memory_space<vmem>>, vector<112x280xf32>
    %9 = arith.mulf %7, %8 : vector<112x280xf32>
    %c0_12 = arith.constant 0 : index
    %c0_13 = arith.constant 0 : index
    %10 = vector.load %arg6[%c0_12, %c0_13] : memref<280x10xf32, #tpu.memory_space<vmem>>, vector<280x10xf32>
    %cst_14 = arith.constant dense<0.000000e+00> : vector<112x10xf32>
    %11 = tpu.matmul %9, %10, %cst_14 {dimension_numbers = #tpu.dot_dimension_numbers<[1], [0], [0], [1], [0, 0, 1, 1], [], []>} : vector<112x280xf32>, vector<280x10xf32>, vector<112x10xf32> -> vector<112x10xf32>
    %c0_15 = arith.constant 0 : index
    %c0_16 = arith.constant 0 : index
    %12 = vector.load %arg7[%c0_15, %c0_16] : memref<4x112xf32, #tpu.memory_space<vmem>>, vector<4x112xf32>
    %cst_17 = arith.constant dense<0.000000e+00> : vector<4x10xf32>
    %13 = tpu.matmul %12, %11, %cst_17 {dimension_numbers = #tpu.dot_dimension_numbers<[1], [0], [0], [1], [0, 0, 1, 1], [], []>} : vector<4x112xf32>, vector<112x10xf32>, vector<4x10xf32> -> vector<4x10xf32>
    %c0_18 = arith.constant 0 : index
    %c0_19 = arith.constant 0 : index
    %14 = vector.load %arg8[%c0_18, %c0_19] : memref<1x10xf32, #tpu.memory_space<vmem>>, vector<1x10xf32>
    %15 = vector.broadcast %14 : vector<1x10xf32> to vector<4x10xf32>
    %16 = arith.addf %13, %15 : vector<4x10xf32>
    %cst_20 = arith.constant dense<0xFF800000> : vector<4xf32>
    %17 = vector.multi_reduction <maximumf>, %16, %cst_20 [1] : vector<4x10xf32> to vector<4xf32>
    %18 = vector.shape_cast %17 : vector<4xf32> to vector<4x1xf32>
    %19 = vector.broadcast %18 : vector<4x1xf32> to vector<4x10xf32>
    %20 = arith.subf %16, %19 : vector<4x10xf32>
    %21 = math.exp %20 : vector<4x10xf32>
    %cst_21 = arith.constant dense<0.000000e+00> : vector<4xf32>
    %22 = vector.multi_reduction <add>, %21, %cst_21 [1] : vector<4x10xf32> to vector<4xf32>
    %23 = vector.shape_cast %22 : vector<4xf32> to vector<4x1xf32>
    %24 = vector.broadcast %23 : vector<4x1xf32> to vector<4x10xf32>
    %25 = arith.divf %21, %24 : vector<4x10xf32>
    %c0_22 = arith.constant 0 : index
    %c0_23 = arith.constant 0 : index
    %c0_24 = arith.constant 0 : index
    %26 = vector.load %arg9[%c0_22, %c0_23, %c0_24] : memref<1x4x10xf32, #tpu.memory_space<vmem>>, vector<1x4x10xf32>
    %27 = vector.shape_cast %26 : vector<1x4x10xf32> to vector<4x10xf32>
    %28 = vector.shape_cast %25 : vector<4x10xf32> to vector<1x4x10xf32>
    tpu.vector_store %arg9[%c0_22, %c0_23, %c0_24], %28 {strides = array<i32>} : memref<1x4x10xf32, #tpu.memory_space<vmem>>, vector<1x4x10xf32>,
    return
  }
  func.func @transform_0(%arg0: i32) -> (i32, i32, i32) {
    %c0_i32 = arith.constant 0 : i32
    %c0_i32_0 = arith.constant 0 : i32
    %c0_i32_1 = arith.constant 0 : i32
    return %arg0, %c0_i32, %c0_i32_0 : i32, i32, i32
  }
  func.func @transform_1(%arg0: i32) -> (i32, i32) {
    %c0_i32 = arith.constant 0 : i32
    %c0_i32_0 = arith.constant 0 : i32
    %c0_i32_1 = arith.constant 0 : i32
    return %c0_i32, %c0_i32_0 : i32, i32
  }
  func.func @transform_2(%arg0: i32) -> (i32, i32) {
    %c0_i32 = arith.constant 0 : i32
    %c0_i32_0 = arith.constant 0 : i32
    %c0_i32_1 = arith.constant 0 : i32
    return %c0_i32, %c0_i32_0 : i32, i32
  }
  func.func @transform_3(%arg0: i32) -> (i32, i32) {
    %c0_i32 = arith.constant 0 : i32
    %c0_i32_0 = arith.constant 0 : i32
    %c0_i32_1 = arith.constant 0 : i32
    return %c0_i32, %c0_i32_0 : i32, i32
  }
  func.func @transform_4(%arg0: i32) -> (i32, i32) {
    %c0_i32 = arith.constant 0 : i32
    %c0_i32_0 = arith.constant 0 : i32
    %c0_i32_1 = arith.constant 0 : i32
    return %c0_i32, %c0_i32_0 : i32, i32
  }
  func.func @transform_5(%arg0: i32) -> (i32, i32) {
    %c0_i32 = arith.constant 0 : i32
    %c0_i32_0 = arith.constant 0 : i32
    %c0_i32_1 = arith.constant 0 : i32
    return %c0_i32, %c0_i32_0 : i32, i32
  }
  func.func @transform_6(%arg0: i32) -> (i32, i32) {
    %c0_i32 = arith.constant 0 : i32
    %c0_i32_0 = arith.constant 0 : i32
    %c0_i32_1 = arith.constant 0 : i32
    return %c0_i32, %c0_i32_0 : i32, i32
  }
  func.func @transform_7(%arg0: i32) -> (i32, i32) {
    %c0_i32 = arith.constant 0 : i32
    %c0_i32_0 = arith.constant 0 : i32
    %c0_i32_1 = arith.constant 0 : i32
    return %c0_i32, %c0_i32_0 : i32, i32
  }
  func.func @transform_8(%arg0: i32) -> (i32, i32, i32) {
    %c0_i32 = arith.constant 0 : i32
    %c0_i32_0 = arith.constant 0 : i32
    %c0_i32_1 = arith.constant 0 : i32
    return %arg0, %c0_i32, %c0_i32_0 : i32, i32, i32
  }
}

</mosaic_0001>

<llo_original>
// kernel: _forward_impl.1
$region0: #{_forward_impl.1}
  #allocation0 [shape = 'u32[]', space=smem, size = 0x4, offset = 0x4, fixed_abs, tag = 'smem constant byte address 0x4 - core index']
  #allocation1 [shape = 'u32[72,128]{1,0:T(1,128)}', space=vmem, size = 0x9000, scoped, tag = 'internal scratch']
  %s0 = inlined_call_operand.vmem [shape: f32[8,280,1120], index: 0, kind: input, shape index: {}]
  %s1 = inlined_call_operand.vmem [shape: f32[1120,28], index: 1, kind: input, shape index: {}]
  %s2 = inlined_call_operand.vmem [shape: f32[112,1120], index: 2, kind: input, shape index: {}]
  %s3 = inlined_call_operand.vmem [shape: f32[28,280], index: 3, kind: input, shape index: {}]
  %s4 = inlined_call_operand.vmem [shape: f32[112,280], index: 4, kind: input, shape index: {}]
  %s5 = inlined_call_operand.vmem [shape: f32[280,10], index: 5, kind: input, shape index: {}]
  %s6 = inlined_call_operand.vmem [shape: f32[4,112], index: 6, kind: input, shape index: {}]
  %s7 = inlined_call_operand.vmem [shape: f32[1,10], index: 7, kind: input, shape index: {}]
  %s8 = inlined_call_operand.hbm [shape: f32[2,4,10], index: 8, kind: output, shape index: {}]
  %s9 = sld [smem:[#allocation0]]
  $region65: #{_forward_impl.1} parent=0
    _
  %s11 = ssub.s32 1, %s9
  %s12 = scalar_select 0, %s11, %s9
  $region1: #{_forward_impl.1} parent=0
    #allocation2 [shape = 'u8[4096]{0}', space=vmem, size = 0x1000, scoped, tag = 'output window, operand 0']
    #allocation3 [shape = 's32[2]{0}', space=sflag, size = 0x8, scoped, tag = 'scoped memory for _forward_impl.1']
    %13 = vsyncpa [#allocation3], 0
    %s14 = scalar_lea.sflag [#allocation3], 1
    %15 = vsyncpa %s14, 0
    loop: start=0, step=1, limit=4
    $region2: #{_forward_impl.1} parent=1 // loop_pre_header
      _
    $region3: #{_forward_impl.1} parent=1 // loop_header
      %s17 = sphi 0, %s21
      %p18 = scmp.ge.s32.totalorder %s17, 4
      %s27 = sphi 0, %s29
      %s30 = sphi 0, %s27
      %s31 = sphi 0, %s30
      %s47 = sphi 0, %s31
      %s51 = sphi 0, %s51
      %s53 = sphi 0, %s51
      %s54 = sphi 0, %s53
      %s68 = sphi 0, %s54
      %s72 = sphi 0, %s72
      %s74 = sphi 0, %s72
      %s75 = sphi 0, %s74
      %s89 = sphi 0, %s75
      %s93 = sphi 0, %s93
      %s95 = sphi 0, %s93
      %s96 = sphi 0, %s95
      %s110 = sphi 0, %s96
      %s114 = sphi 0, %s114
      %s116 = sphi 0, %s114
      %s117 = sphi 0, %s116
      %s131 = sphi 0, %s117
      %s135 = sphi 0, %s135
      %s137 = sphi 0, %s135
      %s138 = sphi 0, %s137
      %s152 = sphi 0, %s138
      %s156 = sphi 0, %s156
      %s158 = sphi 0, %s156
      %s159 = sphi 0, %s158
      %s173 = sphi 0, %s159
      %s177 = sphi 0, %s177
      %s179 = sphi 0, %s177
      %s180 = sphi 0, %s179
      %s194 = sphi 0, %s180
      %s200 = sphi 0, %s202
      %s203 = sphi 0, %s200
      %s204 = sphi 0, %s203
      %s220 = sphi 0, %s204
    $region4: #{_forward_impl.1} parent=1 // loop_header_branch
      %20 = sbr.rel (%p18) target = $region8
    $region5: #{_forward_impl.1} parent=1 // loop_body
      %s22 = ssub.s32 %s17, 1
      %s23 = ssub.s32 %s17, 2
      %s24 = sadd.s32 %s17, 1
      %s25 = ssub.s32 %s17, %s24
      %p26 = scmp.eq.s32.totalorder %s25, 0
      %s28 = sadd.s32 %s27, 1
      %s29 = scalar_select %p26, %s27, %s28
      %p32 = pneg %p26
      %p33 = scmp.eq.s32.totalorder %s17, 1
      %p34 = por %p32, %p33
      %p35 = scmp.ne.s32.totalorder %s27, %s30
      %p36 = scmp.eq.s32.totalorder %s17, 0
      %p37 = por %p35, %p36
      %p38 = scmp.ne.s32.totalorder %s27, %s30
      %p39 = scmp.eq.s32.totalorder %s22, 1
      %p40 = por %p38, %p39
      %p41 = scmp.ne.s32.totalorder %s30, %s31
      %p42 = scmp.eq.s32.totalorder %s22, 0
      %p43 = por %p41, %p42
      %p44 = scmp.ne.s32.totalorder %s30, %s31
      %p45 = scmp.eq.s32.totalorder %s23, 1
      %p46 = por %p44, %p45
      %p48 = scmp.ne.s32.totalorder %s31, %s47
      %p49 = scmp.eq.s32.totalorder %s23, 0
      %p50 = por %p48, %p49
      %s52 = sadd.s32 %s51, 1
      %p55 = scmp.eq.s32.totalorder %s17, 1
      %p56 = scmp.ne.s32.totalorder %s51, %s53
      %p57 = scmp.eq.s32.totalorder %s17, 0
      %p58 = por %p56, %p57
      %p59 = scmp.ne.s32.totalorder %s51, %s53
      %p60 = scmp.eq.s32.totalorder %s22, 1
      %p61 = por %p59, %p60
      %p62 = scmp.ne.s32.totalorder %s53, %s54
      %p63 = scmp.eq.s32.totalorder %s22, 0
      %p64 = por %p62, %p63
      %p65 = scmp.ne.s32.totalorder %s53, %s54
      %p66 = scmp.eq.s32.totalorder %s23, 1
      %p67 = por %p65, %p66
      %p69 = scmp.ne.s32.totalorder %s54, %s68
      %p70 = scmp.eq.s32.totalorder %s23, 0
      %p71 = por %p69, %p70
      %s73 = sadd.s32 %s72, 1
      %p76 = scmp.eq.s32.totalorder %s17, 1
      %p77 = scmp.ne.s32.totalorder %s72, %s74
      %p78 = scmp.eq.s32.totalorder %s17, 0
      %p79 = por %p77, %p78
      %p80 = scmp.ne.s32.totalorder %s72, %s74
      %p81 = scmp.eq.s32.totalorder %s22, 1
      %p82 = por %p80, %p81
      %p83 = scmp.ne.s32.totalorder %s74, %s75
      %p84 = scmp.eq.s32.totalorder %s22, 0
      %p85 = por %p83, %p84
      %p86 = scmp.ne.s32.totalorder %s74, %s75
      %p87 = scmp.eq.s32.totalorder %s23, 1
      %p88 = por %p86, %p87
      %p90 = scmp.ne.s32.totalorder %s75, %s89
      %p91 = scmp.eq.s32.totalorder %s23, 0
      %p92 = por %p90, %p91
      %s94 = sadd.s32 %s93, 1
      %p97 = scmp.eq.s32.totalorder %s17, 1
      %p98 = scmp.ne.s32.totalorder %s93, %s95
      %p99 = scmp.eq.s32.totalorder %s17, 0
      %p100 = por %p98, %p99
      %p101 = scmp.ne.s32.totalorder %s93, %s95
      %p102 = scmp.eq.s32.totalorder %s22, 1
      %p103 = por %p101, %p102
      %p104 = scmp.ne.s32.totalorder %s95, %s96
      %p105 = scmp.eq.s32.totalorder %s22, 0
      %p106 = por %p104, %p105
      %p107 = scmp.ne.s32.totalorder %s95, %s96
      %p108 = scmp.eq.s32.totalorder %s23, 1
      %p109 = por %p107, %p108
      %p111 = scmp.ne.s32.totalorder %s96, %s110
      %p112 = scmp.eq.s32.totalorder %s23, 0
      %p113 = por %p111, %p112
      %s115 = sadd.s32 %s114, 1
      %p118 = scmp.eq.s32.totalorder %s17, 1
      %p119 = scmp.ne.s32.totalorder %s114, %s116
      %p120 = scmp.eq.s32.totalorder %s17, 0
      %p121 = por %p119, %p120
      %p122 = scmp.ne.s32.totalorder %s114, %s116
      %p123 = scmp.eq.s32.totalorder %s22, 1
      %p124 = por %p122, %p123
      %p125 = scmp.ne.s32.totalorder %s116, %s117
      %p126 = scmp.eq.s32.totalorder %s22, 0
      %p127 = por %p125, %p126
      %p128 = scmp.ne.s32.totalorder %s116, %s117
      %p129 = scmp.eq.s32.totalorder %s23, 1
      %p130 = por %p128, %p129
      %p132 = scmp.ne.s32.totalorder %s117, %s131
      %p133 = scmp.eq.s32.totalorder %s23, 0
      %p134 = por %p132, %p133
      %s136 = sadd.s32 %s135, 1
      %p139 = scmp.eq.s32.totalorder %s17, 1
      %p140 = scmp.ne.s32.totalorder %s135, %s137
      %p141 = scmp.eq.s32.totalorder %s17, 0
      %p142 = por %p140, %p141
      %p143 = scmp.ne.s32.totalorder %s135, %s137
      %p144 = scmp.eq.s32.totalorder %s22, 1
      %p145 = por %p143, %p144
      %p146 = scmp.ne.s32.totalorder %s137, %s138
      %p147 = scmp.eq.s32.totalorder %s22, 0
      %p148 = por %p146, %p147
      %p149 = scmp.ne.s32.totalorder %s137, %s138
      %p150 = scmp.eq.s32.totalorder %s23, 1
      %p151 = por %p149, %p150
      %p153 = scmp.ne.s32.totalorder %s138, %s152
      %p154 = scmp.eq.s32.totalorder %s23, 0
      %p155 = por %p153, %p154
      %s157 = sadd.s32 %s156, 1
      %p160 = scmp.eq.s32.totalorder %s17, 1
      %p161 = scmp.ne.s32.totalorder %s156, %s158
      %p162 = scmp.eq.s32.totalorder %s17, 0
      %p163 = por %p161, %p162
      %p164 = scmp.ne.s32.totalorder %s156, %s158
      %p165 = scmp.eq.s32.totalorder %s22, 1
      %p166 = por %p164, %p165
      %p167 = scmp.ne.s32.totalorder %s158, %s159
      %p168 = scmp.eq.s32.totalorder %s22, 0
      %p169 = por %p167, %p168
      %p170 = scmp.ne.s32.totalorder %s158, %s159
      %p171 = scmp.eq.s32.totalorder %s23, 1
      %p172 = por %p170, %p171
      %p174 = scmp.ne.s32.totalorder %s159, %s173
      %p175 = scmp.eq.s32.totalorder %s23, 0
      %p176 = por %p174, %p175
      %s178 = sadd.s32 %s177, 1
      %p181 = scmp.eq.s32.totalorder %s17, 1
      %p182 = scmp.ne.s32.totalorder %s177, %s179
      %p183 = scmp.eq.s32.totalorder %s17, 0
      %p184 = por %p182, %p183
      %p185 = scmp.ne.s32.totalorder %s177, %s179
      %p186 = scmp.eq.s32.totalorder %s22, 1
      %p187 = por %p185, %p186
      %p188 = scmp.ne.s32.totalorder %s179, %s180
      %p189 = scmp.eq.s32.totalorder %s22, 0
      %p190 = por %p188, %p189
      %p191 = scmp.ne.s32.totalorder %s179, %s180
      %p192 = scmp.eq.s32.totalorder %s23, 1
      %p193 = por %p191, %p192
      %p195 = scmp.ne.s32.totalorder %s180, %s194
      %p196 = scmp.eq.s32.totalorder %s23, 0
      %p197 = por %p195, %p196
      %s198 = ssub.s32 %s17, %s24
      %p199 = scmp.eq.s32.totalorder %s198, 0
      %s201 = sadd.s32 %s200, 1
      %s202 = scalar_select %p199, %s200, %s201
      %p205 = pneg %p199
      %p206 = scmp.eq.s32.totalorder %s17, 1
      %p207 = por %p205, %p206
      %p208 = scmp.ne.s32.totalorder %s200, %s203
      %p209 = scmp.eq.s32.totalorder %s17, 0
      %p210 = por %p208, %p209
      %p211 = scmp.ne.s32.totalorder %s200, %s203
      %p212 = scmp.eq.s32.totalorder %s22, 1
      %p213 = por %p211, %p212
      %p214 = scmp.ne.s32.totalorder %s203, %s204
      %p215 = scmp.eq.s32.totalorder %s22, 0
      %p216 = por %p214, %p215
      %p217 = scmp.ne.s32.totalorder %s203, %s204
      %p218 = scmp.eq.s32.totalorder %s23, 1
      %p219 = por %p217, %p218
      %p221 = scmp.ne.s32.totalorder %s204, %s220
      %p222 = scmp.eq.s32.totalorder %s23, 0
      %p223 = por %p221, %p222
      %p224 = scmp.le.s32.totalorder 1, %s17
      %p225 = scmp.lt.s32.totalorder %s17, 3
      %p226 = pnand %p224, %p225
      %p227 = pneg %p226
      // Predicated region
      $region9: #{_forward_impl.1} parent=5 // pred_check
        _
      $region10: #{_forward_impl.1} parent=5 // pred_check_branch
        %229 = sbr.rel (%p226) target = $region12
      $region11: #{_forward_impl.1} parent=5 // pred_region
        %s230 = ssub.s32 %s17, 1
        // Predicated region
        $region13: #{_forward_impl.1} parent=11 // pred_check
          %p231 = pneg %p64
        $region14: #{_forward_impl.1} parent=11 // pred_check_branch
          %233 = sbr.rel (%p231) target = $region16
        $region15: #{_forward_impl.1} parent=11 // pred_region
          _
        $region16: #{_forward_impl.1} parent=11 // pred_fallthru
          _
        // Predicated region
        $region17: #{_forward_impl.1} parent=11 // pred_check
          %p234 = pneg %p85
        $region18: #{_forward_impl.1} parent=11 // pred_check_branch
          %236 = sbr.rel (%p234) target = $region20
        $region19: #{_forward_impl.1} parent=11 // pred_region
          _
        $region20: #{_forward_impl.1} parent=11 // pred_fallthru
          _
        // Predicated region
        $region21: #{_forward_impl.1} parent=11 // pred_check
          %p237 = pneg %p106
        $region22: #{_forward_impl.1} parent=11 // pred_check_branch
          %239 = sbr.rel (%p237) target = $region24
        $region23: #{_forward_impl.1} parent=11 // pred_region
          _
        $region24: #{_forward_impl.1} parent=11 // pred_fallthru
          _
        // Predicated region
        $region25: #{_forward_impl.1} parent=11 // pred_check
          %p240 = pneg %p127
        $region26: #{_forward_impl.1} parent=11 // pred_check_branch
          %242 = sbr.rel (%p240) target = $region28
        $region27: #{_forward_impl.1} parent=11 // pred_region
          _
        $region28: #{_forward_impl.1} parent=11 // pred_fallthru
          _
        // Predicated region
        $region29: #{_forward_impl.1} parent=11 // pred_check
          %p243 = pneg %p148
        $region30: #{_forward_impl.1} parent=11 // pred_check_branch
          %245 = sbr.rel (%p243) target = $region32
        $region31: #{_forward_impl.1} parent=11 // pred_region
          _
        $region32: #{_forward_impl.1} parent=11 // pred_fallthru
          _
        // Predicated region
        $region33: #{_forward_impl.1} parent=11 // pred_check
          %p246 = pneg %p169
        $region34: #{_forward_impl.1} parent=11 // pred_check_branch
          %248 = sbr.rel (%p246) target = $region36
        $region35: #{_forward_impl.1} parent=11 // pred_region
          _
        $region36: #{_forward_impl.1} parent=11 // pred_fallthru
          _
        // Predicated region
        $region37: #{_forward_impl.1} parent=11 // pred_check
          %p249 = pneg %p190
        $region38: #{_forward_impl.1} parent=11 // pred_check_branch
          %251 = sbr.rel (%p249) target = $region40
        $region39: #{_forward_impl.1} parent=11 // pred_region
          _
        $region40: #{_forward_impl.1} parent=11 // pred_fallthru
          _
      $region12: #{_forward_impl.1} parent=5 // pred_fallthru
        _
      %p252 = scmp.lt.s32.totalorder %s17, 2
      // Predicated region
      $region41: #{_forward_impl.1} parent=5 // pred_check
        %p253 = pneg %p252
      $region42: #{_forward_impl.1} parent=5 // pred_check_branch
        %255 = sbr.rel (%p253) target = $region44
      $region43: #{_forward_impl.1} parent=5 // pred_region
        // Predicated region
        $region45: #{_forward_impl.1} parent=43 // pred_check
          %p256 = pneg %p37
        $region46: #{_forward_impl.1} parent=43 // pred_check_branch
          %258 = sbr.rel (%p256) target = $region48
        $region47: #{_forward_impl.1} parent=43 // pred_region
          %s259 = smul.u32 4, %s17
          %p260 = scmp.lt.s32.totalorder %s259, 7
          %s261 = scalar_select %p260, %s259, 7
          %s262 = smul.addr %s261, 315
          %s263 = smul.addr %s262, 8
          %s264 = scalar_lea.vmem %s0, %s263
          %s265 = smul.u32 4, %s17
        $region48: #{_forward_impl.1} parent=43 // pred_fallthru
          _
      $region44: #{_forward_impl.1} parent=5 // pred_fallthru
        _
      %p266 = scmp.le.s32.totalorder 1, %s17
      %p267 = scmp.lt.s32.totalorder %s17, 3
      %p268 = pnand %p266, %p267
      %p269 = pneg %p268
      // Predicated region
      $region49: #{_forward_impl.1} parent=5 // pred_check
        _
      $region50: #{_forward_impl.1} parent=5 // pred_check_branch
        %271 = sbr.rel (%p268) target = $region52
      $region51: #{_forward_impl.1} parent=5 // pred_region
        %s272 = ssub.s32 %s17, 1
        %s273 = smul.u32 4, %s22
        %p274 = scmp.lt.s32.totalorder %s273, 7
        %s275 = scalar_select %p274, %s273, 7
        %s276 = smul.addr %s275, 315
        %s277 = smul.addr %s276, 8
        %s278 = scalar_lea.vmem %s0, %s277
        %p279 = pneg %p43
        %p280 = pneg %p40
        %p281 = pneg %p64
        %p282 = pneg %p61
        %p283 = pneg %p85
        %p284 = pneg %p82
        %p285 = pneg %p106
        %p286 = pneg %p103
        %p287 = pneg %p127
        %p288 = pneg %p124
        %p289 = pneg %p148
        %p290 = pneg %p145
        %p291 = pneg %p169
        %p292 = pneg %p166
        %p293 = pneg %p190
        %p294 = pneg %p187
        %p295 = pneg %p216
        %p296 = pneg %p213
        %s297 = sand.u32 %s203, 1
        %s298 = scalar_lea.sflag [#allocation3], %s297
        %s299 = sand.u32 %s203, 1
        %s300 = smul.addr %s299, 4
        %s301 = scalar_lea.vmem [#allocation2], %s300
        %s302 = smul.u32 4, %s22
        %p303 = scmp.lt.s32.totalorder %s302, 7
        %s304 = scalar_select %p303, %s302, 7
        %s305 = smul.addr %s304, 315
        %s306 = smul.addr %s305, 8
        %s307 = scalar_lea.vmem %s0, %s306
        %s308 = smul.u32 4, %s22
        %v309 = vld [vmem:[%s307] sm:$0xff]
        %v310 = vld [vmem:[%s307 + $0x8] sm:$0xff]
        %v311 = vld [vmem:[%s307 + $0x10] sm:$0xff]
        %v312 = vld [vmem:[%s307 + $0x18] sm:$0xff]
        %v313 = vld [vmem:[%s307 + $0x20] sm:$0xff]
        %v314 = vld [vmem:[%s307 + $0x28] sm:$0xff]
        %v315 = vld [vmem:[%s307 + $0x30] sm:$0xff]
        %v316 = vld [vmem:[%s307 + $0x38] sm:$0xff]
        %v317 = vld [vmem:[%s307 + $0x40] sm:$0xff]
        %v318 = vld [vmem:[%s307 + $0x48] sm:$0xff]
        %v319 = vld [vmem:[%s307 + $0x50] sm:$0xff]
        %v320 = vld [vmem:[%s307 + $0x58] sm:$0xff]
        %v321 = vld [vmem:[%s307 + $0x60] sm:$0xff]
        %v322 = vld [vmem:[%s307 + $0x68] sm:$0xff]
        %v323 = vld [vmem:[%s307 + $0x70] sm:$0xff]
        %v324 = vld [vmem:[%s307 + $0x78] sm:$0xff]
        %v325 = vld [vmem:[%s307 + $0x80] sm:$0xff]
        %v326 = vld [vmem:[%s307 + $0x88] sm:$0xff]
        %v327 = vld [vmem:[%s307 + $0x90] sm:$0xff]
        %v328 = vld [vmem:[%s307 + $0x98] sm:$0xff]
        %v329 = vld [vmem:[%s307 + $0xa0] sm:$0xff]
        %v330 = vld [vmem:[%s307 + $0xa8] sm:$0xff]
        %v331 = vld [vmem:[%s307 + $0xb0] sm:$0xff]
        %v332 = vld [vmem:[%s307 + $0xb8] sm:$0xff]
        %v333 = vld [vmem:[%s307 + $0xc0] sm:$0xff]
        %v334 = vld [vmem:[%s307 + $0xc8] sm:$0xff]
        %v335 = vld [vmem:[%s307 + $0xd0] sm:$0xff]
        %v336 = vld [vmem:[%s307 + $0xd8] sm:$0xff]
        %v337 = vld [vmem:[%s307 + $0xe0] sm:$0xff]
        %v338 = vld [vmem:[%s307 + $0xe8] sm:$0xff]
        %v339 = vld [vmem:[%s307 + $0xf0] sm:$0xff]
        %v340 = vld [vmem:[%s307 + $0xf8] sm:$0xff]
        %v341 = vld [vmem:[%s307 + $0x100] sm:$0xff]
        %v342 = vld [vmem:[%s307 + $0x108] sm:$0xff]
        %v343 = vld [vmem:[%s307 + $0x110] sm:$0xff]
        %v344 = vld [vmem:[%s307 + $0x118] sm:$0xff]
        %v345 = vld [vmem:[%s307 + $0x120] sm:$0xff]
        %v346 = vld [vmem:[%s307 + $0x128] sm:$0xff]
        %v347 = vld [vmem:[%s307 + $0x130] sm:$0xff]
        %v348 = vld [vmem:[%s307 + $0x138] sm:$0xff]
        %v349 = vld [vmem:[%s307 + $0x140] sm:$0xff]
        %v350 = vld [vmem:[%s307 + $0x148] sm:$0xff]
        %v351 = vld [vmem:[%s307 + $0x150] sm:$0xff]
        %v352 = vld [vmem:[%s307 + $0x158] sm:$0xff]
        %v353 = vld [vmem:[%s307 + $0x160] sm:$0xff]
        %v354 = vld [vmem:[%s307 + $0x168] sm:$0xff]
        %v355 = vld [vmem:[%s307 + $0x170] sm:$0xff]
        %v356 = vld [vmem:[%s307 + $0x178] sm:$0xff]
        %v357 = vld [vmem:[%s307 + $0x180] sm:$0xff]
        %v358 = vld [vmem:[%s307 + $0x188] sm:$0xff]
        %v359 = vld [vmem:[%s307 + $0x190] sm:$0xff]
        %v360 = vld [vmem:[%s307 + $0x198] sm:$0xff]
        %v361 = vld [vmem:[%s307 + $0x1a0] sm:$0xff]
        %v362 = vld [vmem:[%s307 + $0x1a8] sm:$0xff]
        %v363 = vld [vmem:[%s307 + $0x1b0] sm:$0xff]
        %v364 = vld [vmem:[%s307 + $0x1b8] sm:$0xff]
        %v365 = vld [vmem:[%s307 + $0x1c0] sm:$0xff]
        %v366 = vld [vmem:[%s307 + $0x1c8] sm:$0xff]
        %v367 = vld [vmem:[%s307 + $0x1d0] sm:$0xff]
        %v368 = vld [vmem:[%s307 + $0x1d8] sm:$0xff]
        %v369 = vld [vmem:[%s307 + $0x1e0] sm:$0xff]
        %v370 = vld [vmem:[%s307 + $0x1e8] sm:$0xff]
        %v371 = vld [vmem:[%s307 + $0x1f0] sm:$0xff]
        %v372 = vld [vmem:[%s307 + $0x1f8] sm:$0xff]
        %v373 = vld [vmem:[%s307 + $0x200] sm:$0xff]
        %v374 = vld [vmem:[%s307 + $0x208] sm:$0xff]
        %v375 = vld [vmem:[%s307 + $0x210] sm:$0xff]
        %v376 = vld [vmem:[%s307 + $0x218] sm:$0xff]
        %v377 = vld [vmem:[%s307 + $0x220] sm:$0xff]
        %v378 = vld [vmem:[%s307 + $0x228] sm:$0xff]
        %v379 = vld [vmem:[%s307 + $0x230] sm:$0xff]
        %v380 = vld [vmem:[%s307 + $0x238] sm:$0xff]
        %v381 = vld [vmem:[%s307 + $0x240] sm:$0xff]
        %v382 = vld [vmem:[%s307 + $0x248] sm:$0xff]
        %v383 = vld [vmem:[%s307 + $0x250] sm:$0xff]
        %v384 = vld [vmem:[%s307 + $0x258] sm:$0xff]
        %v385 = vld [vmem:[%s307 + $0x260] sm:$0xff]
        %v386 = vld [vmem:[%s307 + $0x268] sm:$0xff]
        %v387 = vld [vmem:[%s307 + $0x270] sm:$0xff]
        %v388 = vld [vmem:[%s307 + $0x278] sm:$0xff]
        %v389 = vld [vmem:[%s307 + $0x280] sm:$0xff]
        %v390 = vld [vmem:[%s307 + $0x288] sm:$0xff]
        %v391 = vld [vmem:[%s307 + $0x290] sm:$0xff]
        %v392 = vld [vmem:[%s307 + $0x298] sm:$0xff]
        %v393 = vld [vmem:[%s307 + $0x2a0] sm:$0xff]
        %v394 = vld [vmem:[%s307 + $0x2a8] sm:$0xff]
        %v395 = vld [vmem:[%s307 + $0x2b0] sm:$0xff]
        %v396 = vld [vmem:[%s307 + $0x2b8] sm:$0xff]
        %v397 = vld [vmem:[%s307 + $0x2c0] sm:$0xff]
        %v398 = vld [vmem:[%s307 + $0x2c8] sm:$0xff]
        %v399 = vld [vmem:[%s307 + $0x2d0] sm:$0xff]
        %v400 = vld [vmem:[%s307 + $0x2d8] sm:$0xff]
        %v401 = vld [vmem:[%s307 + $0x2e0] sm:$0xff]
        %v402 = vld [vmem:[%s307 + $0x2e8] sm:$0xff]
        %v403 = vld [vmem:[%s307 + $0x2f0] sm:$0xff]
        %v404 = vld [vmem:[%s307 + $0x2f8] sm:$0xff]
        %v405 = vld [vmem:[%s307 + $0x300] sm:$0xff]
        %v406 = vld [vmem:[%s307 + $0x308] sm:$0xff]
        %v407 = vld [vmem:[%s307 + $0x310] sm:$0xff]
        %v408 = vld [vmem:[%s307 + $0x318] sm:$0xff]
        %v409 = vld [vmem:[%s307 + $0x320] sm:$0xff]
        %v410 = vld [vmem:[%s307 + $0x328] sm:$0xff]
        %v411 = vld [vmem:[%s307 + $0x330] sm:$0xff]
        %v412 = vld [vmem:[%s307 + $0x338] sm:$0xff]
        %v413 = vld [vmem:[%s307 + $0x340] sm:$0xff]
        %v414 = vld [vmem:[%s307 + $0x348] sm:$0xff]
        %v415 = vld [vmem:[%s307 + $0x350] sm:$0xff]
        %v416 = vld [vmem:[%s307 + $0x358] sm:$0xff]
        %v417 = vld [vmem:[%s307 + $0x360] sm:$0xff]
        %v418 = vld [vmem:[%s307 + $0x368] sm:$0xff]
        %v419 = vld [vmem:[%s307 + $0x370] sm:$0xff]
        %v420 = vld [vmem:[%s307 + $0x378] sm:$0xff]
        %v421 = vld [vmem:[%s307 + $0x380] sm:$0xff]
        %v422 = vld [vmem:[%s307 + $0x388] sm:$0xff]
        %v423 = vld [vmem:[%s307 + $0x390] sm:$0xff]
        %v424 = vld [vmem:[%s307 + $0x398] sm:$0xff]
        %v425 = vld [vmem:[%s307 + $0x3a0] sm:$0xff]
        %v426 = vld [vmem:[%s307 + $0x3a8] sm:$0xff]
        %v427 = vld [vmem:[%s307 + $0x3b0] sm:$0xff]
        %v428 = vld [vmem:[%s307 + $0x3b8] sm:$0xff]
        %v429 = vld [vmem:[%s307 + $0x3c0] sm:$0xff]
        %v430 = vld [vmem:[%s307 + $0x3c8] sm:$0xff]
        %v431 = vld [vmem:[%s307 + $0x3d0] sm:$0xff]
        %v432 = vld [vmem:[%s307 + $0x3d8] sm:$0xff]
        %v433 = vld [vmem:[%s307 + $0x3e0] sm:$0xff]
        %v434 = vld [vmem:[%s307 + $0x3e8] sm:$0xff]
        %v435 = vld [vmem:[%s307 + $0x3f0] sm:$0xff]
        %v436 = vld [vmem:[%s307 + $0x3f8] sm:$0xff]
        %v437 = vld [vmem:[%s307 + $0x400] sm:$0xff]
        %v438 = vld [vmem:[%s307 + $0x408] sm:$0xff]
        %v439 = vld [vmem:[%s307 + $0x410] sm:$0xff]
        %v440 = vld [vmem:[%s307 + $0x418] sm:$0xff]
        %v441 = vld [vmem:[%s307 + $0x420] sm:$0xff]
        %v442 = vld [vmem:[%s307 + $0x428] sm:$0xff]
        %v443 = vld [vmem:[%s307 + $0x430] sm:$0xff]
        %v444 = vld [vmem:[%s307 + $0x438] sm:$0xff]
        %v445 = vld [vmem:[%s307 + $0x440] sm:$0xff]
        %v446 = vld [vmem:[%s307 + $0x448] sm:$0xff]
        %v447 = vld [vmem:[%s307 + $0x450] sm:$0xff]
        %v448 = vld [vmem:[%s307 + $0x458] sm:$0xff]
        %v449 = vld [vmem:[%s307 + $0x460] sm:$0xff]
        %v450 = vld [vmem:[%s307 + $0x468] sm:$0xff]
        %v451 = vld [vmem:[%s307 + $0x470] sm:$0xff]
        %v452 = vld [vmem:[%s307 + $0x478] sm:$0xff]
        %v453 = vld [vmem:[%s307 + $0x480] sm:$0xff]
        %v454 = vld [vmem:[%s307 + $0x488] sm:$0xff]
        %v455 = vld [vmem:[%s307 + $0x490] sm:$0xff]
        %v456 = vld [vmem:[%s307 + $0x498] sm:$0xff]
        %v457 = vld [vmem:[%s307 + $0x4a0] sm:$0xff]
        %v458 = vld [vmem:[%s307 + $0x4a8] sm:$0xff]
        %v459 = vld [vmem:[%s307 + $0x4b0] sm:$0xff]
        %v460 = vld [vmem:[%s307 + $0x4b8] sm:$0xff]
        %v461 = vld [vmem:[%s307 + $0x4c0] sm:$0xff]
        %v462 = vld [vmem:[%s307 + $0x4c8] sm:$0xff]
        %v463 = vld [vmem:[%s307 + $0x4d0] sm:$0xff]
        %v464 = vld [vmem:[%s307 + $0x4d8] sm:$0xff]
        %v465 = vld [vmem:[%s307 + $0x4e0] sm:$0xff]
        %v466 = vld [vmem:[%s307 + $0x4e8] sm:$0xff]
        %v467 = vld [vmem:[%s307 + $0x4f0] sm:$0xff]
        %v468 = vld [vmem:[%s307 + $0x4f8] sm:$0xff]
        %v469 = vld [vmem:[%s307 + $0x500] sm:$0xff]
        %v470 = vld [vmem:[%s307 + $0x508] sm:$0xff]
        %v471 = vld [vmem:[%s307 + $0x510] sm:$0xff]
        %v472 = vld [vmem:[%s307 + $0x518] sm:$0xff]
        %v473 = vld [vmem:[%s307 + $0x520] sm:$0xff]
        %v474 = vld [vmem:[%s307 + $0x528] sm:$0xff]
        %v475 = vld [vmem:[%s307 + $0x530] sm:$0xff]
        %v476 = vld [vmem:[%s307 + $0x538] sm:$0xff]
        %v477 = vld [vmem:[%s307 + $0x540] sm:$0xff]
        %v478 = vld [vmem:[%s307 + $0x548] sm:$0xff]
        %v479 = vld [vmem:[%s307 + $0x550] sm:$0xff]
        %v480 = vld [vmem:[%s307 + $0x558] sm:$0xff]
        %v481 = vld [vmem:[%s307 + $0x560] sm:$0xff]
        %v482 = vld [vmem:[%s307 + $0x568] sm:$0xff]
        %v483 = vld [vmem:[%s307 + $0x570] sm:$0xff]
        %v484 = vld [vmem:[%s307 + $0x578] sm:$0xff]
        %v485 = vld [vmem:[%s307 + $0x580] sm:$0xff]
        %v486 = vld [vmem:[%s307 + $0x588] sm:$0xff]
        %v487 = vld [vmem:[%s307 + $0x590] sm:$0xff]
        %v488 = vld [vmem:[%s307 + $0x598] sm:$0xff]
        %v489 = vld [vmem:[%s307 + $0x5a0] sm:$0xff]
        %v490 = vld [vmem:[%s307 + $0x5a8] sm:$0xff]
        %v491 = vld [vmem:[%s307 + $0x5b0] sm:$0xff]
        %v492 = vld [vmem:[%s307 + $0x5b8] sm:$0xff]
        %v493 = vld [vmem:[%s307 + $0x5c0] sm:$0xff]
        %v494 = vld [vmem:[%s307 + $0x5c8] sm:$0xff]
        %v495 = vld [vmem:[%s307 + $0x5d0] sm:$0xff]
        %v496 = vld [vmem:[%s307 + $0x5d8] sm:$0xff]
        %v497 = vld [vmem:[%s307 + $0x5e0] sm:$0xff]
        %v498 = vld [vmem:[%s307 + $0x5e8] sm:$0xff]
        %v499 = vld [vmem:[%s307 + $0x5f0] sm:$0xff]
        %v500 = vld [vmem:[%s307 + $0x5f8] sm:$0xff]
        %v501 = vld [vmem:[%s307 + $0x600] sm:$0xff]
        %v502 = vld [vmem:[%s307 + $0x608] sm:$0xff]
        %v503 = vld [vmem:[%s307 + $0x610] sm:$0xff]
        %v504 = vld [vmem:[%s307 + $0x618] sm:$0xff]
        %v505 = vld [vmem:[%s307 + $0x620] sm:$0xff]
        %v506 = vld [vmem:[%s307 + $0x628] sm:$0xff]
        %v507 = vld [vmem:[%s307 + $0x630] sm:$0xff]
        %v508 = vld [vmem:[%s307 + $0x638] sm:$0xff]
        %v509 = vld [vmem:[%s307 + $0x640] sm:$0xff]
        %v510 = vld [vmem:[%s307 + $0x648] sm:$0xff]
        %v511 = vld [vmem:[%s307 + $0x650] sm:$0xff]
        %v512 = vld [vmem:[%s307 + $0x658] sm:$0xff]
        %v513 = vld [vmem:[%s307 + $0x660] sm:$0xff]
        %v514 = vld [vmem:[%s307 + $0x668] sm:$0xff]
        %v515 = vld [vmem:[%s307 + $0x670] sm:$0xff]
        %v516 = vld [vmem:[%s307 + $0x678] sm:$0xff]
        %v517 = vld [vmem:[%s307 + $0x680] sm:$0xff]
        %v518 = vld [vmem:[%s307 + $0x688] sm:$0xff]
        %v519 = vld [vmem:[%s307 + $0x690] sm:$0xff]
        %v520 = vld [vmem:[%s307 + $0x698] sm:$0xff]
        %v521 = vld [vmem:[%s307 + $0x6a0] sm:$0xff]
        %v522 = vld [vmem:[%s307 + $0x6a8] sm:$0xff]
        %v523 = vld [vmem:[%s307 + $0x6b0] sm:$0xff]
        %v524 = vld [vmem:[%s307 + $0x6b8] sm:$0xff]
        %v525 = vld [vmem:[%s307 + $0x6c0] sm:$0xff]
        %v526 = vld [vmem:[%s307 + $0x6c8] sm:$0xff]
        %v527 = vld [vmem:[%s307 + $0x6d0] sm:$0xff]
        %v528 = vld [vmem:[%s307 + $0x6d8] sm:$0xff]
        %v529 = vld [vmem:[%s307 + $0x6e0] sm:$0xff]
        %v530 = vld [vmem:[%s307 + $0x6e8] sm:$0xff]
        %v531 = vld [vmem:[%s307 + $0x6f0] sm:$0xff]
        %v532 = vld [vmem:[%s307 + $0x6f8] sm:$0xff]
        %v533 = vld [vmem:[%s307 + $0x700] sm:$0xff]
        %v534 = vld [vmem:[%s307 + $0x708] sm:$0xff]
        %v535 = vld [vmem:[%s307 + $0x710] sm:$0xff]
        %v536 = vld [vmem:[%s307 + $0x718] sm:$0xff]
        %v537 = vld [vmem:[%s307 + $0x720] sm:$0xff]
        %v538 = vld [vmem:[%s307 + $0x728] sm:$0xff]
        %v539 = vld [vmem:[%s307 + $0x730] sm:$0xff]
        %v540 = vld [vmem:[%s307 + $0x738] sm:$0xff]
        %v541 = vld [vmem:[%s307 + $0x740] sm:$0xff]
        %v542 = vld [vmem:[%s307 + $0x748] sm:$0xff]
        %v543 = vld [vmem:[%s307 + $0x750] sm:$0xff]
        %v544 = vld [vmem:[%s307 + $0x758] sm:$0xff]
        %v545 = vld [vmem:[%s307 + $0x760] sm:$0xff]
        %v546 = vld [vmem:[%s307 + $0x768] sm:$0xff]
        %v547 = vld [vmem:[%s307 + $0x770] sm:$0xff]
        %v548 = vld [vmem:[%s307 + $0x778] sm:$0xff]
        %v549 = vld [vmem:[%s307 + $0x780] sm:$0xff]
        %v550 = vld [vmem:[%s307 + $0x788] sm:$0xff]
        %v551 = vld [vmem:[%s307 + $0x790] sm:$0xff]
        %v552 = vld [vmem:[%s307 + $0x798] sm:$0xff]
        %v553 = vld [vmem:[%s307 + $0x7a0] sm:$0xff]
        %v554 = vld [vmem:[%s307 + $0x7a8] sm:$0xff]
        %v555 = vld [vmem:[%s307 + $0x7b0] sm:$0xff]
        %v556 = vld [vmem:[%s307 + $0x7b8] sm:$0xff]
        %v557 = vld [vmem:[%s307 + $0x7c0] sm:$0xff]
        %v558 = vld [vmem:[%s307 + $0x7c8] sm:$0xff]
        %v559 = vld [vmem:[%s307 + $0x7d0] sm:$0xff]
        %v560 = vld [vmem:[%s307 + $0x7d8] sm:$0xff]
        %v561 = vld [vmem:[%s307 + $0x7e0] sm:$0xff]
        %v562 = vld [vmem:[%s307 + $0x7e8] sm:$0xff]
        %v563 = vld [vmem:[%s307 + $0x7f0] sm:$0xff]
        %v564 = vld [vmem:[%s307 + $0x7f8] sm:$0xff]
        %v565 = vld [vmem:[%s307 + $0x800] sm:$0xff]
        %v566 = vld [vmem:[%s307 + $0x808] sm:$0xff]
        %v567 = vld [vmem:[%s307 + $0x810] sm:$0xff]
        %v568 = vld [vmem:[%s307 + $0x818] sm:$0xff]
        %v569 = vld [vmem:[%s307 + $0x820] sm:$0xff]
        %v570 = vld [vmem:[%s307 + $0x828] sm:$0xff]
        %v571 = vld [vmem:[%s307 + $0x830] sm:$0xff]
        %v572 = vld [vmem:[%s307 + $0x838] sm:$0xff]
        %v573 = vld [vmem:[%s307 + $0x840] sm:$0xff]
        %v574 = vld [vmem:[%s307 + $0x848] sm:$0xff]
        %v575 = vld [vmem:[%s307 + $0x850] sm:$0xff]
        %v576 = vld [vmem:[%s307 + $0x858] sm:$0xff]
        %v577 = vld [vmem:[%s307 + $0x860] sm:$0xff]
        %v578 = vld [vmem:[%s307 + $0x868] sm:$0xff]
        %v579 = vld [vmem:[%s307 + $0x870] sm:$0xff]
        %v580 = vld [vmem:[%s307 + $0x878] sm:$0xff]
        %v581 = vld [vmem:[%s307 + $0x880] sm:$0xff]
        %v582 = vld [vmem:[%s307 + $0x888] sm:$0xff]
        %v583 = vld [vmem:[%s307 + $0x890] sm:$0xff]
        %v584 = vld [vmem:[%s307 + $0x898] sm:$0xff]
        %v585 = vld [vmem:[%s307 + $0x8a0] sm:$0xff]
        %v586 = vld [vmem:[%s307 + $0x8a8] sm:$0xff]
        %v587 = vld [vmem:[%s307 + $0x8b0] sm:$0xff]
        %v588 = vld [vmem:[%s307 + $0x8b8] sm:$0xff]
        %v589 = vld [vmem:[%s307 + $0x8c0] sm:$0xff]
        %v590 = vld [vmem:[%s307 + $0x8c8] sm:$0xff]
        %v591 = vld [vmem:[%s307 + $0x8d0] sm:$0xff]
        %v592 = vld [vmem:[%s307 + $0x8d8] sm:$0xff]
        %v593 = vld [vmem:[%s307 + $0x8e0] sm:$0xff]
        %v594 = vld [vmem:[%s307 + $0x8e8] sm:$0xff]
        %v595 = vld [vmem:[%s307 + $0x8f0] sm:$0xff]
        %v596 = vld [vmem:[%s307 + $0x8f8] sm:$0xff]
        %v597 = vld [vmem:[%s307 + $0x900] sm:$0xff]
        %v598 = vld [vmem:[%s307 + $0x908] sm:$0xff]
        %v599 = vld [vmem:[%s307 + $0x910] sm:$0xff]
        %v600 = vld [vmem:[%s307 + $0x918] sm:$0xff]
        %v601 = vld [vmem:[%s307 + $0x920] sm:$0xff]
        %v602 = vld [vmem:[%s307 + $0x928] sm:$0xff]
        %v603 = vld [vmem:[%s307 + $0x930] sm:$0xff]
        %v604 = vld [vmem:[%s307 + $0x938] sm:$0xff]
        %v605 = vld [vmem:[%s307 + $0x940] sm:$0xff]
        %v606 = vld [vmem:[%s307 + $0x948] sm:$0xff]
        %v607 = vld [vmem:[%s307 + $0x950] sm:$0xff]
        %v608 = vld [vmem:[%s307 + $0x958] sm:$0xff]
        %v609 = vld [vmem:[%s307 + $0x960] sm:$0xff]
        %v610 = vld [vmem:[%s307 + $0x968] sm:$0xff]
        %v611 = vld [vmem:[%s307 + $0x970] sm:$0xff]
        %v612 = vld [vmem:[%s307 + $0x978] sm:$0xff]
        %v613 = vld [vmem:[%s307 + $0x980] sm:$0xff]
        %v614 = vld [vmem:[%s307 + $0x988] sm:$0xff]
        %v615 = vld [vmem:[%s307 + $0x990] sm:$0xff]
        %v616 = vld [vmem:[%s307 + $0x998] sm:$0xff]
        %v617 = vld [vmem:[%s307 + $0x9a0] sm:$0xff]
        %v618 = vld [vmem:[%s307 + $0x9a8] sm:$0xff]
        %v619 = vld [vmem:[%s307 + $0x9b0] sm:$0xff]
        %v620 = vld [vmem:[%s307 + $0x9b8] sm:$0xff]
        %v621 = vld [vmem:[%s307 + $0x9c0] sm:$0xff]
        %v622 = vld [vmem:[%s307 + $0x9c8] sm:$0xff]
        %v623 = vld [vmem:[%s307 + $0x9d0] sm:$0xff]
        %v624 = vld [vmem:[%s307 + $0x9d8] sm:$0xff]
        %v625 = vld [vmem:[%s307 + $0x9e0] sm:$0xff]
        %v626 = vld [vmem:[%s307 + $0x9e8] sm:$0xff]
        %v627 = vld [vmem:[%s307 + $0x9f0] sm:$0xff]
        %v628 = vld [vmem:[%s307 + $0x9f8] sm:$0xff]
        %v629 = vld [vmem:[%s307 + $0xa00] sm:$0xff]
        %v630 = vld [vmem:[%s307 + $0xa08] sm:$0xff]
        %v631 = vld [vmem:[%s307 + $0xa10] sm:$0xff]
        %v632 = vld [vmem:[%s307 + $0xa18] sm:$0xff]
        %v633 = vld [vmem:[%s307 + $0xa20] sm:$0xff]
        %v634 = vld [vmem:[%s307 + $0xa28] sm:$0xff]
        %v635 = vld [vmem:[%s307 + $0xa30] sm:$0xff]
        %v636 = vld [vmem:[%s307 + $0xa38] sm:$0xff]
        %v637 = vld [vmem:[%s307 + $0xa40] sm:$0xff]
        %v638 = vld [vmem:[%s307 + $0xa48] sm:$0xff]
        %v639 = vld [vmem:[%s307 + $0xa50] sm:$0xff]
        %v640 = vld [vmem:[%s307 + $0xa58] sm:$0xff]
        %v641 = vld [vmem:[%s307 + $0xa60] sm:$0xff]
        %v642 = vld [vmem:[%s307 + $0xa68] sm:$0xff]
        %v643 = vld [vmem:[%s307 + $0xa70] sm:$0xff]
        %v644 = vld [vmem:[%s307 + $0xa78] sm:$0xff]
        %v645 = vld [vmem:[%s307 + $0xa80] sm:$0xff]
        %v646 = vld [vmem:[%s307 + $0xa88] sm:$0xff]
        %v647 = vld [vmem:[%s307 + $0xa90] sm:$0xff]
        %v648 = vld [vmem:[%s307 + $0xa98] sm:$0xff]
        %v649 = vld [vmem:[%s307 + $0xaa0] sm:$0xff]
        %v650 = vld [vmem:[%s307 + $0xaa8] sm:$0xff]
        %v651 = vld [vmem:[%s307 + $0xab0] sm:$0xff]
        %v652 = vld [vmem:[%s307 + $0xab8] sm:$0xff]
        %v653 = vld [vmem:[%s307 + $0xac0] sm:$0xff]
        %v654 = vld [vmem:[%s307 + $0xac8] sm:$0xff]
        %v655 = vld [vmem:[%s307 + $0xad0] sm:$0xff]
        %v656 = vld [vmem:[%s307 + $0xad8] sm:$0xff]
        %v657 = vld [vmem:[%s307 + $0xae0] sm:$0xff]
        %v658 = vld [vmem:[%s307 + $0xae8] sm:$0xff]
        %v659 = vld [vmem:[%s307 + $0xaf0] sm:$0xff]
        %v660 = vld [vmem:[%s307 + $0xaf8] sm:$0xff]
        %v661 = vld [vmem:[%s307 + $0xb00] sm:$0xff]
        %v662 = vld [vmem:[%s307 + $0xb08] sm:$0xff]
        %v663 = vld [vmem:[%s307 + $0xb10] sm:$0xff]
        %v664 = vld [vmem:[%s307 + $0xb18] sm:$0xff]
        %v665 = vld [vmem:[%s307 + $0xb20] sm:$0xff]
        %v666 = vld [vmem:[%s307 + $0xb28] sm:$0xff]
        %v667 = vld [vmem:[%s307 + $0xb30] sm:$0xff]
        %v668 = vld [vmem:[%s307 + $0xb38] sm:$0xff]
        %v669 = vld [vmem:[%s307 + $0xb40] sm:$0xff]
        %v670 = vld [vmem:[%s307 + $0xb48] sm:$0xff]
        %v671 = vld [vmem:[%s307 + $0xb50] sm:$0xff]
        %v672 = vld [vmem:[%s307 + $0xb58] sm:$0xff]
        %v673 = vld [vmem:[%s307 + $0xb60] sm:$0xff]
        %v674 = vld [vmem:[%s307 + $0xb68] sm:$0xff]
        %v675 = vld [vmem:[%s307 + $0xb70] sm:$0xff]
        %v676 = vld [vmem:[%s307 + $0xb78] sm:$0xff]
        %v677 = vld [vmem:[%s307 + $0xb80] sm:$0xff]
        %v678 = vld [vmem:[%s307 + $0xb88] sm:$0xff]
        %v679 = vld [vmem:[%s307 + $0xb90] sm:$0xff]
        %v680 = vld [vmem:[%s307 + $0xb98] sm:$0xff]
        %v681 = vld [vmem:[%s307 + $0xba0] sm:$0xff]
        %v682 = vld [vmem:[%s307 + $0xba8] sm:$0xff]
        %v683 = vld [vmem:[%s307 + $0xbb0] sm:$0xff]
        %v684 = vld [vmem:[%s307 + $0xbb8] sm:$0xff]
        %v685 = vld [vmem:[%s307 + $0xbc0] sm:$0xff]
        %v686 = vld [vmem:[%s307 + $0xbc8] sm:$0xff]
        %v687 = vld [vmem:[%s307 + $0xbd0] sm:$0xff]
        %v688 = vld [vmem:[%s307 + $0xbd8] sm:$0xff]
        %v689 = vld [vmem:[%s307 + $0xbe0] sm:$0xff]
        %v690 = vld [vmem:[%s307 + $0xbe8] sm:$0xff]
        %v691 = vld [vmem:[%s307 + $0xbf0] sm:$0xff]
        %v692 = vld [vmem:[%s307 + $0xbf8] sm:$0xff]
        %v693 = vld [vmem:[%s307 + $0xc00] sm:$0xff]
        %v694 = vld [vmem:[%s307 + $0xc08] sm:$0xff]
        %v695 = vld [vmem:[%s307 + $0xc10] sm:$0xff]
        %v696 = vld [vmem:[%s307 + $0xc18] sm:$0xff]
        %v697 = vld [vmem:[%s307 + $0xc20] sm:$0xff]
        %v698 = vld [vmem:[%s307 + $0xc28] sm:$0xff]
        %v699 = vld [vmem:[%s307 + $0xc30] sm:$0xff]
        %v700 = vld [vmem:[%s307 + $0xc38] sm:$0xff]
        %v701 = vld [vmem:[%s307 + $0xc40] sm:$0xff]
        %v702 = vld [vmem:[%s307 + $0xc48] sm:$0xff]
        %v703 = vld [vmem:[%s307 + $0xc50] sm:$0xff]
        %v704 = vld [vmem:[%s307 + $0xc58] sm:$0xff]
        %v705 = vld [vmem:[%s307 + $0xc60] sm:$0xff]
        %v706 = vld [vmem:[%s307 + $0xc68] sm:$0xff]
        %v707 = vld [vmem:[%s307 + $0xc70] sm:$0xff]
        %v708 = vld [vmem:[%s307 + $0xc78] sm:$0xff]
        %v709 = vld [vmem:[%s307 + $0xc80] sm:$0xff]
        %v710 = vld [vmem:[%s307 + $0xc88] sm:$0xff]
        %v711 = vld [vmem:[%s307 + $0xc90] sm:$0xff]
        %v712 = vld [vmem:[%s307 + $0xc98] sm:$0xff]
        %v713 = vld [vmem:[%s307 + $0xca0] sm:$0xff]
        %v714 = vld [vmem:[%s307 + $0xca8] sm:$0xff]
        %v715 = vld [vmem:[%s307 + $0xcb0] sm:$0xff]
        %v716 = vld [vmem:[%s307 + $0xcb8] sm:$0xff]
        %v717 = vld [vmem:[%s307 + $0xcc0] sm:$0xff]
        %v718 = vld [vmem:[%s307 + $0xcc8] sm:$0xff]
        %v719 = vld [vmem:[%s307 + $0xcd0] sm:$0xff]
        %v720 = vld [vmem:[%s307 + $0xcd8] sm:$0xff]
        %v721 = vld [vmem:[%s307 + $0xce0] sm:$0xff]
        %v722 = vld [vmem:[%s307 + $0xce8] sm:$0xff]
        %v723 = vld [vmem:[%s307 + $0xcf0] sm:$0xff]
        %v724 = vld [vmem:[%s307 + $0xcf8] sm:$0xff]
        %v725 = vld [vmem:[%s307 + $0xd00] sm:$0xff]
        %v726 = vld [vmem:[%s307 + $0xd08] sm:$0xff]
        %v727 = vld [vmem:[%s307 + $0xd10] sm:$0xff]
        %v728 = vld [vmem:[%s307 + $0xd18] sm:$0xff]
        %v729 = vld [vmem:[%s307 + $0xd20] sm:$0xff]
        %v730 = vld [vmem:[%s307 + $0xd28] sm:$0xff]
        %v731 = vld [vmem:[%s307 + $0xd30] sm:$0xff]
        %v732 = vld [vmem:[%s307 + $0xd38] sm:$0xff]
        %v733 = vld [vmem:[%s307 + $0xd40] sm:$0xff]
        %v734 = vld [vmem:[%s307 + $0xd48] sm:$0xff]
        %v735 = vld [vmem:[%s307 + $0xd50] sm:$0xff]
        %v736 = vld [vmem:[%s307 + $0xd58] sm:$0xff]
        %v737 = vld [vmem:[%s307 + $0xd60] sm:$0xff]
        %v738 = vld [vmem:[%s307 + $0xd68] sm:$0xff]
        %v739 = vld [vmem:[%s307 + $0xd70] sm:$0xff]
        %v740 = vld [vmem:[%s307 + $0xd78] sm:$0xff]
        %v741 = vld [vmem:[%s307 + $0xd80] sm:$0xff]
        %v742 = vld [vmem:[%s307 + $0xd88] sm:$0xff]
        %v743 = vld [vmem:[%s307 + $0xd90] sm:$0xff]
        %v744 = vld [vmem:[%s307 + $0xd98] sm:$0xff]
        %v745 = vld [vmem:[%s307 + $0xda0] sm:$0xff]
        %v746 = vld [vmem:[%s307 + $0xda8] sm:$0xff]
        %v747 = vld [vmem:[%s307 + $0xdb0] sm:$0xff]
        %v748 = vld [vmem:[%s307 + $0xdb8] sm:$0xff]
        %v749 = vld [vmem:[%s307 + $0xdc0] sm:$0xff]
        %v750 = vld [vmem:[%s307 + $0xdc8] sm:$0xff]
        %v751 = vld [vmem:[%s307 + $0xdd0] sm:$0xff]
        %v752 = vld [vmem:[%s307 + $0xdd8] sm:$0xff]
        %v753 = vld [vmem:[%s307 + $0xde0] sm:$0xff]
        %v754 = vld [vmem:[%s307 + $0xde8] sm:$0xff]
        %v755 = vld [vmem:[%s307 + $0xdf0] sm:$0xff]
        %v756 = vld [vmem:[%s307 + $0xdf8] sm:$0xff]
        %v757 = vld [vmem:[%s307 + $0xe00] sm:$0xff]
        %v758 = vld [vmem:[%s307 + $0xe08] sm:$0xff]
        %v759 = vld [vmem:[%s307 + $0xe10] sm:$0xff]
        %v760 = vld [vmem:[%s307 + $0xe18] sm:$0xff]
        %v761 = vld [vmem:[%s307 + $0xe20] sm:$0xff]
        %v762 = vld [vmem:[%s307 + $0xe28] sm:$0xff]
        %v763 = vld [vmem:[%s307 + $0xe30] sm:$0xff]
        %v764 = vld [vmem:[%s307 + $0xe38] sm:$0xff]
        %v765 = vld [vmem:[%s307 + $0xe40] sm:$0xff]
        %v766 = vld [vmem:[%s307 + $0xe48] sm:$0xff]
        %v767 = vld [vmem:[%s307 + $0xe50] sm:$0xff]
        %v768 = vld [vmem:[%s307 + $0xe58] sm:$0xff]
        %v769 = vld [vmem:[%s307 + $0xe60] sm:$0xff]
        %v770 = vld [vmem:[%s307 + $0xe68] sm:$0xff]
        %v771 = vld [vmem:[%s307 + $0xe70] sm:$0xff]
        %v772 = vld [vmem:[%s307 + $0xe78] sm:$0xff]
        %v773 = vld [vmem:[%s307 + $0xe80] sm:$0xff]
        %v774 = vld [vmem:[%s307 + $0xe88] sm:$0xff]
        %v775 = vld [vmem:[%s307 + $0xe90] sm:$0xff]
        %v776 = vld [vmem:[%s307 + $0xe98] sm:$0xff]
        %v777 = vld [vmem:[%s307 + $0xea0] sm:$0xff]
        %v778 = vld [vmem:[%s307 + $0xea8] sm:$0xff]
        %v779 = vld [vmem:[%s307 + $0xeb0] sm:$0xff]
        %v780 = vld [vmem:[%s307 + $0xeb8] sm:$0xff]
        %v781 = vld [vmem:[%s307 + $0xec0] sm:$0xff]
        %v782 = vld [vmem:[%s307 + $0xec8] sm:$0xff]
        %v783 = vld [vmem:[%s307 + $0xed0] sm:$0xff]
        %v784 = vld [vmem:[%s307 + $0xed8] sm:$0xff]
        %v785 = vld [vmem:[%s307 + $0xee0] sm:$0xff]
        %v786 = vld [vmem:[%s307 + $0xee8] sm:$0xff]
        %v787 = vld [vmem:[%s307 + $0xef0] sm:$0xff]
        %v788 = vld [vmem:[%s307 + $0xef8] sm:$0xff]
        %v789 = vld [vmem:[%s307 + $0xf00] sm:$0xff]
        %v790 = vld [vmem:[%s307 + $0xf08] sm:$0xff]
        %v791 = vld [vmem:[%s307 + $0xf10] sm:$0xff]
        %v792 = vld [vmem:[%s307 + $0xf18] sm:$0xff]
        %v793 = vld [vmem:[%s307 + $0xf20] sm:$0xff]
        %v794 = vld [vmem:[%s307 + $0xf28] sm:$0xff]
        %v795 = vld [vmem:[%s307 + $0xf30] sm:$0xff]
        %v796 = vld [vmem:[%s307 + $0xf38] sm:$0xff]
        %v797 = vld [vmem:[%s307 + $0xf40] sm:$0xff]
        %v798 = vld [vmem:[%s307 + $0xf48] sm:$0xff]
        %v799 = vld [vmem:[%s307 + $0xf50] sm:$0xff]
        %v800 = vld [vmem:[%s307 + $0xf58] sm:$0xff]
        %v801 = vld [vmem:[%s307 + $0xf60] sm:$0xff]
        %v802 = vld [vmem:[%s307 + $0xf68] sm:$0xff]
        %v803 = vld [vmem:[%s307 + $0xf70] sm:$0xff]
        %v804 = vld [vmem:[%s307 + $0xf78] sm:$0xff]
        %v805 = vld [vmem:[%s307 + $0xf80] sm:$0xff]
        %v806 = vld [vmem:[%s307 + $0xf88] sm:$0xff]
        %v807 = vld [vmem:[%s307 + $0xf90] sm:$0xff]
        %v808 = vld [vmem:[%s307 + $0xf98] sm:$0xff]
        %v809 = vld [vmem:[%s307 + $0xfa0] sm:$0xff]
        %v810 = vld [vmem:[%s307 + $0xfa8] sm:$0xff]
        %v811 = vld [vmem:[%s307 + $0xfb0] sm:$0xff]
        %v812 = vld [vmem:[%s307 + $0xfb8] sm:$0xff]
        %v813 = vld [vmem:[%s307 + $0xfc0] sm:$0xff]
        %v814 = vld [vmem:[%s307 + $0xfc8] sm:$0xff]
        %v815 = vld [vmem:[%s307 + $0xfd0] sm:$0xff]
        %v816 = vld [vmem:[%s307 + $0xfd8] sm:$0xff]
        %v817 = vld [vmem:[%s307 + $0xfe0] sm:$0xff]
        %v818 = vld [vmem:[%s307 + $0xfe8] sm:$0xff]
        %v819 = vld [vmem:[%s307 + $0xff0] sm:$0xff]
        %v820 = vld [vmem:[%s307 + $0xff8] sm:$0xff]
        %v821 = vld [vmem:[%s307 + $0x1000] sm:$0xff]
        %v822 = vld [vmem:[%s307 + $0x1008] sm:$0xff]
        %v823 = vld [vmem:[%s307 + $0x1010] sm:$0xff]
        %v824 = vld [vmem:[%s307 + $0x1018] sm:$0xff]
        %v825 = vld [vmem:[%s307 + $0x1020] sm:$0xff]
        %v826 = vld [vmem:[%s307 + $0x1028] sm:$0xff]
        %v827 = vld [vmem:[%s307 + $0x1030] sm:$0xff]
        %v828 = vld [vmem:[%s307 + $0x1038] sm:$0xff]
        %v829 = vld [vmem:[%s307 + $0x1040] sm:$0xff]
        %v830 = vld [vmem:[%s307 + $0x1048] sm:$0xff]
        %v831 = vld [vmem:[%s307 + $0x1050] sm:$0xff]
        %v832 = vld [vmem:[%s307 + $0x1058] sm:$0xff]
        %v833 = vld [vmem:[%s307 + $0x1060] sm:$0xff]
        %v834 = vld [vmem:[%s307 + $0x1068] sm:$0xff]
        %v835 = vld [vmem:[%s307 + $0x1070] sm:$0xff]
        %v836 = vld [vmem:[%s307 + $0x1078] sm:$0xff]
        %v837 = vld [vmem:[%s307 + $0x1080] sm:$0xff]
        %v838 = vld [vmem:[%s307 + $0x1088] sm:$0xff]
        %v839 = vld [vmem:[%s307 + $0x1090] sm:$0xff]
        %v840 = vld [vmem:[%s307 + $0x1098] sm:$0xff]
        %v841 = vld [vmem:[%s307 + $0x10a0] sm:$0xff]
        %v842 = vld [vmem:[%s307 + $0x10a8] sm:$0xff]
        %v843 = vld [vmem:[%s307 + $0x10b0] sm:$0xff]
        %v844 = vld [vmem:[%s307 + $0x10b8] sm:$0xff]
        %v845 = vld [vmem:[%s307 + $0x10c0] sm:$0xff]
        %v846 = vld [vmem:[%s307 + $0x10c8] sm:$0xff]
        %v847 = vld [vmem:[%s307 + $0x10d0] sm:$0xff]
        %v848 = vld [vmem:[%s307 + $0x10d8] sm:$0xff]
        %v849 = vld [vmem:[%s307 + $0x10e0] sm:$0xff]
        %v850 = vld [vmem:[%s307 + $0x10e8] sm:$0xff]
        %v851 = vld [vmem:[%s307 + $0x10f0] sm:$0xff]
        %v852 = vld [vmem:[%s307 + $0x10f8] sm:$0xff]
        %v853 = vld [vmem:[%s307 + $0x1100] sm:$0xff]
        %v854 = vld [vmem:[%s307 + $0x1108] sm:$0xff]
        %v855 = vld [vmem:[%s307 + $0x1110] sm:$0xff]
        %v856 = vld [vmem:[%s307 + $0x1118] sm:$0xff]
        %v857 = vld [vmem:[%s307 + $0x1120] sm:$0xff]
        %v858 = vld [vmem:[%s307 + $0x1128] sm:$0xff]
        %v859 = vld [vmem:[%s307 + $0x1130] sm:$0xff]
        %v860 = vld [vmem:[%s307 + $0x1138] sm:$0xff]
        %v861 = vld [vmem:[%s307 + $0x1140] sm:$0xff]
        %v862 = vld [vmem:[%s307 + $0x1148] sm:$0xff]
        %v863 = vld [vmem:[%s307 + $0x1150] sm:$0xff]
        %v864 = vld [vmem:[%s307 + $0x1158] sm:$0xff]
        %v865 = vld [vmem:[%s307 + $0x1160] sm:$0xff]
        %v866 = vld [vmem:[%s307 + $0x1168] sm:$0xff]
        %v867 = vld [vmem:[%s307 + $0x1170] sm:$0xff]
        %v868 = vld [vmem:[%s307 + $0x1178] sm:$0xff]
        %v869 = vld [vmem:[%s307 + $0x1180] sm:$0xff]
        %v870 = vld [vmem:[%s307 + $0x1188] sm:$0xff]
        %v871 = vld [vmem:[%s307 + $0x1190] sm:$0xff]
        %v872 = vld [vmem:[%s307 + $0x1198] sm:$0xff]
        %v873 = vld [vmem:[%s307 + $0x11a0] sm:$0xff]
        %v874 = vld [vmem:[%s307 + $0x11a8] sm:$0xff]
        %v875 = vld [vmem:[%s307 + $0x11b0] sm:$0xff]
        %v876 = vld [vmem:[%s307 + $0x11b8] sm:$0xff]
        %v877 = vld [vmem:[%s307 + $0x11c0] sm:$0xff]
        %v878 = vld [vmem:[%s307 + $0x11c8] sm:$0xff]
        %v879 = vld [vmem:[%s307 + $0x11d0] sm:$0xff]
        %v880 = vld [vmem:[%s307 + $0x11d8] sm:$0xff]
        %v881 = vld [vmem:[%s307 + $0x11e0] sm:$0xff]
        %v882 = vld [vmem:[%s307 + $0x11e8] sm:$0xff]
        %v883 = vld [vmem:[%s307 + $0x11f0] sm:$0xff]
        %v884 = vld [vmem:[%s307 + $0x11f8] sm:$0xff]
        %v885 = vld [vmem:[%s307 + $0x1200] sm:$0xff]
        %v886 = vld [vmem:[%s307 + $0x1208] sm:$0xff]
        %v887 = vld [vmem:[%s307 + $0x1210] sm:$0xff]
        %v888 = vld [vmem:[%s307 + $0x1218] sm:$0xff]
        %v889 = vld [vmem:[%s307 + $0x1220] sm:$0xff]
        %v890 = vld [vmem:[%s307 + $0x1228] sm:$0xff]
        %v891 = vld [vmem:[%s307 + $0x1230] sm:$0xff]
        %v892 = vld [vmem:[%s307 + $0x1238] sm:$0xff]
        %v893 = vld [vmem:[%s307 + $0x1240] sm:$0xff]
        %v894 = vld [vmem:[%s307 + $0x1248] sm:$0xff]
        %v895 = vld [vmem:[%s307 + $0x1250] sm:$0xff]
        %v896 = vld [vmem:[%s307 + $0x1258] sm:$0xff]
        %v897 = vld [vmem:[%s307 + $0x1260] sm:$0xff]
        %v898 = vld [vmem:[%s307 + $0x1268] sm:$0xff]
        %v899 = vld [vmem:[%s307 + $0x1270] sm:$0xff]
        %v900 = vld [vmem:[%s307 + $0x1278] sm:$0xff]
        %v901 = vld [vmem:[%s307 + $0x1280] sm:$0xff]
        %v902 = vld [vmem:[%s307 + $0x1288] sm:$0xff]
        %v903 = vld [vmem:[%s307 + $0x1290] sm:$0xff]
        %v904 = vld [vmem:[%s307 + $0x1298] sm:$0xff]
        %v905 = vld [vmem:[%s307 + $0x12a0] sm:$0xff]
        %v906 = vld [vmem:[%s307 + $0x12a8] sm:$0xff]
        %v907 = vld [vmem:[%s307 + $0x12b0] sm:$0xff]
        %v908 = vld [vmem:[%s307 + $0x12b8] sm:$0xff]
        %v909 = vld [vmem:[%s307 + $0x12c0] sm:$0xff]
        %v910 = vld [vmem:[%s307 + $0x12c8] sm:$0xff]
        %v911 = vld [vmem:[%s307 + $0x12d0] sm:$0xff]
        %v912 = vld [vmem:[%s307 + $0x12d8] sm:$0xff]
        %v913 = vld [vmem:[%s307 + $0x12e0] sm:$0xff]
        %v914 = vld [vmem:[%s307 + $0x12e8] sm:$0xff]
        %v915 = vld [vmem:[%s307 + $0x12f0] sm:$0xff]
        %v916 = vld [vmem:[%s307 + $0x12f8] sm:$0xff]
        %v917 = vld [vmem:[%s307 + $0x1300] sm:$0xff]
        %v918 = vld [vmem:[%s307 + $0x1308] sm:$0xff]
        %v919 = vld [vmem:[%s307 + $0x1310] sm:$0xff]
        %v920 = vld [vmem:[%s307 + $0x1318] sm:$0xff]
        %v921 = vld [vmem:[%s307 + $0x1320] sm:$0xff]
        %v922 = vld [vmem:[%s307 + $0x1328] sm:$0xff]
        %v923 = vld [vmem:[%s307 + $0x1330] sm:$0xff]
        %v924 = vld [vmem:[%s307 + $0x1338] sm:$0xff]
        %v925 = vld [vmem:[%s307 + $0x1340] sm:$0xff]
        %v926 = vld [vmem:[%s307 + $0x1348] sm:$0xff]
        %v927 = vld [vmem:[%s307 + $0x1350] sm:$0xff]
        %v928 = vld [vmem:[%s307 + $0x1358] sm:$0xff]
        %v929 = vld [vmem:[%s307 + $0x1360] sm:$0xff]
        %v930 = vld [vmem:[%s307 + $0x1368] sm:$0xff]
        %v931 = vld [vmem:[%s307 + $0x1370] sm:$0xff]
        %v932 = vld [vmem:[%s307 + $0x1378] sm:$0xff]
        %v933 = vld [vmem:[%s307 + $0x1380] sm:$0xff]
        %v934 = vld [vmem:[%s307 + $0x1388] sm:$0xff]
        %v935 = vld [vmem:[%s307 + $0x1390] sm:$0xff]
        %v936 = vld [vmem:[%s307 + $0x1398] sm:$0xff]
        %v937 = vld [vmem:[%s307 + $0x13a0] sm:$0xff]
        %v938 = vld [vmem:[%s307 + $0x13a8] sm:$0xff]
        %v939 = vld [vmem:[%s307 + $0x13b0] sm:$0xff]
        %v940 = vld [vmem:[%s307 + $0x13b8] sm:$0xff]
        %v941 = vld [vmem:[%s307 + $0x13c0] sm:$0xff]
        %v942 = vld [vmem:[%s307 + $0x13c8] sm:$0xff]
        %v943 = vld [vmem:[%s307 + $0x13d0] sm:$0xff]
        %v944 = vld [vmem:[%s307 + $0x13d8] sm:$0xff]
        %v945 = vld [vmem:[%s307 + $0x13e0] sm:$0xff]
        %v946 = vld [vmem:[%s307 + $0x13e8] sm:$0xff]
        %v947 = vld [vmem:[%s307 + $0x13f0] sm:$0xff]
        %v948 = vld [vmem:[%s307 + $0x13f8] sm:$0xff]
        %v949 = vld [vmem:[%s307 + $0x1400] sm:$0xff]
        %v950 = vld [vmem:[%s307 + $0x1408] sm:$0xff]
        %v951 = vld [vmem:[%s307 + $0x1410] sm:$0xff]
        %v952 = vld [vmem:[%s307 + $0x1418] sm:$0xff]
        %v953 = vld [vmem:[%s307 + $0x1420] sm:$0xff]
        %v954 = vld [vmem:[%s307 + $0x1428] sm:$0xff]
        %v955 = vld [vmem:[%s307 + $0x1430] sm:$0xff]
        %v956 = vld [vmem:[%s307 + $0x1438] sm:$0xff]
        %v957 = vld [vmem:[%s307 + $0x1440] sm:$0xff]
        %v958 = vld [vmem:[%s307 + $0x1448] sm:$0xff]
        %v959 = vld [vmem:[%s307 + $0x1450] sm:$0xff]
        %v960 = vld [vmem:[%s307 + $0x1458] sm:$0xff]
        %v961 = vld [vmem:[%s307 + $0x1460] sm:$0xff]
        %v962 = vld [vmem:[%s307 + $0x1468] sm:$0xff]
        %v963 = vld [vmem:[%s307 + $0x1470] sm:$0xff]
        %v964 = vld [vmem:[%s307 + $0x1478] sm:$0xff]
        %v965 = vld [vmem:[%s307 + $0x1480] sm:$0xff]
        %v966 = vld [vmem:[%s307 + $0x1488] sm:$0xff]
        %v967 = vld [vmem:[%s307 + $0x1490] sm:$0xff]
        %v968 = vld [vmem:[%s307 + $0x1498] sm:$0xff]
        %v969 = vld [vmem:[%s307 + $0x14a0] sm:$0xff]
        %v970 = vld [vmem:[%s307 + $0x14a8] sm:$0xff]
        %v971 = vld [vmem:[%s307 + $0x14b0] sm:$0xff]
        %v972 = vld [vmem:[%s307 + $0x14b8] sm:$0xff]
        %v973 = vld [vmem:[%s307 + $0x14c0] sm:$0xff]
        %v974 = vld [vmem:[%s307 + $0x14c8] sm:$0xff]
        %v975 = vld [vmem:[%s307 + $0x14d0] sm:$0xff]
        %v976 = vld [vmem:[%s307 + $0x14d8] sm:$0xff]
        %v977 = vld [vmem:[%s307 + $0x14e0] sm:$0xff]
        %v978 = vld [vmem:[%s307 + $0x14e8] sm:$0xff]
        %v979 = vld [vmem:[%s307 + $0x14f0] sm:$0xff]
        %v980 = vld [vmem:[%s307 + $0x14f8] sm:$0xff]
        %v981 = vld [vmem:[%s307 + $0x1500] sm:$0xff]
        %v982 = vld [vmem:[%s307 + $0x1508] sm:$0xff]
        %v983 = vld [vmem:[%s307 + $0x1510] sm:$0xff]
        %v984 = vld [vmem:[%s307 + $0x1518] sm:$0xff]
        %v985 = vld [vmem:[%s307 + $0x1520] sm:$0xff]
        %v986 = vld [vmem:[%s307 + $0x1528] sm:$0xff]
        %v987 = vld [vmem:[%s307 + $0x1530] sm:$0xff]
        %v988 = vld [vmem:[%s307 + $0x1538] sm:$0xff]
        %v989 = vld [vmem:[%s307 + $0x1540] sm:$0xff]
        %v990 = vld [vmem:[%s307 + $0x1548] sm:$0xff]
        %v991 = vld [vmem:[%s307 + $0x1550] sm:$0xff]
        %v992 = vld [vmem:[%s307 + $0x1558] sm:$0xff]
        %v993 = vld [vmem:[%s307 + $0x1560] sm:$0xff]
        %v994 = vld [vmem:[%s307 + $0x1568] sm:$0xff]
        %v995 = vld [vmem:[%s307 + $0x1570] sm:$0xff]
        %v996 = vld [vmem:[%s307 + $0x1578] sm:$0xff]
        %v997 = vld [vmem:[%s307 + $0x1580] sm:$0xff]
        %v998 = vld [vmem:[%s307 + $0x1588] sm:$0xff]
        %v999 = vld [vmem:[%s307 + $0x1590] sm:$0xff]
        %v1000 = vld [vmem:[%s307 + $0x1598] sm:$0xff]
        %v1001 = vld [vmem:[%s307 + $0x15a0] sm:$0xff]
        %v1002 = vld [vmem:[%s307 + $0x15a8] sm:$0xff]
        %v1003 = vld [vmem:[%s307 + $0x15b0] sm:$0xff]
        %v1004 = vld [vmem:[%s307 + $0x15b8] sm:$0xff]
        %v1005 = vld [vmem:[%s307 + $0x15c0] sm:$0xff]
        %v1006 = vld [vmem:[%s307 + $0x15c8] sm:$0xff]
        %v1007 = vld [vmem:[%s307 + $0x15d0] sm:$0xff]
        %v1008 = vld [vmem:[%s307 + $0x15d8] sm:$0xff]
        %v1009 = vld [vmem:[%s307 + $0x15e0] sm:$0xff]
        %v1010 = vld [vmem:[%s307 + $0x15e8] sm:$0xff]
        %v1011 = vld [vmem:[%s307 + $0x15f0] sm:$0xff]
        %v1012 = vld [vmem:[%s307 + $0x15f8] sm:$0xff]
        %v1013 = vld [vmem:[%s307 + $0x1600] sm:$0xff]
        %v1014 = vld [vmem:[%s307 + $0x1608] sm:$0xff]
        %v1015 = vld [vmem:[%s307 + $0x1610] sm:$0xff]
        %v1016 = vld [vmem:[%s307 + $0x1618] sm:$0xff]
        %v1017 = vld [vmem:[%s307 + $0x1620] sm:$0xff]
        %v1018 = vld [vmem:[%s307 + $0x1628] sm:$0xff]
        %v1019 = vld [vmem:[%s307 + $0x1630] sm:$0xff]
        %v1020 = vld [vmem:[%s307 + $0x1638] sm:$0xff]
        %v1021 = vld [vmem:[%s307 + $0x1640] sm:$0xff]
        %v1022 = vld [vmem:[%s307 + $0x1648] sm:$0xff]
        %v1023 = vld [vmem:[%s307 + $0x1650] sm:$0xff]
        %v1024 = vld [vmem:[%s307 + $0x1658] sm:$0xff]
        %v1025 = vld [vmem:[%s307 + $0x1660] sm:$0xff]
        %v1026 = vld [vmem:[%s307 + $0x1668] sm:$0xff]
        %v1027 = vld [vmem:[%s307 + $0x1670] sm:$0xff]
        %v1028 = vld [vmem:[%s307 + $0x1678] sm:$0xff]
        %v1029 = vld [vmem:[%s307 + $0x1680] sm:$0xff]
        %v1030 = vld [vmem:[%s307 + $0x1688] sm:$0xff]
        %v1031 = vld [vmem:[%s307 + $0x1690] sm:$0xff]
        %v1032 = vld [vmem:[%s307 + $0x1698] sm:$0xff]
        %v1033 = vld [vmem:[%s307 + $0x16a0] sm:$0xff]
        %v1034 = vld [vmem:[%s307 + $0x16a8] sm:$0xff]
        %v1035 = vld [vmem:[%s307 + $0x16b0] sm:$0xff]
        %v1036 = vld [vmem:[%s307 + $0x16b8] sm:$0xff]
        %v1037 = vld [vmem:[%s307 + $0x16c0] sm:$0xff]
        %v1038 = vld [vmem:[%s307 + $0x16c8] sm:$0xff]
        %v1039 = vld [vmem:[%s307 + $0x16d0] sm:$0xff]
        %v1040 = vld [vmem:[%s307 + $0x16d8] sm:$0xff]
        %v1041 = vld [vmem:[%s307 + $0x16e0] sm:$0xff]
        %v1042 = vld [vmem:[%s307 + $0x16e8] sm:$0xff]
        %v1043 = vld [vmem:[%s307 + $0x16f0] sm:$0xff]
        %v1044 = vld [vmem:[%s307 + $0x16f8] sm:$0xff]
        %v1045 = vld [vmem:[%s307 + $0x1700] sm:$0xff]
        %v1046 = vld [vmem:[%s307 + $0x1708] sm:$0xff]
        %v1047 = vld [vmem:[%s307 + $0x1710] sm:$0xff]
        %v1048 = vld [vmem:[%s307 + $0x1718] sm:$0xff]
        %v1049 = vld [vmem:[%s307 + $0x1720] sm:$0xff]
        %v1050 = vld [vmem:[%s307 + $0x1728] sm:$0xff]
        %v1051 = vld [vmem:[%s307 + $0x1730] sm:$0xff]
        %v1052 = vld [vmem:[%s307 + $0x1738] sm:$0xff]
        %v1053 = vld [vmem:[%s307 + $0x1740] sm:$0xff]
        %v1054 = vld [vmem:[%s307 + $0x1748] sm:$0xff]
        %v1055 = vld [vmem:[%s307 + $0x1750] sm:$0xff]
        %v1056 = vld [vmem:[%s307 + $0x1758] sm:$0xff]
        %v1057 = vld [vmem:[%s307 + $0x1760] sm:$0xff]
        %v1058 = vld [vmem:[%s307 + $0x1768] sm:$0xff]
        %v1059 = vld [vmem:[%s307 + $0x1770] sm:$0xff]
        %v1060 = vld [vmem:[%s307 + $0x1778] sm:$0xff]
        %v1061 = vld [vmem:[%s307 + $0x1780] sm:$0xff]
        %v1062 = vld [vmem:[%s307 + $0x1788] sm:$0xff]
        %v1063 = vld [vmem:[%s307 + $0x1790] sm:$0xff]
        %v1064 = vld [vmem:[%s307 + $0x1798] sm:$0xff]
        %v1065 = vld [vmem:[%s307 + $0x17a0] sm:$0xff]
        %v1066 = vld [vmem:[%s307 + $0x17a8] sm:$0xff]
        %v1067 = vld [vmem:[%s307 + $0x17b0] sm:$0xff]
        %v1068 = vld [vmem:[%s307 + $0x17b8] sm:$0xff]
        %v1069 = vld [vmem:[%s307 + $0x17c0] sm:$0xff]
        %v1070 = vld [vmem:[%s307 + $0x17c8] sm:$0xff]
        %v1071 = vld [vmem:[%s307 + $0x17d0] sm:$0xff]
        %v1072 = vld [vmem:[%s307 + $0x17d8] sm:$0xff]
        %v1073 = vld [vmem:[%s307 + $0x17e0] sm:$0xff]
        %v1074 = vld [vmem:[%s307 + $0x17e8] sm:$0xff]
        %v1075 = vld [vmem:[%s307 + $0x17f0] sm:$0xff]
        %v1076 = vld [vmem:[%s307 + $0x17f8] sm:$0xff]
        %v1077 = vld [vmem:[%s307 + $0x1800] sm:$0xff]
        %v1078 = vld [vmem:[%s307 + $0x1808] sm:$0xff]
        %v1079 = vld [vmem:[%s307 + $0x1810] sm:$0xff]
        %v1080 = vld [vmem:[%s307 + $0x1818] sm:$0xff]
        %v1081 = vld [vmem:[%s307 + $0x1820] sm:$0xff]
        %v1082 = vld [vmem:[%s307 + $0x1828] sm:$0xff]
        %v1083 = vld [vmem:[%s307 + $0x1830] sm:$0xff]
        %v1084 = vld [vmem:[%s307 + $0x1838] sm:$0xff]
        %v1085 = vld [vmem:[%s307 + $0x1840] sm:$0xff]
        %v1086 = vld [vmem:[%s307 + $0x1848] sm:$0xff]
        %v1087 = vld [vmem:[%s307 + $0x1850] sm:$0xff]
        %v1088 = vld [vmem:[%s307 + $0x1858] sm:$0xff]
        %v1089 = vld [vmem:[%s307 + $0x1860] sm:$0xff]
        %v1090 = vld [vmem:[%s307 + $0x1868] sm:$0xff]
        %v1091 = vld [vmem:[%s307 + $0x1870] sm:$0xff]
        %v1092 = vld [vmem:[%s307 + $0x1878] sm:$0xff]
        %v1093 = vld [vmem:[%s307 + $0x1880] sm:$0xff]
        %v1094 = vld [vmem:[%s307 + $0x1888] sm:$0xff]
        %v1095 = vld [vmem:[%s307 + $0x1890] sm:$0xff]
        %v1096 = vld [vmem:[%s307 + $0x1898] sm:$0xff]
        %v1097 = vld [vmem:[%s307 + $0x18a0] sm:$0xff]
        %v1098 = vld [vmem:[%s307 + $0x18a8] sm:$0xff]
        %v1099 = vld [vmem:[%s307 + $0x18b0] sm:$0xff]
        %v1100 = vld [vmem:[%s307 + $0x18b8] sm:$0xff]
        %v1101 = vld [vmem:[%s307 + $0x18c0] sm:$0xff]
        %v1102 = vld [vmem:[%s307 + $0x18c8] sm:$0xff]
        %v1103 = vld [vmem:[%s307 + $0x18d0] sm:$0xff]
        %v1104 = vld [vmem:[%s307 + $0x18d8] sm:$0xff]
        %v1105 = vld [vmem:[%s307 + $0x18e0] sm:$0xff]
        %v1106 = vld [vmem:[%s307 + $0x18e8] sm:$0xff]
        %v1107 = vld [vmem:[%s307 + $0x18f0] sm:$0xff]
        %v1108 = vld [vmem:[%s307 + $0x18f8] sm:$0xff]
        %v1109 = vld [vmem:[%s307 + $0x1900] sm:$0xff]
        %v1110 = vld [vmem:[%s307 + $0x1908] sm:$0xff]
        %v1111 = vld [vmem:[%s307 + $0x1910] sm:$0xff]
        %v1112 = vld [vmem:[%s307 + $0x1918] sm:$0xff]
        %v1113 = vld [vmem:[%s307 + $0x1920] sm:$0xff]
        %v1114 = vld [vmem:[%s307 + $0x1928] sm:$0xff]
        %v1115 = vld [vmem:[%s307 + $0x1930] sm:$0xff]
        %v1116 = vld [vmem:[%s307 + $0x1938] sm:$0xff]
        %v1117 = vld [vmem:[%s307 + $0x1940] sm:$0xff]
        %v1118 = vld [vmem:[%s307 + $0x1948] sm:$0xff]
        %v1119 = vld [vmem:[%s307 + $0x1950] sm:$0xff]
        %v1120 = vld [vmem:[%s307 + $0x1958] sm:$0xff]
        %v1121 = vld [vmem:[%s307 + $0x1960] sm:$0xff]
        %v1122 = vld [vmem:[%s307 + $0x1968] sm:$0xff]
        %v1123 = vld [vmem:[%s307 + $0x1970] sm:$0xff]
        %v1124 = vld [vmem:[%s307 + $0x1978] sm:$0xff]
        %v1125 = vld [vmem:[%s307 + $0x1980] sm:$0xff]
        %v1126 = vld [vmem:[%s307 + $0x1988] sm:$0xff]
        %v1127 = vld [vmem:[%s307 + $0x1990] sm:$0xff]
        %v1128 = vld [vmem:[%s307 + $0x1998] sm:$0xff]
        %v1129 = vld [vmem:[%s307 + $0x19a0] sm:$0xff]
        %v1130 = vld [vmem:[%s307 + $0x19a8] sm:$0xff]
        %v1131 = vld [vmem:[%s307 + $0x19b0] sm:$0xff]
        %v1132 = vld [vmem:[%s307 + $0x19b8] sm:$0xff]
        %v1133 = vld [vmem:[%s307 + $0x19c0] sm:$0xff]
        %v1134 = vld [vmem:[%s307 + $0x19c8] sm:$0xff]
        %v1135 = vld [vmem:[%s307 + $0x19d0] sm:$0xff]
        %v1136 = vld [vmem:[%s307 + $0x19d8] sm:$0xff]
        %v1137 = vld [vmem:[%s307 + $0x19e0] sm:$0xff]
        %v1138 = vld [vmem:[%s307 + $0x19e8] sm:$0xff]
        %v1139 = vld [vmem:[%s307 + $0x19f0] sm:$0xff]
        %v1140 = vld [vmem:[%s307 + $0x19f8] sm:$0xff]
        %v1141 = vld [vmem:[%s307 + $0x1a00] sm:$0xff]
        %v1142 = vld [vmem:[%s307 + $0x1a08] sm:$0xff]
        %v1143 = vld [vmem:[%s307 + $0x1a10] sm:$0xff]
        %v1144 = vld [vmem:[%s307 + $0x1a18] sm:$0xff]
        %v1145 = vld [vmem:[%s307 + $0x1a20] sm:$0xff]
        %v1146 = vld [vmem:[%s307 + $0x1a28] sm:$0xff]
        %v1147 = vld [vmem:[%s307 + $0x1a30] sm:$0xff]
        %v1148 = vld [vmem:[%s307 + $0x1a38] sm:$0xff]
        %v1149 = vld [vmem:[%s307 + $0x1a40] sm:$0xff]
        %v1150 = vld [vmem:[%s307 + $0x1a48] sm:$0xff]
        %v1151 = vld [vmem:[%s307 + $0x1a50] sm:$0xff]
        %v1152 = vld [vmem:[%s307 + $0x1a58] sm:$0xff]
        %v1153 = vld [vmem:[%s307 + $0x1a60] sm:$0xff]
        %v1154 = vld [vmem:[%s307 + $0x1a68] sm:$0xff]
        %v1155 = vld [vmem:[%s307 + $0x1a70] sm:$0xff]
        %v1156 = vld [vmem:[%s307 + $0x1a78] sm:$0xff]
        %v1157 = vld [vmem:[%s307 + $0x1a80] sm:$0xff]
        %v1158 = vld [vmem:[%s307 + $0x1a88] sm:$0xff]
        %v1159 = vld [vmem:[%s307 + $0x1a90] sm:$0xff]
        %v1160 = vld [vmem:[%s307 + $0x1a98] sm:$0xff]
        %v1161 = vld [vmem:[%s307 + $0x1aa0] sm:$0xff]
        %v1162 = vld [vmem:[%s307 + $0x1aa8] sm:$0xff]
        %v1163 = vld [vmem:[%s307 + $0x1ab0] sm:$0xff]
        %v1164 = vld [vmem:[%s307 + $0x1ab8] sm:$0xff]
        %v1165 = vld [vmem:[%s307 + $0x1ac0] sm:$0xff]
        %v1166 = vld [vmem:[%s307 + $0x1ac8] sm:$0xff]
        %v1167 = vld [vmem:[%s307 + $0x1ad0] sm:$0xff]
        %v1168 = vld [vmem:[%s307 + $0x1ad8] sm:$0xff]
        %v1169 = vld [vmem:[%s307 + $0x1ae0] sm:$0xff]
        %v1170 = vld [vmem:[%s307 + $0x1ae8] sm:$0xff]
        %v1171 = vld [vmem:[%s307 + $0x1af0] sm:$0xff]
        %v1172 = vld [vmem:[%s307 + $0x1af8] sm:$0xff]
        %v1173 = vld [vmem:[%s307 + $0x1b00] sm:$0xff]
        %v1174 = vld [vmem:[%s307 + $0x1b08] sm:$0xff]
        %v1175 = vld [vmem:[%s307 + $0x1b10] sm:$0xff]
        %v1176 = vld [vmem:[%s307 + $0x1b18] sm:$0xff]
        %v1177 = vld [vmem:[%s307 + $0x1b20] sm:$0xff]
        %v1178 = vld [vmem:[%s307 + $0x1b28] sm:$0xff]
        %v1179 = vld [vmem:[%s307 + $0x1b30] sm:$0xff]
        %v1180 = vld [vmem:[%s307 + $0x1b38] sm:$0xff]
        %v1181 = vld [vmem:[%s307 + $0x1b40] sm:$0xff]
        %v1182 = vld [vmem:[%s307 + $0x1b48] sm:$0xff]
        %v1183 = vld [vmem:[%s307 + $0x1b50] sm:$0xff]
        %v1184 = vld [vmem:[%s307 + $0x1b58] sm:$0xff]
        %v1185 = vld [vmem:[%s307 + $0x1b60] sm:$0xff]
        %v1186 = vld [vmem:[%s307 + $0x1b68] sm:$0xff]
        %v1187 = vld [vmem:[%s307 + $0x1b70] sm:$0xff]
        %v1188 = vld [vmem:[%s307 + $0x1b78] sm:$0xff]
        %v1189 = vld [vmem:[%s307 + $0x1b80] sm:$0xff]
        %v1190 = vld [vmem:[%s307 + $0x1b88] sm:$0xff]
        %v1191 = vld [vmem:[%s307 + $0x1b90] sm:$0xff]
        %v1192 = vld [vmem:[%s307 + $0x1b98] sm:$0xff]
        %v1193 = vld [vmem:[%s307 + $0x1ba0] sm:$0xff]
        %v1194 = vld [vmem:[%s307 + $0x1ba8] sm:$0xff]
        %v1195 = vld [vmem:[%s307 + $0x1bb0] sm:$0xff]
        %v1196 = vld [vmem:[%s307 + $0x1bb8] sm:$0xff]
        %v1197 = vld [vmem:[%s307 + $0x1bc0] sm:$0xff]
        %v1198 = vld [vmem:[%s307 + $0x1bc8] sm:$0xff]
        %v1199 = vld [vmem:[%s307 + $0x1bd0] sm:$0xff]
        %v1200 = vld [vmem:[%s307 + $0x1bd8] sm:$0xff]
        %v1201 = vld [vmem:[%s307 + $0x1be0] sm:$0xff]
        %v1202 = vld [vmem:[%s307 + $0x1be8] sm:$0xff]
        %v1203 = vld [vmem:[%s307 + $0x1bf0] sm:$0xff]
        %v1204 = vld [vmem:[%s307 + $0x1bf8] sm:$0xff]
        %v1205 = vld [vmem:[%s307 + $0x1c00] sm:$0xff]
        %v1206 = vld [vmem:[%s307 + $0x1c08] sm:$0xff]
        %v1207 = vld [vmem:[%s307 + $0x1c10] sm:$0xff]
        %v1208 = vld [vmem:[%s307 + $0x1c18] sm:$0xff]
        %v1209 = vld [vmem:[%s307 + $0x1c20] sm:$0xff]
        %v1210 = vld [vmem:[%s307 + $0x1c28] sm:$0xff]
        %v1211 = vld [vmem:[%s307 + $0x1c30] sm:$0xff]
        %v1212 = vld [vmem:[%s307 + $0x1c38] sm:$0xff]
        %v1213 = vld [vmem:[%s307 + $0x1c40] sm:$0xff]
        %v1214 = vld [vmem:[%s307 + $0x1c48] sm:$0xff]
        %v1215 = vld [vmem:[%s307 + $0x1c50] sm:$0xff]
        %v1216 = vld [vmem:[%s307 + $0x1c58] sm:$0xff]
        %v1217 = vld [vmem:[%s307 + $0x1c60] sm:$0xff]
        %v1218 = vld [vmem:[%s307 + $0x1c68] sm:$0xff]
        %v1219 = vld [vmem:[%s307 + $0x1c70] sm:$0xff]
        %v1220 = vld [vmem:[%s307 + $0x1c78] sm:$0xff]
        %v1221 = vld [vmem:[%s307 + $0x1c80] sm:$0xff]
        %v1222 = vld [vmem:[%s307 + $0x1c88] sm:$0xff]
        %v1223 = vld [vmem:[%s307 + $0x1c90] sm:$0xff]
        %v1224 = vld [vmem:[%s307 + $0x1c98] sm:$0xff]
        %v1225 = vld [vmem:[%s307 + $0x1ca0] sm:$0xff]
        %v1226 = vld [vmem:[%s307 + $0x1ca8] sm:$0xff]
        %v1227 = vld [vmem:[%s307 + $0x1cb0] sm:$0xff]
        %v1228 = vld [vmem:[%s307 + $0x1cb8] sm:$0xff]
        %v1229 = vld [vmem:[%s307 + $0x1cc0] sm:$0xff]
        %v1230 = vld [vmem:[%s307 + $0x1cc8] sm:$0xff]
        %v1231 = vld [vmem:[%s307 + $0x1cd0] sm:$0xff]
        %v1232 = vld [vmem:[%s307 + $0x1cd8] sm:$0xff]
        %v1233 = vld [vmem:[%s307 + $0x1ce0] sm:$0xff]
        %v1234 = vld [vmem:[%s307 + $0x1ce8] sm:$0xff]
        %v1235 = vld [vmem:[%s307 + $0x1cf0] sm:$0xff]
        %v1236 = vld [vmem:[%s307 + $0x1cf8] sm:$0xff]
        %v1237 = vld [vmem:[%s307 + $0x1d00] sm:$0xff]
        %v1238 = vld [vmem:[%s307 + $0x1d08] sm:$0xff]
        %v1239 = vld [vmem:[%s307 + $0x1d10] sm:$0xff]
        %v1240 = vld [vmem:[%s307 + $0x1d18] sm:$0xff]
        %v1241 = vld [vmem:[%s307 + $0x1d20] sm:$0xff]
        %v1242 = vld [vmem:[%s307 + $0x1d28] sm:$0xff]
        %v1243 = vld [vmem:[%s307 + $0x1d30] sm:$0xff]
        %v1244 = vld [vmem:[%s307 + $0x1d38] sm:$0xff]
        %v1245 = vld [vmem:[%s307 + $0x1d40] sm:$0xff]
        %v1246 = vld [vmem:[%s307 + $0x1d48] sm:$0xff]
        %v1247 = vld [vmem:[%s307 + $0x1d50] sm:$0xff]
        %v1248 = vld [vmem:[%s307 + $0x1d58] sm:$0xff]
        %v1249 = vld [vmem:[%s307 + $0x1d60] sm:$0xff]
        %v1250 = vld [vmem:[%s307 + $0x1d68] sm:$0xff]
        %v1251 = vld [vmem:[%s307 + $0x1d70] sm:$0xff]
        %v1252 = vld [vmem:[%s307 + $0x1d78] sm:$0xff]
        %v1253 = vld [vmem:[%s307 + $0x1d80] sm:$0xff]
        %v1254 = vld [vmem:[%s307 + $0x1d88] sm:$0xff]
        %v1255 = vld [vmem:[%s307 + $0x1d90] sm:$0xff]
        %v1256 = vld [vmem:[%s307 + $0x1d98] sm:$0xff]
        %v1257 = vld [vmem:[%s307 + $0x1da0] sm:$0xff]
        %v1258 = vld [vmem:[%s307 + $0x1da8] sm:$0xff]
        %v1259 = vld [vmem:[%s307 + $0x1db0] sm:$0xff]
        %v1260 = vld [vmem:[%s307 + $0x1db8] sm:$0xff]
        %v1261 = vld [vmem:[%s307 + $0x1dc0] sm:$0xff]
        %v1262 = vld [vmem:[%s307 + $0x1dc8] sm:$0xff]
        %v1263 = vld [vmem:[%s307 + $0x1dd0] sm:$0xff]
        %v1264 = vld [vmem:[%s307 + $0x1dd8] sm:$0xff]
        %v1265 = vld [vmem:[%s307 + $0x1de0] sm:$0xff]
        %v1266 = vld [vmem:[%s307 + $0x1de8] sm:$0xff]
        %v1267 = vld [vmem:[%s307 + $0x1df0] sm:$0xff]
        %v1268 = vld [vmem:[%s307 + $0x1df8] sm:$0xff]
        %v1269 = vld [vmem:[%s307 + $0x1e00] sm:$0xff]
        %v1270 = vld [vmem:[%s307 + $0x1e08] sm:$0xff]
        %v1271 = vld [vmem:[%s307 + $0x1e10] sm:$0xff]
        %v1272 = vld [vmem:[%s307 + $0x1e18] sm:$0xff]
        %v1273 = vld [vmem:[%s307 + $0x1e20] sm:$0xff]
        %v1274 = vld [vmem:[%s307 + $0x1e28] sm:$0xff]
        %v1275 = vld [vmem:[%s307 + $0x1e30] sm:$0xff]
        %v1276 = vld [vmem:[%s307 + $0x1e38] sm:$0xff]
        %v1277 = vld [vmem:[%s307 + $0x1e40] sm:$0xff]
        %v1278 = vld [vmem:[%s307 + $0x1e48] sm:$0xff]
        %v1279 = vld [vmem:[%s307 + $0x1e50] sm:$0xff]
        %v1280 = vld [vmem:[%s307 + $0x1e58] sm:$0xff]
        %v1281 = vld [vmem:[%s307 + $0x1e60] sm:$0xff]
        %v1282 = vld [vmem:[%s307 + $0x1e68] sm:$0xff]
        %v1283 = vld [vmem:[%s307 + $0x1e70] sm:$0xff]
        %v1284 = vld [vmem:[%s307 + $0x1e78] sm:$0xff]
        %v1285 = vld [vmem:[%s307 + $0x1e80] sm:$0xff]
        %v1286 = vld [vmem:[%s307 + $0x1e88] sm:$0xff]
        %v1287 = vld [vmem:[%s307 + $0x1e90] sm:$0xff]
        %v1288 = vld [vmem:[%s307 + $0x1e98] sm:$0xff]
        %v1289 = vld [vmem:[%s307 + $0x1ea0] sm:$0xff]
        %v1290 = vld [vmem:[%s307 + $0x1ea8] sm:$0xff]
        %v1291 = vld [vmem:[%s307 + $0x1eb0] sm:$0xff]
        %v1292 = vld [vmem:[%s307 + $0x1eb8] sm:$0xff]
        %v1293 = vld [vmem:[%s307 + $0x1ec0] sm:$0xff]
        %v1294 = vld [vmem:[%s307 + $0x1ec8] sm:$0xff]
        %v1295 = vld [vmem:[%s307 + $0x1ed0] sm:$0xff]
        %v1296 = vld [vmem:[%s307 + $0x1ed8] sm:$0xff]
        %v1297 = vld [vmem:[%s307 + $0x1ee0] sm:$0xff]
        %v1298 = vld [vmem:[%s307 + $0x1ee8] sm:$0xff]
        %v1299 = vld [vmem:[%s307 + $0x1ef0] sm:$0xff]
        %v1300 = vld [vmem:[%s307 + $0x1ef8] sm:$0xff]
        %v1301 = vld [vmem:[%s307 + $0x1f00] sm:$0xff]
        %v1302 = vld [vmem:[%s307 + $0x1f08] sm:$0xff]
        %v1303 = vld [vmem:[%s307 + $0x1f10] sm:$0xff]
        %v1304 = vld [vmem:[%s307 + $0x1f18] sm:$0xff]
        %v1305 = vld [vmem:[%s307 + $0x1f20] sm:$0xff]
        %v1306 = vld [vmem:[%s307 + $0x1f28] sm:$0xff]
        %v1307 = vld [vmem:[%s307 + $0x1f30] sm:$0xff]
        %v1308 = vld [vmem:[%s307 + $0x1f38] sm:$0xff]
        %v1309 = vld [vmem:[%s307 + $0x1f40] sm:$0xff]
        %v1310 = vld [vmem:[%s307 + $0x1f48] sm:$0xff]
        %v1311 = vld [vmem:[%s307 + $0x1f50] sm:$0xff]
        %v1312 = vld [vmem:[%s307 + $0x1f58] sm:$0xff]
        %v1313 = vld [vmem:[%s307 + $0x1f60] sm:$0xff]
        %v1314 = vld [vmem:[%s307 + $0x1f68] sm:$0xff]
        %v1315 = vld [vmem:[%s307 + $0x1f70] sm:$0xff]
        %v1316 = vld [vmem:[%s307 + $0x1f78] sm:$0xff]
        %v1317 = vld [vmem:[%s307 + $0x1f80] sm:$0xff]
        %v1318 = vld [vmem:[%s307 + $0x1f88] sm:$0xff]
        %v1319 = vld [vmem:[%s307 + $0x1f90] sm:$0xff]
        %v1320 = vld [vmem:[%s307 + $0x1f98] sm:$0xff]
        %v1321 = vld [vmem:[%s307 + $0x1fa0] sm:$0xff]
        %v1322 = vld [vmem:[%s307 + $0x1fa8] sm:$0xff]
        %v1323 = vld [vmem:[%s307 + $0x1fb0] sm:$0xff]
        %v1324 = vld [vmem:[%s307 + $0x1fb8] sm:$0xff]
        %v1325 = vld [vmem:[%s307 + $0x1fc0] sm:$0xff]
        %v1326 = vld [vmem:[%s307 + $0x1fc8] sm:$0xff]
        %v1327 = vld [vmem:[%s307 + $0x1fd0] sm:$0xff]
        %v1328 = vld [vmem:[%s307 + $0x1fd8] sm:$0xff]
        %v1329 = vld [vmem:[%s307 + $0x1fe0] sm:$0xff]
        %v1330 = vld [vmem:[%s307 + $0x1fe8] sm:$0xff]
        %v1331 = vld [vmem:[%s307 + $0x1ff0] sm:$0xff]
        %v1332 = vld [vmem:[%s307 + $0x1ff8] sm:$0xff]
        %v1333 = vld [vmem:[%s307 + $0x2000] sm:$0xff]
        %v1334 = vld [vmem:[%s307 + $0x2008] sm:$0xff]
        %v1335 = vld [vmem:[%s307 + $0x2010] sm:$0xff]
        %v1336 = vld [vmem:[%s307 + $0x2018] sm:$0xff]
        %v1337 = vld [vmem:[%s307 + $0x2020] sm:$0xff]
        %v1338 = vld [vmem:[%s307 + $0x2028] sm:$0xff]
        %v1339 = vld [vmem:[%s307 + $0x2030] sm:$0xff]
        %v1340 = vld [vmem:[%s307 + $0x2038] sm:$0xff]
        %v1341 = vld [vmem:[%s307 + $0x2040] sm:$0xff]
        %v1342 = vld [vmem:[%s307 + $0x2048] sm:$0xff]
        %v1343 = vld [vmem:[%s307 + $0x2050] sm:$0xff]
        %v1344 = vld [vmem:[%s307 + $0x2058] sm:$0xff]
        %v1345 = vld [vmem:[%s307 + $0x2060] sm:$0xff]
        %v1346 = vld [vmem:[%s307 + $0x2068] sm:$0xff]
        %v1347 = vld [vmem:[%s307 + $0x2070] sm:$0xff]
        %v1348 = vld [vmem:[%s307 + $0x2078] sm:$0xff]
        %v1349 = vld [vmem:[%s307 + $0x2080] sm:$0xff]
        %v1350 = vld [vmem:[%s307 + $0x2088] sm:$0xff]
        %v1351 = vld [vmem:[%s307 + $0x2090] sm:$0xff]
        %v1352 = vld [vmem:[%s307 + $0x2098] sm:$0xff]
        %v1353 = vld [vmem:[%s307 + $0x20a0] sm:$0xff]
        %v1354 = vld [vmem:[%s307 + $0x20a8] sm:$0xff]
        %v1355 = vld [vmem:[%s307 + $0x20b0] sm:$0xff]
        %v1356 = vld [vmem:[%s307 + $0x20b8] sm:$0xff]
        %v1357 = vld [vmem:[%s307 + $0x20c0] sm:$0xff]
        %v1358 = vld [vmem:[%s307 + $0x20c8] sm:$0xff]
        %v1359 = vld [vmem:[%s307 + $0x20d0] sm:$0xff]
        %v1360 = vld [vmem:[%s307 + $0x20d8] sm:$0xff]
        %v1361 = vld [vmem:[%s307 + $0x20e0] sm:$0xff]
        %v1362 = vld [vmem:[%s307 + $0x20e8] sm:$0xff]
        %v1363 = vld [vmem:[%s307 + $0x20f0] sm:$0xff]
        %v1364 = vld [vmem:[%s307 + $0x20f8] sm:$0xff]
        %v1365 = vld [vmem:[%s307 + $0x2100] sm:$0xff]
        %v1366 = vld [vmem:[%s307 + $0x2108] sm:$0xff]
        %v1367 = vld [vmem:[%s307 + $0x2110] sm:$0xff]
        %v1368 = vld [vmem:[%s307 + $0x2118] sm:$0xff]
        %v1369 = vld [vmem:[%s307 + $0x2120] sm:$0xff]
        %v1370 = vld [vmem:[%s307 + $0x2128] sm:$0xff]
        %v1371 = vld [vmem:[%s307 + $0x2130] sm:$0xff]
        %v1372 = vld [vmem:[%s307 + $0x2138] sm:$0xff]
        %v1373 = vld [vmem:[%s307 + $0x2140] sm:$0xff]
        %v1374 = vld [vmem:[%s307 + $0x2148] sm:$0xff]
        %v1375 = vld [vmem:[%s307 + $0x2150] sm:$0xff]
        %v1376 = vld [vmem:[%s307 + $0x2158] sm:$0xff]
        %v1377 = vld [vmem:[%s307 + $0x2160] sm:$0xff]
        %v1378 = vld [vmem:[%s307 + $0x2168] sm:$0xff]
        %v1379 = vld [vmem:[%s307 + $0x2170] sm:$0xff]
        %v1380 = vld [vmem:[%s307 + $0x2178] sm:$0xff]
        %v1381 = vld [vmem:[%s307 + $0x2180] sm:$0xff]
        %v1382 = vld [vmem:[%s307 + $0x2188] sm:$0xff]
        %v1383 = vld [vmem:[%s307 + $0x2190] sm:$0xff]
        %v1384 = vld [vmem:[%s307 + $0x2198] sm:$0xff]
        %v1385 = vld [vmem:[%s307 + $0x21a0] sm:$0xff]
        %v1386 = vld [vmem:[%s307 + $0x21a8] sm:$0xff]
        %v1387 = vld [vmem:[%s307 + $0x21b0] sm:$0xff]
        %v1388 = vld [vmem:[%s307 + $0x21b8] sm:$0xff]
        %v1389 = vld [vmem:[%s307 + $0x21c0] sm:$0xff]
        %v1390 = vld [vmem:[%s307 + $0x21c8] sm:$0xff]
        %v1391 = vld [vmem:[%s307 + $0x21d0] sm:$0xff]
        %v1392 = vld [vmem:[%s307 + $0x21d8] sm:$0xff]
        %v1393 = vld [vmem:[%s307 + $0x21e0] sm:$0xff]
        %v1394 = vld [vmem:[%s307 + $0x21e8] sm:$0xff]
        %v1395 = vld [vmem:[%s307 + $0x21f0] sm:$0xff]
        %v1396 = vld [vmem:[%s307 + $0x21f8] sm:$0xff]
        %v1397 = vld [vmem:[%s307 + $0x2200] sm:$0xff]
        %v1398 = vld [vmem:[%s307 + $0x2208] sm:$0xff]
        %v1399 = vld [vmem:[%s307 + $0x2210] sm:$0xff]
        %v1400 = vld [vmem:[%s307 + $0x2218] sm:$0xff]
        %v1401 = vld [vmem:[%s307 + $0x2220] sm:$0xff]
        %v1402 = vld [vmem:[%s307 + $0x2228] sm:$0xff]
        %v1403 = vld [vmem:[%s307 + $0x2230] sm:$0xff]
        %v1404 = vld [vmem:[%s307 + $0x2238] sm:$0xff]
        %v1405 = vld [vmem:[%s307 + $0x2240] sm:$0xff]
        %v1406 = vld [vmem:[%s307 + $0x2248] sm:$0xff]
        %v1407 = vld [vmem:[%s307 + $0x2250] sm:$0xff]
        %v1408 = vld [vmem:[%s307 + $0x2258] sm:$0xff]
        %v1409 = vld [vmem:[%s307 + $0x2260] sm:$0xff]
        %v1410 = vld [vmem:[%s307 + $0x2268] sm:$0xff]
        %v1411 = vld [vmem:[%s307 + $0x2270] sm:$0xff]
        %v1412 = vld [vmem:[%s307 + $0x2278] sm:$0xff]
        %v1413 = vld [vmem:[%s307 + $0x2280] sm:$0xff]
        %v1414 = vld [vmem:[%s307 + $0x2288] sm:$0xff]
        %v1415 = vld [vmem:[%s307 + $0x2290] sm:$0xff]
        %v1416 = vld [vmem:[%s307 + $0x2298] sm:$0xff]
        %v1417 = vld [vmem:[%s307 + $0x22a0] sm:$0xff]
        %v1418 = vld [vmem:[%s307 + $0x22a8] sm:$0xff]
        %v1419 = vld [vmem:[%s307 + $0x22b0] sm:$0xff]
        %v1420 = vld [vmem:[%s307 + $0x22b8] sm:$0xff]
        %v1421 = vld [vmem:[%s307 + $0x22c0] sm:$0xff]
        %v1422 = vld [vmem:[%s307 + $0x22c8] sm:$0xff]
        %v1423 = vld [vmem:[%s307 + $0x22d0] sm:$0xff]
        %v1424 = vld [vmem:[%s307 + $0x22d8] sm:$0xff]
        %v1425 = vld [vmem:[%s307 + $0x22e0] sm:$0xff]
        %v1426 = vld [vmem:[%s307 + $0x22e8] sm:$0xff]
        %v1427 = vld [vmem:[%s307 + $0x22f0] sm:$0xff]
        %v1428 = vld [vmem:[%s307 + $0x22f8] sm:$0xff]
        %v1429 = vld [vmem:[%s307 + $0x2300] sm:$0xff]
        %v1430 = vld [vmem:[%s307 + $0x2308] sm:$0xff]
        %v1431 = vld [vmem:[%s307 + $0x2310] sm:$0xff]
        %v1432 = vld [vmem:[%s307 + $0x2318] sm:$0xff]
        %v1433 = vld [vmem:[%s307 + $0x2320] sm:$0xff]
        %v1434 = vld [vmem:[%s307 + $0x2328] sm:$0xff]
        %v1435 = vld [vmem:[%s307 + $0x2330] sm:$0xff]
        %v1436 = vld [vmem:[%s307 + $0x2338] sm:$0xff]
        %v1437 = vld [vmem:[%s307 + $0x2340] sm:$0xff]
        %v1438 = vld [vmem:[%s307 + $0x2348] sm:$0xff]
        %v1439 = vld [vmem:[%s307 + $0x2350] sm:$0xff]
        %v1440 = vld [vmem:[%s307 + $0x2358] sm:$0xff]
        %v1441 = vld [vmem:[%s307 + $0x2360] sm:$0xff]
        %v1442 = vld [vmem:[%s307 + $0x2368] sm:$0xff]
        %v1443 = vld [vmem:[%s307 + $0x2370] sm:$0xff]
        %v1444 = vld [vmem:[%s307 + $0x2378] sm:$0xff]
        %v1445 = vld [vmem:[%s307 + $0x2380] sm:$0xff]
        %v1446 = vld [vmem:[%s307 + $0x2388] sm:$0xff]
        %v1447 = vld [vmem:[%s307 + $0x2390] sm:$0xff]
        %v1448 = vld [vmem:[%s307 + $0x2398] sm:$0xff]
        %v1449 = vld [vmem:[%s307 + $0x23a0] sm:$0xff]
        %v1450 = vld [vmem:[%s307 + $0x23a8] sm:$0xff]
        %v1451 = vld [vmem:[%s307 + $0x23b0] sm:$0xff]
        %v1452 = vld [vmem:[%s307 + $0x23b8] sm:$0xff]
        %v1453 = vld [vmem:[%s307 + $0x23c0] sm:$0xff]
        %v1454 = vld [vmem:[%s307 + $0x23c8] sm:$0xff]
        %v1455 = vld [vmem:[%s307 + $0x23d0] sm:$0xff]
        %v1456 = vld [vmem:[%s307 + $0x23d8] sm:$0xff]
        %v1457 = vld [vmem:[%s307 + $0x23e0] sm:$0xff]
        %v1458 = vld [vmem:[%s307 + $0x23e8] sm:$0xff]
        %v1459 = vld [vmem:[%s307 + $0x23f0] sm:$0xff]
        %v1460 = vld [vmem:[%s307 + $0x23f8] sm:$0xff]
        %v1461 = vld [vmem:[%s307 + $0x2400] sm:$0xff]
        %v1462 = vld [vmem:[%s307 + $0x2408] sm:$0xff]
        %v1463 = vld [vmem:[%s307 + $0x2410] sm:$0xff]
        %v1464 = vld [vmem:[%s307 + $0x2418] sm:$0xff]
        %v1465 = vld [vmem:[%s307 + $0x2420] sm:$0xff]
        %v1466 = vld [vmem:[%s307 + $0x2428] sm:$0xff]
        %v1467 = vld [vmem:[%s307 + $0x2430] sm:$0xff]
        %v1468 = vld [vmem:[%s307 + $0x2438] sm:$0xff]
        %v1469 = vld [vmem:[%s307 + $0x2440] sm:$0xff]
        %v1470 = vld [vmem:[%s307 + $0x2448] sm:$0xff]
        %v1471 = vld [vmem:[%s307 + $0x2450] sm:$0xff]
        %v1472 = vld [vmem:[%s307 + $0x2458] sm:$0xff]
        %v1473 = vld [vmem:[%s307 + $0x2460] sm:$0xff]
        %v1474 = vld [vmem:[%s307 + $0x2468] sm:$0xff]
        %v1475 = vld [vmem:[%s307 + $0x2470] sm:$0xff]
        %v1476 = vld [vmem:[%s307 + $0x2478] sm:$0xff]
        %v1477 = vld [vmem:[%s307 + $0x2480] sm:$0xff]
        %v1478 = vld [vmem:[%s307 + $0x2488] sm:$0xff]
        %v1479 = vld [vmem:[%s307 + $0x2490] sm:$0xff]
        %v1480 = vld [vmem:[%s307 + $0x2498] sm:$0xff]
        %v1481 = vld [vmem:[%s307 + $0x24a0] sm:$0xff]
        %v1482 = vld [vmem:[%s307 + $0x24a8] sm:$0xff]
        %v1483 = vld [vmem:[%s307 + $0x24b0] sm:$0xff]
        %v1484 = vld [vmem:[%s307 + $0x24b8] sm:$0xff]
        %v1485 = vld [vmem:[%s307 + $0x24c0] sm:$0xff]
        %v1486 = vld [vmem:[%s307 + $0x24c8] sm:$0xff]
        %v1487 = vld [vmem:[%s307 + $0x24d0] sm:$0xff]
        %v1488 = vld [vmem:[%s307 + $0x24d8] sm:$0xff]
        %v1489 = vld [vmem:[%s307 + $0x24e0] sm:$0xff]
        %v1490 = vld [vmem:[%s307 + $0x24e8] sm:$0xff]
        %v1491 = vld [vmem:[%s307 + $0x24f0] sm:$0xff]
        %v1492 = vld [vmem:[%s307 + $0x24f8] sm:$0xff]
        %v1493 = vld [vmem:[%s307 + $0x2500] sm:$0xff]
        %v1494 = vld [vmem:[%s307 + $0x2508] sm:$0xff]
        %v1495 = vld [vmem:[%s307 + $0x2510] sm:$0xff]
        %v1496 = vld [vmem:[%s307 + $0x2518] sm:$0xff]
        %v1497 = vld [vmem:[%s307 + $0x2520] sm:$0xff]
        %v1498 = vld [vmem:[%s307 + $0x2528] sm:$0xff]
        %v1499 = vld [vmem:[%s307 + $0x2530] sm:$0xff]
        %v1500 = vld [vmem:[%s307 + $0x2538] sm:$0xff]
        %v1501 = vld [vmem:[%s307 + $0x2540] sm:$0xff]
        %v1502 = vld [vmem:[%s307 + $0x2548] sm:$0xff]
        %v1503 = vld [vmem:[%s307 + $0x2550] sm:$0xff]
        %v1504 = vld [vmem:[%s307 + $0x2558] sm:$0xff]
        %v1505 = vld [vmem:[%s307 + $0x2560] sm:$0xff]
        %v1506 = vld [vmem:[%s307 + $0x2568] sm:$0xff]
        %v1507 = vld [vmem:[%s307 + $0x2570] sm:$0xff]
        %v1508 = vld [vmem:[%s307 + $0x2578] sm:$0xff]
        %v1509 = vld [vmem:[%s307 + $0x2580] sm:$0xff]
        %v1510 = vld [vmem:[%s307 + $0x2588] sm:$0xff]
        %v1511 = vld [vmem:[%s307 + $0x2590] sm:$0xff]
        %v1512 = vld [vmem:[%s307 + $0x2598] sm:$0xff]
        %v1513 = vld [vmem:[%s307 + $0x25a0] sm:$0xff]
        %v1514 = vld [vmem:[%s307 + $0x25a8] sm:$0xff]
        %v1515 = vld [vmem:[%s307 + $0x25b0] sm:$0xff]
        %v1516 = vld [vmem:[%s307 + $0x25b8] sm:$0xff]
        %v1517 = vld [vmem:[%s307 + $0x25c0] sm:$0xff]
        %v1518 = vld [vmem:[%s307 + $0x25c8] sm:$0xff]
        %v1519 = vld [vmem:[%s307 + $0x25d0] sm:$0xff]
        %v1520 = vld [vmem:[%s307 + $0x25d8] sm:$0xff]
        %v1521 = vld [vmem:[%s307 + $0x25e0] sm:$0xff]
        %v1522 = vld [vmem:[%s307 + $0x25e8] sm:$0xff]
        %v1523 = vld [vmem:[%s307 + $0x25f0] sm:$0xff]
        %v1524 = vld [vmem:[%s307 + $0x25f8] sm:$0xff]
        %v1525 = vld [vmem:[%s307 + $0x2600] sm:$0xff]
        %v1526 = vld [vmem:[%s307 + $0x2608] sm:$0xff]
        %v1527 = vld [vmem:[%s307 + $0x2610] sm:$0xff]
        %v1528 = vld [vmem:[%s307 + $0x2618] sm:$0xff]
        %v1529 = vld [vmem:[%s307 + $0x2620] sm:$0xff]
        %v1530 = vld [vmem:[%s307 + $0x2628] sm:$0xff]
        %v1531 = vld [vmem:[%s307 + $0x2630] sm:$0xff]
        %v1532 = vld [vmem:[%s307 + $0x2638] sm:$0xff]
        %v1533 = vld [vmem:[%s307 + $0x2640] sm:$0xff]
        %v1534 = vld [vmem:[%s307 + $0x2648] sm:$0xff]
        %v1535 = vld [vmem:[%s307 + $0x2650] sm:$0xff]
        %v1536 = vld [vmem:[%s307 + $0x2658] sm:$0xff]
        %v1537 = vld [vmem:[%s307 + $0x2660] sm:$0xff]
        %v1538 = vld [vmem:[%s307 + $0x2668] sm:$0xff]
        %v1539 = vld [vmem:[%s307 + $0x2670] sm:$0xff]
        %v1540 = vld [vmem:[%s307 + $0x2678] sm:$0xff]
        %v1541 = vld [vmem:[%s307 + $0x2680] sm:$0xff]
        %v1542 = vld [vmem:[%s307 + $0x2688] sm:$0xff]
        %v1543 = vld [vmem:[%s307 + $0x2690] sm:$0xff]
        %v1544 = vld [vmem:[%s307 + $0x2698] sm:$0xff]
        %v1545 = vld [vmem:[%s307 + $0x26a0] sm:$0xff]
        %v1546 = vld [vmem:[%s307 + $0x26a8] sm:$0xff]
        %v1547 = vld [vmem:[%s307 + $0x26b0] sm:$0xff]
        %v1548 = vld [vmem:[%s307 + $0x26b8] sm:$0xff]
        %v1549 = vld [vmem:[%s307 + $0x26c0] sm:$0xff]
        %v1550 = vld [vmem:[%s307 + $0x26c8] sm:$0xff]
        %v1551 = vld [vmem:[%s307 + $0x26d0] sm:$0xff]
        %v1552 = vld [vmem:[%s307 + $0x26d8] sm:$0xff]
        %v1553 = vld [vmem:[%s307 + $0x26e0] sm:$0xff]
        %v1554 = vld [vmem:[%s307 + $0x26e8] sm:$0xff]
        %v1555 = vld [vmem:[%s307 + $0x26f0] sm:$0xff]
        %v1556 = vld [vmem:[%s307 + $0x26f8] sm:$0xff]
        %v1557 = vld [vmem:[%s307 + $0x2700] sm:$0xff]
        %v1558 = vld [vmem:[%s307 + $0x2708] sm:$0xff]
        %v1559 = vld [vmem:[%s307 + $0x2710] sm:$0xff]
        %v1560 = vld [vmem:[%s307 + $0x2718] sm:$0xff]
        %v1561 = vld [vmem:[%s307 + $0x2720] sm:$0xff]
        %v1562 = vld [vmem:[%s307 + $0x2728] sm:$0xff]
        %v1563 = vld [vmem:[%s307 + $0x2730] sm:$0xff]
        %v1564 = vld [vmem:[%s307 + $0x2738] sm:$0xff]
        %v1565 = vld [vmem:[%s307 + $0x2740] sm:$0xff]
        %v1566 = vld [vmem:[%s307 + $0x2748] sm:$0xff]
        %v1567 = vld [vmem:[%s307 + $0x2750] sm:$0xff]
        %v1568 = vld [vmem:[%s307 + $0x2758] sm:$0xff]
        %v1569 = vld [vmem:[%s1] sm:$0xff]
        %v1570 = vld [vmem:[%s1 + $0x8] sm:$0xff]
        %v1571 = vld [vmem:[%s1 + $0x10] sm:$0xff]
        %v1572 = vld [vmem:[%s1 + $0x18] sm:$0xff]
        %v1573 = vld [vmem:[%s1 + $0x20] sm:$0xff]
        %v1574 = vld [vmem:[%s1 + $0x28] sm:$0xff]
        %v1575 = vld [vmem:[%s1 + $0x30] sm:$0xff]
        %v1576 = vld [vmem:[%s1 + $0x38] sm:$0xff]
        %v1577 = vld [vmem:[%s1 + $0x40] sm:$0xff]
        %v1578 = vld [vmem:[%s1 + $0x48] sm:$0xff]
        %v1579 = vld [vmem:[%s1 + $0x50] sm:$0xff]
        %v1580 = vld [vmem:[%s1 + $0x58] sm:$0xff]
        %v1581 = vld [vmem:[%s1 + $0x60] sm:$0xff]
        %v1582 = vld [vmem:[%s1 + $0x68] sm:$0xff]
        %v1583 = vld [vmem:[%s1 + $0x70] sm:$0xff]
        %v1584 = vld [vmem:[%s1 + $0x78] sm:$0xff]
        %v1585 = vld [vmem:[%s1 + $0x80] sm:$0xff]
        %v1586 = vld [vmem:[%s1 + $0x88] sm:$0xff]
        %v1587 = vld [vmem:[%s1 + $0x90] sm:$0xff]
        %v1588 = vld [vmem:[%s1 + $0x98] sm:$0xff]
        %v1589 = vld [vmem:[%s1 + $0xa0] sm:$0xff]
        %v1590 = vld [vmem:[%s1 + $0xa8] sm:$0xff]
        %v1591 = vld [vmem:[%s1 + $0xb0] sm:$0xff]
        %v1592 = vld [vmem:[%s1 + $0xb8] sm:$0xff]
        %v1593 = vld [vmem:[%s1 + $0xc0] sm:$0xff]
        %v1594 = vld [vmem:[%s1 + $0xc8] sm:$0xff]
        %v1595 = vld [vmem:[%s1 + $0xd0] sm:$0xff]
        %v1596 = vld [vmem:[%s1 + $0xd8] sm:$0xff]
        %v1597 = vld [vmem:[%s1 + $0xe0] sm:$0xff]
        %v1598 = vld [vmem:[%s1 + $0xe8] sm:$0xff]
        %v1599 = vld [vmem:[%s1 + $0xf0] sm:$0xff]
        %v1600 = vld [vmem:[%s1 + $0xf8] sm:$0xff]
        %v1601 = vld [vmem:[%s1 + $0x100] sm:$0xff]
        %v1602 = vld [vmem:[%s1 + $0x108] sm:$0xff]
        %v1603 = vld [vmem:[%s1 + $0x110] sm:$0xff]
        %v1604 = vld [vmem:[%s1 + $0x118] sm:$0xff]
        %v1605 = vld [vmem:[%s1 + $0x120] sm:$0xff]
        %v1606 = vld [vmem:[%s1 + $0x128] sm:$0xff]
        %v1607 = vld [vmem:[%s1 + $0x130] sm:$0xff]
        %v1608 = vld [vmem:[%s1 + $0x138] sm:$0xff]
        %v1609 = vld [vmem:[%s1 + $0x140] sm:$0xff]
        %v1610 = vld [vmem:[%s1 + $0x148] sm:$0xff]
        %v1611 = vld [vmem:[%s1 + $0x150] sm:$0xff]
        %v1612 = vld [vmem:[%s1 + $0x158] sm:$0xff]
        %v1613 = vld [vmem:[%s1 + $0x160] sm:$0xff]
        %v1614 = vld [vmem:[%s1 + $0x168] sm:$0xff]
        %v1615 = vld [vmem:[%s1 + $0x170] sm:$0xff]
        %v1616 = vld [vmem:[%s1 + $0x178] sm:$0xff]
        %v1617 = vld [vmem:[%s1 + $0x180] sm:$0xff]
        %v1618 = vld [vmem:[%s1 + $0x188] sm:$0xff]
        %v1619 = vld [vmem:[%s1 + $0x190] sm:$0xff]
        %v1620 = vld [vmem:[%s1 + $0x198] sm:$0xff]
        %v1621 = vld [vmem:[%s1 + $0x1a0] sm:$0xff]
        %v1622 = vld [vmem:[%s1 + $0x1a8] sm:$0xff]
        %v1623 = vld [vmem:[%s1 + $0x1b0] sm:$0xff]
        %v1624 = vld [vmem:[%s1 + $0x1b8] sm:$0xff]
        %v1625 = vld [vmem:[%s1 + $0x1c0] sm:$0xff]
        %v1626 = vld [vmem:[%s1 + $0x1c8] sm:$0xff]
        %v1627 = vld [vmem:[%s1 + $0x1d0] sm:$0xff]
        %v1628 = vld [vmem:[%s1 + $0x1d8] sm:$0xff]
        %v1629 = vld [vmem:[%s1 + $0x1e0] sm:$0xff]
        %v1630 = vld [vmem:[%s1 + $0x1e8] sm:$0xff]
        %v1631 = vld [vmem:[%s1 + $0x1f0] sm:$0xff]
        %v1632 = vld [vmem:[%s1 + $0x1f8] sm:$0xff]
        %v1633 = vld [vmem:[%s1 + $0x200] sm:$0xff]
        %v1634 = vld [vmem:[%s1 + $0x208] sm:$0xff]
        %v1635 = vld [vmem:[%s1 + $0x210] sm:$0xff]
        %v1636 = vld [vmem:[%s1 + $0x218] sm:$0xff]
        %v1637 = vld [vmem:[%s1 + $0x220] sm:$0xff]
        %v1638 = vld [vmem:[%s1 + $0x228] sm:$0xff]
        %v1639 = vld [vmem:[%s1 + $0x230] sm:$0xff]
        %v1640 = vld [vmem:[%s1 + $0x238] sm:$0xff]
        %v1641 = vld [vmem:[%s1 + $0x240] sm:$0xff]
        %v1642 = vld [vmem:[%s1 + $0x248] sm:$0xff]
        %v1643 = vld [vmem:[%s1 + $0x250] sm:$0xff]
        %v1644 = vld [vmem:[%s1 + $0x258] sm:$0xff]
        %v1645 = vld [vmem:[%s1 + $0x260] sm:$0xff]
        %v1646 = vld [vmem:[%s1 + $0x268] sm:$0xff]
        %v1647 = vld [vmem:[%s1 + $0x270] sm:$0xff]
        %v1648 = vld [vmem:[%s1 + $0x278] sm:$0xff]
        %v1649 = vld [vmem:[%s1 + $0x280] sm:$0xff]
        %v1650 = vld [vmem:[%s1 + $0x288] sm:$0xff]
        %v1651 = vld [vmem:[%s1 + $0x290] sm:$0xff]
        %v1652 = vld [vmem:[%s1 + $0x298] sm:$0xff]
        %v1653 = vld [vmem:[%s1 + $0x2a0] sm:$0xff]
        %v1654 = vld [vmem:[%s1 + $0x2a8] sm:$0xff]
        %v1655 = vld [vmem:[%s1 + $0x2b0] sm:$0xff]
        %v1656 = vld [vmem:[%s1 + $0x2b8] sm:$0xff]
        %v1657 = vld [vmem:[%s1 + $0x2c0] sm:$0xff]
        %v1658 = vld [vmem:[%s1 + $0x2c8] sm:$0xff]
        %v1659 = vld [vmem:[%s1 + $0x2d0] sm:$0xff]
        %v1660 = vld [vmem:[%s1 + $0x2d8] sm:$0xff]
        %v1661 = vld [vmem:[%s1 + $0x2e0] sm:$0xff]
        %v1662 = vld [vmem:[%s1 + $0x2e8] sm:$0xff]
        %v1663 = vld [vmem:[%s1 + $0x2f0] sm:$0xff]
        %v1664 = vld [vmem:[%s1 + $0x2f8] sm:$0xff]
        %v1665 = vld [vmem:[%s1 + $0x300] sm:$0xff]
        %v1666 = vld [vmem:[%s1 + $0x308] sm:$0xff]
        %v1667 = vld [vmem:[%s1 + $0x310] sm:$0xff]
        %v1668 = vld [vmem:[%s1 + $0x318] sm:$0xff]
        %v1669 = vld [vmem:[%s1 + $0x320] sm:$0xff]
        %v1670 = vld [vmem:[%s1 + $0x328] sm:$0xff]
        %v1671 = vld [vmem:[%s1 + $0x330] sm:$0xff]
        %v1672 = vld [vmem:[%s1 + $0x338] sm:$0xff]
        %v1673 = vld [vmem:[%s1 + $0x340] sm:$0xff]
        %v1674 = vld [vmem:[%s1 + $0x348] sm:$0xff]
        %v1675 = vld [vmem:[%s1 + $0x350] sm:$0xff]
        %v1676 = vld [vmem:[%s1 + $0x358] sm:$0xff]
        %v1677 = vld [vmem:[%s1 + $0x360] sm:$0xff]
        %v1678 = vld [vmem:[%s1 + $0x368] sm:$0xff]
        %v1679 = vld [vmem:[%s1 + $0x370] sm:$0xff]
        %v1680 = vld [vmem:[%s1 + $0x378] sm:$0xff]
        %v1681 = vld [vmem:[%s1 + $0x380] sm:$0xff]
        %v1682 = vld [vmem:[%s1 + $0x388] sm:$0xff]
        %v1683 = vld [vmem:[%s1 + $0x390] sm:$0xff]
        %v1684 = vld [vmem:[%s1 + $0x398] sm:$0xff]
        %v1685 = vld [vmem:[%s1 + $0x3a0] sm:$0xff]
        %v1686 = vld [vmem:[%s1 + $0x3a8] sm:$0xff]
        %v1687 = vld [vmem:[%s1 + $0x3b0] sm:$0xff]
        %v1688 = vld [vmem:[%s1 + $0x3b8] sm:$0xff]
        %v1689 = vld [vmem:[%s1 + $0x3c0] sm:$0xff]
        %v1690 = vld [vmem:[%s1 + $0x3c8] sm:$0xff]
        %v1691 = vld [vmem:[%s1 + $0x3d0] sm:$0xff]
        %v1692 = vld [vmem:[%s1 + $0x3d8] sm:$0xff]
        %v1693 = vld [vmem:[%s1 + $0x3e0] sm:$0xff]
        %v1694 = vld [vmem:[%s1 + $0x3e8] sm:$0xff]
        %v1695 = vld [vmem:[%s1 + $0x3f0] sm:$0xff]
        %v1696 = vld [vmem:[%s1 + $0x3f8] sm:$0xff]
        %v1697 = vld [vmem:[%s1 + $0x400] sm:$0xff]
        %v1698 = vld [vmem:[%s1 + $0x408] sm:$0xff]
        %v1699 = vld [vmem:[%s1 + $0x410] sm:$0xff]
        %v1700 = vld [vmem:[%s1 + $0x418] sm:$0xff]
        %v1701 = vld [vmem:[%s1 + $0x420] sm:$0xff]
        %v1702 = vld [vmem:[%s1 + $0x428] sm:$0xff]
        %v1703 = vld [vmem:[%s1 + $0x430] sm:$0xff]
        %v1704 = vld [vmem:[%s1 + $0x438] sm:$0xff]
        %v1705 = vld [vmem:[%s1 + $0x440] sm:$0xff]
        %v1706 = vld [vmem:[%s1 + $0x448] sm:$0xff]
        %v1707 = vld [vmem:[%s1 + $0x450] sm:$0xff]
        %v1708 = vld [vmem:[%s1 + $0x458] sm:$0xff]
        %vm1709 = vcmask 785408
        %v1711 = vsel %vm1709, %v317, 0
        %v1714 = vsel %vm1709, %v326, 0
        %v1717 = vsel %vm1709, %v335, 0
        %v1720 = vsel %vm1709, %v344, 0
        %v1723 = vsel %vm1709, %v353, 0
        %v1726 = vsel %vm1709, %v362, 0
        %v1729 = vsel %vm1709, %v371, 0
        %v1732 = vsel %vm1709, %v380, 0
        %v1735 = vsel %vm1709, %v389, 0
        %v1738 = vsel %vm1709, %v398, 0
        %v1741 = vsel %vm1709, %v407, 0
        %v1744 = vsel %vm1709, %v416, 0
        %v1747 = vsel %vm1709, %v425, 0
        %v1750 = vsel %vm1709, %v434, 0
        %v1753 = vsel %vm1709, %v443, 0
        %v1756 = vsel %vm1709, %v452, 0
        %v1759 = vsel %vm1709, %v461, 0
        %v1762 = vsel %vm1709, %v470, 0
        %v1765 = vsel %vm1709, %v479, 0
        %v1768 = vsel %vm1709, %v488, 0
        %v1771 = vsel %vm1709, %v497, 0
        %v1774 = vsel %vm1709, %v506, 0
        %v1777 = vsel %vm1709, %v515, 0
        %v1780 = vsel %vm1709, %v524, 0
        %v1783 = vsel %vm1709, %v533, 0
        %v1786 = vsel %vm1709, %v542, 0
        %v1789 = vsel %vm1709, %v551, 0
        %v1792 = vsel %vm1709, %v560, 0
        %v1795 = vsel %vm1709, %v569, 0
        %v1798 = vsel %vm1709, %v578, 0
        %v1801 = vsel %vm1709, %v587, 0
        %v1804 = vsel %vm1709, %v596, 0
        %v1807 = vsel %vm1709, %v605, 0
        %v1810 = vsel %vm1709, %v614, 0
        %v1813 = vsel %vm1709, %v623, 0
        %v1816 = vsel %vm1709, %v632, 0
        %v1819 = vsel %vm1709, %v641, 0
        %v1822 = vsel %vm1709, %v650, 0
        %v1825 = vsel %vm1709, %v659, 0
        %v1828 = vsel %vm1709, %v668, 0
        %v1831 = vsel %vm1709, %v677, 0
        %v1834 = vsel %vm1709, %v686, 0
        %v1837 = vsel %vm1709, %v695, 0
        %v1840 = vsel %vm1709, %v704, 0
        %v1843 = vsel %vm1709, %v713, 0
        %v1846 = vsel %vm1709, %v722, 0
        %v1849 = vsel %vm1709, %v731, 0
        %v1852 = vsel %vm1709, %v740, 0
        %v1855 = vsel %vm1709, %v749, 0
        %v1858 = vsel %vm1709, %v758, 0
        %v1861 = vsel %vm1709, %v767, 0
        %v1864 = vsel %vm1709, %v776, 0
        %v1867 = vsel %vm1709, %v785, 0
        %v1870 = vsel %vm1709, %v794, 0
        %v1873 = vsel %vm1709, %v803, 0
        %v1876 = vsel %vm1709, %v812, 0
        %v1879 = vsel %vm1709, %v821, 0
        %v1882 = vsel %vm1709, %v830, 0
        %v1885 = vsel %vm1709, %v839, 0
        %v1888 = vsel %vm1709, %v848, 0
        %v1891 = vsel %vm1709, %v857, 0
        %v1894 = vsel %vm1709, %v866, 0
        %v1897 = vsel %vm1709, %v875, 0
        %v1900 = vsel %vm1709, %v884, 0
        %v1903 = vsel %vm1709, %v893, 0
        %v1906 = vsel %vm1709, %v902, 0
        %v1909 = vsel %vm1709, %v911, 0
        %v1912 = vsel %vm1709, %v920, 0
        %v1915 = vsel %vm1709, %v929, 0
        %v1918 = vsel %vm1709, %v938, 0
        %v1921 = vsel %vm1709, %v947, 0
        %v1924 = vsel %vm1709, %v956, 0
        %v1927 = vsel %vm1709, %v965, 0
        %v1930 = vsel %vm1709, %v974, 0
        %v1933 = vsel %vm1709, %v983, 0
        %v1936 = vsel %vm1709, %v992, 0
        %v1939 = vsel %vm1709, %v1001, 0
        %v1942 = vsel %vm1709, %v1010, 0
        %v1945 = vsel %vm1709, %v1019, 0
        %v1948 = vsel %vm1709, %v1028, 0
        %v1951 = vsel %vm1709, %v1037, 0
        %v1954 = vsel %vm1709, %v1046, 0
        %v1957 = vsel %vm1709, %v1055, 0
        %v1960 = vsel %vm1709, %v1064, 0
        %v1963 = vsel %vm1709, %v1073, 0
        %v1966 = vsel %vm1709, %v1082, 0
        %v1969 = vsel %vm1709, %v1091, 0
        %v1972 = vsel %vm1709, %v1100, 0
        %v1975 = vsel %vm1709, %v1109, 0
        %v1978 = vsel %vm1709, %v1118, 0
        %v1981 = vsel %vm1709, %v1127, 0
        %v1984 = vsel %vm1709, %v1136, 0
        %v1987 = vsel %vm1709, %v1145, 0
        %v1990 = vsel %vm1709, %v1154, 0
        %v1993 = vsel %vm1709, %v1163, 0
        %v1996 = vsel %vm1709, %v1172, 0
        %v1999 = vsel %vm1709, %v1181, 0
        %v2002 = vsel %vm1709, %v1190, 0
        %v2005 = vsel %vm1709, %v1199, 0
        %v2008 = vsel %vm1709, %v1208, 0
        %v2011 = vsel %vm1709, %v1217, 0
        %v2014 = vsel %vm1709, %v1226, 0
        %v2017 = vsel %vm1709, %v1235, 0
        %v2020 = vsel %vm1709, %v1244, 0
        %v2023 = vsel %vm1709, %v1253, 0
        %v2026 = vsel %vm1709, %v1262, 0
        %v2029 = vsel %vm1709, %v1271, 0
        %v2032 = vsel %vm1709, %v1280, 0
        %v2035 = vsel %vm1709, %v1289, 0
        %v2038 = vsel %vm1709, %v1298, 0
        %v2041 = vsel %vm1709, %v1307, 0
        %v2044 = vsel %vm1709, %v1316, 0
        %v2047 = vsel %vm1709, %v1325, 0
        %v2050 = vsel %vm1709, %v1334, 0
        %v2053 = vsel %vm1709, %v1343, 0
        %v2056 = vsel %vm1709, %v1352, 0
        %v2059 = vsel %vm1709, %v1361, 0
        %v2062 = vsel %vm1709, %v1370, 0
        %v2065 = vsel %vm1709, %v1379, 0
        %v2068 = vsel %vm1709, %v1388, 0
        %v2071 = vsel %vm1709, %v1397, 0
        %v2074 = vsel %vm1709, %v1406, 0
        %v2077 = vsel %vm1709, %v1415, 0
        %v2080 = vsel %vm1709, %v1424, 0
        %v2083 = vsel %vm1709, %v1433, 0
        %v2086 = vsel %vm1709, %v1442, 0
        %v2089 = vsel %vm1709, %v1451, 0
        %v2092 = vsel %vm1709, %v1460, 0
        %v2095 = vsel %vm1709, %v1469, 0
        %v2098 = vsel %vm1709, %v1478, 0
        %v2101 = vsel %vm1709, %v1487, 0
        %v2104 = vsel %vm1709, %v1496, 0
        %v2107 = vsel %vm1709, %v1505, 0
        %v2110 = vsel %vm1709, %v1514, 0
        %v2113 = vsel %vm1709, %v1523, 0
        %v2116 = vsel %vm1709, %v1532, 0
        %v2119 = vsel %vm1709, %v1541, 0
        %v2122 = vsel %vm1709, %v1550, 0
        %v2125 = vsel %vm1709, %v1559, 0
        %v2128 = vsel %vm1709, %v1568, 0
        %2130 = vmatpush.msra.mxu0 %v1584
        %2131 = vmatpush.msra.mxu0 %v1583
        %2132 = vmatpush.msra.mxu0 %v1582
        %2133 = vmatpush.msra.mxu0 %v1581
        %2134 = vmatpush.msra.mxu0 %v1580
        %2135 = vmatpush.msra.mxu0 %v1579
        %2136 = vmatpush.msra.mxu0 %v1578
        %2137 = vmatpush.msra.mxu0 %v1577
        %2138 = vmatpush.msra.mxu0 %v1576
        %2139 = vmatpush.msra.mxu0 %v1575
        %2140 = vmatpush.msra.mxu0 %v1574
        %2141 = vmatpush.msra.mxu0 %v1573
        %2142 = vmatpush.msra.mxu0 %v1572
        %2143 = vmatpush.msra.mxu0 %v1571
        %2144 = vmatpush.msra.mxu0 %v1570
        %2145 = vmatpush.msra.mxu0 %v1569
        %2146 = vmatmul.f32.gmra.mxu0 %v309
        %v2147 = vpop.f32.mrf.mxu0
        %v2148 = vadd.f32 0.0, %v2147
        %2149 = vmatmul.f32.gmra.mxu0 %v318
        %v2150 = vpop.f32.mrf.mxu0
        %v2151 = vadd.f32 0.0, %v2150
        %2152 = vmatmul.f32.gmra.mxu0 %v327
        %v2153 = vpop.f32.mrf.mxu0
        %v2154 = vadd.f32 0.0, %v2153
        %2155 = vmatmul.f32.gmra.mxu0 %v336
        %v2156 = vpop.f32.mrf.mxu0
        %v2157 = vadd.f32 0.0, %v2156
        %2158 = vmatmul.f32.gmra.mxu0 %v345
        %v2159 = vpop.f32.mrf.mxu0
        %v2160 = vadd.f32 0.0, %v2159
        %2161 = vmatmul.f32.gmra.mxu0 %v354
        %v2162 = vpop.f32.mrf.mxu0
        %v2163 = vadd.f32 0.0, %v2162
        %2164 = vmatmul.f32.gmra.mxu0 %v363
        %v2165 = vpop.f32.mrf.mxu0
        %v2166 = vadd.f32 0.0, %v2165
        %2167 = vmatmul.f32.gmra.mxu0 %v372
        %v2168 = vpop.f32.mrf.mxu0
        %v2169 = vadd.f32 0.0, %v2168
        %2170 = vmatmul.f32.gmra.mxu0 %v381
        %v2171 = vpop.f32.mrf.mxu0
        %v2172 = vadd.f32 0.0, %v2171
        %2173 = vmatmul.f32.gmra.mxu0 %v390
        %v2174 = vpop.f32.mrf.mxu0
        %v2175 = vadd.f32 0.0, %v2174
        %2176 = vmatmul.f32.gmra.mxu0 %v399
        %v2177 = vpop.f32.mrf.mxu0
        %v2178 = vadd.f32 0.0, %v2177
        %2179 = vmatmul.f32.gmra.mxu0 %v408
        %v2180 = vpop.f32.mrf.mxu0
        %v2181 = vadd.f32 0.0, %v2180
        %2182 = vmatmul.f32.gmra.mxu0 %v417
        %v2183 = vpop.f32.mrf.mxu0
        %v2184 = vadd.f32 0.0, %v2183
        %2185 = vmatmul.f32.gmra.mxu0 %v426
        %v2186 = vpop.f32.mrf.mxu0
        %v2187 = vadd.f32 0.0, %v2186
        %2188 = vmatmul.f32.gmra.mxu0 %v435
        %v2189 = vpop.f32.mrf.mxu0
        %v2190 = vadd.f32 0.0, %v2189
        %2191 = vmatmul.f32.gmra.mxu0 %v444
        %v2192 = vpop.f32.mrf.mxu0
        %v2193 = vadd.f32 0.0, %v2192
        %2194 = vmatmul.f32.gmra.mxu0 %v453
        %v2195 = vpop.f32.mrf.mxu0
        %v2196 = vadd.f32 0.0, %v2195
        %2197 = vmatmul.f32.gmra.mxu0 %v462
        %v2198 = vpop.f32.mrf.mxu0
        %v2199 = vadd.f32 0.0, %v2198
        %2200 = vmatmul.f32.gmra.mxu0 %v471
        %v2201 = vpop.f32.mrf.mxu0
        %v2202 = vadd.f32 0.0, %v2201
        %2203 = vmatmul.f32.gmra.mxu0 %v480
        %v2204 = vpop.f32.mrf.mxu0
        %v2205 = vadd.f32 0.0, %v2204
        %2206 = vmatmul.f32.gmra.mxu0 %v489
        %v2207 = vpop.f32.mrf.mxu0
        %v2208 = vadd.f32 0.0, %v2207
        %2209 = vmatmul.f32.gmra.mxu0 %v498
        %v2210 = vpop.f32.mrf.mxu0
        %v2211 = vadd.f32 0.0, %v2210
        %2212 = vmatmul.f32.gmra.mxu0 %v507
        %v2213 = vpop.f32.mrf.mxu0
        %v2214 = vadd.f32 0.0, %v2213
        %2215 = vmatmul.f32.gmra.mxu0 %v516
        %v2216 = vpop.f32.mrf.mxu0
        %v2217 = vadd.f32 0.0, %v2216
        %2218 = vmatmul.f32.gmra.mxu0 %v525
        %v2219 = vpop.f32.mrf.mxu0
        %v2220 = vadd.f32 0.0, %v2219
        %2221 = vmatmul.f32.gmra.mxu0 %v534
        %v2222 = vpop.f32.mrf.mxu0
        %v2223 = vadd.f32 0.0, %v2222
        %2224 = vmatmul.f32.gmra.mxu0 %v543
        %v2225 = vpop.f32.mrf.mxu0
        %v2226 = vadd.f32 0.0, %v2225
        %2227 = vmatmul.f32.gmra.mxu0 %v552
        %v2228 = vpop.f32.mrf.mxu0
        %v2229 = vadd.f32 0.0, %v2228
        %2230 = vmatmul.f32.gmra.mxu0 %v561
        %v2231 = vpop.f32.mrf.mxu0
        %v2232 = vadd.f32 0.0, %v2231
        %2233 = vmatmul.f32.gmra.mxu0 %v570
        %v2234 = vpop.f32.mrf.mxu0
        %v2235 = vadd.f32 0.0, %v2234
        %2236 = vmatmul.f32.gmra.mxu0 %v579
        %v2237 = vpop.f32.mrf.mxu0
        %v2238 = vadd.f32 0.0, %v2237
        %2239 = vmatmul.f32.gmra.mxu0 %v588
        %v2240 = vpop.f32.mrf.mxu0
        %v2241 = vadd.f32 0.0, %v2240
        %2242 = vmatmul.f32.gmra.mxu0 %v597
        %v2243 = vpop.f32.mrf.mxu0
        %v2244 = vadd.f32 0.0, %v2243
        %2245 = vmatmul.f32.gmra.mxu0 %v606
        %v2246 = vpop.f32.mrf.mxu0
        %v2247 = vadd.f32 0.0, %v2246
        %2248 = vmatmul.f32.gmra.mxu0 %v615
        %v2249 = vpop.f32.mrf.mxu0
        %v2250 = vadd.f32 0.0, %v2249
        %2251 = vmatmul.f32.gmra.mxu0 %v624
        %v2252 = vpop.f32.mrf.mxu0
        %v2253 = vadd.f32 0.0, %v2252
        %2254 = vmatmul.f32.gmra.mxu0 %v633
        %v2255 = vpop.f32.mrf.mxu0
        %v2256 = vadd.f32 0.0, %v2255
        %2257 = vmatmul.f32.gmra.mxu0 %v642
        %v2258 = vpop.f32.mrf.mxu0
        %v2259 = vadd.f32 0.0, %v2258
        %2260 = vmatmul.f32.gmra.mxu0 %v651
        %v2261 = vpop.f32.mrf.mxu0
        %v2262 = vadd.f32 0.0, %v2261
        %2263 = vmatmul.f32.gmra.mxu0 %v660
        %v2264 = vpop.f32.mrf.mxu0
        %v2265 = vadd.f32 0.0, %v2264
        %2266 = vmatmul.f32.gmra.mxu0 %v669
        %v2267 = vpop.f32.mrf.mxu0
        %v2268 = vadd.f32 0.0, %v2267
        %2269 = vmatmul.f32.gmra.mxu0 %v678
        %v2270 = vpop.f32.mrf.mxu0
        %v2271 = vadd.f32 0.0, %v2270
        %2272 = vmatmul.f32.gmra.mxu0 %v687
        %v2273 = vpop.f32.mrf.mxu0
        %v2274 = vadd.f32 0.0, %v2273
        %2275 = vmatmul.f32.gmra.mxu0 %v696
        %v2276 = vpop.f32.mrf.mxu0
        %v2277 = vadd.f32 0.0, %v2276
        %2278 = vmatmul.f32.gmra.mxu0 %v705
        %v2279 = vpop.f32.mrf.mxu0
        %v2280 = vadd.f32 0.0, %v2279
        %2281 = vmatmul.f32.gmra.mxu0 %v714
        %v2282 = vpop.f32.mrf.mxu0
        %v2283 = vadd.f32 0.0, %v2282
        %2284 = vmatmul.f32.gmra.mxu0 %v723
        %v2285 = vpop.f32.mrf.mxu0
        %v2286 = vadd.f32 0.0, %v2285
        %2287 = vmatmul.f32.gmra.mxu0 %v732
        %v2288 = vpop.f32.mrf.mxu0
        %v2289 = vadd.f32 0.0, %v2288
        %2290 = vmatmul.f32.gmra.mxu0 %v741
        %v2291 = vpop.f32.mrf.mxu0
        %v2292 = vadd.f32 0.0, %v2291
        %2293 = vmatmul.f32.gmra.mxu0 %v750
        %v2294 = vpop.f32.mrf.mxu0
        %v2295 = vadd.f32 0.0, %v2294
        %2296 = vmatmul.f32.gmra.mxu0 %v759
        %v2297 = vpop.f32.mrf.mxu0
        %v2298 = vadd.f32 0.0, %v2297
        %2299 = vmatmul.f32.gmra.mxu0 %v768
        %v2300 = vpop.f32.mrf.mxu0
        %v2301 = vadd.f32 0.0, %v2300
        %2302 = vmatmul.f32.gmra.mxu0 %v777
        %v2303 = vpop.f32.mrf.mxu0
        %v2304 = vadd.f32 0.0, %v2303
        %2305 = vmatmul.f32.gmra.mxu0 %v786
        %v2306 = vpop.f32.mrf.mxu0
        %v2307 = vadd.f32 0.0, %v2306
        %2308 = vmatmul.f32.gmra.mxu0 %v795
        %v2309 = vpop.f32.mrf.mxu0
        %v2310 = vadd.f32 0.0, %v2309
        %2311 = vmatmul.f32.gmra.mxu0 %v804
        %v2312 = vpop.f32.mrf.mxu0
        %v2313 = vadd.f32 0.0, %v2312
        %2314 = vmatmul.f32.gmra.mxu0 %v813
        %v2315 = vpop.f32.mrf.mxu0
        %v2316 = vadd.f32 0.0, %v2315
        %2317 = vmatmul.f32.gmra.mxu0 %v822
        %v2318 = vpop.f32.mrf.mxu0
        %v2319 = vadd.f32 0.0, %v2318
        %2320 = vmatmul.f32.gmra.mxu0 %v831
        %v2321 = vpop.f32.mrf.mxu0
        %v2322 = vadd.f32 0.0, %v2321
        %2323 = vmatmul.f32.gmra.mxu0 %v840
        %v2324 = vpop.f32.mrf.mxu0
        %v2325 = vadd.f32 0.0, %v2324
        %2326 = vmatmul.f32.gmra.mxu0 %v849
        %v2327 = vpop.f32.mrf.mxu0
        %v2328 = vadd.f32 0.0, %v2327
        %2329 = vmatmul.f32.gmra.mxu0 %v858
        %v2330 = vpop.f32.mrf.mxu0
        %v2331 = vadd.f32 0.0, %v2330
        %2332 = vmatmul.f32.gmra.mxu0 %v867
        %v2333 = vpop.f32.mrf.mxu0
        %v2334 = vadd.f32 0.0, %v2333
        %2335 = vmatmul.f32.gmra.mxu0 %v876
        %v2336 = vpop.f32.mrf.mxu0
        %v2337 = vadd.f32 0.0, %v2336
        %2338 = vmatmul.f32.gmra.mxu0 %v885
        %v2339 = vpop.f32.mrf.mxu0
        %v2340 = vadd.f32 0.0, %v2339
        %2341 = vmatmul.f32.gmra.mxu0 %v894
        %v2342 = vpop.f32.mrf.mxu0
        %v2343 = vadd.f32 0.0, %v2342
        %2344 = vmatmul.f32.gmra.mxu0 %v903
        %v2345 = vpop.f32.mrf.mxu0
        %v2346 = vadd.f32 0.0, %v2345
        %2347 = vmatmul.f32.gmra.mxu0 %v912
        %v2348 = vpop.f32.mrf.mxu0
        %v2349 = vadd.f32 0.0, %v2348
        %2350 = vmatmul.f32.gmra.mxu0 %v921
        %v2351 = vpop.f32.mrf.mxu0
        %v2352 = vadd.f32 0.0, %v2351
        %2353 = vmatmul.f32.gmra.mxu0 %v930
        %v2354 = vpop.f32.mrf.mxu0
        %v2355 = vadd.f32 0.0, %v2354
        %2356 = vmatmul.f32.gmra.mxu0 %v939
        %v2357 = vpop.f32.mrf.mxu0
        %v2358 = vadd.f32 0.0, %v2357
        %2359 = vmatmul.f32.gmra.mxu0 %v948
        %v2360 = vpop.f32.mrf.mxu0
        %v2361 = vadd.f32 0.0, %v2360
        %2362 = vmatmul.f32.gmra.mxu0 %v957
        %v2363 = vpop.f32.mrf.mxu0
        %v2364 = vadd.f32 0.0, %v2363
        %2365 = vmatmul.f32.gmra.mxu0 %v966
        %v2366 = vpop.f32.mrf.mxu0
        %v2367 = vadd.f32 0.0, %v2366
        %2368 = vmatmul.f32.gmra.mxu0 %v975
        %v2369 = vpop.f32.mrf.mxu0
        %v2370 = vadd.f32 0.0, %v2369
        %2371 = vmatmul.f32.gmra.mxu0 %v984
        %v2372 = vpop.f32.mrf.mxu0
        %v2373 = vadd.f32 0.0, %v2372
        %2374 = vmatmul.f32.gmra.mxu0 %v993
        %v2375 = vpop.f32.mrf.mxu0
        %v2376 = vadd.f32 0.0, %v2375
        %2377 = vmatmul.f32.gmra.mxu0 %v1002
        %v2378 = vpop.f32.mrf.mxu0
        %v2379 = vadd.f32 0.0, %v2378
        %2380 = vmatmul.f32.gmra.mxu0 %v1011
        %v2381 = vpop.f32.mrf.mxu0
        %v2382 = vadd.f32 0.0, %v2381
        %2383 = vmatmul.f32.gmra.mxu0 %v1020
        %v2384 = vpop.f32.mrf.mxu0
        %v2385 = vadd.f32 0.0, %v2384
        %2386 = vmatmul.f32.gmra.mxu0 %v1029
        %v2387 = vpop.f32.mrf.mxu0
        %v2388 = vadd.f32 0.0, %v2387
        %2389 = vmatmul.f32.gmra.mxu0 %v1038
        %v2390 = vpop.f32.mrf.mxu0
        %v2391 = vadd.f32 0.0, %v2390
        %2392 = vmatmul.f32.gmra.mxu0 %v1047
        %v2393 = vpop.f32.mrf.mxu0
        %v2394 = vadd.f32 0.0, %v2393
        %2395 = vmatmul.f32.gmra.mxu0 %v1056
        %v2396 = vpop.f32.mrf.mxu0
        %v2397 = vadd.f32 0.0, %v2396
        %2398 = vmatmul.f32.gmra.mxu0 %v1065
        %v2399 = vpop.f32.mrf.mxu0
        %v2400 = vadd.f32 0.0, %v2399
        %2401 = vmatmul.f32.gmra.mxu0 %v1074
        %v2402 = vpop.f32.mrf.mxu0
        %v2403 = vadd.f32 0.0, %v2402
        %2404 = vmatmul.f32.gmra.mxu0 %v1083
        %v2405 = vpop.f32.mrf.mxu0
        %v2406 = vadd.f32 0.0, %v2405
        %2407 = vmatmul.f32.gmra.mxu0 %v1092
        %v2408 = vpop.f32.mrf.mxu0
        %v2409 = vadd.f32 0.0, %v2408
        %2410 = vmatmul.f32.gmra.mxu0 %v1101
        %v2411 = vpop.f32.mrf.mxu0
        %v2412 = vadd.f32 0.0, %v2411
        %2413 = vmatmul.f32.gmra.mxu0 %v1110
        %v2414 = vpop.f32.mrf.mxu0
        %v2415 = vadd.f32 0.0, %v2414
        %2416 = vmatmul.f32.gmra.mxu0 %v1119
        %v2417 = vpop.f32.mrf.mxu0
        %v2418 = vadd.f32 0.0, %v2417
        %2419 = vmatmul.f32.gmra.mxu0 %v1128
        %v2420 = vpop.f32.mrf.mxu0
        %v2421 = vadd.f32 0.0, %v2420
        %2422 = vmatmul.f32.gmra.mxu0 %v1137
        %v2423 = vpop.f32.mrf.mxu0
        %v2424 = vadd.f32 0.0, %v2423
        %2425 = vmatmul.f32.gmra.mxu0 %v1146
        %v2426 = vpop.f32.mrf.mxu0
        %v2427 = vadd.f32 0.0, %v2426
        %2428 = vmatmul.f32.gmra.mxu0 %v1155
        %v2429 = vpop.f32.mrf.mxu0
        %v2430 = vadd.f32 0.0, %v2429
        %2431 = vmatmul.f32.gmra.mxu0 %v1164
        %v2432 = vpop.f32.mrf.mxu0
        %v2433 = vadd.f32 0.0, %v2432
        %2434 = vmatmul.f32.gmra.mxu0 %v1173
        %v2435 = vpop.f32.mrf.mxu0
        %v2436 = vadd.f32 0.0, %v2435
        %2437 = vmatmul.f32.gmra.mxu0 %v1182
        %v2438 = vpop.f32.mrf.mxu0
        %v2439 = vadd.f32 0.0, %v2438
        %2440 = vmatmul.f32.gmra.mxu0 %v1191
        %v2441 = vpop.f32.mrf.mxu0
        %v2442 = vadd.f32 0.0, %v2441
        %2443 = vmatmul.f32.gmra.mxu0 %v1200
        %v2444 = vpop.f32.mrf.mxu0
        %v2445 = vadd.f32 0.0, %v2444
        %2446 = vmatmul.f32.gmra.mxu0 %v1209
        %v2447 = vpop.f32.mrf.mxu0
        %v2448 = vadd.f32 0.0, %v2447
        %2449 = vmatmul.f32.gmra.mxu0 %v1218
        %v2450 = vpop.f32.mrf.mxu0
        %v2451 = vadd.f32 0.0, %v2450
        %2452 = vmatmul.f32.gmra.mxu0 %v1227
        %v2453 = vpop.f32.mrf.mxu0
        %v2454 = vadd.f32 0.0, %v2453
        %2455 = vmatmul.f32.gmra.mxu0 %v1236
        %v2456 = vpop.f32.mrf.mxu0
        %v2457 = vadd.f32 0.0, %v2456
        %2458 = vmatmul.f32.gmra.mxu0 %v1245
        %v2459 = vpop.f32.mrf.mxu0
        %v2460 = vadd.f32 0.0, %v2459
        %2461 = vmatmul.f32.gmra.mxu0 %v1254
        %v2462 = vpop.f32.mrf.mxu0
        %v2463 = vadd.f32 0.0, %v2462
        %2464 = vmatmul.f32.gmra.mxu0 %v1263
        %v2465 = vpop.f32.mrf.mxu0
        %v2466 = vadd.f32 0.0, %v2465
        %2467 = vmatmul.f32.gmra.mxu0 %v1272
        %v2468 = vpop.f32.mrf.mxu0
        %v2469 = vadd.f32 0.0, %v2468
        %2470 = vmatmul.f32.gmra.mxu0 %v1281
        %v2471 = vpop.f32.mrf.mxu0
        %v2472 = vadd.f32 0.0, %v2471
        %2473 = vmatmul.f32.gmra.mxu0 %v1290
        %v2474 = vpop.f32.mrf.mxu0
        %v2475 = vadd.f32 0.0, %v2474
        %2476 = vmatmul.f32.gmra.mxu0 %v1299
        %v2477 = vpop.f32.mrf.mxu0
        %v2478 = vadd.f32 0.0, %v2477
        %2479 = vmatmul.f32.gmra.mxu0 %v1308
        %v2480 = vpop.f32.mrf.mxu0
        %v2481 = vadd.f32 0.0, %v2480
        %2482 = vmatmul.f32.gmra.mxu0 %v1317
        %v2483 = vpop.f32.mrf.mxu0
        %v2484 = vadd.f32 0.0, %v2483
        %2485 = vmatmul.f32.gmra.mxu0 %v1326
        %v2486 = vpop.f32.mrf.mxu0
        %v2487 = vadd.f32 0.0, %v2486
        %2488 = vmatmul.f32.gmra.mxu0 %v1335
        %v2489 = vpop.f32.mrf.mxu0
        %v2490 = vadd.f32 0.0, %v2489
        %2491 = vmatmul.f32.gmra.mxu0 %v1344
        %v2492 = vpop.f32.mrf.mxu0
        %v2493 = vadd.f32 0.0, %v2492
        %2494 = vmatmul.f32.gmra.mxu0 %v1353
        %v2495 = vpop.f32.mrf.mxu0
        %v2496 = vadd.f32 0.0, %v2495
        %2497 = vmatmul.f32.gmra.mxu0 %v1362
        %v2498 = vpop.f32.mrf.mxu0
        %v2499 = vadd.f32 0.0, %v2498
        %2500 = vmatmul.f32.gmra.mxu0 %v1371
        %v2501 = vpop.f32.mrf.mxu0
        %v2502 = vadd.f32 0.0, %v2501
        %2503 = vmatmul.f32.gmra.mxu0 %v1380
        %v2504 = vpop.f32.mrf.mxu0
        %v2505 = vadd.f32 0.0, %v2504
        %2506 = vmatmul.f32.gmra.mxu0 %v1389
        %v2507 = vpop.f32.mrf.mxu0
        %v2508 = vadd.f32 0.0, %v2507
        %2509 = vmatmul.f32.gmra.mxu0 %v1398
        %v2510 = vpop.f32.mrf.mxu0
        %v2511 = vadd.f32 0.0, %v2510
        %2512 = vmatmul.f32.gmra.mxu0 %v1407
        %v2513 = vpop.f32.mrf.mxu0
        %v2514 = vadd.f32 0.0, %v2513
        %2515 = vmatmul.f32.gmra.mxu0 %v1416
        %v2516 = vpop.f32.mrf.mxu0
        %v2517 = vadd.f32 0.0, %v2516
        %2518 = vmatmul.f32.gmra.mxu0 %v1425
        %v2519 = vpop.f32.mrf.mxu0
        %v2520 = vadd.f32 0.0, %v2519
        %2521 = vmatmul.f32.gmra.mxu0 %v1434
        %v2522 = vpop.f32.mrf.mxu0
        %v2523 = vadd.f32 0.0, %v2522
        %2524 = vmatmul.f32.gmra.mxu0 %v1443
        %v2525 = vpop.f32.mrf.mxu0
        %v2526 = vadd.f32 0.0, %v2525
        %2527 = vmatmul.f32.gmra.mxu0 %v1452
        %v2528 = vpop.f32.mrf.mxu0
        %v2529 = vadd.f32 0.0, %v2528
        %2530 = vmatmul.f32.gmra.mxu0 %v1461
        %v2531 = vpop.f32.mrf.mxu0
        %v2532 = vadd.f32 0.0, %v2531
        %2533 = vmatmul.f32.gmra.mxu0 %v1470
        %v2534 = vpop.f32.mrf.mxu0
        %v2535 = vadd.f32 0.0, %v2534
        %2536 = vmatmul.f32.gmra.mxu0 %v1479
        %v2537 = vpop.f32.mrf.mxu0
        %v2538 = vadd.f32 0.0, %v2537
        %2539 = vmatmul.f32.gmra.mxu0 %v1488
        %v2540 = vpop.f32.mrf.mxu0
        %v2541 = vadd.f32 0.0, %v2540
        %2542 = vmatmul.f32.gmra.mxu0 %v1497
        %v2543 = vpop.f32.mrf.mxu0
        %v2544 = vadd.f32 0.0, %v2543
        %2545 = vmatmul.f32.gmra.mxu0 %v1506
        %v2546 = vpop.f32.mrf.mxu0
        %v2547 = vadd.f32 0.0, %v2546
        %2548 = vmatmul.f32.gmra.mxu0 %v1515
        %v2549 = vpop.f32.mrf.mxu0
        %v2550 = vadd.f32 0.0, %v2549
        %2551 = vmatmul.f32.gmra.mxu0 %v1524
        %v2552 = vpop.f32.mrf.mxu0
        %v2553 = vadd.f32 0.0, %v2552
        %2554 = vmatmul.f32.gmra.mxu0 %v1533
        %v2555 = vpop.f32.mrf.mxu0
        %v2556 = vadd.f32 0.0, %v2555
        %2557 = vmatmul.f32.gmra.mxu0 %v1542
        %v2558 = vpop.f32.mrf.mxu0
        %v2559 = vadd.f32 0.0, %v2558
        %2560 = vmatmul.f32.gmra.mxu0 %v1551
        %v2561 = vpop.f32.mrf.mxu0
        %v2562 = vadd.f32 0.0, %v2561
        %2563 = vmatmul.f32.gmra.mxu0 %v1560
        %v2564 = vpop.f32.mrf.mxu0
        %v2565 = vadd.f32 0.0, %v2564
        %2566 = vdwg.mxu0
        %2567 = vmatpush.msra.mxu0 %v1600
        %2568 = vmatpush.msra.mxu0 %v1599
        %2569 = vmatpush.msra.mxu0 %v1598
        %2570 = vmatpush.msra.mxu0 %v1597
        %2571 = vmatpush.msra.mxu0 %v1596
        %2572 = vmatpush.msra.mxu0 %v1595
        %2573 = vmatpush.msra.mxu0 %v1594
        %2574 = vmatpush.msra.mxu0 %v1593
        %2575 = vmatpush.msra.mxu0 %v1592
        %2576 = vmatpush.msra.mxu0 %v1591
        %2577 = vmatpush.msra.mxu0 %v1590
        %2578 = vmatpush.msra.mxu0 %v1589
        %2579 = vmatpush.msra.mxu0 %v1588
        %2580 = vmatpush.msra.mxu0 %v1587
        %2581 = vmatpush.msra.mxu0 %v1586
        %2582 = vmatpush.msra.mxu0 %v1585
        %2583 = vmatmul.f32.gmra.mxu0 %v310
        %v2584 = vpop.f32.mrf.mxu0
        %v2585 = vadd.f32 %v2148, %v2584
        %2586 = vmatmul.f32.gmra.mxu0 %v319
        %v2587 = vpop.f32.mrf.mxu0
        %v2588 = vadd.f32 %v2151, %v2587
        %2589 = vmatmul.f32.gmra.mxu0 %v328
        %v2590 = vpop.f32.mrf.mxu0
        %v2591 = vadd.f32 %v2154, %v2590
        %2592 = vmatmul.f32.gmra.mxu0 %v337
        %v2593 = vpop.f32.mrf.mxu0
        %v2594 = vadd.f32 %v2157, %v2593
        %2595 = vmatmul.f32.gmra.mxu0 %v346
        %v2596 = vpop.f32.mrf.mxu0
        %v2597 = vadd.f32 %v2160, %v2596
        %2598 = vmatmul.f32.gmra.mxu0 %v355
        %v2599 = vpop.f32.mrf.mxu0
        %v2600 = vadd.f32 %v2163, %v2599
        %2601 = vmatmul.f32.gmra.mxu0 %v364
        %v2602 = vpop.f32.mrf.mxu0
        %v2603 = vadd.f32 %v2166, %v2602
        %2604 = vmatmul.f32.gmra.mxu0 %v373
        %v2605 = vpop.f32.mrf.mxu0
        %v2606 = vadd.f32 %v2169, %v2605
        %2607 = vmatmul.f32.gmra.mxu0 %v382
        %v2608 = vpop.f32.mrf.mxu0
        %v2609 = vadd.f32 %v2172, %v2608
        %2610 = vmatmul.f32.gmra.mxu0 %v391
        %v2611 = vpop.f32.mrf.mxu0
        %v2612 = vadd.f32 %v2175, %v2611
        %2613 = vmatmul.f32.gmra.mxu0 %v400
        %v2614 = vpop.f32.mrf.mxu0
        %v2615 = vadd.f32 %v2178, %v2614
        %2616 = vmatmul.f32.gmra.mxu0 %v409
        %v2617 = vpop.f32.mrf.mxu0
        %v2618 = vadd.f32 %v2181, %v2617
        %2619 = vmatmul.f32.gmra.mxu0 %v418
        %v2620 = vpop.f32.mrf.mxu0
        %v2621 = vadd.f32 %v2184, %v2620
        %2622 = vmatmul.f32.gmra.mxu0 %v427
        %v2623 = vpop.f32.mrf.mxu0
        %v2624 = vadd.f32 %v2187, %v2623
        %2625 = vmatmul.f32.gmra.mxu0 %v436
        %v2626 = vpop.f32.mrf.mxu0
        %v2627 = vadd.f32 %v2190, %v2626
        %2628 = vmatmul.f32.gmra.mxu0 %v445
        %v2629 = vpop.f32.mrf.mxu0
        %v2630 = vadd.f32 %v2193, %v2629
        %2631 = vmatmul.f32.gmra.mxu0 %v454
        %v2632 = vpop.f32.mrf.mxu0
        %v2633 = vadd.f32 %v2196, %v2632
        %2634 = vmatmul.f32.gmra.mxu0 %v463
        %v2635 = vpop.f32.mrf.mxu0
        %v2636 = vadd.f32 %v2199, %v2635
        %2637 = vmatmul.f32.gmra.mxu0 %v472
        %v2638 = vpop.f32.mrf.mxu0
        %v2639 = vadd.f32 %v2202, %v2638
        %2640 = vmatmul.f32.gmra.mxu0 %v481
        %v2641 = vpop.f32.mrf.mxu0
        %v2642 = vadd.f32 %v2205, %v2641
        %2643 = vmatmul.f32.gmra.mxu0 %v490
        %v2644 = vpop.f32.mrf.mxu0
        %v2645 = vadd.f32 %v2208, %v2644
        %2646 = vmatmul.f32.gmra.mxu0 %v499
        %v2647 = vpop.f32.mrf.mxu0
        %v2648 = vadd.f32 %v2211, %v2647
        %2649 = vmatmul.f32.gmra.mxu0 %v508
        %v2650 = vpop.f32.mrf.mxu0
        %v2651 = vadd.f32 %v2214, %v2650
        %2652 = vmatmul.f32.gmra.mxu0 %v517
        %v2653 = vpop.f32.mrf.mxu0
        %v2654 = vadd.f32 %v2217, %v2653
        %2655 = vmatmul.f32.gmra.mxu0 %v526
        %v2656 = vpop.f32.mrf.mxu0
        %v2657 = vadd.f32 %v2220, %v2656
        %2658 = vmatmul.f32.gmra.mxu0 %v535
        %v2659 = vpop.f32.mrf.mxu0
        %v2660 = vadd.f32 %v2223, %v2659
        %2661 = vmatmul.f32.gmra.mxu0 %v544
        %v2662 = vpop.f32.mrf.mxu0
        %v2663 = vadd.f32 %v2226, %v2662
        %2664 = vmatmul.f32.gmra.mxu0 %v553
        %v2665 = vpop.f32.mrf.mxu0
        %v2666 = vadd.f32 %v2229, %v2665
        %2667 = vmatmul.f32.gmra.mxu0 %v562
        %v2668 = vpop.f32.mrf.mxu0
        %v2669 = vadd.f32 %v2232, %v2668
        %2670 = vmatmul.f32.gmra.mxu0 %v571
        %v2671 = vpop.f32.mrf.mxu0
        %v2672 = vadd.f32 %v2235, %v2671
        %2673 = vmatmul.f32.gmra.mxu0 %v580
        %v2674 = vpop.f32.mrf.mxu0
        %v2675 = vadd.f32 %v2238, %v2674
        %2676 = vmatmul.f32.gmra.mxu0 %v589
        %v2677 = vpop.f32.mrf.mxu0
        %v2678 = vadd.f32 %v2241, %v2677
        %2679 = vmatmul.f32.gmra.mxu0 %v598
        %v2680 = vpop.f32.mrf.mxu0
        %v2681 = vadd.f32 %v2244, %v2680
        %2682 = vmatmul.f32.gmra.mxu0 %v607
        %v2683 = vpop.f32.mrf.mxu0
        %v2684 = vadd.f32 %v2247, %v2683
        %2685 = vmatmul.f32.gmra.mxu0 %v616
        %v2686 = vpop.f32.mrf.mxu0
        %v2687 = vadd.f32 %v2250, %v2686
        %2688 = vmatmul.f32.gmra.mxu0 %v625
        %v2689 = vpop.f32.mrf.mxu0
        %v2690 = vadd.f32 %v2253, %v2689
        %2691 = vmatmul.f32.gmra.mxu0 %v634
        %v2692 = vpop.f32.mrf.mxu0
        %v2693 = vadd.f32 %v2256, %v2692
        %2694 = vmatmul.f32.gmra.mxu0 %v643
        %v2695 = vpop.f32.mrf.mxu0
        %v2696 = vadd.f32 %v2259, %v2695
        %2697 = vmatmul.f32.gmra.mxu0 %v652
        %v2698 = vpop.f32.mrf.mxu0
        %v2699 = vadd.f32 %v2262, %v2698
        %2700 = vmatmul.f32.gmra.mxu0 %v661
        %v2701 = vpop.f32.mrf.mxu0
        %v2702 = vadd.f32 %v2265, %v2701
        %2703 = vmatmul.f32.gmra.mxu0 %v670
        %v2704 = vpop.f32.mrf.mxu0
        %v2705 = vadd.f32 %v2268, %v2704
        %2706 = vmatmul.f32.gmra.mxu0 %v679
        %v2707 = vpop.f32.mrf.mxu0
        %v2708 = vadd.f32 %v2271, %v2707
        %2709 = vmatmul.f32.gmra.mxu0 %v688
        %v2710 = vpop.f32.mrf.mxu0
        %v2711 = vadd.f32 %v2274, %v2710
        %2712 = vmatmul.f32.gmra.mxu0 %v697
        %v2713 = vpop.f32.mrf.mxu0
        %v2714 = vadd.f32 %v2277, %v2713
        %2715 = vmatmul.f32.gmra.mxu0 %v706
        %v2716 = vpop.f32.mrf.mxu0
        %v2717 = vadd.f32 %v2280, %v2716
        %2718 = vmatmul.f32.gmra.mxu0 %v715
        %v2719 = vpop.f32.mrf.mxu0
        %v2720 = vadd.f32 %v2283, %v2719
        %2721 = vmatmul.f32.gmra.mxu0 %v724
        %v2722 = vpop.f32.mrf.mxu0
        %v2723 = vadd.f32 %v2286, %v2722
        %2724 = vmatmul.f32.gmra.mxu0 %v733
        %v2725 = vpop.f32.mrf.mxu0
        %v2726 = vadd.f32 %v2289, %v2725
        %2727 = vmatmul.f32.gmra.mxu0 %v742
        %v2728 = vpop.f32.mrf.mxu0
        %v2729 = vadd.f32 %v2292, %v2728
        %2730 = vmatmul.f32.gmra.mxu0 %v751
        %v2731 = vpop.f32.mrf.mxu0
        %v2732 = vadd.f32 %v2295, %v2731
        %2733 = vmatmul.f32.gmra.mxu0 %v760
        %v2734 = vpop.f32.mrf.mxu0
        %v2735 = vadd.f32 %v2298, %v2734
        %2736 = vmatmul.f32.gmra.mxu0 %v769
        %v2737 = vpop.f32.mrf.mxu0
        %v2738 = vadd.f32 %v2301, %v2737
        %2739 = vmatmul.f32.gmra.mxu0 %v778
        %v2740 = vpop.f32.mrf.mxu0
        %v2741 = vadd.f32 %v2304, %v2740
        %2742 = vmatmul.f32.gmra.mxu0 %v787
        %v2743 = vpop.f32.mrf.mxu0
        %v2744 = vadd.f32 %v2307, %v2743
        %2745 = vmatmul.f32.gmra.mxu0 %v796
        %v2746 = vpop.f32.mrf.mxu0
        %v2747 = vadd.f32 %v2310, %v2746
        %2748 = vmatmul.f32.gmra.mxu0 %v805
        %v2749 = vpop.f32.mrf.mxu0
        %v2750 = vadd.f32 %v2313, %v2749
        %2751 = vmatmul.f32.gmra.mxu0 %v814
        %v2752 = vpop.f32.mrf.mxu0
        %v2753 = vadd.f32 %v2316, %v2752
        %2754 = vmatmul.f32.gmra.mxu0 %v823
        %v2755 = vpop.f32.mrf.mxu0
        %v2756 = vadd.f32 %v2319, %v2755
        %2757 = vmatmul.f32.gmra.mxu0 %v832
        %v2758 = vpop.f32.mrf.mxu0
        %v2759 = vadd.f32 %v2322, %v2758
        %2760 = vmatmul.f32.gmra.mxu0 %v841
        %v2761 = vpop.f32.mrf.mxu0
        %v2762 = vadd.f32 %v2325, %v2761
        %2763 = vmatmul.f32.gmra.mxu0 %v850
        %v2764 = vpop.f32.mrf.mxu0
        %v2765 = vadd.f32 %v2328, %v2764
        %2766 = vmatmul.f32.gmra.mxu0 %v859
        %v2767 = vpop.f32.mrf.mxu0
        %v2768 = vadd.f32 %v2331, %v2767
        %2769 = vmatmul.f32.gmra.mxu0 %v868
        %v2770 = vpop.f32.mrf.mxu0
        %v2771 = vadd.f32 %v2334, %v2770
        %2772 = vmatmul.f32.gmra.mxu0 %v877
        %v2773 = vpop.f32.mrf.mxu0
        %v2774 = vadd.f32 %v2337, %v2773
        %2775 = vmatmul.f32.gmra.mxu0 %v886
        %v2776 = vpop.f32.mrf.mxu0
        %v2777 = vadd.f32 %v2340, %v2776
        %2778 = vmatmul.f32.gmra.mxu0 %v895
        %v2779 = vpop.f32.mrf.mxu0
        %v2780 = vadd.f32 %v2343, %v2779
        %2781 = vmatmul.f32.gmra.mxu0 %v904
        %v2782 = vpop.f32.mrf.mxu0
        %v2783 = vadd.f32 %v2346, %v2782
        %2784 = vmatmul.f32.gmra.mxu0 %v913
        %v2785 = vpop.f32.mrf.mxu0
        %v2786 = vadd.f32 %v2349, %v2785
        %2787 = vmatmul.f32.gmra.mxu0 %v922
        %v2788 = vpop.f32.mrf.mxu0
        %v2789 = vadd.f32 %v2352, %v2788
        %2790 = vmatmul.f32.gmra.mxu0 %v931
        %v2791 = vpop.f32.mrf.mxu0
        %v2792 = vadd.f32 %v2355, %v2791
        %2793 = vmatmul.f32.gmra.mxu0 %v940
        %v2794 = vpop.f32.mrf.mxu0
        %v2795 = vadd.f32 %v2358, %v2794
        %2796 = vmatmul.f32.gmra.mxu0 %v949
        %v2797 = vpop.f32.mrf.mxu0
        %v2798 = vadd.f32 %v2361, %v2797
        %2799 = vmatmul.f32.gmra.mxu0 %v958
        %v2800 = vpop.f32.mrf.mxu0
        %v2801 = vadd.f32 %v2364, %v2800
        %2802 = vmatmul.f32.gmra.mxu0 %v967
        %v2803 = vpop.f32.mrf.mxu0
        %v2804 = vadd.f32 %v2367, %v2803
        %2805 = vmatmul.f32.gmra.mxu0 %v976
        %v2806 = vpop.f32.mrf.mxu0
        %v2807 = vadd.f32 %v2370, %v2806
        %2808 = vmatmul.f32.gmra.mxu0 %v985
        %v2809 = vpop.f32.mrf.mxu0
        %v2810 = vadd.f32 %v2373, %v2809
        %2811 = vmatmul.f32.gmra.mxu0 %v994
        %v2812 = vpop.f32.mrf.mxu0
        %v2813 = vadd.f32 %v2376, %v2812
        %2814 = vmatmul.f32.gmra.mxu0 %v1003
        %v2815 = vpop.f32.mrf.mxu0
        %v2816 = vadd.f32 %v2379, %v2815
        %2817 = vmatmul.f32.gmra.mxu0 %v1012
        %v2818 = vpop.f32.mrf.mxu0
        %v2819 = vadd.f32 %v2382, %v2818
        %2820 = vmatmul.f32.gmra.mxu0 %v1021
        %v2821 = vpop.f32.mrf.mxu0
        %v2822 = vadd.f32 %v2385, %v2821
        %2823 = vmatmul.f32.gmra.mxu0 %v1030
        %v2824 = vpop.f32.mrf.mxu0
        %v2825 = vadd.f32 %v2388, %v2824
        %2826 = vmatmul.f32.gmra.mxu0 %v1039
        %v2827 = vpop.f32.mrf.mxu0
        %v2828 = vadd.f32 %v2391, %v2827
        %2829 = vmatmul.f32.gmra.mxu0 %v1048
        %v2830 = vpop.f32.mrf.mxu0
        %v2831 = vadd.f32 %v2394, %v2830
        %2832 = vmatmul.f32.gmra.mxu0 %v1057
        %v2833 = vpop.f32.mrf.mxu0
        %v2834 = vadd.f32 %v2397, %v2833
        %2835 = vmatmul.f32.gmra.mxu0 %v1066
        %v2836 = vpop.f32.mrf.mxu0
        %v2837 = vadd.f32 %v2400, %v2836
        %2838 = vmatmul.f32.gmra.mxu0 %v1075
        %v2839 = vpop.f32.mrf.mxu0
        %v2840 = vadd.f32 %v2403, %v2839
        %2841 = vmatmul.f32.gmra.mxu0 %v1084
        %v2842 = vpop.f32.mrf.mxu0
        %v2843 = vadd.f32 %v2406, %v2842
        %2844 = vmatmul.f32.gmra.mxu0 %v1093
        %v2845 = vpop.f32.mrf.mxu0
        %v2846 = vadd.f32 %v2409, %v2845
        %2847 = vmatmul.f32.gmra.mxu0 %v1102
        %v2848 = vpop.f32.mrf.mxu0
        %v2849 = vadd.f32 %v2412, %v2848
        %2850 = vmatmul.f32.gmra.mxu0 %v1111
        %v2851 = vpop.f32.mrf.mxu0
        %v2852 = vadd.f32 %v2415, %v2851
        %2853 = vmatmul.f32.gmra.mxu0 %v1120
        %v2854 = vpop.f32.mrf.mxu0
        %v2855 = vadd.f32 %v2418, %v2854
        %2856 = vmatmul.f32.gmra.mxu0 %v1129
        %v2857 = vpop.f32.mrf.mxu0
        %v2858 = vadd.f32 %v2421, %v2857
        %2859 = vmatmul.f32.gmra.mxu0 %v1138
        %v2860 = vpop.f32.mrf.mxu0
        %v2861 = vadd.f32 %v2424, %v2860
        %2862 = vmatmul.f32.gmra.mxu0 %v1147
        %v2863 = vpop.f32.mrf.mxu0
        %v2864 = vadd.f32 %v2427, %v2863
        %2865 = vmatmul.f32.gmra.mxu0 %v1156
        %v2866 = vpop.f32.mrf.mxu0
        %v2867 = vadd.f32 %v2430, %v2866
        %2868 = vmatmul.f32.gmra.mxu0 %v1165
        %v2869 = vpop.f32.mrf.mxu0
        %v2870 = vadd.f32 %v2433, %v2869
        %2871 = vmatmul.f32.gmra.mxu0 %v1174
        %v2872 = vpop.f32.mrf.mxu0
        %v2873 = vadd.f32 %v2436, %v2872
        %2874 = vmatmul.f32.gmra.mxu0 %v1183
        %v2875 = vpop.f32.mrf.mxu0
        %v2876 = vadd.f32 %v2439, %v2875
        %2877 = vmatmul.f32.gmra.mxu0 %v1192
        %v2878 = vpop.f32.mrf.mxu0
        %v2879 = vadd.f32 %v2442, %v2878
        %2880 = vmatmul.f32.gmra.mxu0 %v1201
        %v2881 = vpop.f32.mrf.mxu0
        %v2882 = vadd.f32 %v2445, %v2881
        %2883 = vmatmul.f32.gmra.mxu0 %v1210
        %v2884 = vpop.f32.mrf.mxu0
        %v2885 = vadd.f32 %v2448, %v2884
        %2886 = vmatmul.f32.gmra.mxu0 %v1219
        %v2887 = vpop.f32.mrf.mxu0
        %v2888 = vadd.f32 %v2451, %v2887
        %2889 = vmatmul.f32.gmra.mxu0 %v1228
        %v2890 = vpop.f32.mrf.mxu0
        %v2891 = vadd.f32 %v2454, %v2890
        %2892 = vmatmul.f32.gmra.mxu0 %v1237
        %v2893 = vpop.f32.mrf.mxu0
        %v2894 = vadd.f32 %v2457, %v2893
        %2895 = vmatmul.f32.gmra.mxu0 %v1246
        %v2896 = vpop.f32.mrf.mxu0
        %v2897 = vadd.f32 %v2460, %v2896
        %2898 = vmatmul.f32.gmra.mxu0 %v1255
        %v2899 = vpop.f32.mrf.mxu0
        %v2900 = vadd.f32 %v2463, %v2899
        %2901 = vmatmul.f32.gmra.mxu0 %v1264
        %v2902 = vpop.f32.mrf.mxu0
        %v2903 = vadd.f32 %v2466, %v2902
        %2904 = vmatmul.f32.gmra.mxu0 %v1273
        %v2905 = vpop.f32.mrf.mxu0
        %v2906 = vadd.f32 %v2469, %v2905
        %2907 = vmatmul.f32.gmra.mxu0 %v1282
        %v2908 = vpop.f32.mrf.mxu0
        %v2909 = vadd.f32 %v2472, %v2908
        %2910 = vmatmul.f32.gmra.mxu0 %v1291
        %v2911 = vpop.f32.mrf.mxu0
        %v2912 = vadd.f32 %v2475, %v2911
        %2913 = vmatmul.f32.gmra.mxu0 %v1300
        %v2914 = vpop.f32.mrf.mxu0
        %v2915 = vadd.f32 %v2478, %v2914
        %2916 = vmatmul.f32.gmra.mxu0 %v1309
        %v2917 = vpop.f32.mrf.mxu0
        %v2918 = vadd.f32 %v2481, %v2917
        %2919 = vmatmul.f32.gmra.mxu0 %v1318
        %v2920 = vpop.f32.mrf.mxu0
        %v2921 = vadd.f32 %v2484, %v2920
        %2922 = vmatmul.f32.gmra.mxu0 %v1327
        %v2923 = vpop.f32.mrf.mxu0
        %v2924 = vadd.f32 %v2487, %v2923
        %2925 = vmatmul.f32.gmra.mxu0 %v1336
        %v2926 = vpop.f32.mrf.mxu0
        %v2927 = vadd.f32 %v2490, %v2926
        %2928 = vmatmul.f32.gmra.mxu0 %v1345
        %v2929 = vpop.f32.mrf.mxu0
        %v2930 = vadd.f32 %v2493, %v2929
        %2931 = vmatmul.f32.gmra.mxu0 %v1354
        %v2932 = vpop.f32.mrf.mxu0
        %v2933 = vadd.f32 %v2496, %v2932
        %2934 = vmatmul.f32.gmra.mxu0 %v1363
        %v2935 = vpop.f32.mrf.mxu0
        %v2936 = vadd.f32 %v2499, %v2935
        %2937 = vmatmul.f32.gmra.mxu0 %v1372
        %v2938 = vpop.f32.mrf.mxu0
        %v2939 = vadd.f32 %v2502, %v2938
        %2940 = vmatmul.f32.gmra.mxu0 %v1381
        %v2941 = vpop.f32.mrf.mxu0
        %v2942 = vadd.f32 %v2505, %v2941
        %2943 = vmatmul.f32.gmra.mxu0 %v1390
        %v2944 = vpop.f32.mrf.mxu0
        %v2945 = vadd.f32 %v2508, %v2944
        %2946 = vmatmul.f32.gmra.mxu0 %v1399
        %v2947 = vpop.f32.mrf.mxu0
        %v2948 = vadd.f32 %v2511, %v2947
        %2949 = vmatmul.f32.gmra.mxu0 %v1408
        %v2950 = vpop.f32.mrf.mxu0
        %v2951 = vadd.f32 %v2514, %v2950
        %2952 = vmatmul.f32.gmra.mxu0 %v1417
        %v2953 = vpop.f32.mrf.mxu0
        %v2954 = vadd.f32 %v2517, %v2953
        %2955 = vmatmul.f32.gmra.mxu0 %v1426
        %v2956 = vpop.f32.mrf.mxu0
        %v2957 = vadd.f32 %v2520, %v2956
        %2958 = vmatmul.f32.gmra.mxu0 %v1435
        %v2959 = vpop.f32.mrf.mxu0
        %v2960 = vadd.f32 %v2523, %v2959
        %2961 = vmatmul.f32.gmra.mxu0 %v1444
        %v2962 = vpop.f32.mrf.mxu0
        %v2963 = vadd.f32 %v2526, %v2962
        %2964 = vmatmul.f32.gmra.mxu0 %v1453
        %v2965 = vpop.f32.mrf.mxu0
        %v2966 = vadd.f32 %v2529, %v2965
        %2967 = vmatmul.f32.gmra.mxu0 %v1462
        %v2968 = vpop.f32.mrf.mxu0
        %v2969 = vadd.f32 %v2532, %v2968
        %2970 = vmatmul.f32.gmra.mxu0 %v1471
        %v2971 = vpop.f32.mrf.mxu0
        %v2972 = vadd.f32 %v2535, %v2971
        %2973 = vmatmul.f32.gmra.mxu0 %v1480
        %v2974 = vpop.f32.mrf.mxu0
        %v2975 = vadd.f32 %v2538, %v2974
        %2976 = vmatmul.f32.gmra.mxu0 %v1489
        %v2977 = vpop.f32.mrf.mxu0
        %v2978 = vadd.f32 %v2541, %v2977
        %2979 = vmatmul.f32.gmra.mxu0 %v1498
        %v2980 = vpop.f32.mrf.mxu0
        %v2981 = vadd.f32 %v2544, %v2980
        %2982 = vmatmul.f32.gmra.mxu0 %v1507
        %v2983 = vpop.f32.mrf.mxu0
        %v2984 = vadd.f32 %v2547, %v2983
        %2985 = vmatmul.f32.gmra.mxu0 %v1516
        %v2986 = vpop.f32.mrf.mxu0
        %v2987 = vadd.f32 %v2550, %v2986
        %2988 = vmatmul.f32.gmra.mxu0 %v1525
        %v2989 = vpop.f32.mrf.mxu0
        %v2990 = vadd.f32 %v2553, %v2989
        %2991 = vmatmul.f32.gmra.mxu0 %v1534
        %v2992 = vpop.f32.mrf.mxu0
        %v2993 = vadd.f32 %v2556, %v2992
        %2994 = vmatmul.f32.gmra.mxu0 %v1543
        %v2995 = vpop.f32.mrf.mxu0
        %v2996 = vadd.f32 %v2559, %v2995
        %2997 = vmatmul.f32.gmra.mxu0 %v1552
        %v2998 = vpop.f32.mrf.mxu0
        %v2999 = vadd.f32 %v2562, %v2998
        %3000 = vmatmul.f32.gmra.mxu0 %v1561
        %v3001 = vpop.f32.mrf.mxu0
        %v3002 = vadd.f32 %v2565, %v3001
        %3003 = vdwg.mxu0
        %3004 = vmatpush.msra.mxu0 %v1616
        %3005 = vmatpush.msra.mxu0 %v1615
        %3006 = vmatpush.msra.mxu0 %v1614
        %3007 = vmatpush.msra.mxu0 %v1613
        %3008 = vmatpush.msra.mxu0 %v1612
        %3009 = vmatpush.msra.mxu0 %v1611
        %3010 = vmatpush.msra.mxu0 %v1610
        %3011 = vmatpush.msra.mxu0 %v1609
        %3012 = vmatpush.msra.mxu0 %v1608
        %3013 = vmatpush.msra.mxu0 %v1607
        %3014 = vmatpush.msra.mxu0 %v1606
        %3015 = vmatpush.msra.mxu0 %v1605
        %3016 = vmatpush.msra.mxu0 %v1604
        %3017 = vmatpush.msra.mxu0 %v1603
        %3018 = vmatpush.msra.mxu0 %v1602
        %3019 = vmatpush.msra.mxu0 %v1601
        %3020 = vmatmul.f32.gmra.mxu0 %v311
        %v3021 = vpop.f32.mrf.mxu0
        %v3022 = vadd.f32 %v2585, %v3021
        %3023 = vmatmul.f32.gmra.mxu0 %v320
        %v3024 = vpop.f32.mrf.mxu0
        %v3025 = vadd.f32 %v2588, %v3024
        %3026 = vmatmul.f32.gmra.mxu0 %v329
        %v3027 = vpop.f32.mrf.mxu0
        %v3028 = vadd.f32 %v2591, %v3027
        %3029 = vmatmul.f32.gmra.mxu0 %v338
        %v3030 = vpop.f32.mrf.mxu0
        %v3031 = vadd.f32 %v2594, %v3030
        %3032 = vmatmul.f32.gmra.mxu0 %v347
        %v3033 = vpop.f32.mrf.mxu0
        %v3034 = vadd.f32 %v2597, %v3033
        %3035 = vmatmul.f32.gmra.mxu0 %v356
        %v3036 = vpop.f32.mrf.mxu0
        %v3037 = vadd.f32 %v2600, %v3036
        %3038 = vmatmul.f32.gmra.mxu0 %v365
        %v3039 = vpop.f32.mrf.mxu0
        %v3040 = vadd.f32 %v2603, %v3039
        %3041 = vmatmul.f32.gmra.mxu0 %v374
        %v3042 = vpop.f32.mrf.mxu0
        %v3043 = vadd.f32 %v2606, %v3042
        %3044 = vmatmul.f32.gmra.mxu0 %v383
        %v3045 = vpop.f32.mrf.mxu0
        %v3046 = vadd.f32 %v2609, %v3045
        %3047 = vmatmul.f32.gmra.mxu0 %v392
        %v3048 = vpop.f32.mrf.mxu0
        %v3049 = vadd.f32 %v2612, %v3048
        %3050 = vmatmul.f32.gmra.mxu0 %v401
        %v3051 = vpop.f32.mrf.mxu0
        %v3052 = vadd.f32 %v2615, %v3051
        %3053 = vmatmul.f32.gmra.mxu0 %v410
        %v3054 = vpop.f32.mrf.mxu0
        %v3055 = vadd.f32 %v2618, %v3054
        %3056 = vmatmul.f32.gmra.mxu0 %v419
        %v3057 = vpop.f32.mrf.mxu0
        %v3058 = vadd.f32 %v2621, %v3057
        %3059 = vmatmul.f32.gmra.mxu0 %v428
        %v3060 = vpop.f32.mrf.mxu0
        %v3061 = vadd.f32 %v2624, %v3060
        %3062 = vmatmul.f32.gmra.mxu0 %v437
        %v3063 = vpop.f32.mrf.mxu0
        %v3064 = vadd.f32 %v2627, %v3063
        %3065 = vmatmul.f32.gmra.mxu0 %v446
        %v3066 = vpop.f32.mrf.mxu0
        %v3067 = vadd.f32 %v2630, %v3066
        %3068 = vmatmul.f32.gmra.mxu0 %v455
        %v3069 = vpop.f32.mrf.mxu0
        %v3070 = vadd.f32 %v2633, %v3069
        %3071 = vmatmul.f32.gmra.mxu0 %v464
        %v3072 = vpop.f32.mrf.mxu0
        %v3073 = vadd.f32 %v2636, %v3072
        %3074 = vmatmul.f32.gmra.mxu0 %v473
        %v3075 = vpop.f32.mrf.mxu0
        %v3076 = vadd.f32 %v2639, %v3075
        %3077 = vmatmul.f32.gmra.mxu0 %v482
        %v3078 = vpop.f32.mrf.mxu0
        %v3079 = vadd.f32 %v2642, %v3078
        %3080 = vmatmul.f32.gmra.mxu0 %v491
        %v3081 = vpop.f32.mrf.mxu0
        %v3082 = vadd.f32 %v2645, %v3081
        %3083 = vmatmul.f32.gmra.mxu0 %v500
        %v3084 = vpop.f32.mrf.mxu0
        %v3085 = vadd.f32 %v2648, %v3084
        %3086 = vmatmul.f32.gmra.mxu0 %v509
        %v3087 = vpop.f32.mrf.mxu0
        %v3088 = vadd.f32 %v2651, %v3087
        %3089 = vmatmul.f32.gmra.mxu0 %v518
        %v3090 = vpop.f32.mrf.mxu0
        %v3091 = vadd.f32 %v2654, %v3090
        %3092 = vmatmul.f32.gmra.mxu0 %v527
        %v3093 = vpop.f32.mrf.mxu0
        %v3094 = vadd.f32 %v2657, %v3093
        %3095 = vmatmul.f32.gmra.mxu0 %v536
        %v3096 = vpop.f32.mrf.mxu0
        %v3097 = vadd.f32 %v2660, %v3096
        %3098 = vmatmul.f32.gmra.mxu0 %v545
        %v3099 = vpop.f32.mrf.mxu0
        %v3100 = vadd.f32 %v2663, %v3099
        %3101 = vmatmul.f32.gmra.mxu0 %v554
        %v3102 = vpop.f32.mrf.mxu0
        %v3103 = vadd.f32 %v2666, %v3102
        %3104 = vmatmul.f32.gmra.mxu0 %v563
        %v3105 = vpop.f32.mrf.mxu0
        %v3106 = vadd.f32 %v2669, %v3105
        %3107 = vmatmul.f32.gmra.mxu0 %v572
        %v3108 = vpop.f32.mrf.mxu0
        %v3109 = vadd.f32 %v2672, %v3108
        %3110 = vmatmul.f32.gmra.mxu0 %v581
        %v3111 = vpop.f32.mrf.mxu0
        %v3112 = vadd.f32 %v2675, %v3111
        %3113 = vmatmul.f32.gmra.mxu0 %v590
        %v3114 = vpop.f32.mrf.mxu0
        %v3115 = vadd.f32 %v2678, %v3114
        %3116 = vmatmul.f32.gmra.mxu0 %v599
        %v3117 = vpop.f32.mrf.mxu0
        %v3118 = vadd.f32 %v2681, %v3117
        %3119 = vmatmul.f32.gmra.mxu0 %v608
        %v3120 = vpop.f32.mrf.mxu0
        %v3121 = vadd.f32 %v2684, %v3120
        %3122 = vmatmul.f32.gmra.mxu0 %v617
        %v3123 = vpop.f32.mrf.mxu0
        %v3124 = vadd.f32 %v2687, %v3123
        %3125 = vmatmul.f32.gmra.mxu0 %v626
        %v3126 = vpop.f32.mrf.mxu0
        %v3127 = vadd.f32 %v2690, %v3126
        %3128 = vmatmul.f32.gmra.mxu0 %v635
        %v3129 = vpop.f32.mrf.mxu0
        %v3130 = vadd.f32 %v2693, %v3129
        %3131 = vmatmul.f32.gmra.mxu0 %v644
        %v3132 = vpop.f32.mrf.mxu0
        %v3133 = vadd.f32 %v2696, %v3132
        %3134 = vmatmul.f32.gmra.mxu0 %v653
        %v3135 = vpop.f32.mrf.mxu0
        %v3136 = vadd.f32 %v2699, %v3135
        %3137 = vmatmul.f32.gmra.mxu0 %v662
        %v3138 = vpop.f32.mrf.mxu0
        %v3139 = vadd.f32 %v2702, %v3138
        %3140 = vmatmul.f32.gmra.mxu0 %v671
        %v3141 = vpop.f32.mrf.mxu0
        %v3142 = vadd.f32 %v2705, %v3141
        %3143 = vmatmul.f32.gmra.mxu0 %v680
        %v3144 = vpop.f32.mrf.mxu0
        %v3145 = vadd.f32 %v2708, %v3144
        %3146 = vmatmul.f32.gmra.mxu0 %v689
        %v3147 = vpop.f32.mrf.mxu0
        %v3148 = vadd.f32 %v2711, %v3147
        %3149 = vmatmul.f32.gmra.mxu0 %v698
        %v3150 = vpop.f32.mrf.mxu0
        %v3151 = vadd.f32 %v2714, %v3150
        %3152 = vmatmul.f32.gmra.mxu0 %v707
        %v3153 = vpop.f32.mrf.mxu0
        %v3154 = vadd.f32 %v2717, %v3153
        %3155 = vmatmul.f32.gmra.mxu0 %v716
        %v3156 = vpop.f32.mrf.mxu0
        %v3157 = vadd.f32 %v2720, %v3156
        %3158 = vmatmul.f32.gmra.mxu0 %v725
        %v3159 = vpop.f32.mrf.mxu0
        %v3160 = vadd.f32 %v2723, %v3159
        %3161 = vmatmul.f32.gmra.mxu0 %v734
        %v3162 = vpop.f32.mrf.mxu0
        %v3163 = vadd.f32 %v2726, %v3162
        %3164 = vmatmul.f32.gmra.mxu0 %v743
        %v3165 = vpop.f32.mrf.mxu0
        %v3166 = vadd.f32 %v2729, %v3165
        %3167 = vmatmul.f32.gmra.mxu0 %v752
        %v3168 = vpop.f32.mrf.mxu0
        %v3169 = vadd.f32 %v2732, %v3168
        %3170 = vmatmul.f32.gmra.mxu0 %v761
        %v3171 = vpop.f32.mrf.mxu0
        %v3172 = vadd.f32 %v2735, %v3171
        %3173 = vmatmul.f32.gmra.mxu0 %v770
        %v3174 = vpop.f32.mrf.mxu0
        %v3175 = vadd.f32 %v2738, %v3174
        %3176 = vmatmul.f32.gmra.mxu0 %v779
        %v3177 = vpop.f32.mrf.mxu0
        %v3178 = vadd.f32 %v2741, %v3177
        %3179 = vmatmul.f32.gmra.mxu0 %v788
        %v3180 = vpop.f32.mrf.mxu0
        %v3181 = vadd.f32 %v2744, %v3180
        %3182 = vmatmul.f32.gmra.mxu0 %v797
        %v3183 = vpop.f32.mrf.mxu0
        %v3184 = vadd.f32 %v2747, %v3183
        %3185 = vmatmul.f32.gmra.mxu0 %v806
        %v3186 = vpop.f32.mrf.mxu0
        %v3187 = vadd.f32 %v2750, %v3186
        %3188 = vmatmul.f32.gmra.mxu0 %v815
        %v3189 = vpop.f32.mrf.mxu0
        %v3190 = vadd.f32 %v2753, %v3189
        %3191 = vmatmul.f32.gmra.mxu0 %v824
        %v3192 = vpop.f32.mrf.mxu0
        %v3193 = vadd.f32 %v2756, %v3192
        %3194 = vmatmul.f32.gmra.mxu0 %v833
        %v3195 = vpop.f32.mrf.mxu0
        %v3196 = vadd.f32 %v2759, %v3195
        %3197 = vmatmul.f32.gmra.mxu0 %v842
        %v3198 = vpop.f32.mrf.mxu0
        %v3199 = vadd.f32 %v2762, %v3198
        %3200 = vmatmul.f32.gmra.mxu0 %v851
        %v3201 = vpop.f32.mrf.mxu0
        %v3202 = vadd.f32 %v2765, %v3201
        %3203 = vmatmul.f32.gmra.mxu0 %v860
        %v3204 = vpop.f32.mrf.mxu0
        %v3205 = vadd.f32 %v2768, %v3204
        %3206 = vmatmul.f32.gmra.mxu0 %v869
        %v3207 = vpop.f32.mrf.mxu0
        %v3208 = vadd.f32 %v2771, %v3207
        %3209 = vmatmul.f32.gmra.mxu0 %v878
        %v3210 = vpop.f32.mrf.mxu0
        %v3211 = vadd.f32 %v2774, %v3210
        %3212 = vmatmul.f32.gmra.mxu0 %v887
        %v3213 = vpop.f32.mrf.mxu0
        %v3214 = vadd.f32 %v2777, %v3213
        %3215 = vmatmul.f32.gmra.mxu0 %v896
        %v3216 = vpop.f32.mrf.mxu0
        %v3217 = vadd.f32 %v2780, %v3216
        %3218 = vmatmul.f32.gmra.mxu0 %v905
        %v3219 = vpop.f32.mrf.mxu0
        %v3220 = vadd.f32 %v2783, %v3219
        %3221 = vmatmul.f32.gmra.mxu0 %v914
        %v3222 = vpop.f32.mrf.mxu0
        %v3223 = vadd.f32 %v2786, %v3222
        %3224 = vmatmul.f32.gmra.mxu0 %v923
        %v3225 = vpop.f32.mrf.mxu0
        %v3226 = vadd.f32 %v2789, %v3225
        %3227 = vmatmul.f32.gmra.mxu0 %v932
        %v3228 = vpop.f32.mrf.mxu0
        %v3229 = vadd.f32 %v2792, %v3228
        %3230 = vmatmul.f32.gmra.mxu0 %v941
        %v3231 = vpop.f32.mrf.mxu0
        %v3232 = vadd.f32 %v2795, %v3231
        %3233 = vmatmul.f32.gmra.mxu0 %v950
        %v3234 = vpop.f32.mrf.mxu0
        %v3235 = vadd.f32 %v2798, %v3234
        %3236 = vmatmul.f32.gmra.mxu0 %v959
        %v3237 = vpop.f32.mrf.mxu0
        %v3238 = vadd.f32 %v2801, %v3237
        %3239 = vmatmul.f32.gmra.mxu0 %v968
        %v3240 = vpop.f32.mrf.mxu0
        %v3241 = vadd.f32 %v2804, %v3240
        %3242 = vmatmul.f32.gmra.mxu0 %v977
        %v3243 = vpop.f32.mrf.mxu0
        %v3244 = vadd.f32 %v2807, %v3243
        %3245 = vmatmul.f32.gmra.mxu0 %v986
        %v3246 = vpop.f32.mrf.mxu0
        %v3247 = vadd.f32 %v2810, %v3246
        %3248 = vmatmul.f32.gmra.mxu0 %v995
        %v3249 = vpop.f32.mrf.mxu0
        %v3250 = vadd.f32 %v2813, %v3249
        %3251 = vmatmul.f32.gmra.mxu0 %v1004
        %v3252 = vpop.f32.mrf.mxu0
        %v3253 = vadd.f32 %v2816, %v3252
        %3254 = vmatmul.f32.gmra.mxu0 %v1013
        %v3255 = vpop.f32.mrf.mxu0
        %v3256 = vadd.f32 %v2819, %v3255
        %3257 = vmatmul.f32.gmra.mxu0 %v1022
        %v3258 = vpop.f32.mrf.mxu0
        %v3259 = vadd.f32 %v2822, %v3258
        %3260 = vmatmul.f32.gmra.mxu0 %v1031
        %v3261 = vpop.f32.mrf.mxu0
        %v3262 = vadd.f32 %v2825, %v3261
        %3263 = vmatmul.f32.gmra.mxu0 %v1040
        %v3264 = vpop.f32.mrf.mxu0
        %v3265 = vadd.f32 %v2828, %v3264
        %3266 = vmatmul.f32.gmra.mxu0 %v1049
        %v3267 = vpop.f32.mrf.mxu0
        %v3268 = vadd.f32 %v2831, %v3267
        %3269 = vmatmul.f32.gmra.mxu0 %v1058
        %v3270 = vpop.f32.mrf.mxu0
        %v3271 = vadd.f32 %v2834, %v3270
        %3272 = vmatmul.f32.gmra.mxu0 %v1067
        %v3273 = vpop.f32.mrf.mxu0
        %v3274 = vadd.f32 %v2837, %v3273
        %3275 = vmatmul.f32.gmra.mxu0 %v1076
        %v3276 = vpop.f32.mrf.mxu0
        %v3277 = vadd.f32 %v2840, %v3276
        %3278 = vmatmul.f32.gmra.mxu0 %v1085
        %v3279 = vpop.f32.mrf.mxu0
        %v3280 = vadd.f32 %v2843, %v3279
        %3281 = vmatmul.f32.gmra.mxu0 %v1094
        %v3282 = vpop.f32.mrf.mxu0
        %v3283 = vadd.f32 %v2846, %v3282
        %3284 = vmatmul.f32.gmra.mxu0 %v1103
        %v3285 = vpop.f32.mrf.mxu0
        %v3286 = vadd.f32 %v2849, %v3285
        %3287 = vmatmul.f32.gmra.mxu0 %v1112
        %v3288 = vpop.f32.mrf.mxu0
        %v3289 = vadd.f32 %v2852, %v3288
        %3290 = vmatmul.f32.gmra.mxu0 %v1121
        %v3291 = vpop.f32.mrf.mxu0
        %v3292 = vadd.f32 %v2855, %v3291
        %3293 = vmatmul.f32.gmra.mxu0 %v1130
        %v3294 = vpop.f32.mrf.mxu0
        %v3295 = vadd.f32 %v2858, %v3294
        %3296 = vmatmul.f32.gmra.mxu0 %v1139
        %v3297 = vpop.f32.mrf.mxu0
        %v3298 = vadd.f32 %v2861, %v3297
        %3299 = vmatmul.f32.gmra.mxu0 %v1148
        %v3300 = vpop.f32.mrf.mxu0
        %v3301 = vadd.f32 %v2864, %v3300
        %3302 = vmatmul.f32.gmra.mxu0 %v1157
        %v3303 = vpop.f32.mrf.mxu0
        %v3304 = vadd.f32 %v2867, %v3303
        %3305 = vmatmul.f32.gmra.mxu0 %v1166
        %v3306 = vpop.f32.mrf.mxu0
        %v3307 = vadd.f32 %v2870, %v3306
        %3308 = vmatmul.f32.gmra.mxu0 %v1175
        %v3309 = vpop.f32.mrf.mxu0
        %v3310 = vadd.f32 %v2873, %v3309
        %3311 = vmatmul.f32.gmra.mxu0 %v1184
        %v3312 = vpop.f32.mrf.mxu0
        %v3313 = vadd.f32 %v2876, %v3312
        %3314 = vmatmul.f32.gmra.mxu0 %v1193
        %v3315 = vpop.f32.mrf.mxu0
        %v3316 = vadd.f32 %v2879, %v3315
        %3317 = vmatmul.f32.gmra.mxu0 %v1202
        %v3318 = vpop.f32.mrf.mxu0
        %v3319 = vadd.f32 %v2882, %v3318
        %3320 = vmatmul.f32.gmra.mxu0 %v1211
        %v3321 = vpop.f32.mrf.mxu0
        %v3322 = vadd.f32 %v2885, %v3321
        %3323 = vmatmul.f32.gmra.mxu0 %v1220
        %v3324 = vpop.f32.mrf.mxu0
        %v3325 = vadd.f32 %v2888, %v3324
        %3326 = vmatmul.f32.gmra.mxu0 %v1229
        %v3327 = vpop.f32.mrf.mxu0
        %v3328 = vadd.f32 %v2891, %v3327
        %3329 = vmatmul.f32.gmra.mxu0 %v1238
        %v3330 = vpop.f32.mrf.mxu0
        %v3331 = vadd.f32 %v2894, %v3330
        %3332 = vmatmul.f32.gmra.mxu0 %v1247
        %v3333 = vpop.f32.mrf.mxu0
        %v3334 = vadd.f32 %v2897, %v3333
        %3335 = vmatmul.f32.gmra.mxu0 %v1256
        %v3336 = vpop.f32.mrf.mxu0
        %v3337 = vadd.f32 %v2900, %v3336
        %3338 = vmatmul.f32.gmra.mxu0 %v1265
        %v3339 = vpop.f32.mrf.mxu0
        %v3340 = vadd.f32 %v2903, %v3339
        %3341 = vmatmul.f32.gmra.mxu0 %v1274
        %v3342 = vpop.f32.mrf.mxu0
        %v3343 = vadd.f32 %v2906, %v3342
        %3344 = vmatmul.f32.gmra.mxu0 %v1283
        %v3345 = vpop.f32.mrf.mxu0
        %v3346 = vadd.f32 %v2909, %v3345
        %3347 = vmatmul.f32.gmra.mxu0 %v1292
        %v3348 = vpop.f32.mrf.mxu0
        %v3349 = vadd.f32 %v2912, %v3348
        %3350 = vmatmul.f32.gmra.mxu0 %v1301
        %v3351 = vpop.f32.mrf.mxu0
        %v3352 = vadd.f32 %v2915, %v3351
        %3353 = vmatmul.f32.gmra.mxu0 %v1310
        %v3354 = vpop.f32.mrf.mxu0
        %v3355 = vadd.f32 %v2918, %v3354
        %3356 = vmatmul.f32.gmra.mxu0 %v1319
        %v3357 = vpop.f32.mrf.mxu0
        %v3358 = vadd.f32 %v2921, %v3357
        %3359 = vmatmul.f32.gmra.mxu0 %v1328
        %v3360 = vpop.f32.mrf.mxu0
        %v3361 = vadd.f32 %v2924, %v3360
        %3362 = vmatmul.f32.gmra.mxu0 %v1337
        %v3363 = vpop.f32.mrf.mxu0
        %v3364 = vadd.f32 %v2927, %v3363
        %3365 = vmatmul.f32.gmra.mxu0 %v1346
        %v3366 = vpop.f32.mrf.mxu0
        %v3367 = vadd.f32 %v2930, %v3366
        %3368 = vmatmul.f32.gmra.mxu0 %v1355
        %v3369 = vpop.f32.mrf.mxu0
        %v3370 = vadd.f32 %v2933, %v3369
        %3371 = vmatmul.f32.gmra.mxu0 %v1364
        %v3372 = vpop.f32.mrf.mxu0
        %v3373 = vadd.f32 %v2936, %v3372
        %3374 = vmatmul.f32.gmra.mxu0 %v1373
        %v3375 = vpop.f32.mrf.mxu0
        %v3376 = vadd.f32 %v2939, %v3375
        %3377 = vmatmul.f32.gmra.mxu0 %v1382
        %v3378 = vpop.f32.mrf.mxu0
        %v3379 = vadd.f32 %v2942, %v3378
        %3380 = vmatmul.f32.gmra.mxu0 %v1391
        %v3381 = vpop.f32.mrf.mxu0
        %v3382 = vadd.f32 %v2945, %v3381
        %3383 = vmatmul.f32.gmra.mxu0 %v1400
        %v3384 = vpop.f32.mrf.mxu0
        %v3385 = vadd.f32 %v2948, %v3384
        %3386 = vmatmul.f32.gmra.mxu0 %v1409
        %v3387 = vpop.f32.mrf.mxu0
        %v3388 = vadd.f32 %v2951, %v3387
        %3389 = vmatmul.f32.gmra.mxu0 %v1418
        %v3390 = vpop.f32.mrf.mxu0
        %v3391 = vadd.f32 %v2954, %v3390
        %3392 = vmatmul.f32.gmra.mxu0 %v1427
        %v3393 = vpop.f32.mrf.mxu0
        %v3394 = vadd.f32 %v2957, %v3393
        %3395 = vmatmul.f32.gmra.mxu0 %v1436
        %v3396 = vpop.f32.mrf.mxu0
        %v3397 = vadd.f32 %v2960, %v3396
        %3398 = vmatmul.f32.gmra.mxu0 %v1445
        %v3399 = vpop.f32.mrf.mxu0
        %v3400 = vadd.f32 %v2963, %v3399
        %3401 = vmatmul.f32.gmra.mxu0 %v1454
        %v3402 = vpop.f32.mrf.mxu0
        %v3403 = vadd.f32 %v2966, %v3402
        %3404 = vmatmul.f32.gmra.mxu0 %v1463
        %v3405 = vpop.f32.mrf.mxu0
        %v3406 = vadd.f32 %v2969, %v3405
        %3407 = vmatmul.f32.gmra.mxu0 %v1472
        %v3408 = vpop.f32.mrf.mxu0
        %v3409 = vadd.f32 %v2972, %v3408
        %3410 = vmatmul.f32.gmra.mxu0 %v1481
        %v3411 = vpop.f32.mrf.mxu0
        %v3412 = vadd.f32 %v2975, %v3411
        %3413 = vmatmul.f32.gmra.mxu0 %v1490
        %v3414 = vpop.f32.mrf.mxu0
        %v3415 = vadd.f32 %v2978, %v3414
        %3416 = vmatmul.f32.gmra.mxu0 %v1499
        %v3417 = vpop.f32.mrf.mxu0
        %v3418 = vadd.f32 %v2981, %v3417
        %3419 = vmatmul.f32.gmra.mxu0 %v1508
        %v3420 = vpop.f32.mrf.mxu0
        %v3421 = vadd.f32 %v2984, %v3420
        %3422 = vmatmul.f32.gmra.mxu0 %v1517
        %v3423 = vpop.f32.mrf.mxu0
        %v3424 = vadd.f32 %v2987, %v3423
        %3425 = vmatmul.f32.gmra.mxu0 %v1526
        %v3426 = vpop.f32.mrf.mxu0
        %v3427 = vadd.f32 %v2990, %v3426
        %3428 = vmatmul.f32.gmra.mxu0 %v1535
        %v3429 = vpop.f32.mrf.mxu0
        %v3430 = vadd.f32 %v2993, %v3429
        %3431 = vmatmul.f32.gmra.mxu0 %v1544
        %v3432 = vpop.f32.mrf.mxu0
        %v3433 = vadd.f32 %v2996, %v3432
        %3434 = vmatmul.f32.gmra.mxu0 %v1553
        %v3435 = vpop.f32.mrf.mxu0
        %v3436 = vadd.f32 %v2999, %v3435
        %3437 = vmatmul.f32.gmra.mxu0 %v1562
        %v3438 = vpop.f32.mrf.mxu0
        %v3439 = vadd.f32 %v3002, %v3438
        %3440 = vdwg.mxu0
        %3441 = vmatpush.msra.mxu0 %v1632
        %3442 = vmatpush.msra.mxu0 %v1631
        %3443 = vmatpush.msra.mxu0 %v1630
        %3444 = vmatpush.msra.mxu0 %v1629
        %3445 = vmatpush.msra.mxu0 %v1628
        %3446 = vmatpush.msra.mxu0 %v1627
        %3447 = vmatpush.msra.mxu0 %v1626
        %3448 = vmatpush.msra.mxu0 %v1625
        %3449 = vmatpush.msra.mxu0 %v1624
        %3450 = vmatpush.msra.mxu0 %v1623
        %3451 = vmatpush.msra.mxu0 %v1622
        %3452 = vmatpush.msra.mxu0 %v1621
        %3453 = vmatpush.msra.mxu0 %v1620
        %3454 = vmatpush.msra.mxu0 %v1619
        %3455 = vmatpush.msra.mxu0 %v1618
        %3456 = vmatpush.msra.mxu0 %v1617
        %3457 = vmatmul.f32.gmra.mxu0 %v312
        %v3458 = vpop.f32.mrf.mxu0
        %v3459 = vadd.f32 %v3022, %v3458
        %3460 = vmatmul.f32.gmra.mxu0 %v321
        %v3461 = vpop.f32.mrf.mxu0
        %v3462 = vadd.f32 %v3025, %v3461
        %3463 = vmatmul.f32.gmra.mxu0 %v330
        %v3464 = vpop.f32.mrf.mxu0
        %v3465 = vadd.f32 %v3028, %v3464
        %3466 = vmatmul.f32.gmra.mxu0 %v339
        %v3467 = vpop.f32.mrf.mxu0
        %v3468 = vadd.f32 %v3031, %v3467
        %3469 = vmatmul.f32.gmra.mxu0 %v348
        %v3470 = vpop.f32.mrf.mxu0
        %v3471 = vadd.f32 %v3034, %v3470
        %3472 = vmatmul.f32.gmra.mxu0 %v357
        %v3473 = vpop.f32.mrf.mxu0
        %v3474 = vadd.f32 %v3037, %v3473
        %3475 = vmatmul.f32.gmra.mxu0 %v366
        %v3476 = vpop.f32.mrf.mxu0
        %v3477 = vadd.f32 %v3040, %v3476
        %3478 = vmatmul.f32.gmra.mxu0 %v375
        %v3479 = vpop.f32.mrf.mxu0
        %v3480 = vadd.f32 %v3043, %v3479
        %3481 = vmatmul.f32.gmra.mxu0 %v384
        %v3482 = vpop.f32.mrf.mxu0
        %v3483 = vadd.f32 %v3046, %v3482
        %3484 = vmatmul.f32.gmra.mxu0 %v393
        %v3485 = vpop.f32.mrf.mxu0
        %v3486 = vadd.f32 %v3049, %v3485
        %3487 = vmatmul.f32.gmra.mxu0 %v402
        %v3488 = vpop.f32.mrf.mxu0
        %v3489 = vadd.f32 %v3052, %v3488
        %3490 = vmatmul.f32.gmra.mxu0 %v411
        %v3491 = vpop.f32.mrf.mxu0
        %v3492 = vadd.f32 %v3055, %v3491
        %3493 = vmatmul.f32.gmra.mxu0 %v420
        %v3494 = vpop.f32.mrf.mxu0
        %v3495 = vadd.f32 %v3058, %v3494
        %3496 = vmatmul.f32.gmra.mxu0 %v429
        %v3497 = vpop.f32.mrf.mxu0
        %v3498 = vadd.f32 %v3061, %v3497
        %3499 = vmatmul.f32.gmra.mxu0 %v438
        %v3500 = vpop.f32.mrf.mxu0
        %v3501 = vadd.f32 %v3064, %v3500
        %3502 = vmatmul.f32.gmra.mxu0 %v447
        %v3503 = vpop.f32.mrf.mxu0
        %v3504 = vadd.f32 %v3067, %v3503
        %3505 = vmatmul.f32.gmra.mxu0 %v456
        %v3506 = vpop.f32.mrf.mxu0
        %v3507 = vadd.f32 %v3070, %v3506
        %3508 = vmatmul.f32.gmra.mxu0 %v465
        %v3509 = vpop.f32.mrf.mxu0
        %v3510 = vadd.f32 %v3073, %v3509
        %3511 = vmatmul.f32.gmra.mxu0 %v474
        %v3512 = vpop.f32.mrf.mxu0
        %v3513 = vadd.f32 %v3076, %v3512
        %3514 = vmatmul.f32.gmra.mxu0 %v483
        %v3515 = vpop.f32.mrf.mxu0
        %v3516 = vadd.f32 %v3079, %v3515
        %3517 = vmatmul.f32.gmra.mxu0 %v492
        %v3518 = vpop.f32.mrf.mxu0
        %v3519 = vadd.f32 %v3082, %v3518
        %3520 = vmatmul.f32.gmra.mxu0 %v501
        %v3521 = vpop.f32.mrf.mxu0
        %v3522 = vadd.f32 %v3085, %v3521
        %3523 = vmatmul.f32.gmra.mxu0 %v510
        %v3524 = vpop.f32.mrf.mxu0
        %v3525 = vadd.f32 %v3088, %v3524
        %3526 = vmatmul.f32.gmra.mxu0 %v519
        %v3527 = vpop.f32.mrf.mxu0
        %v3528 = vadd.f32 %v3091, %v3527
        %3529 = vmatmul.f32.gmra.mxu0 %v528
        %v3530 = vpop.f32.mrf.mxu0
        %v3531 = vadd.f32 %v3094, %v3530
        %3532 = vmatmul.f32.gmra.mxu0 %v537
        %v3533 = vpop.f32.mrf.mxu0
        %v3534 = vadd.f32 %v3097, %v3533
        %3535 = vmatmul.f32.gmra.mxu0 %v546
        %v3536 = vpop.f32.mrf.mxu0
        %v3537 = vadd.f32 %v3100, %v3536
        %3538 = vmatmul.f32.gmra.mxu0 %v555
        %v3539 = vpop.f32.mrf.mxu0
        %v3540 = vadd.f32 %v3103, %v3539
        %3541 = vmatmul.f32.gmra.mxu0 %v564
        %v3542 = vpop.f32.mrf.mxu0
        %v3543 = vadd.f32 %v3106, %v3542
        %3544 = vmatmul.f32.gmra.mxu0 %v573
        %v3545 = vpop.f32.mrf.mxu0
        %v3546 = vadd.f32 %v3109, %v3545
        %3547 = vmatmul.f32.gmra.mxu0 %v582
        %v3548 = vpop.f32.mrf.mxu0
        %v3549 = vadd.f32 %v3112, %v3548
        %3550 = vmatmul.f32.gmra.mxu0 %v591
        %v3551 = vpop.f32.mrf.mxu0
        %v3552 = vadd.f32 %v3115, %v3551
        %3553 = vmatmul.f32.gmra.mxu0 %v600
        %v3554 = vpop.f32.mrf.mxu0
        %v3555 = vadd.f32 %v3118, %v3554
        %3556 = vmatmul.f32.gmra.mxu0 %v609
        %v3557 = vpop.f32.mrf.mxu0
        %v3558 = vadd.f32 %v3121, %v3557
        %3559 = vmatmul.f32.gmra.mxu0 %v618
        %v3560 = vpop.f32.mrf.mxu0
        %v3561 = vadd.f32 %v3124, %v3560
        %3562 = vmatmul.f32.gmra.mxu0 %v627
        %v3563 = vpop.f32.mrf.mxu0
        %v3564 = vadd.f32 %v3127, %v3563
        %3565 = vmatmul.f32.gmra.mxu0 %v636
        %v3566 = vpop.f32.mrf.mxu0
        %v3567 = vadd.f32 %v3130, %v3566
        %3568 = vmatmul.f32.gmra.mxu0 %v645
        %v3569 = vpop.f32.mrf.mxu0
        %v3570 = vadd.f32 %v3133, %v3569
        %3571 = vmatmul.f32.gmra.mxu0 %v654
        %v3572 = vpop.f32.mrf.mxu0
        %v3573 = vadd.f32 %v3136, %v3572
        %3574 = vmatmul.f32.gmra.mxu0 %v663
        %v3575 = vpop.f32.mrf.mxu0
        %v3576 = vadd.f32 %v3139, %v3575
        %3577 = vmatmul.f32.gmra.mxu0 %v672
        %v3578 = vpop.f32.mrf.mxu0
        %v3579 = vadd.f32 %v3142, %v3578
        %3580 = vmatmul.f32.gmra.mxu0 %v681
        %v3581 = vpop.f32.mrf.mxu0
        %v3582 = vadd.f32 %v3145, %v3581
        %3583 = vmatmul.f32.gmra.mxu0 %v690
        %v3584 = vpop.f32.mrf.mxu0
        %v3585 = vadd.f32 %v3148, %v3584
        %3586 = vmatmul.f32.gmra.mxu0 %v699
        %v3587 = vpop.f32.mrf.mxu0
        %v3588 = vadd.f32 %v3151, %v3587
        %3589 = vmatmul.f32.gmra.mxu0 %v708
        %v3590 = vpop.f32.mrf.mxu0
        %v3591 = vadd.f32 %v3154, %v3590
        %3592 = vmatmul.f32.gmra.mxu0 %v717
        %v3593 = vpop.f32.mrf.mxu0
        %v3594 = vadd.f32 %v3157, %v3593
        %3595 = vmatmul.f32.gmra.mxu0 %v726
        %v3596 = vpop.f32.mrf.mxu0
        %v3597 = vadd.f32 %v3160, %v3596
        %3598 = vmatmul.f32.gmra.mxu0 %v735
        %v3599 = vpop.f32.mrf.mxu0
        %v3600 = vadd.f32 %v3163, %v3599
        %3601 = vmatmul.f32.gmra.mxu0 %v744
        %v3602 = vpop.f32.mrf.mxu0
        %v3603 = vadd.f32 %v3166, %v3602
        %3604 = vmatmul.f32.gmra.mxu0 %v753
        %v3605 = vpop.f32.mrf.mxu0
        %v3606 = vadd.f32 %v3169, %v3605
        %3607 = vmatmul.f32.gmra.mxu0 %v762
        %v3608 = vpop.f32.mrf.mxu0
        %v3609 = vadd.f32 %v3172, %v3608
        %3610 = vmatmul.f32.gmra.mxu0 %v771
        %v3611 = vpop.f32.mrf.mxu0
        %v3612 = vadd.f32 %v3175, %v3611
        %3613 = vmatmul.f32.gmra.mxu0 %v780
        %v3614 = vpop.f32.mrf.mxu0
        %v3615 = vadd.f32 %v3178, %v3614
        %3616 = vmatmul.f32.gmra.mxu0 %v789
        %v3617 = vpop.f32.mrf.mxu0
        %v3618 = vadd.f32 %v3181, %v3617
        %3619 = vmatmul.f32.gmra.mxu0 %v798
        %v3620 = vpop.f32.mrf.mxu0
        %v3621 = vadd.f32 %v3184, %v3620
        %3622 = vmatmul.f32.gmra.mxu0 %v807
        %v3623 = vpop.f32.mrf.mxu0
        %v3624 = vadd.f32 %v3187, %v3623
        %3625 = vmatmul.f32.gmra.mxu0 %v816
        %v3626 = vpop.f32.mrf.mxu0
        %v3627 = vadd.f32 %v3190, %v3626
        %3628 = vmatmul.f32.gmra.mxu0 %v825
        %v3629 = vpop.f32.mrf.mxu0
        %v3630 = vadd.f32 %v3193, %v3629
        %3631 = vmatmul.f32.gmra.mxu0 %v834
        %v3632 = vpop.f32.mrf.mxu0
        %v3633 = vadd.f32 %v3196, %v3632
        %3634 = vmatmul.f32.gmra.mxu0 %v843
        %v3635 = vpop.f32.mrf.mxu0
        %v3636 = vadd.f32 %v3199, %v3635
        %3637 = vmatmul.f32.gmra.mxu0 %v852
        %v3638 = vpop.f32.mrf.mxu0
        %v3639 = vadd.f32 %v3202, %v3638
        %3640 = vmatmul.f32.gmra.mxu0 %v861
        %v3641 = vpop.f32.mrf.mxu0
        %v3642 = vadd.f32 %v3205, %v3641
        %3643 = vmatmul.f32.gmra.mxu0 %v870
        %v3644 = vpop.f32.mrf.mxu0
        %v3645 = vadd.f32 %v3208, %v3644
        %3646 = vmatmul.f32.gmra.mxu0 %v879
        %v3647 = vpop.f32.mrf.mxu0
        %v3648 = vadd.f32 %v3211, %v3647
        %3649 = vmatmul.f32.gmra.mxu0 %v888
        %v3650 = vpop.f32.mrf.mxu0
        %v3651 = vadd.f32 %v3214, %v3650
        %3652 = vmatmul.f32.gmra.mxu0 %v897
        %v3653 = vpop.f32.mrf.mxu0
        %v3654 = vadd.f32 %v3217, %v3653
        %3655 = vmatmul.f32.gmra.mxu0 %v906
        %v3656 = vpop.f32.mrf.mxu0
        %v3657 = vadd.f32 %v3220, %v3656
        %3658 = vmatmul.f32.gmra.mxu0 %v915
        %v3659 = vpop.f32.mrf.mxu0
        %v3660 = vadd.f32 %v3223, %v3659
        %3661 = vmatmul.f32.gmra.mxu0 %v924
        %v3662 = vpop.f32.mrf.mxu0
        %v3663 = vadd.f32 %v3226, %v3662
        %3664 = vmatmul.f32.gmra.mxu0 %v933
        %v3665 = vpop.f32.mrf.mxu0
        %v3666 = vadd.f32 %v3229, %v3665
        %3667 = vmatmul.f32.gmra.mxu0 %v942
        %v3668 = vpop.f32.mrf.mxu0
        %v3669 = vadd.f32 %v3232, %v3668
        %3670 = vmatmul.f32.gmra.mxu0 %v951
        %v3671 = vpop.f32.mrf.mxu0
        %v3672 = vadd.f32 %v3235, %v3671
        %3673 = vmatmul.f32.gmra.mxu0 %v960
        %v3674 = vpop.f32.mrf.mxu0
        %v3675 = vadd.f32 %v3238, %v3674
        %3676 = vmatmul.f32.gmra.mxu0 %v969
        %v3677 = vpop.f32.mrf.mxu0
        %v3678 = vadd.f32 %v3241, %v3677
        %3679 = vmatmul.f32.gmra.mxu0 %v978
        %v3680 = vpop.f32.mrf.mxu0
        %v3681 = vadd.f32 %v3244, %v3680
        %3682 = vmatmul.f32.gmra.mxu0 %v987
        %v3683 = vpop.f32.mrf.mxu0
        %v3684 = vadd.f32 %v3247, %v3683
        %3685 = vmatmul.f32.gmra.mxu0 %v996
        %v3686 = vpop.f32.mrf.mxu0
        %v3687 = vadd.f32 %v3250, %v3686
        %3688 = vmatmul.f32.gmra.mxu0 %v1005
        %v3689 = vpop.f32.mrf.mxu0
        %v3690 = vadd.f32 %v3253, %v3689
        %3691 = vmatmul.f32.gmra.mxu0 %v1014
        %v3692 = vpop.f32.mrf.mxu0
        %v3693 = vadd.f32 %v3256, %v3692
        %3694 = vmatmul.f32.gmra.mxu0 %v1023
        %v3695 = vpop.f32.mrf.mxu0
        %v3696 = vadd.f32 %v3259, %v3695
        %3697 = vmatmul.f32.gmra.mxu0 %v1032
        %v3698 = vpop.f32.mrf.mxu0
        %v3699 = vadd.f32 %v3262, %v3698
        %3700 = vmatmul.f32.gmra.mxu0 %v1041
        %v3701 = vpop.f32.mrf.mxu0
        %v3702 = vadd.f32 %v3265, %v3701
        %3703 = vmatmul.f32.gmra.mxu0 %v1050
        %v3704 = vpop.f32.mrf.mxu0
        %v3705 = vadd.f32 %v3268, %v3704
        %3706 = vmatmul.f32.gmra.mxu0 %v1059
        %v3707 = vpop.f32.mrf.mxu0
        %v3708 = vadd.f32 %v3271, %v3707
        %3709 = vmatmul.f32.gmra.mxu0 %v1068
        %v3710 = vpop.f32.mrf.mxu0
        %v3711 = vadd.f32 %v3274, %v3710
        %3712 = vmatmul.f32.gmra.mxu0 %v1077
        %v3713 = vpop.f32.mrf.mxu0
        %v3714 = vadd.f32 %v3277, %v3713
        %3715 = vmatmul.f32.gmra.mxu0 %v1086
        %v3716 = vpop.f32.mrf.mxu0
        %v3717 = vadd.f32 %v3280, %v3716
        %3718 = vmatmul.f32.gmra.mxu0 %v1095
        %v3719 = vpop.f32.mrf.mxu0
        %v3720 = vadd.f32 %v3283, %v3719
        %3721 = vmatmul.f32.gmra.mxu0 %v1104
        %v3722 = vpop.f32.mrf.mxu0
        %v3723 = vadd.f32 %v3286, %v3722
        %3724 = vmatmul.f32.gmra.mxu0 %v1113
        %v3725 = vpop.f32.mrf.mxu0
        %v3726 = vadd.f32 %v3289, %v3725
        %3727 = vmatmul.f32.gmra.mxu0 %v1122
        %v3728 = vpop.f32.mrf.mxu0
        %v3729 = vadd.f32 %v3292, %v3728
        %3730 = vmatmul.f32.gmra.mxu0 %v1131
        %v3731 = vpop.f32.mrf.mxu0
        %v3732 = vadd.f32 %v3295, %v3731
        %3733 = vmatmul.f32.gmra.mxu0 %v1140
        %v3734 = vpop.f32.mrf.mxu0
        %v3735 = vadd.f32 %v3298, %v3734
        %3736 = vmatmul.f32.gmra.mxu0 %v1149
        %v3737 = vpop.f32.mrf.mxu0
        %v3738 = vadd.f32 %v3301, %v3737
        %3739 = vmatmul.f32.gmra.mxu0 %v1158
        %v3740 = vpop.f32.mrf.mxu0
        %v3741 = vadd.f32 %v3304, %v3740
        %3742 = vmatmul.f32.gmra.mxu0 %v1167
        %v3743 = vpop.f32.mrf.mxu0
        %v3744 = vadd.f32 %v3307, %v3743
        %3745 = vmatmul.f32.gmra.mxu0 %v1176
        %v3746 = vpop.f32.mrf.mxu0
        %v3747 = vadd.f32 %v3310, %v3746
        %3748 = vmatmul.f32.gmra.mxu0 %v1185
        %v3749 = vpop.f32.mrf.mxu0
        %v3750 = vadd.f32 %v3313, %v3749
        %3751 = vmatmul.f32.gmra.mxu0 %v1194
        %v3752 = vpop.f32.mrf.mxu0
        %v3753 = vadd.f32 %v3316, %v3752
        %3754 = vmatmul.f32.gmra.mxu0 %v1203
        %v3755 = vpop.f32.mrf.mxu0
        %v3756 = vadd.f32 %v3319, %v3755
        %3757 = vmatmul.f32.gmra.mxu0 %v1212
        %v3758 = vpop.f32.mrf.mxu0
        %v3759 = vadd.f32 %v3322, %v3758
        %3760 = vmatmul.f32.gmra.mxu0 %v1221
        %v3761 = vpop.f32.mrf.mxu0
        %v3762 = vadd.f32 %v3325, %v3761
        %3763 = vmatmul.f32.gmra.mxu0 %v1230
        %v3764 = vpop.f32.mrf.mxu0
        %v3765 = vadd.f32 %v3328, %v3764
        %3766 = vmatmul.f32.gmra.mxu0 %v1239
        %v3767 = vpop.f32.mrf.mxu0
        %v3768 = vadd.f32 %v3331, %v3767
        %3769 = vmatmul.f32.gmra.mxu0 %v1248
        %v3770 = vpop.f32.mrf.mxu0
        %v3771 = vadd.f32 %v3334, %v3770
        %3772 = vmatmul.f32.gmra.mxu0 %v1257
        %v3773 = vpop.f32.mrf.mxu0
        %v3774 = vadd.f32 %v3337, %v3773
        %3775 = vmatmul.f32.gmra.mxu0 %v1266
        %v3776 = vpop.f32.mrf.mxu0
        %v3777 = vadd.f32 %v3340, %v3776
        %3778 = vmatmul.f32.gmra.mxu0 %v1275
        %v3779 = vpop.f32.mrf.mxu0
        %v3780 = vadd.f32 %v3343, %v3779
        %3781 = vmatmul.f32.gmra.mxu0 %v1284
        %v3782 = vpop.f32.mrf.mxu0
        %v3783 = vadd.f32 %v3346, %v3782
        %3784 = vmatmul.f32.gmra.mxu0 %v1293
        %v3785 = vpop.f32.mrf.mxu0
        %v3786 = vadd.f32 %v3349, %v3785
        %3787 = vmatmul.f32.gmra.mxu0 %v1302
        %v3788 = vpop.f32.mrf.mxu0
        %v3789 = vadd.f32 %v3352, %v3788
        %3790 = vmatmul.f32.gmra.mxu0 %v1311
        %v3791 = vpop.f32.mrf.mxu0
        %v3792 = vadd.f32 %v3355, %v3791
        %3793 = vmatmul.f32.gmra.mxu0 %v1320
        %v3794 = vpop.f32.mrf.mxu0
        %v3795 = vadd.f32 %v3358, %v3794
        %3796 = vmatmul.f32.gmra.mxu0 %v1329
        %v3797 = vpop.f32.mrf.mxu0
        %v3798 = vadd.f32 %v3361, %v3797
        %3799 = vmatmul.f32.gmra.mxu0 %v1338
        %v3800 = vpop.f32.mrf.mxu0
        %v3801 = vadd.f32 %v3364, %v3800
        %3802 = vmatmul.f32.gmra.mxu0 %v1347
        %v3803 = vpop.f32.mrf.mxu0
        %v3804 = vadd.f32 %v3367, %v3803
        %3805 = vmatmul.f32.gmra.mxu0 %v1356
        %v3806 = vpop.f32.mrf.mxu0
        %v3807 = vadd.f32 %v3370, %v3806
        %3808 = vmatmul.f32.gmra.mxu0 %v1365
        %v3809 = vpop.f32.mrf.mxu0
        %v3810 = vadd.f32 %v3373, %v3809
        %3811 = vmatmul.f32.gmra.mxu0 %v1374
        %v3812 = vpop.f32.mrf.mxu0
        %v3813 = vadd.f32 %v3376, %v3812
        %3814 = vmatmul.f32.gmra.mxu0 %v1383
        %v3815 = vpop.f32.mrf.mxu0
        %v3816 = vadd.f32 %v3379, %v3815
        %3817 = vmatmul.f32.gmra.mxu0 %v1392
        %v3818 = vpop.f32.mrf.mxu0
        %v3819 = vadd.f32 %v3382, %v3818
        %3820 = vmatmul.f32.gmra.mxu0 %v1401
        %v3821 = vpop.f32.mrf.mxu0
        %v3822 = vadd.f32 %v3385, %v3821
        %3823 = vmatmul.f32.gmra.mxu0 %v1410
        %v3824 = vpop.f32.mrf.mxu0
        %v3825 = vadd.f32 %v3388, %v3824
        %3826 = vmatmul.f32.gmra.mxu0 %v1419
        %v3827 = vpop.f32.mrf.mxu0
        %v3828 = vadd.f32 %v3391, %v3827
        %3829 = vmatmul.f32.gmra.mxu0 %v1428
        %v3830 = vpop.f32.mrf.mxu0
        %v3831 = vadd.f32 %v3394, %v3830
        %3832 = vmatmul.f32.gmra.mxu0 %v1437
        %v3833 = vpop.f32.mrf.mxu0
        %v3834 = vadd.f32 %v3397, %v3833
        %3835 = vmatmul.f32.gmra.mxu0 %v1446
        %v3836 = vpop.f32.mrf.mxu0
        %v3837 = vadd.f32 %v3400, %v3836
        %3838 = vmatmul.f32.gmra.mxu0 %v1455
        %v3839 = vpop.f32.mrf.mxu0
        %v3840 = vadd.f32 %v3403, %v3839
        %3841 = vmatmul.f32.gmra.mxu0 %v1464
        %v3842 = vpop.f32.mrf.mxu0
        %v3843 = vadd.f32 %v3406, %v3842
        %3844 = vmatmul.f32.gmra.mxu0 %v1473
        %v3845 = vpop.f32.mrf.mxu0
        %v3846 = vadd.f32 %v3409, %v3845
        %3847 = vmatmul.f32.gmra.mxu0 %v1482
        %v3848 = vpop.f32.mrf.mxu0
        %v3849 = vadd.f32 %v3412, %v3848
        %3850 = vmatmul.f32.gmra.mxu0 %v1491
        %v3851 = vpop.f32.mrf.mxu0
        %v3852 = vadd.f32 %v3415, %v3851
        %3853 = vmatmul.f32.gmra.mxu0 %v1500
        %v3854 = vpop.f32.mrf.mxu0
        %v3855 = vadd.f32 %v3418, %v3854
        %3856 = vmatmul.f32.gmra.mxu0 %v1509
        %v3857 = vpop.f32.mrf.mxu0
        %v3858 = vadd.f32 %v3421, %v3857
        %3859 = vmatmul.f32.gmra.mxu0 %v1518
        %v3860 = vpop.f32.mrf.mxu0
        %v3861 = vadd.f32 %v3424, %v3860
        %3862 = vmatmul.f32.gmra.mxu0 %v1527
        %v3863 = vpop.f32.mrf.mxu0
        %v3864 = vadd.f32 %v3427, %v3863
        %3865 = vmatmul.f32.gmra.mxu0 %v1536
        %v3866 = vpop.f32.mrf.mxu0
        %v3867 = vadd.f32 %v3430, %v3866
        %3868 = vmatmul.f32.gmra.mxu0 %v1545
        %v3869 = vpop.f32.mrf.mxu0
        %v3870 = vadd.f32 %v3433, %v3869
        %3871 = vmatmul.f32.gmra.mxu0 %v1554
        %v3872 = vpop.f32.mrf.mxu0
        %v3873 = vadd.f32 %v3436, %v3872
        %3874 = vmatmul.f32.gmra.mxu0 %v1563
        %v3875 = vpop.f32.mrf.mxu0
        %v3876 = vadd.f32 %v3439, %v3875
        %3877 = vdwg.mxu0
        %3878 = vmatpush.msra.mxu0 %v1648
        %3879 = vmatpush.msra.mxu0 %v1647
        %3880 = vmatpush.msra.mxu0 %v1646
        %3881 = vmatpush.msra.mxu0 %v1645
        %3882 = vmatpush.msra.mxu0 %v1644
        %3883 = vmatpush.msra.mxu0 %v1643
        %3884 = vmatpush.msra.mxu0 %v1642
        %3885 = vmatpush.msra.mxu0 %v1641
        %3886 = vmatpush.msra.mxu0 %v1640
        %3887 = vmatpush.msra.mxu0 %v1639
        %3888 = vmatpush.msra.mxu0 %v1638
        %3889 = vmatpush.msra.mxu0 %v1637
        %3890 = vmatpush.msra.mxu0 %v1636
        %3891 = vmatpush.msra.mxu0 %v1635
        %3892 = vmatpush.msra.mxu0 %v1634
        %3893 = vmatpush.msra.mxu0 %v1633
        %3894 = vmatmul.f32.gmra.mxu0 %v313
        %v3895 = vpop.f32.mrf.mxu0
        %v3896 = vadd.f32 %v3459, %v3895
        %3897 = vmatmul.f32.gmra.mxu0 %v322
        %v3898 = vpop.f32.mrf.mxu0
        %v3899 = vadd.f32 %v3462, %v3898
        %3900 = vmatmul.f32.gmra.mxu0 %v331
        %v3901 = vpop.f32.mrf.mxu0
        %v3902 = vadd.f32 %v3465, %v3901
        %3903 = vmatmul.f32.gmra.mxu0 %v340
        %v3904 = vpop.f32.mrf.mxu0
        %v3905 = vadd.f32 %v3468, %v3904
        %3906 = vmatmul.f32.gmra.mxu0 %v349
        %v3907 = vpop.f32.mrf.mxu0
        %v3908 = vadd.f32 %v3471, %v3907
        %3909 = vmatmul.f32.gmra.mxu0 %v358
        %v3910 = vpop.f32.mrf.mxu0
        %v3911 = vadd.f32 %v3474, %v3910
        %3912 = vmatmul.f32.gmra.mxu0 %v367
        %v3913 = vpop.f32.mrf.mxu0
        %v3914 = vadd.f32 %v3477, %v3913
        %3915 = vmatmul.f32.gmra.mxu0 %v376
        %v3916 = vpop.f32.mrf.mxu0
        %v3917 = vadd.f32 %v3480, %v3916
        %3918 = vmatmul.f32.gmra.mxu0 %v385
        %v3919 = vpop.f32.mrf.mxu0
        %v3920 = vadd.f32 %v3483, %v3919
        %3921 = vmatmul.f32.gmra.mxu0 %v394
        %v3922 = vpop.f32.mrf.mxu0
        %v3923 = vadd.f32 %v3486, %v3922
        %3924 = vmatmul.f32.gmra.mxu0 %v403
        %v3925 = vpop.f32.mrf.mxu0
        %v3926 = vadd.f32 %v3489, %v3925
        %3927 = vmatmul.f32.gmra.mxu0 %v412
        %v3928 = vpop.f32.mrf.mxu0
        %v3929 = vadd.f32 %v3492, %v3928
        %3930 = vmatmul.f32.gmra.mxu0 %v421
        %v3931 = vpop.f32.mrf.mxu0
        %v3932 = vadd.f32 %v3495, %v3931
        %3933 = vmatmul.f32.gmra.mxu0 %v430
        %v3934 = vpop.f32.mrf.mxu0
        %v3935 = vadd.f32 %v3498, %v3934
        %3936 = vmatmul.f32.gmra.mxu0 %v439
        %v3937 = vpop.f32.mrf.mxu0
        %v3938 = vadd.f32 %v3501, %v3937
        %3939 = vmatmul.f32.gmra.mxu0 %v448
        %v3940 = vpop.f32.mrf.mxu0
        %v3941 = vadd.f32 %v3504, %v3940
        %3942 = vmatmul.f32.gmra.mxu0 %v457
        %v3943 = vpop.f32.mrf.mxu0
        %v3944 = vadd.f32 %v3507, %v3943
        %3945 = vmatmul.f32.gmra.mxu0 %v466
        %v3946 = vpop.f32.mrf.mxu0
        %v3947 = vadd.f32 %v3510, %v3946
        %3948 = vmatmul.f32.gmra.mxu0 %v475
        %v3949 = vpop.f32.mrf.mxu0
        %v3950 = vadd.f32 %v3513, %v3949
        %3951 = vmatmul.f32.gmra.mxu0 %v484
        %v3952 = vpop.f32.mrf.mxu0
        %v3953 = vadd.f32 %v3516, %v3952
        %3954 = vmatmul.f32.gmra.mxu0 %v493
        %v3955 = vpop.f32.mrf.mxu0
        %v3956 = vadd.f32 %v3519, %v3955
        %3957 = vmatmul.f32.gmra.mxu0 %v502
        %v3958 = vpop.f32.mrf.mxu0
        %v3959 = vadd.f32 %v3522, %v3958
        %3960 = vmatmul.f32.gmra.mxu0 %v511
        %v3961 = vpop.f32.mrf.mxu0
        %v3962 = vadd.f32 %v3525, %v3961
        %3963 = vmatmul.f32.gmra.mxu0 %v520
        %v3964 = vpop.f32.mrf.mxu0
        %v3965 = vadd.f32 %v3528, %v3964
        %3966 = vmatmul.f32.gmra.mxu0 %v529
        %v3967 = vpop.f32.mrf.mxu0
        %v3968 = vadd.f32 %v3531, %v3967
        %3969 = vmatmul.f32.gmra.mxu0 %v538
        %v3970 = vpop.f32.mrf.mxu0
        %v3971 = vadd.f32 %v3534, %v3970
        %3972 = vmatmul.f32.gmra.mxu0 %v547
        %v3973 = vpop.f32.mrf.mxu0
        %v3974 = vadd.f32 %v3537, %v3973
        %3975 = vmatmul.f32.gmra.mxu0 %v556
        %v3976 = vpop.f32.mrf.mxu0
        %v3977 = vadd.f32 %v3540, %v3976
        %3978 = vmatmul.f32.gmra.mxu0 %v565
        %v3979 = vpop.f32.mrf.mxu0
        %v3980 = vadd.f32 %v3543, %v3979
        %3981 = vmatmul.f32.gmra.mxu0 %v574
        %v3982 = vpop.f32.mrf.mxu0
        %v3983 = vadd.f32 %v3546, %v3982
        %3984 = vmatmul.f32.gmra.mxu0 %v583
        %v3985 = vpop.f32.mrf.mxu0
        %v3986 = vadd.f32 %v3549, %v3985
        %3987 = vmatmul.f32.gmra.mxu0 %v592
        %v3988 = vpop.f32.mrf.mxu0
        %v3989 = vadd.f32 %v3552, %v3988
        %3990 = vmatmul.f32.gmra.mxu0 %v601
        %v3991 = vpop.f32.mrf.mxu0
        %v3992 = vadd.f32 %v3555, %v3991
        %3993 = vmatmul.f32.gmra.mxu0 %v610
        %v3994 = vpop.f32.mrf.mxu0
        %v3995 = vadd.f32 %v3558, %v3994
        %3996 = vmatmul.f32.gmra.mxu0 %v619
        %v3997 = vpop.f32.mrf.mxu0
        %v3998 = vadd.f32 %v3561, %v3997
        %3999 = vmatmul.f32.gmra.mxu0 %v628
        %v4000 = vpop.f32.mrf.mxu0
        %v4001 = vadd.f32 %v3564, %v4000
        %4002 = vmatmul.f32.gmra.mxu0 %v637
        %v4003 = vpop.f32.mrf.mxu0
        %v4004 = vadd.f32 %v3567, %v4003
        %4005 = vmatmul.f32.gmra.mxu0 %v646
        %v4006 = vpop.f32.mrf.mxu0
        %v4007 = vadd.f32 %v3570, %v4006
        %4008 = vmatmul.f32.gmra.mxu0 %v655
        %v4009 = vpop.f32.mrf.mxu0
        %v4010 = vadd.f32 %v3573, %v4009
        %4011 = vmatmul.f32.gmra.mxu0 %v664
        %v4012 = vpop.f32.mrf.mxu0
        %v4013 = vadd.f32 %v3576, %v4012
        %4014 = vmatmul.f32.gmra.mxu0 %v673
        %v4015 = vpop.f32.mrf.mxu0
        %v4016 = vadd.f32 %v3579, %v4015
        %4017 = vmatmul.f32.gmra.mxu0 %v682
        %v4018 = vpop.f32.mrf.mxu0
        %v4019 = vadd.f32 %v3582, %v4018
        %4020 = vmatmul.f32.gmra.mxu0 %v691
        %v4021 = vpop.f32.mrf.mxu0
        %v4022 = vadd.f32 %v3585, %v4021
        %4023 = vmatmul.f32.gmra.mxu0 %v700
        %v4024 = vpop.f32.mrf.mxu0
        %v4025 = vadd.f32 %v3588, %v4024
        %4026 = vmatmul.f32.gmra.mxu0 %v709
        %v4027 = vpop.f32.mrf.mxu0
        %v4028 = vadd.f32 %v3591, %v4027
        %4029 = vmatmul.f32.gmra.mxu0 %v718
        %v4030 = vpop.f32.mrf.mxu0
        %v4031 = vadd.f32 %v3594, %v4030
        %4032 = vmatmul.f32.gmra.mxu0 %v727
        %v4033 = vpop.f32.mrf.mxu0
        %v4034 = vadd.f32 %v3597, %v4033
        %4035 = vmatmul.f32.gmra.mxu0 %v736
        %v4036 = vpop.f32.mrf.mxu0
        %v4037 = vadd.f32 %v3600, %v4036
        %4038 = vmatmul.f32.gmra.mxu0 %v745
        %v4039 = vpop.f32.mrf.mxu0
        %v4040 = vadd.f32 %v3603, %v4039
        %4041 = vmatmul.f32.gmra.mxu0 %v754
        %v4042 = vpop.f32.mrf.mxu0
        %v4043 = vadd.f32 %v3606, %v4042
        %4044 = vmatmul.f32.gmra.mxu0 %v763
        %v4045 = vpop.f32.mrf.mxu0
        %v4046 = vadd.f32 %v3609, %v4045
        %4047 = vmatmul.f32.gmra.mxu0 %v772
        %v4048 = vpop.f32.mrf.mxu0
        %v4049 = vadd.f32 %v3612, %v4048
        %4050 = vmatmul.f32.gmra.mxu0 %v781
        %v4051 = vpop.f32.mrf.mxu0
        %v4052 = vadd.f32 %v3615, %v4051
        %4053 = vmatmul.f32.gmra.mxu0 %v790
        %v4054 = vpop.f32.mrf.mxu0
        %v4055 = vadd.f32 %v3618, %v4054
        %4056 = vmatmul.f32.gmra.mxu0 %v799
        %v4057 = vpop.f32.mrf.mxu0
        %v4058 = vadd.f32 %v3621, %v4057
        %4059 = vmatmul.f32.gmra.mxu0 %v808
        %v4060 = vpop.f32.mrf.mxu0
        %v4061 = vadd.f32 %v3624, %v4060
        %4062 = vmatmul.f32.gmra.mxu0 %v817
        %v4063 = vpop.f32.mrf.mxu0
        %v4064 = vadd.f32 %v3627, %v4063
        %4065 = vmatmul.f32.gmra.mxu0 %v826
        %v4066 = vpop.f32.mrf.mxu0
        %v4067 = vadd.f32 %v3630, %v4066
        %4068 = vmatmul.f32.gmra.mxu0 %v835
        %v4069 = vpop.f32.mrf.mxu0
        %v4070 = vadd.f32 %v3633, %v4069
        %4071 = vmatmul.f32.gmra.mxu0 %v844
        %v4072 = vpop.f32.mrf.mxu0
        %v4073 = vadd.f32 %v3636, %v4072
        %4074 = vmatmul.f32.gmra.mxu0 %v853
        %v4075 = vpop.f32.mrf.mxu0
        %v4076 = vadd.f32 %v3639, %v4075
        %4077 = vmatmul.f32.gmra.mxu0 %v862
        %v4078 = vpop.f32.mrf.mxu0
        %v4079 = vadd.f32 %v3642, %v4078
        %4080 = vmatmul.f32.gmra.mxu0 %v871
        %v4081 = vpop.f32.mrf.mxu0
        %v4082 = vadd.f32 %v3645, %v4081
        %4083 = vmatmul.f32.gmra.mxu0 %v880
        %v4084 = vpop.f32.mrf.mxu0
        %v4085 = vadd.f32 %v3648, %v4084
        %4086 = vmatmul.f32.gmra.mxu0 %v889
        %v4087 = vpop.f32.mrf.mxu0
        %v4088 = vadd.f32 %v3651, %v4087
        %4089 = vmatmul.f32.gmra.mxu0 %v898
        %v4090 = vpop.f32.mrf.mxu0
        %v4091 = vadd.f32 %v3654, %v4090
        %4092 = vmatmul.f32.gmra.mxu0 %v907
        %v4093 = vpop.f32.mrf.mxu0
        %v4094 = vadd.f32 %v3657, %v4093
        %4095 = vmatmul.f32.gmra.mxu0 %v916
        %v4096 = vpop.f32.mrf.mxu0
        %v4097 = vadd.f32 %v3660, %v4096
        %4098 = vmatmul.f32.gmra.mxu0 %v925
        %v4099 = vpop.f32.mrf.mxu0
        %v4100 = vadd.f32 %v3663, %v4099
        %4101 = vmatmul.f32.gmra.mxu0 %v934
        %v4102 = vpop.f32.mrf.mxu0
        %v4103 = vadd.f32 %v3666, %v4102
        %4104 = vmatmul.f32.gmra.mxu0 %v943
        %v4105 = vpop.f32.mrf.mxu0
        %v4106 = vadd.f32 %v3669, %v4105
        %4107 = vmatmul.f32.gmra.mxu0 %v952
        %v4108 = vpop.f32.mrf.mxu0
        %v4109 = vadd.f32 %v3672, %v4108
        %4110 = vmatmul.f32.gmra.mxu0 %v961
        %v4111 = vpop.f32.mrf.mxu0
        %v4112 = vadd.f32 %v3675, %v4111
        %4113 = vmatmul.f32.gmra.mxu0 %v970
        %v4114 = vpop.f32.mrf.mxu0
        %v4115 = vadd.f32 %v3678, %v4114
        %4116 = vmatmul.f32.gmra.mxu0 %v979
        %v4117 = vpop.f32.mrf.mxu0
        %v4118 = vadd.f32 %v3681, %v4117
        %4119 = vmatmul.f32.gmra.mxu0 %v988
        %v4120 = vpop.f32.mrf.mxu0
        %v4121 = vadd.f32 %v3684, %v4120
        %4122 = vmatmul.f32.gmra.mxu0 %v997
        %v4123 = vpop.f32.mrf.mxu0
        %v4124 = vadd.f32 %v3687, %v4123
        %4125 = vmatmul.f32.gmra.mxu0 %v1006
        %v4126 = vpop.f32.mrf.mxu0
        %v4127 = vadd.f32 %v3690, %v4126
        %4128 = vmatmul.f32.gmra.mxu0 %v1015
        %v4129 = vpop.f32.mrf.mxu0
        %v4130 = vadd.f32 %v3693, %v4129
        %4131 = vmatmul.f32.gmra.mxu0 %v1024
        %v4132 = vpop.f32.mrf.mxu0
        %v4133 = vadd.f32 %v3696, %v4132
        %4134 = vmatmul.f32.gmra.mxu0 %v1033
        %v4135 = vpop.f32.mrf.mxu0
        %v4136 = vadd.f32 %v3699, %v4135
        %4137 = vmatmul.f32.gmra.mxu0 %v1042
        %v4138 = vpop.f32.mrf.mxu0
        %v4139 = vadd.f32 %v3702, %v4138
        %4140 = vmatmul.f32.gmra.mxu0 %v1051
        %v4141 = vpop.f32.mrf.mxu0
        %v4142 = vadd.f32 %v3705, %v4141
        %4143 = vmatmul.f32.gmra.mxu0 %v1060
        %v4144 = vpop.f32.mrf.mxu0
        %v4145 = vadd.f32 %v3708, %v4144
        %4146 = vmatmul.f32.gmra.mxu0 %v1069
        %v4147 = vpop.f32.mrf.mxu0
        %v4148 = vadd.f32 %v3711, %v4147
        %4149 = vmatmul.f32.gmra.mxu0 %v1078
        %v4150 = vpop.f32.mrf.mxu0
        %v4151 = vadd.f32 %v3714, %v4150
        %4152 = vmatmul.f32.gmra.mxu0 %v1087
        %v4153 = vpop.f32.mrf.mxu0
        %v4154 = vadd.f32 %v3717, %v4153
        %4155 = vmatmul.f32.gmra.mxu0 %v1096
        %v4156 = vpop.f32.mrf.mxu0
        %v4157 = vadd.f32 %v3720, %v4156
        %4158 = vmatmul.f32.gmra.mxu0 %v1105
        %v4159 = vpop.f32.mrf.mxu0
        %v4160 = vadd.f32 %v3723, %v4159
        %4161 = vmatmul.f32.gmra.mxu0 %v1114
        %v4162 = vpop.f32.mrf.mxu0
        %v4163 = vadd.f32 %v3726, %v4162
        %4164 = vmatmul.f32.gmra.mxu0 %v1123
        %v4165 = vpop.f32.mrf.mxu0
        %v4166 = vadd.f32 %v3729, %v4165
        %4167 = vmatmul.f32.gmra.mxu0 %v1132
        %v4168 = vpop.f32.mrf.mxu0
        %v4169 = vadd.f32 %v3732, %v4168
        %4170 = vmatmul.f32.gmra.mxu0 %v1141
        %v4171 = vpop.f32.mrf.mxu0
        %v4172 = vadd.f32 %v3735, %v4171
        %4173 = vmatmul.f32.gmra.mxu0 %v1150
        %v4174 = vpop.f32.mrf.mxu0
        %v4175 = vadd.f32 %v3738, %v4174
        %4176 = vmatmul.f32.gmra.mxu0 %v1159
        %v4177 = vpop.f32.mrf.mxu0
        %v4178 = vadd.f32 %v3741, %v4177
        %4179 = vmatmul.f32.gmra.mxu0 %v1168
        %v4180 = vpop.f32.mrf.mxu0
        %v4181 = vadd.f32 %v3744, %v4180
        %4182 = vmatmul.f32.gmra.mxu0 %v1177
        %v4183 = vpop.f32.mrf.mxu0
        %v4184 = vadd.f32 %v3747, %v4183
        %4185 = vmatmul.f32.gmra.mxu0 %v1186
        %v4186 = vpop.f32.mrf.mxu0
        %v4187 = vadd.f32 %v3750, %v4186
        %4188 = vmatmul.f32.gmra.mxu0 %v1195
        %v4189 = vpop.f32.mrf.mxu0
        %v4190 = vadd.f32 %v3753, %v4189
        %4191 = vmatmul.f32.gmra.mxu0 %v1204
        %v4192 = vpop.f32.mrf.mxu0
        %v4193 = vadd.f32 %v3756, %v4192
        %4194 = vmatmul.f32.gmra.mxu0 %v1213
        %v4195 = vpop.f32.mrf.mxu0
        %v4196 = vadd.f32 %v3759, %v4195
        %4197 = vmatmul.f32.gmra.mxu0 %v1222
        %v4198 = vpop.f32.mrf.mxu0
        %v4199 = vadd.f32 %v3762, %v4198
        %4200 = vmatmul.f32.gmra.mxu0 %v1231
        %v4201 = vpop.f32.mrf.mxu0
        %v4202 = vadd.f32 %v3765, %v4201
        %4203 = vmatmul.f32.gmra.mxu0 %v1240
        %v4204 = vpop.f32.mrf.mxu0
        %v4205 = vadd.f32 %v3768, %v4204
        %4206 = vmatmul.f32.gmra.mxu0 %v1249
        %v4207 = vpop.f32.mrf.mxu0
        %v4208 = vadd.f32 %v3771, %v4207
        %4209 = vmatmul.f32.gmra.mxu0 %v1258
        %v4210 = vpop.f32.mrf.mxu0
        %v4211 = vadd.f32 %v3774, %v4210
        %4212 = vmatmul.f32.gmra.mxu0 %v1267
        %v4213 = vpop.f32.mrf.mxu0
        %v4214 = vadd.f32 %v3777, %v4213
        %4215 = vmatmul.f32.gmra.mxu0 %v1276
        %v4216 = vpop.f32.mrf.mxu0
        %v4217 = vadd.f32 %v3780, %v4216
        %4218 = vmatmul.f32.gmra.mxu0 %v1285
        %v4219 = vpop.f32.mrf.mxu0
        %v4220 = vadd.f32 %v3783, %v4219
        %4221 = vmatmul.f32.gmra.mxu0 %v1294
        %v4222 = vpop.f32.mrf.mxu0
        %v4223 = vadd.f32 %v3786, %v4222
        %4224 = vmatmul.f32.gmra.mxu0 %v1303
        %v4225 = vpop.f32.mrf.mxu0
        %v4226 = vadd.f32 %v3789, %v4225
        %4227 = vmatmul.f32.gmra.mxu0 %v1312
        %v4228 = vpop.f32.mrf.mxu0
        %v4229 = vadd.f32 %v3792, %v4228
        %4230 = vmatmul.f32.gmra.mxu0 %v1321
        %v4231 = vpop.f32.mrf.mxu0
        %v4232 = vadd.f32 %v3795, %v4231
        %4233 = vmatmul.f32.gmra.mxu0 %v1330
        %v4234 = vpop.f32.mrf.mxu0
        %v4235 = vadd.f32 %v3798, %v4234
        %4236 = vmatmul.f32.gmra.mxu0 %v1339
        %v4237 = vpop.f32.mrf.mxu0
        %v4238 = vadd.f32 %v3801, %v4237
        %4239 = vmatmul.f32.gmra.mxu0 %v1348
        %v4240 = vpop.f32.mrf.mxu0
        %v4241 = vadd.f32 %v3804, %v4240
        %4242 = vmatmul.f32.gmra.mxu0 %v1357
        %v4243 = vpop.f32.mrf.mxu0
        %v4244 = vadd.f32 %v3807, %v4243
        %4245 = vmatmul.f32.gmra.mxu0 %v1366
        %v4246 = vpop.f32.mrf.mxu0
        %v4247 = vadd.f32 %v3810, %v4246
        %4248 = vmatmul.f32.gmra.mxu0 %v1375
        %v4249 = vpop.f32.mrf.mxu0
        %v4250 = vadd.f32 %v3813, %v4249
        %4251 = vmatmul.f32.gmra.mxu0 %v1384
        %v4252 = vpop.f32.mrf.mxu0
        %v4253 = vadd.f32 %v3816, %v4252
        %4254 = vmatmul.f32.gmra.mxu0 %v1393
        %v4255 = vpop.f32.mrf.mxu0
        %v4256 = vadd.f32 %v3819, %v4255
        %4257 = vmatmul.f32.gmra.mxu0 %v1402
        %v4258 = vpop.f32.mrf.mxu0
        %v4259 = vadd.f32 %v3822, %v4258
        %4260 = vmatmul.f32.gmra.mxu0 %v1411
        %v4261 = vpop.f32.mrf.mxu0
        %v4262 = vadd.f32 %v3825, %v4261
        %4263 = vmatmul.f32.gmra.mxu0 %v1420
        %v4264 = vpop.f32.mrf.mxu0
        %v4265 = vadd.f32 %v3828, %v4264
        %4266 = vmatmul.f32.gmra.mxu0 %v1429
        %v4267 = vpop.f32.mrf.mxu0
        %v4268 = vadd.f32 %v3831, %v4267
        %4269 = vmatmul.f32.gmra.mxu0 %v1438
        %v4270 = vpop.f32.mrf.mxu0
        %v4271 = vadd.f32 %v3834, %v4270
        %4272 = vmatmul.f32.gmra.mxu0 %v1447
        %v4273 = vpop.f32.mrf.mxu0
        %v4274 = vadd.f32 %v3837, %v4273
        %4275 = vmatmul.f32.gmra.mxu0 %v1456
        %v4276 = vpop.f32.mrf.mxu0
        %v4277 = vadd.f32 %v3840, %v4276
        %4278 = vmatmul.f32.gmra.mxu0 %v1465
        %v4279 = vpop.f32.mrf.mxu0
        %v4280 = vadd.f32 %v3843, %v4279
        %4281 = vmatmul.f32.gmra.mxu0 %v1474
        %v4282 = vpop.f32.mrf.mxu0
        %v4283 = vadd.f32 %v3846, %v4282
        %4284 = vmatmul.f32.gmra.mxu0 %v1483
        %v4285 = vpop.f32.mrf.mxu0
        %v4286 = vadd.f32 %v3849, %v4285
        %4287 = vmatmul.f32.gmra.mxu0 %v1492
        %v4288 = vpop.f32.mrf.mxu0
        %v4289 = vadd.f32 %v3852, %v4288
        %4290 = vmatmul.f32.gmra.mxu0 %v1501
        %v4291 = vpop.f32.mrf.mxu0
        %v4292 = vadd.f32 %v3855, %v4291
        %4293 = vmatmul.f32.gmra.mxu0 %v1510
        %v4294 = vpop.f32.mrf.mxu0
        %v4295 = vadd.f32 %v3858, %v4294
        %4296 = vmatmul.f32.gmra.mxu0 %v1519
        %v4297 = vpop.f32.mrf.mxu0
        %v4298 = vadd.f32 %v3861, %v4297
        %4299 = vmatmul.f32.gmra.mxu0 %v1528
        %v4300 = vpop.f32.mrf.mxu0
        %v4301 = vadd.f32 %v3864, %v4300
        %4302 = vmatmul.f32.gmra.mxu0 %v1537
        %v4303 = vpop.f32.mrf.mxu0
        %v4304 = vadd.f32 %v3867, %v4303
        %4305 = vmatmul.f32.gmra.mxu0 %v1546
        %v4306 = vpop.f32.mrf.mxu0
        %v4307 = vadd.f32 %v3870, %v4306
        %4308 = vmatmul.f32.gmra.mxu0 %v1555
        %v4309 = vpop.f32.mrf.mxu0
        %v4310 = vadd.f32 %v3873, %v4309
        %4311 = vmatmul.f32.gmra.mxu0 %v1564
        %v4312 = vpop.f32.mrf.mxu0
        %v4313 = vadd.f32 %v3876, %v4312
        %4314 = vdwg.mxu0
        %4315 = vmatpush.msra.mxu0 %v1664
        %4316 = vmatpush.msra.mxu0 %v1663
        %4317 = vmatpush.msra.mxu0 %v1662
        %4318 = vmatpush.msra.mxu0 %v1661
        %4319 = vmatpush.msra.mxu0 %v1660
        %4320 = vmatpush.msra.mxu0 %v1659
        %4321 = vmatpush.msra.mxu0 %v1658
        %4322 = vmatpush.msra.mxu0 %v1657
        %4323 = vmatpush.msra.mxu0 %v1656
        %4324 = vmatpush.msra.mxu0 %v1655
        %4325 = vmatpush.msra.mxu0 %v1654
        %4326 = vmatpush.msra.mxu0 %v1653
        %4327 = vmatpush.msra.mxu0 %v1652
        %4328 = vmatpush.msra.mxu0 %v1651
        %4329 = vmatpush.msra.mxu0 %v1650
        %4330 = vmatpush.msra.mxu0 %v1649
        %4331 = vmatmul.f32.gmra.mxu0 %v314
        %v4332 = vpop.f32.mrf.mxu0
        %v4333 = vadd.f32 %v3896, %v4332
        %4334 = vmatmul.f32.gmra.mxu0 %v323
        %v4335 = vpop.f32.mrf.mxu0
        %v4336 = vadd.f32 %v3899, %v4335
        %4337 = vmatmul.f32.gmra.mxu0 %v332
        %v4338 = vpop.f32.mrf.mxu0
        %v4339 = vadd.f32 %v3902, %v4338
        %4340 = vmatmul.f32.gmra.mxu0 %v341
        %v4341 = vpop.f32.mrf.mxu0
        %v4342 = vadd.f32 %v3905, %v4341
        %4343 = vmatmul.f32.gmra.mxu0 %v350
        %v4344 = vpop.f32.mrf.mxu0
        %v4345 = vadd.f32 %v3908, %v4344
        %4346 = vmatmul.f32.gmra.mxu0 %v359
        %v4347 = vpop.f32.mrf.mxu0
        %v4348 = vadd.f32 %v3911, %v4347
        %4349 = vmatmul.f32.gmra.mxu0 %v368
        %v4350 = vpop.f32.mrf.mxu0
        %v4351 = vadd.f32 %v3914, %v4350
        %4352 = vmatmul.f32.gmra.mxu0 %v377
        %v4353 = vpop.f32.mrf.mxu0
        %v4354 = vadd.f32 %v3917, %v4353
        %4355 = vmatmul.f32.gmra.mxu0 %v386
        %v4356 = vpop.f32.mrf.mxu0
        %v4357 = vadd.f32 %v3920, %v4356
        %4358 = vmatmul.f32.gmra.mxu0 %v395
        %v4359 = vpop.f32.mrf.mxu0
        %v4360 = vadd.f32 %v3923, %v4359
        %4361 = vmatmul.f32.gmra.mxu0 %v404
        %v4362 = vpop.f32.mrf.mxu0
        %v4363 = vadd.f32 %v3926, %v4362
        %4364 = vmatmul.f32.gmra.mxu0 %v413
        %v4365 = vpop.f32.mrf.mxu0
        %v4366 = vadd.f32 %v3929, %v4365
        %4367 = vmatmul.f32.gmra.mxu0 %v422
        %v4368 = vpop.f32.mrf.mxu0
        %v4369 = vadd.f32 %v3932, %v4368
        %4370 = vmatmul.f32.gmra.mxu0 %v431
        %v4371 = vpop.f32.mrf.mxu0
        %v4372 = vadd.f32 %v3935, %v4371
        %4373 = vmatmul.f32.gmra.mxu0 %v440
        %v4374 = vpop.f32.mrf.mxu0
        %v4375 = vadd.f32 %v3938, %v4374
        %4376 = vmatmul.f32.gmra.mxu0 %v449
        %v4377 = vpop.f32.mrf.mxu0
        %v4378 = vadd.f32 %v3941, %v4377
        %4379 = vmatmul.f32.gmra.mxu0 %v458
        %v4380 = vpop.f32.mrf.mxu0
        %v4381 = vadd.f32 %v3944, %v4380
        %4382 = vmatmul.f32.gmra.mxu0 %v467
        %v4383 = vpop.f32.mrf.mxu0
        %v4384 = vadd.f32 %v3947, %v4383
        %4385 = vmatmul.f32.gmra.mxu0 %v476
        %v4386 = vpop.f32.mrf.mxu0
        %v4387 = vadd.f32 %v3950, %v4386
        %4388 = vmatmul.f32.gmra.mxu0 %v485
        %v4389 = vpop.f32.mrf.mxu0
        %v4390 = vadd.f32 %v3953, %v4389
        %4391 = vmatmul.f32.gmra.mxu0 %v494
        %v4392 = vpop.f32.mrf.mxu0
        %v4393 = vadd.f32 %v3956, %v4392
        %4394 = vmatmul.f32.gmra.mxu0 %v503
        %v4395 = vpop.f32.mrf.mxu0
        %v4396 = vadd.f32 %v3959, %v4395
        %4397 = vmatmul.f32.gmra.mxu0 %v512
        %v4398 = vpop.f32.mrf.mxu0
        %v4399 = vadd.f32 %v3962, %v4398
        %4400 = vmatmul.f32.gmra.mxu0 %v521
        %v4401 = vpop.f32.mrf.mxu0
        %v4402 = vadd.f32 %v3965, %v4401
        %4403 = vmatmul.f32.gmra.mxu0 %v530
        %v4404 = vpop.f32.mrf.mxu0
        %v4405 = vadd.f32 %v3968, %v4404
        %4406 = vmatmul.f32.gmra.mxu0 %v539
        %v4407 = vpop.f32.mrf.mxu0
        %v4408 = vadd.f32 %v3971, %v4407
        %4409 = vmatmul.f32.gmra.mxu0 %v548
        %v4410 = vpop.f32.mrf.mxu0
        %v4411 = vadd.f32 %v3974, %v4410
        %4412 = vmatmul.f32.gmra.mxu0 %v557
        %v4413 = vpop.f32.mrf.mxu0
        %v4414 = vadd.f32 %v3977, %v4413
        %4415 = vmatmul.f32.gmra.mxu0 %v566
        %v4416 = vpop.f32.mrf.mxu0
        %v4417 = vadd.f32 %v3980, %v4416
        %4418 = vmatmul.f32.gmra.mxu0 %v575
        %v4419 = vpop.f32.mrf.mxu0
        %v4420 = vadd.f32 %v3983, %v4419
        %4421 = vmatmul.f32.gmra.mxu0 %v584
        %v4422 = vpop.f32.mrf.mxu0
        %v4423 = vadd.f32 %v3986, %v4422
        %4424 = vmatmul.f32.gmra.mxu0 %v593
        %v4425 = vpop.f32.mrf.mxu0
        %v4426 = vadd.f32 %v3989, %v4425
        %4427 = vmatmul.f32.gmra.mxu0 %v602
        %v4428 = vpop.f32.mrf.mxu0
        %v4429 = vadd.f32 %v3992, %v4428
        %4430 = vmatmul.f32.gmra.mxu0 %v611
        %v4431 = vpop.f32.mrf.mxu0
        %v4432 = vadd.f32 %v3995, %v4431
        %4433 = vmatmul.f32.gmra.mxu0 %v620
        %v4434 = vpop.f32.mrf.mxu0
        %v4435 = vadd.f32 %v3998, %v4434
        %4436 = vmatmul.f32.gmra.mxu0 %v629
        %v4437 = vpop.f32.mrf.mxu0
        %v4438 = vadd.f32 %v4001, %v4437
        %4439 = vmatmul.f32.gmra.mxu0 %v638
        %v4440 = vpop.f32.mrf.mxu0
        %v4441 = vadd.f32 %v4004, %v4440
        %4442 = vmatmul.f32.gmra.mxu0 %v647
        %v4443 = vpop.f32.mrf.mxu0
        %v4444 = vadd.f32 %v4007, %v4443
        %4445 = vmatmul.f32.gmra.mxu0 %v656
        %v4446 = vpop.f32.mrf.mxu0
        %v4447 = vadd.f32 %v4010, %v4446
        %4448 = vmatmul.f32.gmra.mxu0 %v665
        %v4449 = vpop.f32.mrf.mxu0
        %v4450 = vadd.f32 %v4013, %v4449
        %4451 = vmatmul.f32.gmra.mxu0 %v674
        %v4452 = vpop.f32.mrf.mxu0
        %v4453 = vadd.f32 %v4016, %v4452
        %4454 = vmatmul.f32.gmra.mxu0 %v683
        %v4455 = vpop.f32.mrf.mxu0
        %v4456 = vadd.f32 %v4019, %v4455
        %4457 = vmatmul.f32.gmra.mxu0 %v692
        %v4458 = vpop.f32.mrf.mxu0
        %v4459 = vadd.f32 %v4022, %v4458
        %4460 = vmatmul.f32.gmra.mxu0 %v701
        %v4461 = vpop.f32.mrf.mxu0
        %v4462 = vadd.f32 %v4025, %v4461
        %4463 = vmatmul.f32.gmra.mxu0 %v710
        %v4464 = vpop.f32.mrf.mxu0
        %v4465 = vadd.f32 %v4028, %v4464
        %4466 = vmatmul.f32.gmra.mxu0 %v719
        %v4467 = vpop.f32.mrf.mxu0
        %v4468 = vadd.f32 %v4031, %v4467
        %4469 = vmatmul.f32.gmra.mxu0 %v728
        %v4470 = vpop.f32.mrf.mxu0
        %v4471 = vadd.f32 %v4034, %v4470
        %4472 = vmatmul.f32.gmra.mxu0 %v737
        %v4473 = vpop.f32.mrf.mxu0
        %v4474 = vadd.f32 %v4037, %v4473
        %4475 = vmatmul.f32.gmra.mxu0 %v746
        %v4476 = vpop.f32.mrf.mxu0
        %v4477 = vadd.f32 %v4040, %v4476
        %4478 = vmatmul.f32.gmra.mxu0 %v755
        %v4479 = vpop.f32.mrf.mxu0
        %v4480 = vadd.f32 %v4043, %v4479
        %4481 = vmatmul.f32.gmra.mxu0 %v764
        %v4482 = vpop.f32.mrf.mxu0
        %v4483 = vadd.f32 %v4046, %v4482
        %4484 = vmatmul.f32.gmra.mxu0 %v773
        %v4485 = vpop.f32.mrf.mxu0
        %v4486 = vadd.f32 %v4049, %v4485
        %4487 = vmatmul.f32.gmra.mxu0 %v782
        %v4488 = vpop.f32.mrf.mxu0
        %v4489 = vadd.f32 %v4052, %v4488
        %4490 = vmatmul.f32.gmra.mxu0 %v791
        %v4491 = vpop.f32.mrf.mxu0
        %v4492 = vadd.f32 %v4055, %v4491
        %4493 = vmatmul.f32.gmra.mxu0 %v800
        %v4494 = vpop.f32.mrf.mxu0
        %v4495 = vadd.f32 %v4058, %v4494
        %4496 = vmatmul.f32.gmra.mxu0 %v809
        %v4497 = vpop.f32.mrf.mxu0
        %v4498 = vadd.f32 %v4061, %v4497
        %4499 = vmatmul.f32.gmra.mxu0 %v818
        %v4500 = vpop.f32.mrf.mxu0
        %v4501 = vadd.f32 %v4064, %v4500
        %4502 = vmatmul.f32.gmra.mxu0 %v827
        %v4503 = vpop.f32.mrf.mxu0
        %v4504 = vadd.f32 %v4067, %v4503
        %4505 = vmatmul.f32.gmra.mxu0 %v836
        %v4506 = vpop.f32.mrf.mxu0
        %v4507 = vadd.f32 %v4070, %v4506
        %4508 = vmatmul.f32.gmra.mxu0 %v845
        %v4509 = vpop.f32.mrf.mxu0
        %v4510 = vadd.f32 %v4073, %v4509
        %4511 = vmatmul.f32.gmra.mxu0 %v854
        %v4512 = vpop.f32.mrf.mxu0
        %v4513 = vadd.f32 %v4076, %v4512
        %4514 = vmatmul.f32.gmra.mxu0 %v863
        %v4515 = vpop.f32.mrf.mxu0
        %v4516 = vadd.f32 %v4079, %v4515
        %4517 = vmatmul.f32.gmra.mxu0 %v872
        %v4518 = vpop.f32.mrf.mxu0
        %v4519 = vadd.f32 %v4082, %v4518
        %4520 = vmatmul.f32.gmra.mxu0 %v881
        %v4521 = vpop.f32.mrf.mxu0
        %v4522 = vadd.f32 %v4085, %v4521
        %4523 = vmatmul.f32.gmra.mxu0 %v890
        %v4524 = vpop.f32.mrf.mxu0
        %v4525 = vadd.f32 %v4088, %v4524
        %4526 = vmatmul.f32.gmra.mxu0 %v899
        %v4527 = vpop.f32.mrf.mxu0
        %v4528 = vadd.f32 %v4091, %v4527
        %4529 = vmatmul.f32.gmra.mxu0 %v908
        %v4530 = vpop.f32.mrf.mxu0
        %v4531 = vadd.f32 %v4094, %v4530
        %4532 = vmatmul.f32.gmra.mxu0 %v917
        %v4533 = vpop.f32.mrf.mxu0
        %v4534 = vadd.f32 %v4097, %v4533
        %4535 = vmatmul.f32.gmra.mxu0 %v926
        %v4536 = vpop.f32.mrf.mxu0
        %v4537 = vadd.f32 %v4100, %v4536
        %4538 = vmatmul.f32.gmra.mxu0 %v935
        %v4539 = vpop.f32.mrf.mxu0
        %v4540 = vadd.f32 %v4103, %v4539
        %4541 = vmatmul.f32.gmra.mxu0 %v944
        %v4542 = vpop.f32.mrf.mxu0
        %v4543 = vadd.f32 %v4106, %v4542
        %4544 = vmatmul.f32.gmra.mxu0 %v953
        %v4545 = vpop.f32.mrf.mxu0
        %v4546 = vadd.f32 %v4109, %v4545
        %4547 = vmatmul.f32.gmra.mxu0 %v962
        %v4548 = vpop.f32.mrf.mxu0
        %v4549 = vadd.f32 %v4112, %v4548
        %4550 = vmatmul.f32.gmra.mxu0 %v971
        %v4551 = vpop.f32.mrf.mxu0
        %v4552 = vadd.f32 %v4115, %v4551
        %4553 = vmatmul.f32.gmra.mxu0 %v980
        %v4554 = vpop.f32.mrf.mxu0
        %v4555 = vadd.f32 %v4118, %v4554
        %4556 = vmatmul.f32.gmra.mxu0 %v989
        %v4557 = vpop.f32.mrf.mxu0
        %v4558 = vadd.f32 %v4121, %v4557
        %4559 = vmatmul.f32.gmra.mxu0 %v998
        %v4560 = vpop.f32.mrf.mxu0
        %v4561 = vadd.f32 %v4124, %v4560
        %4562 = vmatmul.f32.gmra.mxu0 %v1007
        %v4563 = vpop.f32.mrf.mxu0
        %v4564 = vadd.f32 %v4127, %v4563
        %4565 = vmatmul.f32.gmra.mxu0 %v1016
        %v4566 = vpop.f32.mrf.mxu0
        %v4567 = vadd.f32 %v4130, %v4566
        %4568 = vmatmul.f32.gmra.mxu0 %v1025
        %v4569 = vpop.f32.mrf.mxu0
        %v4570 = vadd.f32 %v4133, %v4569
        %4571 = vmatmul.f32.gmra.mxu0 %v1034
        %v4572 = vpop.f32.mrf.mxu0
        %v4573 = vadd.f32 %v4136, %v4572
        %4574 = vmatmul.f32.gmra.mxu0 %v1043
        %v4575 = vpop.f32.mrf.mxu0
        %v4576 = vadd.f32 %v4139, %v4575
        %4577 = vmatmul.f32.gmra.mxu0 %v1052
        %v4578 = vpop.f32.mrf.mxu0
        %v4579 = vadd.f32 %v4142, %v4578
        %4580 = vmatmul.f32.gmra.mxu0 %v1061
        %v4581 = vpop.f32.mrf.mxu0
        %v4582 = vadd.f32 %v4145, %v4581
        %4583 = vmatmul.f32.gmra.mxu0 %v1070
        %v4584 = vpop.f32.mrf.mxu0
        %v4585 = vadd.f32 %v4148, %v4584
        %4586 = vmatmul.f32.gmra.mxu0 %v1079
        %v4587 = vpop.f32.mrf.mxu0
        %v4588 = vadd.f32 %v4151, %v4587
        %4589 = vmatmul.f32.gmra.mxu0 %v1088
        %v4590 = vpop.f32.mrf.mxu0
        %v4591 = vadd.f32 %v4154, %v4590
        %4592 = vmatmul.f32.gmra.mxu0 %v1097
        %v4593 = vpop.f32.mrf.mxu0
        %v4594 = vadd.f32 %v4157, %v4593
        %4595 = vmatmul.f32.gmra.mxu0 %v1106
        %v4596 = vpop.f32.mrf.mxu0
        %v4597 = vadd.f32 %v4160, %v4596
        %4598 = vmatmul.f32.gmra.mxu0 %v1115
        %v4599 = vpop.f32.mrf.mxu0
        %v4600 = vadd.f32 %v4163, %v4599
        %4601 = vmatmul.f32.gmra.mxu0 %v1124
        %v4602 = vpop.f32.mrf.mxu0
        %v4603 = vadd.f32 %v4166, %v4602
        %4604 = vmatmul.f32.gmra.mxu0 %v1133
        %v4605 = vpop.f32.mrf.mxu0
        %v4606 = vadd.f32 %v4169, %v4605
        %4607 = vmatmul.f32.gmra.mxu0 %v1142
        %v4608 = vpop.f32.mrf.mxu0
        %v4609 = vadd.f32 %v4172, %v4608
        %4610 = vmatmul.f32.gmra.mxu0 %v1151
        %v4611 = vpop.f32.mrf.mxu0
        %v4612 = vadd.f32 %v4175, %v4611
        %4613 = vmatmul.f32.gmra.mxu0 %v1160
        %v4614 = vpop.f32.mrf.mxu0
        %v4615 = vadd.f32 %v4178, %v4614
        %4616 = vmatmul.f32.gmra.mxu0 %v1169
        %v4617 = vpop.f32.mrf.mxu0
        %v4618 = vadd.f32 %v4181, %v4617
        %4619 = vmatmul.f32.gmra.mxu0 %v1178
        %v4620 = vpop.f32.mrf.mxu0
        %v4621 = vadd.f32 %v4184, %v4620
        %4622 = vmatmul.f32.gmra.mxu0 %v1187
        %v4623 = vpop.f32.mrf.mxu0
        %v4624 = vadd.f32 %v4187, %v4623
        %4625 = vmatmul.f32.gmra.mxu0 %v1196
        %v4626 = vpop.f32.mrf.mxu0
        %v4627 = vadd.f32 %v4190, %v4626
        %4628 = vmatmul.f32.gmra.mxu0 %v1205
        %v4629 = vpop.f32.mrf.mxu0
        %v4630 = vadd.f32 %v4193, %v4629
        %4631 = vmatmul.f32.gmra.mxu0 %v1214
        %v4632 = vpop.f32.mrf.mxu0
        %v4633 = vadd.f32 %v4196, %v4632
        %4634 = vmatmul.f32.gmra.mxu0 %v1223
        %v4635 = vpop.f32.mrf.mxu0
        %v4636 = vadd.f32 %v4199, %v4635
        %4637 = vmatmul.f32.gmra.mxu0 %v1232
        %v4638 = vpop.f32.mrf.mxu0
        %v4639 = vadd.f32 %v4202, %v4638
        %4640 = vmatmul.f32.gmra.mxu0 %v1241
        %v4641 = vpop.f32.mrf.mxu0
        %v4642 = vadd.f32 %v4205, %v4641
        %4643 = vmatmul.f32.gmra.mxu0 %v1250
        %v4644 = vpop.f32.mrf.mxu0
        %v4645 = vadd.f32 %v4208, %v4644
        %4646 = vmatmul.f32.gmra.mxu0 %v1259
        %v4647 = vpop.f32.mrf.mxu0
        %v4648 = vadd.f32 %v4211, %v4647
        %4649 = vmatmul.f32.gmra.mxu0 %v1268
        %v4650 = vpop.f32.mrf.mxu0
        %v4651 = vadd.f32 %v4214, %v4650
        %4652 = vmatmul.f32.gmra.mxu0 %v1277
        %v4653 = vpop.f32.mrf.mxu0
        %v4654 = vadd.f32 %v4217, %v4653
        %4655 = vmatmul.f32.gmra.mxu0 %v1286
        %v4656 = vpop.f32.mrf.mxu0
        %v4657 = vadd.f32 %v4220, %v4656
        %4658 = vmatmul.f32.gmra.mxu0 %v1295
        %v4659 = vpop.f32.mrf.mxu0
        %v4660 = vadd.f32 %v4223, %v4659
        %4661 = vmatmul.f32.gmra.mxu0 %v1304
        %v4662 = vpop.f32.mrf.mxu0
        %v4663 = vadd.f32 %v4226, %v4662
        %4664 = vmatmul.f32.gmra.mxu0 %v1313
        %v4665 = vpop.f32.mrf.mxu0
        %v4666 = vadd.f32 %v4229, %v4665
        %4667 = vmatmul.f32.gmra.mxu0 %v1322
        %v4668 = vpop.f32.mrf.mxu0
        %v4669 = vadd.f32 %v4232, %v4668
        %4670 = vmatmul.f32.gmra.mxu0 %v1331
        %v4671 = vpop.f32.mrf.mxu0
        %v4672 = vadd.f32 %v4235, %v4671
        %4673 = vmatmul.f32.gmra.mxu0 %v1340
        %v4674 = vpop.f32.mrf.mxu0
        %v4675 = vadd.f32 %v4238, %v4674
        %4676 = vmatmul.f32.gmra.mxu0 %v1349
        %v4677 = vpop.f32.mrf.mxu0
        %v4678 = vadd.f32 %v4241, %v4677
        %4679 = vmatmul.f32.gmra.mxu0 %v1358
        %v4680 = vpop.f32.mrf.mxu0
        %v4681 = vadd.f32 %v4244, %v4680
        %4682 = vmatmul.f32.gmra.mxu0 %v1367
        %v4683 = vpop.f32.mrf.mxu0
        %v4684 = vadd.f32 %v4247, %v4683
        %4685 = vmatmul.f32.gmra.mxu0 %v1376
        %v4686 = vpop.f32.mrf.mxu0
        %v4687 = vadd.f32 %v4250, %v4686
        %4688 = vmatmul.f32.gmra.mxu0 %v1385
        %v4689 = vpop.f32.mrf.mxu0
        %v4690 = vadd.f32 %v4253, %v4689
        %4691 = vmatmul.f32.gmra.mxu0 %v1394
        %v4692 = vpop.f32.mrf.mxu0
        %v4693 = vadd.f32 %v4256, %v4692
        %4694 = vmatmul.f32.gmra.mxu0 %v1403
        %v4695 = vpop.f32.mrf.mxu0
        %v4696 = vadd.f32 %v4259, %v4695
        %4697 = vmatmul.f32.gmra.mxu0 %v1412
        %v4698 = vpop.f32.mrf.mxu0
        %v4699 = vadd.f32 %v4262, %v4698
        %4700 = vmatmul.f32.gmra.mxu0 %v1421
        %v4701 = vpop.f32.mrf.mxu0
        %v4702 = vadd.f32 %v4265, %v4701
        %4703 = vmatmul.f32.gmra.mxu0 %v1430
        %v4704 = vpop.f32.mrf.mxu0
        %v4705 = vadd.f32 %v4268, %v4704
        %4706 = vmatmul.f32.gmra.mxu0 %v1439
        %v4707 = vpop.f32.mrf.mxu0
        %v4708 = vadd.f32 %v4271, %v4707
        %4709 = vmatmul.f32.gmra.mxu0 %v1448
        %v4710 = vpop.f32.mrf.mxu0
        %v4711 = vadd.f32 %v4274, %v4710
        %4712 = vmatmul.f32.gmra.mxu0 %v1457
        %v4713 = vpop.f32.mrf.mxu0
        %v4714 = vadd.f32 %v4277, %v4713
        %4715 = vmatmul.f32.gmra.mxu0 %v1466
        %v4716 = vpop.f32.mrf.mxu0
        %v4717 = vadd.f32 %v4280, %v4716
        %4718 = vmatmul.f32.gmra.mxu0 %v1475
        %v4719 = vpop.f32.mrf.mxu0
        %v4720 = vadd.f32 %v4283, %v4719
        %4721 = vmatmul.f32.gmra.mxu0 %v1484
        %v4722 = vpop.f32.mrf.mxu0
        %v4723 = vadd.f32 %v4286, %v4722
        %4724 = vmatmul.f32.gmra.mxu0 %v1493
        %v4725 = vpop.f32.mrf.mxu0
        %v4726 = vadd.f32 %v4289, %v4725
        %4727 = vmatmul.f32.gmra.mxu0 %v1502
        %v4728 = vpop.f32.mrf.mxu0
        %v4729 = vadd.f32 %v4292, %v4728
        %4730 = vmatmul.f32.gmra.mxu0 %v1511
        %v4731 = vpop.f32.mrf.mxu0
        %v4732 = vadd.f32 %v4295, %v4731
        %4733 = vmatmul.f32.gmra.mxu0 %v1520
        %v4734 = vpop.f32.mrf.mxu0
        %v4735 = vadd.f32 %v4298, %v4734
        %4736 = vmatmul.f32.gmra.mxu0 %v1529
        %v4737 = vpop.f32.mrf.mxu0
        %v4738 = vadd.f32 %v4301, %v4737
        %4739 = vmatmul.f32.gmra.mxu0 %v1538
        %v4740 = vpop.f32.mrf.mxu0
        %v4741 = vadd.f32 %v4304, %v4740
        %4742 = vmatmul.f32.gmra.mxu0 %v1547
        %v4743 = vpop.f32.mrf.mxu0
        %v4744 = vadd.f32 %v4307, %v4743
        %4745 = vmatmul.f32.gmra.mxu0 %v1556
        %v4746 = vpop.f32.mrf.mxu0
        %v4747 = vadd.f32 %v4310, %v4746
        %4748 = vmatmul.f32.gmra.mxu0 %v1565
        %v4749 = vpop.f32.mrf.mxu0
        %v4750 = vadd.f32 %v4313, %v4749
        %4751 = vdwg.mxu0
        %4752 = vmatpush.msra.mxu0 %v1680
        %4753 = vmatpush.msra.mxu0 %v1679
        %4754 = vmatpush.msra.mxu0 %v1678
        %4755 = vmatpush.msra.mxu0 %v1677
        %4756 = vmatpush.msra.mxu0 %v1676
        %4757 = vmatpush.msra.mxu0 %v1675
        %4758 = vmatpush.msra.mxu0 %v1674
        %4759 = vmatpush.msra.mxu0 %v1673
        %4760 = vmatpush.msra.mxu0 %v1672
        %4761 = vmatpush.msra.mxu0 %v1671
        %4762 = vmatpush.msra.mxu0 %v1670
        %4763 = vmatpush.msra.mxu0 %v1669
        %4764 = vmatpush.msra.mxu0 %v1668
        %4765 = vmatpush.msra.mxu0 %v1667
        %4766 = vmatpush.msra.mxu0 %v1666
        %4767 = vmatpush.msra.mxu0 %v1665
        %4768 = vmatmul.f32.gmra.mxu0 %v315
        %v4769 = vpop.f32.mrf.mxu0
        %v4770 = vadd.f32 %v4333, %v4769
        %4771 = vmatmul.f32.gmra.mxu0 %v324
        %v4772 = vpop.f32.mrf.mxu0
        %v4773 = vadd.f32 %v4336, %v4772
        %4774 = vmatmul.f32.gmra.mxu0 %v333
        %v4775 = vpop.f32.mrf.mxu0
        %v4776 = vadd.f32 %v4339, %v4775
        %4777 = vmatmul.f32.gmra.mxu0 %v342
        %v4778 = vpop.f32.mrf.mxu0
        %v4779 = vadd.f32 %v4342, %v4778
        %4780 = vmatmul.f32.gmra.mxu0 %v351
        %v4781 = vpop.f32.mrf.mxu0
        %v4782 = vadd.f32 %v4345, %v4781
        %4783 = vmatmul.f32.gmra.mxu0 %v360
        %v4784 = vpop.f32.mrf.mxu0
        %v4785 = vadd.f32 %v4348, %v4784
        %4786 = vmatmul.f32.gmra.mxu0 %v369
        %v4787 = vpop.f32.mrf.mxu0
        %v4788 = vadd.f32 %v4351, %v4787
        %4789 = vmatmul.f32.gmra.mxu0 %v378
        %v4790 = vpop.f32.mrf.mxu0
        %v4791 = vadd.f32 %v4354, %v4790
        %4792 = vmatmul.f32.gmra.mxu0 %v387
        %v4793 = vpop.f32.mrf.mxu0
        %v4794 = vadd.f32 %v4357, %v4793
        %4795 = vmatmul.f32.gmra.mxu0 %v396
        %v4796 = vpop.f32.mrf.mxu0
        %v4797 = vadd.f32 %v4360, %v4796
        %4798 = vmatmul.f32.gmra.mxu0 %v405
        %v4799 = vpop.f32.mrf.mxu0
        %v4800 = vadd.f32 %v4363, %v4799
        %4801 = vmatmul.f32.gmra.mxu0 %v414
        %v4802 = vpop.f32.mrf.mxu0
        %v4803 = vadd.f32 %v4366, %v4802
        %4804 = vmatmul.f32.gmra.mxu0 %v423
        %v4805 = vpop.f32.mrf.mxu0
        %v4806 = vadd.f32 %v4369, %v4805
        %4807 = vmatmul.f32.gmra.mxu0 %v432
        %v4808 = vpop.f32.mrf.mxu0
        %v4809 = vadd.f32 %v4372, %v4808
        %4810 = vmatmul.f32.gmra.mxu0 %v441
        %v4811 = vpop.f32.mrf.mxu0
        %v4812 = vadd.f32 %v4375, %v4811
        %4813 = vmatmul.f32.gmra.mxu0 %v450
        %v4814 = vpop.f32.mrf.mxu0
        %v4815 = vadd.f32 %v4378, %v4814
        %4816 = vmatmul.f32.gmra.mxu0 %v459
        %v4817 = vpop.f32.mrf.mxu0
        %v4818 = vadd.f32 %v4381, %v4817
        %4819 = vmatmul.f32.gmra.mxu0 %v468
        %v4820 = vpop.f32.mrf.mxu0
        %v4821 = vadd.f32 %v4384, %v4820
        %4822 = vmatmul.f32.gmra.mxu0 %v477
        %v4823 = vpop.f32.mrf.mxu0
        %v4824 = vadd.f32 %v4387, %v4823
        %4825 = vmatmul.f32.gmra.mxu0 %v486
        %v4826 = vpop.f32.mrf.mxu0
        %v4827 = vadd.f32 %v4390, %v4826
        %4828 = vmatmul.f32.gmra.mxu0 %v495
        %v4829 = vpop.f32.mrf.mxu0
        %v4830 = vadd.f32 %v4393, %v4829
        %4831 = vmatmul.f32.gmra.mxu0 %v504
        %v4832 = vpop.f32.mrf.mxu0
        %v4833 = vadd.f32 %v4396, %v4832
        %4834 = vmatmul.f32.gmra.mxu0 %v513
        %v4835 = vpop.f32.mrf.mxu0
        %v4836 = vadd.f32 %v4399, %v4835
        %4837 = vmatmul.f32.gmra.mxu0 %v522
        %v4838 = vpop.f32.mrf.mxu0
        %v4839 = vadd.f32 %v4402, %v4838
        %4840 = vmatmul.f32.gmra.mxu0 %v531
        %v4841 = vpop.f32.mrf.mxu0
        %v4842 = vadd.f32 %v4405, %v4841
        %4843 = vmatmul.f32.gmra.mxu0 %v540
        %v4844 = vpop.f32.mrf.mxu0
        %v4845 = vadd.f32 %v4408, %v4844
        %4846 = vmatmul.f32.gmra.mxu0 %v549
        %v4847 = vpop.f32.mrf.mxu0
        %v4848 = vadd.f32 %v4411, %v4847
        %4849 = vmatmul.f32.gmra.mxu0 %v558
        %v4850 = vpop.f32.mrf.mxu0
        %v4851 = vadd.f32 %v4414, %v4850
        %4852 = vmatmul.f32.gmra.mxu0 %v567
        %v4853 = vpop.f32.mrf.mxu0
        %v4854 = vadd.f32 %v4417, %v4853
        %4855 = vmatmul.f32.gmra.mxu0 %v576
        %v4856 = vpop.f32.mrf.mxu0
        %v4857 = vadd.f32 %v4420, %v4856
        %4858 = vmatmul.f32.gmra.mxu0 %v585
        %v4859 = vpop.f32.mrf.mxu0
        %v4860 = vadd.f32 %v4423, %v4859
        %4861 = vmatmul.f32.gmra.mxu0 %v594
        %v4862 = vpop.f32.mrf.mxu0
        %v4863 = vadd.f32 %v4426, %v4862
        %4864 = vmatmul.f32.gmra.mxu0 %v603
        %v4865 = vpop.f32.mrf.mxu0
        %v4866 = vadd.f32 %v4429, %v4865
        %4867 = vmatmul.f32.gmra.mxu0 %v612
        %v4868 = vpop.f32.mrf.mxu0
        %v4869 = vadd.f32 %v4432, %v4868
        %4870 = vmatmul.f32.gmra.mxu0 %v621
        %v4871 = vpop.f32.mrf.mxu0
        %v4872 = vadd.f32 %v4435, %v4871
        %4873 = vmatmul.f32.gmra.mxu0 %v630
        %v4874 = vpop.f32.mrf.mxu0
        %v4875 = vadd.f32 %v4438, %v4874
        %4876 = vmatmul.f32.gmra.mxu0 %v639
        %v4877 = vpop.f32.mrf.mxu0
        %v4878 = vadd.f32 %v4441, %v4877
        %4879 = vmatmul.f32.gmra.mxu0 %v648
        %v4880 = vpop.f32.mrf.mxu0
        %v4881 = vadd.f32 %v4444, %v4880
        %4882 = vmatmul.f32.gmra.mxu0 %v657
        %v4883 = vpop.f32.mrf.mxu0
        %v4884 = vadd.f32 %v4447, %v4883
        %4885 = vmatmul.f32.gmra.mxu0 %v666
        %v4886 = vpop.f32.mrf.mxu0
        %v4887 = vadd.f32 %v4450, %v4886
        %4888 = vmatmul.f32.gmra.mxu0 %v675
        %v4889 = vpop.f32.mrf.mxu0
        %v4890 = vadd.f32 %v4453, %v4889
        %4891 = vmatmul.f32.gmra.mxu0 %v684
        %v4892 = vpop.f32.mrf.mxu0
        %v4893 = vadd.f32 %v4456, %v4892
        %4894 = vmatmul.f32.gmra.mxu0 %v693
        %v4895 = vpop.f32.mrf.mxu0
        %v4896 = vadd.f32 %v4459, %v4895
        %4897 = vmatmul.f32.gmra.mxu0 %v702
        %v4898 = vpop.f32.mrf.mxu0
        %v4899 = vadd.f32 %v4462, %v4898
        %4900 = vmatmul.f32.gmra.mxu0 %v711
        %v4901 = vpop.f32.mrf.mxu0
        %v4902 = vadd.f32 %v4465, %v4901
        %4903 = vmatmul.f32.gmra.mxu0 %v720
        %v4904 = vpop.f32.mrf.mxu0
        %v4905 = vadd.f32 %v4468, %v4904
        %4906 = vmatmul.f32.gmra.mxu0 %v729
        %v4907 = vpop.f32.mrf.mxu0
        %v4908 = vadd.f32 %v4471, %v4907
        %4909 = vmatmul.f32.gmra.mxu0 %v738
        %v4910 = vpop.f32.mrf.mxu0
        %v4911 = vadd.f32 %v4474, %v4910
        %4912 = vmatmul.f32.gmra.mxu0 %v747
        %v4913 = vpop.f32.mrf.mxu0
        %v4914 = vadd.f32 %v4477, %v4913
        %4915 = vmatmul.f32.gmra.mxu0 %v756
        %v4916 = vpop.f32.mrf.mxu0
        %v4917 = vadd.f32 %v4480, %v4916
        %4918 = vmatmul.f32.gmra.mxu0 %v765
        %v4919 = vpop.f32.mrf.mxu0
        %v4920 = vadd.f32 %v4483, %v4919
        %4921 = vmatmul.f32.gmra.mxu0 %v774
        %v4922 = vpop.f32.mrf.mxu0
        %v4923 = vadd.f32 %v4486, %v4922
        %4924 = vmatmul.f32.gmra.mxu0 %v783
        %v4925 = vpop.f32.mrf.mxu0
        %v4926 = vadd.f32 %v4489, %v4925
        %4927 = vmatmul.f32.gmra.mxu0 %v792
        %v4928 = vpop.f32.mrf.mxu0
        %v4929 = vadd.f32 %v4492, %v4928
        %4930 = vmatmul.f32.gmra.mxu0 %v801
        %v4931 = vpop.f32.mrf.mxu0
        %v4932 = vadd.f32 %v4495, %v4931
        %4933 = vmatmul.f32.gmra.mxu0 %v810
        %v4934 = vpop.f32.mrf.mxu0
        %v4935 = vadd.f32 %v4498, %v4934
        %4936 = vmatmul.f32.gmra.mxu0 %v819
        %v4937 = vpop.f32.mrf.mxu0
        %v4938 = vadd.f32 %v4501, %v4937
        %4939 = vmatmul.f32.gmra.mxu0 %v828
        %v4940 = vpop.f32.mrf.mxu0
        %v4941 = vadd.f32 %v4504, %v4940
        %4942 = vmatmul.f32.gmra.mxu0 %v837
        %v4943 = vpop.f32.mrf.mxu0
        %v4944 = vadd.f32 %v4507, %v4943
        %4945 = vmatmul.f32.gmra.mxu0 %v846
        %v4946 = vpop.f32.mrf.mxu0
        %v4947 = vadd.f32 %v4510, %v4946
        %4948 = vmatmul.f32.gmra.mxu0 %v855
        %v4949 = vpop.f32.mrf.mxu0
        %v4950 = vadd.f32 %v4513, %v4949
        %4951 = vmatmul.f32.gmra.mxu0 %v864
        %v4952 = vpop.f32.mrf.mxu0
        %v4953 = vadd.f32 %v4516, %v4952
        %4954 = vmatmul.f32.gmra.mxu0 %v873
        %v4955 = vpop.f32.mrf.mxu0
        %v4956 = vadd.f32 %v4519, %v4955
        %4957 = vmatmul.f32.gmra.mxu0 %v882
        %v4958 = vpop.f32.mrf.mxu0
        %v4959 = vadd.f32 %v4522, %v4958
        %4960 = vmatmul.f32.gmra.mxu0 %v891
        %v4961 = vpop.f32.mrf.mxu0
        %v4962 = vadd.f32 %v4525, %v4961
        %4963 = vmatmul.f32.gmra.mxu0 %v900
        %v4964 = vpop.f32.mrf.mxu0
        %v4965 = vadd.f32 %v4528, %v4964
        %4966 = vmatmul.f32.gmra.mxu0 %v909
        %v4967 = vpop.f32.mrf.mxu0
        %v4968 = vadd.f32 %v4531, %v4967
        %4969 = vmatmul.f32.gmra.mxu0 %v918
        %v4970 = vpop.f32.mrf.mxu0
        %v4971 = vadd.f32 %v4534, %v4970
        %4972 = vmatmul.f32.gmra.mxu0 %v927
        %v4973 = vpop.f32.mrf.mxu0
        %v4974 = vadd.f32 %v4537, %v4973
        %4975 = vmatmul.f32.gmra.mxu0 %v936
        %v4976 = vpop.f32.mrf.mxu0
        %v4977 = vadd.f32 %v4540, %v4976
        %4978 = vmatmul.f32.gmra.mxu0 %v945
        %v4979 = vpop.f32.mrf.mxu0
        %v4980 = vadd.f32 %v4543, %v4979
        %4981 = vmatmul.f32.gmra.mxu0 %v954
        %v4982 = vpop.f32.mrf.mxu0
        %v4983 = vadd.f32 %v4546, %v4982
        %4984 = vmatmul.f32.gmra.mxu0 %v963
        %v4985 = vpop.f32.mrf.mxu0
        %v4986 = vadd.f32 %v4549, %v4985
        %4987 = vmatmul.f32.gmra.mxu0 %v972
        %v4988 = vpop.f32.mrf.mxu0
        %v4989 = vadd.f32 %v4552, %v4988
        %4990 = vmatmul.f32.gmra.mxu0 %v981
        %v4991 = vpop.f32.mrf.mxu0
        %v4992 = vadd.f32 %v4555, %v4991
        %4993 = vmatmul.f32.gmra.mxu0 %v990
        %v4994 = vpop.f32.mrf.mxu0
        %v4995 = vadd.f32 %v4558, %v4994
        %4996 = vmatmul.f32.gmra.mxu0 %v999
        %v4997 = vpop.f32.mrf.mxu0
        %v4998 = vadd.f32 %v4561, %v4997
        %4999 = vmatmul.f32.gmra.mxu0 %v1008
        %v5000 = vpop.f32.mrf.mxu0
        %v5001 = vadd.f32 %v4564, %v5000
        %5002 = vmatmul.f32.gmra.mxu0 %v1017
        %v5003 = vpop.f32.mrf.mxu0
        %v5004 = vadd.f32 %v4567, %v5003
        %5005 = vmatmul.f32.gmra.mxu0 %v1026
        %v5006 = vpop.f32.mrf.mxu0
        %v5007 = vadd.f32 %v4570, %v5006
        %5008 = vmatmul.f32.gmra.mxu0 %v1035
        %v5009 = vpop.f32.mrf.mxu0
        %v5010 = vadd.f32 %v4573, %v5009
        %5011 = vmatmul.f32.gmra.mxu0 %v1044
        %v5012 = vpop.f32.mrf.mxu0
        %v5013 = vadd.f32 %v4576, %v5012
        %5014 = vmatmul.f32.gmra.mxu0 %v1053
        %v5015 = vpop.f32.mrf.mxu0
        %v5016 = vadd.f32 %v4579, %v5015
        %5017 = vmatmul.f32.gmra.mxu0 %v1062
        %v5018 = vpop.f32.mrf.mxu0
        %v5019 = vadd.f32 %v4582, %v5018
        %5020 = vmatmul.f32.gmra.mxu0 %v1071
        %v5021 = vpop.f32.mrf.mxu0
        %v5022 = vadd.f32 %v4585, %v5021
        %5023 = vmatmul.f32.gmra.mxu0 %v1080
        %v5024 = vpop.f32.mrf.mxu0
        %v5025 = vadd.f32 %v4588, %v5024
        %5026 = vmatmul.f32.gmra.mxu0 %v1089
        %v5027 = vpop.f32.mrf.mxu0
        %v5028 = vadd.f32 %v4591, %v5027
        %5029 = vmatmul.f32.gmra.mxu0 %v1098
        %v5030 = vpop.f32.mrf.mxu0
        %v5031 = vadd.f32 %v4594, %v5030
        %5032 = vmatmul.f32.gmra.mxu0 %v1107
        %v5033 = vpop.f32.mrf.mxu0
        %v5034 = vadd.f32 %v4597, %v5033
        %5035 = vmatmul.f32.gmra.mxu0 %v1116
        %v5036 = vpop.f32.mrf.mxu0
        %v5037 = vadd.f32 %v4600, %v5036
        %5038 = vmatmul.f32.gmra.mxu0 %v1125
        %v5039 = vpop.f32.mrf.mxu0
        %v5040 = vadd.f32 %v4603, %v5039
        %5041 = vmatmul.f32.gmra.mxu0 %v1134
        %v5042 = vpop.f32.mrf.mxu0
        %v5043 = vadd.f32 %v4606, %v5042
        %5044 = vmatmul.f32.gmra.mxu0 %v1143
        %v5045 = vpop.f32.mrf.mxu0
        %v5046 = vadd.f32 %v4609, %v5045
        %5047 = vmatmul.f32.gmra.mxu0 %v1152
        %v5048 = vpop.f32.mrf.mxu0
        %v5049 = vadd.f32 %v4612, %v5048
        %5050 = vmatmul.f32.gmra.mxu0 %v1161
        %v5051 = vpop.f32.mrf.mxu0
        %v5052 = vadd.f32 %v4615, %v5051
        %5053 = vmatmul.f32.gmra.mxu0 %v1170
        %v5054 = vpop.f32.mrf.mxu0
        %v5055 = vadd.f32 %v4618, %v5054
        %5056 = vmatmul.f32.gmra.mxu0 %v1179
        %v5057 = vpop.f32.mrf.mxu0
        %v5058 = vadd.f32 %v4621, %v5057
        %5059 = vmatmul.f32.gmra.mxu0 %v1188
        %v5060 = vpop.f32.mrf.mxu0
        %v5061 = vadd.f32 %v4624, %v5060
        %5062 = vmatmul.f32.gmra.mxu0 %v1197
        %v5063 = vpop.f32.mrf.mxu0
        %v5064 = vadd.f32 %v4627, %v5063
        %5065 = vmatmul.f32.gmra.mxu0 %v1206
        %v5066 = vpop.f32.mrf.mxu0
        %v5067 = vadd.f32 %v4630, %v5066
        %5068 = vmatmul.f32.gmra.mxu0 %v1215
        %v5069 = vpop.f32.mrf.mxu0
        %v5070 = vadd.f32 %v4633, %v5069
        %5071 = vmatmul.f32.gmra.mxu0 %v1224
        %v5072 = vpop.f32.mrf.mxu0
        %v5073 = vadd.f32 %v4636, %v5072
        %5074 = vmatmul.f32.gmra.mxu0 %v1233
        %v5075 = vpop.f32.mrf.mxu0
        %v5076 = vadd.f32 %v4639, %v5075
        %5077 = vmatmul.f32.gmra.mxu0 %v1242
        %v5078 = vpop.f32.mrf.mxu0
        %v5079 = vadd.f32 %v4642, %v5078
        %5080 = vmatmul.f32.gmra.mxu0 %v1251
        %v5081 = vpop.f32.mrf.mxu0
        %v5082 = vadd.f32 %v4645, %v5081
        %5083 = vmatmul.f32.gmra.mxu0 %v1260
        %v5084 = vpop.f32.mrf.mxu0
        %v5085 = vadd.f32 %v4648, %v5084
        %5086 = vmatmul.f32.gmra.mxu0 %v1269
        %v5087 = vpop.f32.mrf.mxu0
        %v5088 = vadd.f32 %v4651, %v5087
        %5089 = vmatmul.f32.gmra.mxu0 %v1278
        %v5090 = vpop.f32.mrf.mxu0
        %v5091 = vadd.f32 %v4654, %v5090
        %5092 = vmatmul.f32.gmra.mxu0 %v1287
        %v5093 = vpop.f32.mrf.mxu0
        %v5094 = vadd.f32 %v4657, %v5093
        %5095 = vmatmul.f32.gmra.mxu0 %v1296
        %v5096 = vpop.f32.mrf.mxu0
        %v5097 = vadd.f32 %v4660, %v5096
        %5098 = vmatmul.f32.gmra.mxu0 %v1305
        %v5099 = vpop.f32.mrf.mxu0
        %v5100 = vadd.f32 %v4663, %v5099
        %5101 = vmatmul.f32.gmra.mxu0 %v1314
        %v5102 = vpop.f32.mrf.mxu0
        %v5103 = vadd.f32 %v4666, %v5102
        %5104 = vmatmul.f32.gmra.mxu0 %v1323
        %v5105 = vpop.f32.mrf.mxu0
        %v5106 = vadd.f32 %v4669, %v5105
        %5107 = vmatmul.f32.gmra.mxu0 %v1332
        %v5108 = vpop.f32.mrf.mxu0
        %v5109 = vadd.f32 %v4672, %v5108
        %5110 = vmatmul.f32.gmra.mxu0 %v1341
        %v5111 = vpop.f32.mrf.mxu0
        %v5112 = vadd.f32 %v4675, %v5111
        %5113 = vmatmul.f32.gmra.mxu0 %v1350
        %v5114 = vpop.f32.mrf.mxu0
        %v5115 = vadd.f32 %v4678, %v5114
        %5116 = vmatmul.f32.gmra.mxu0 %v1359
        %v5117 = vpop.f32.mrf.mxu0
        %v5118 = vadd.f32 %v4681, %v5117
        %5119 = vmatmul.f32.gmra.mxu0 %v1368
        %v5120 = vpop.f32.mrf.mxu0
        %v5121 = vadd.f32 %v4684, %v5120
        %5122 = vmatmul.f32.gmra.mxu0 %v1377
        %v5123 = vpop.f32.mrf.mxu0
        %v5124 = vadd.f32 %v4687, %v5123
        %5125 = vmatmul.f32.gmra.mxu0 %v1386
        %v5126 = vpop.f32.mrf.mxu0
        %v5127 = vadd.f32 %v4690, %v5126
        %5128 = vmatmul.f32.gmra.mxu0 %v1395
        %v5129 = vpop.f32.mrf.mxu0
        %v5130 = vadd.f32 %v4693, %v5129
        %5131 = vmatmul.f32.gmra.mxu0 %v1404
        %v5132 = vpop.f32.mrf.mxu0
        %v5133 = vadd.f32 %v4696, %v5132
        %5134 = vmatmul.f32.gmra.mxu0 %v1413
        %v5135 = vpop.f32.mrf.mxu0
        %v5136 = vadd.f32 %v4699, %v5135
        %5137 = vmatmul.f32.gmra.mxu0 %v1422
        %v5138 = vpop.f32.mrf.mxu0
        %v5139 = vadd.f32 %v4702, %v5138
        %5140 = vmatmul.f32.gmra.mxu0 %v1431
        %v5141 = vpop.f32.mrf.mxu0
        %v5142 = vadd.f32 %v4705, %v5141
        %5143 = vmatmul.f32.gmra.mxu0 %v1440
        %v5144 = vpop.f32.mrf.mxu0
        %v5145 = vadd.f32 %v4708, %v5144
        %5146 = vmatmul.f32.gmra.mxu0 %v1449
        %v5147 = vpop.f32.mrf.mxu0
        %v5148 = vadd.f32 %v4711, %v5147
        %5149 = vmatmul.f32.gmra.mxu0 %v1458
        %v5150 = vpop.f32.mrf.mxu0
        %v5151 = vadd.f32 %v4714, %v5150
        %5152 = vmatmul.f32.gmra.mxu0 %v1467
        %v5153 = vpop.f32.mrf.mxu0
        %v5154 = vadd.f32 %v4717, %v5153
        %5155 = vmatmul.f32.gmra.mxu0 %v1476
        %v5156 = vpop.f32.mrf.mxu0
        %v5157 = vadd.f32 %v4720, %v5156
        %5158 = vmatmul.f32.gmra.mxu0 %v1485
        %v5159 = vpop.f32.mrf.mxu0
        %v5160 = vadd.f32 %v4723, %v5159
        %5161 = vmatmul.f32.gmra.mxu0 %v1494
        %v5162 = vpop.f32.mrf.mxu0
        %v5163 = vadd.f32 %v4726, %v5162
        %5164 = vmatmul.f32.gmra.mxu0 %v1503
        %v5165 = vpop.f32.mrf.mxu0
        %v5166 = vadd.f32 %v4729, %v5165
        %5167 = vmatmul.f32.gmra.mxu0 %v1512
        %v5168 = vpop.f32.mrf.mxu0
        %v5169 = vadd.f32 %v4732, %v5168
        %5170 = vmatmul.f32.gmra.mxu0 %v1521
        %v5171 = vpop.f32.mrf.mxu0
        %v5172 = vadd.f32 %v4735, %v5171
        %5173 = vmatmul.f32.gmra.mxu0 %v1530
        %v5174 = vpop.f32.mrf.mxu0
        %v5175 = vadd.f32 %v4738, %v5174
        %5176 = vmatmul.f32.gmra.mxu0 %v1539
        %v5177 = vpop.f32.mrf.mxu0
        %v5178 = vadd.f32 %v4741, %v5177
        %5179 = vmatmul.f32.gmra.mxu0 %v1548
        %v5180 = vpop.f32.mrf.mxu0
        %v5181 = vadd.f32 %v4744, %v5180
        %5182 = vmatmul.f32.gmra.mxu0 %v1557
        %v5183 = vpop.f32.mrf.mxu0
        %v5184 = vadd.f32 %v4747, %v5183
        %5185 = vmatmul.f32.gmra.mxu0 %v1566
        %v5186 = vpop.f32.mrf.mxu0
        %v5187 = vadd.f32 %v4750, %v5186
        %5188 = vdwg.mxu0
        %5189 = vmatpush.msra.mxu0 %v1696
        %5190 = vmatpush.msra.mxu0 %v1695
        %5191 = vmatpush.msra.mxu0 %v1694
        %5192 = vmatpush.msra.mxu0 %v1693
        %5193 = vmatpush.msra.mxu0 %v1692
        %5194 = vmatpush.msra.mxu0 %v1691
        %5195 = vmatpush.msra.mxu0 %v1690
        %5196 = vmatpush.msra.mxu0 %v1689
        %5197 = vmatpush.msra.mxu0 %v1688
        %5198 = vmatpush.msra.mxu0 %v1687
        %5199 = vmatpush.msra.mxu0 %v1686
        %5200 = vmatpush.msra.mxu0 %v1685
        %5201 = vmatpush.msra.mxu0 %v1684
        %5202 = vmatpush.msra.mxu0 %v1683
        %5203 = vmatpush.msra.mxu0 %v1682
        %5204 = vmatpush.msra.mxu0 %v1681
        %5205 = vmatmul.f32.gmra.mxu0 %v316
        %v5206 = vpop.f32.mrf.mxu0
        %v5207 = vadd.f32 %v4770, %v5206
        %5208 = vmatmul.f32.gmra.mxu0 %v325
        %v5209 = vpop.f32.mrf.mxu0
        %v5210 = vadd.f32 %v4773, %v5209
        %5211 = vmatmul.f32.gmra.mxu0 %v334
        %v5212 = vpop.f32.mrf.mxu0
        %v5213 = vadd.f32 %v4776, %v5212
        %5214 = vmatmul.f32.gmra.mxu0 %v343
        %v5215 = vpop.f32.mrf.mxu0
        %v5216 = vadd.f32 %v4779, %v5215
        %5217 = vmatmul.f32.gmra.mxu0 %v352
        %v5218 = vpop.f32.mrf.mxu0
        %v5219 = vadd.f32 %v4782, %v5218
        %5220 = vmatmul.f32.gmra.mxu0 %v361
        %v5221 = vpop.f32.mrf.mxu0
        %v5222 = vadd.f32 %v4785, %v5221
        %5223 = vmatmul.f32.gmra.mxu0 %v370
        %v5224 = vpop.f32.mrf.mxu0
        %v5225 = vadd.f32 %v4788, %v5224
        %5226 = vmatmul.f32.gmra.mxu0 %v379
        %v5227 = vpop.f32.mrf.mxu0
        %v5228 = vadd.f32 %v4791, %v5227
        %5229 = vmatmul.f32.gmra.mxu0 %v388
        %v5230 = vpop.f32.mrf.mxu0
        %v5231 = vadd.f32 %v4794, %v5230
        %5232 = vmatmul.f32.gmra.mxu0 %v397
        %v5233 = vpop.f32.mrf.mxu0
        %v5234 = vadd.f32 %v4797, %v5233
        %5235 = vmatmul.f32.gmra.mxu0 %v406
        %v5236 = vpop.f32.mrf.mxu0
        %v5237 = vadd.f32 %v4800, %v5236
        %5238 = vmatmul.f32.gmra.mxu0 %v415
        %v5239 = vpop.f32.mrf.mxu0
        %v5240 = vadd.f32 %v4803, %v5239
        %5241 = vmatmul.f32.gmra.mxu0 %v424
        %v5242 = vpop.f32.mrf.mxu0
        %v5243 = vadd.f32 %v4806, %v5242
        %5244 = vmatmul.f32.gmra.mxu0 %v433
        %v5245 = vpop.f32.mrf.mxu0
        %v5246 = vadd.f32 %v4809, %v5245
        %5247 = vmatmul.f32.gmra.mxu0 %v442
        %v5248 = vpop.f32.mrf.mxu0
        %v5249 = vadd.f32 %v4812, %v5248
        %5250 = vmatmul.f32.gmra.mxu0 %v451
        %v5251 = vpop.f32.mrf.mxu0
        %v5252 = vadd.f32 %v4815, %v5251
        %5253 = vmatmul.f32.gmra.mxu0 %v460
        %v5254 = vpop.f32.mrf.mxu0
        %v5255 = vadd.f32 %v4818, %v5254
        %5256 = vmatmul.f32.gmra.mxu0 %v469
        %v5257 = vpop.f32.mrf.mxu0
        %v5258 = vadd.f32 %v4821, %v5257
        %5259 = vmatmul.f32.gmra.mxu0 %v478
        %v5260 = vpop.f32.mrf.mxu0
        %v5261 = vadd.f32 %v4824, %v5260
        %5262 = vmatmul.f32.gmra.mxu0 %v487
        %v5263 = vpop.f32.mrf.mxu0
        %v5264 = vadd.f32 %v4827, %v5263
        %5265 = vmatmul.f32.gmra.mxu0 %v496
        %v5266 = vpop.f32.mrf.mxu0
        %v5267 = vadd.f32 %v4830, %v5266
        %5268 = vmatmul.f32.gmra.mxu0 %v505
        %v5269 = vpop.f32.mrf.mxu0
        %v5270 = vadd.f32 %v4833, %v5269
        %5271 = vmatmul.f32.gmra.mxu0 %v514
        %v5272 = vpop.f32.mrf.mxu0
        %v5273 = vadd.f32 %v4836, %v5272
        %5274 = vmatmul.f32.gmra.mxu0 %v523
        %v5275 = vpop.f32.mrf.mxu0
        %v5276 = vadd.f32 %v4839, %v5275
        %5277 = vmatmul.f32.gmra.mxu0 %v532
        %v5278 = vpop.f32.mrf.mxu0
        %v5279 = vadd.f32 %v4842, %v5278
        %5280 = vmatmul.f32.gmra.mxu0 %v541
        %v5281 = vpop.f32.mrf.mxu0
        %v5282 = vadd.f32 %v4845, %v5281
        %5283 = vmatmul.f32.gmra.mxu0 %v550
        %v5284 = vpop.f32.mrf.mxu0
        %v5285 = vadd.f32 %v4848, %v5284
        %5286 = vmatmul.f32.gmra.mxu0 %v559
        %v5287 = vpop.f32.mrf.mxu0
        %v5288 = vadd.f32 %v4851, %v5287
        %5289 = vmatmul.f32.gmra.mxu0 %v568
        %v5290 = vpop.f32.mrf.mxu0
        %v5291 = vadd.f32 %v4854, %v5290
        %5292 = vmatmul.f32.gmra.mxu0 %v577
        %v5293 = vpop.f32.mrf.mxu0
        %v5294 = vadd.f32 %v4857, %v5293
        %5295 = vmatmul.f32.gmra.mxu0 %v586
        %v5296 = vpop.f32.mrf.mxu0
        %v5297 = vadd.f32 %v4860, %v5296
        %5298 = vmatmul.f32.gmra.mxu0 %v595
        %v5299 = vpop.f32.mrf.mxu0
        %v5300 = vadd.f32 %v4863, %v5299
        %5301 = vmatmul.f32.gmra.mxu0 %v604
        %v5302 = vpop.f32.mrf.mxu0
        %v5303 = vadd.f32 %v4866, %v5302
        %5304 = vmatmul.f32.gmra.mxu0 %v613
        %v5305 = vpop.f32.mrf.mxu0
        %v5306 = vadd.f32 %v4869, %v5305
        %5307 = vmatmul.f32.gmra.mxu0 %v622
        %v5308 = vpop.f32.mrf.mxu0
        %v5309 = vadd.f32 %v4872, %v5308
        %5310 = vmatmul.f32.gmra.mxu0 %v631
        %v5311 = vpop.f32.mrf.mxu0
        %v5312 = vadd.f32 %v4875, %v5311
        %5313 = vmatmul.f32.gmra.mxu0 %v640
        %v5314 = vpop.f32.mrf.mxu0
        %v5315 = vadd.f32 %v4878, %v5314
        %5316 = vmatmul.f32.gmra.mxu0 %v649
        %v5317 = vpop.f32.mrf.mxu0
        %v5318 = vadd.f32 %v4881, %v5317
        %5319 = vmatmul.f32.gmra.mxu0 %v658
        %v5320 = vpop.f32.mrf.mxu0
        %v5321 = vadd.f32 %v4884, %v5320
        %5322 = vmatmul.f32.gmra.mxu0 %v667
        %v5323 = vpop.f32.mrf.mxu0
        %v5324 = vadd.f32 %v4887, %v5323
        %5325 = vmatmul.f32.gmra.mxu0 %v676
        %v5326 = vpop.f32.mrf.mxu0
        %v5327 = vadd.f32 %v4890, %v5326
        %5328 = vmatmul.f32.gmra.mxu0 %v685
        %v5329 = vpop.f32.mrf.mxu0
        %v5330 = vadd.f32 %v4893, %v5329
        %5331 = vmatmul.f32.gmra.mxu0 %v694
        %v5332 = vpop.f32.mrf.mxu0
        %v5333 = vadd.f32 %v4896, %v5332
        %5334 = vmatmul.f32.gmra.mxu0 %v703
        %v5335 = vpop.f32.mrf.mxu0
        %v5336 = vadd.f32 %v4899, %v5335
        %5337 = vmatmul.f32.gmra.mxu0 %v712
        %v5338 = vpop.f32.mrf.mxu0
        %v5339 = vadd.f32 %v4902, %v5338
        %5340 = vmatmul.f32.gmra.mxu0 %v721
        %v5341 = vpop.f32.mrf.mxu0
        %v5342 = vadd.f32 %v4905, %v5341
        %5343 = vmatmul.f32.gmra.mxu0 %v730
        %v5344 = vpop.f32.mrf.mxu0
        %v5345 = vadd.f32 %v4908, %v5344
        %5346 = vmatmul.f32.gmra.mxu0 %v739
        %v5347 = vpop.f32.mrf.mxu0
        %v5348 = vadd.f32 %v4911, %v5347
        %5349 = vmatmul.f32.gmra.mxu0 %v748
        %v5350 = vpop.f32.mrf.mxu0
        %v5351 = vadd.f32 %v4914, %v5350
        %5352 = vmatmul.f32.gmra.mxu0 %v757
        %v5353 = vpop.f32.mrf.mxu0
        %v5354 = vadd.f32 %v4917, %v5353
        %5355 = vmatmul.f32.gmra.mxu0 %v766
        %v5356 = vpop.f32.mrf.mxu0
        %v5357 = vadd.f32 %v4920, %v5356
        %5358 = vmatmul.f32.gmra.mxu0 %v775
        %v5359 = vpop.f32.mrf.mxu0
        %v5360 = vadd.f32 %v4923, %v5359
        %5361 = vmatmul.f32.gmra.mxu0 %v784
        %v5362 = vpop.f32.mrf.mxu0
        %v5363 = vadd.f32 %v4926, %v5362
        %5364 = vmatmul.f32.gmra.mxu0 %v793
        %v5365 = vpop.f32.mrf.mxu0
        %v5366 = vadd.f32 %v4929, %v5365
        %5367 = vmatmul.f32.gmra.mxu0 %v802
        %v5368 = vpop.f32.mrf.mxu0
        %v5369 = vadd.f32 %v4932, %v5368
        %5370 = vmatmul.f32.gmra.mxu0 %v811
        %v5371 = vpop.f32.mrf.mxu0
        %v5372 = vadd.f32 %v4935, %v5371
        %5373 = vmatmul.f32.gmra.mxu0 %v820
        %v5374 = vpop.f32.mrf.mxu0
        %v5375 = vadd.f32 %v4938, %v5374
        %5376 = vmatmul.f32.gmra.mxu0 %v829
        %v5377 = vpop.f32.mrf.mxu0
        %v5378 = vadd.f32 %v4941, %v5377
        %5379 = vmatmul.f32.gmra.mxu0 %v838
        %v5380 = vpop.f32.mrf.mxu0
        %v5381 = vadd.f32 %v4944, %v5380
        %5382 = vmatmul.f32.gmra.mxu0 %v847
        %v5383 = vpop.f32.mrf.mxu0
        %v5384 = vadd.f32 %v4947, %v5383
        %5385 = vmatmul.f32.gmra.mxu0 %v856
        %v5386 = vpop.f32.mrf.mxu0
        %v5387 = vadd.f32 %v4950, %v5386
        %5388 = vmatmul.f32.gmra.mxu0 %v865
        %v5389 = vpop.f32.mrf.mxu0
        %v5390 = vadd.f32 %v4953, %v5389
        %5391 = vmatmul.f32.gmra.mxu0 %v874
        %v5392 = vpop.f32.mrf.mxu0
        %v5393 = vadd.f32 %v4956, %v5392
        %5394 = vmatmul.f32.gmra.mxu0 %v883
        %v5395 = vpop.f32.mrf.mxu0
        %v5396 = vadd.f32 %v4959, %v5395
        %5397 = vmatmul.f32.gmra.mxu0 %v892
        %v5398 = vpop.f32.mrf.mxu0
        %v5399 = vadd.f32 %v4962, %v5398
        %5400 = vmatmul.f32.gmra.mxu0 %v901
        %v5401 = vpop.f32.mrf.mxu0
        %v5402 = vadd.f32 %v4965, %v5401
        %5403 = vmatmul.f32.gmra.mxu0 %v910
        %v5404 = vpop.f32.mrf.mxu0
        %v5405 = vadd.f32 %v4968, %v5404
        %5406 = vmatmul.f32.gmra.mxu0 %v919
        %v5407 = vpop.f32.mrf.mxu0
        %v5408 = vadd.f32 %v4971, %v5407
        %5409 = vmatmul.f32.gmra.mxu0 %v928
        %v5410 = vpop.f32.mrf.mxu0
        %v5411 = vadd.f32 %v4974, %v5410
        %5412 = vmatmul.f32.gmra.mxu0 %v937
        %v5413 = vpop.f32.mrf.mxu0
        %v5414 = vadd.f32 %v4977, %v5413
        %5415 = vmatmul.f32.gmra.mxu0 %v946
        %v5416 = vpop.f32.mrf.mxu0
        %v5417 = vadd.f32 %v4980, %v5416
        %5418 = vmatmul.f32.gmra.mxu0 %v955
        %v5419 = vpop.f32.mrf.mxu0
        %v5420 = vadd.f32 %v4983, %v5419
        %5421 = vmatmul.f32.gmra.mxu0 %v964
        %v5422 = vpop.f32.mrf.mxu0
        %v5423 = vadd.f32 %v4986, %v5422
        %5424 = vmatmul.f32.gmra.mxu0 %v973
        %v5425 = vpop.f32.mrf.mxu0
        %v5426 = vadd.f32 %v4989, %v5425
        %5427 = vmatmul.f32.gmra.mxu0 %v982
        %v5428 = vpop.f32.mrf.mxu0
        %v5429 = vadd.f32 %v4992, %v5428
        %5430 = vmatmul.f32.gmra.mxu0 %v991
        %v5431 = vpop.f32.mrf.mxu0
        %v5432 = vadd.f32 %v4995, %v5431
        %5433 = vmatmul.f32.gmra.mxu0 %v1000
        %v5434 = vpop.f32.mrf.mxu0
        %v5435 = vadd.f32 %v4998, %v5434
        %5436 = vmatmul.f32.gmra.mxu0 %v1009
        %v5437 = vpop.f32.mrf.mxu0
        %v5438 = vadd.f32 %v5001, %v5437
        %5439 = vmatmul.f32.gmra.mxu0 %v1018
        %v5440 = vpop.f32.mrf.mxu0
        %v5441 = vadd.f32 %v5004, %v5440
        %5442 = vmatmul.f32.gmra.mxu0 %v1027
        %v5443 = vpop.f32.mrf.mxu0
        %v5444 = vadd.f32 %v5007, %v5443
        %5445 = vmatmul.f32.gmra.mxu0 %v1036
        %v5446 = vpop.f32.mrf.mxu0
        %v5447 = vadd.f32 %v5010, %v5446
        %5448 = vmatmul.f32.gmra.mxu0 %v1045
        %v5449 = vpop.f32.mrf.mxu0
        %v5450 = vadd.f32 %v5013, %v5449
        %5451 = vmatmul.f32.gmra.mxu0 %v1054
        %v5452 = vpop.f32.mrf.mxu0
        %v5453 = vadd.f32 %v5016, %v5452
        %5454 = vmatmul.f32.gmra.mxu0 %v1063
        %v5455 = vpop.f32.mrf.mxu0
        %v5456 = vadd.f32 %v5019, %v5455
        %5457 = vmatmul.f32.gmra.mxu0 %v1072
        %v5458 = vpop.f32.mrf.mxu0
        %v5459 = vadd.f32 %v5022, %v5458
        %5460 = vmatmul.f32.gmra.mxu0 %v1081
        %v5461 = vpop.f32.mrf.mxu0
        %v5462 = vadd.f32 %v5025, %v5461
        %5463 = vmatmul.f32.gmra.mxu0 %v1090
        %v5464 = vpop.f32.mrf.mxu0
        %v5465 = vadd.f32 %v5028, %v5464
        %5466 = vmatmul.f32.gmra.mxu0 %v1099
        %v5467 = vpop.f32.mrf.mxu0
        %v5468 = vadd.f32 %v5031, %v5467
        %5469 = vmatmul.f32.gmra.mxu0 %v1108
        %v5470 = vpop.f32.mrf.mxu0
        %v5471 = vadd.f32 %v5034, %v5470
        %5472 = vmatmul.f32.gmra.mxu0 %v1117
        %v5473 = vpop.f32.mrf.mxu0
        %v5474 = vadd.f32 %v5037, %v5473
        %5475 = vmatmul.f32.gmra.mxu0 %v1126
        %v5476 = vpop.f32.mrf.mxu0
        %v5477 = vadd.f32 %v5040, %v5476
        %5478 = vmatmul.f32.gmra.mxu0 %v1135
        %v5479 = vpop.f32.mrf.mxu0
        %v5480 = vadd.f32 %v5043, %v5479
        %5481 = vmatmul.f32.gmra.mxu0 %v1144
        %v5482 = vpop.f32.mrf.mxu0
        %v5483 = vadd.f32 %v5046, %v5482
        %5484 = vmatmul.f32.gmra.mxu0 %v1153
        %v5485 = vpop.f32.mrf.mxu0
        %v5486 = vadd.f32 %v5049, %v5485
        %5487 = vmatmul.f32.gmra.mxu0 %v1162
        %v5488 = vpop.f32.mrf.mxu0
        %v5489 = vadd.f32 %v5052, %v5488
        %5490 = vmatmul.f32.gmra.mxu0 %v1171
        %v5491 = vpop.f32.mrf.mxu0
        %v5492 = vadd.f32 %v5055, %v5491
        %5493 = vmatmul.f32.gmra.mxu0 %v1180
        %v5494 = vpop.f32.mrf.mxu0
        %v5495 = vadd.f32 %v5058, %v5494
        %5496 = vmatmul.f32.gmra.mxu0 %v1189
        %v5497 = vpop.f32.mrf.mxu0
        %v5498 = vadd.f32 %v5061, %v5497
        %5499 = vmatmul.f32.gmra.mxu0 %v1198
        %v5500 = vpop.f32.mrf.mxu0
        %v5501 = vadd.f32 %v5064, %v5500
        %5502 = vmatmul.f32.gmra.mxu0 %v1207
        %v5503 = vpop.f32.mrf.mxu0
        %v5504 = vadd.f32 %v5067, %v5503
        %5505 = vmatmul.f32.gmra.mxu0 %v1216
        %v5506 = vpop.f32.mrf.mxu0
        %v5507 = vadd.f32 %v5070, %v5506
        %5508 = vmatmul.f32.gmra.mxu0 %v1225
        %v5509 = vpop.f32.mrf.mxu0
        %v5510 = vadd.f32 %v5073, %v5509
        %5511 = vmatmul.f32.gmra.mxu0 %v1234
        %v5512 = vpop.f32.mrf.mxu0
        %v5513 = vadd.f32 %v5076, %v5512
        %5514 = vmatmul.f32.gmra.mxu0 %v1243
        %v5515 = vpop.f32.mrf.mxu0
        %v5516 = vadd.f32 %v5079, %v5515
        %5517 = vmatmul.f32.gmra.mxu0 %v1252
        %v5518 = vpop.f32.mrf.mxu0
        %v5519 = vadd.f32 %v5082, %v5518
        %5520 = vmatmul.f32.gmra.mxu0 %v1261
        %v5521 = vpop.f32.mrf.mxu0
        %v5522 = vadd.f32 %v5085, %v5521
        %5523 = vmatmul.f32.gmra.mxu0 %v1270
        %v5524 = vpop.f32.mrf.mxu0
        %v5525 = vadd.f32 %v5088, %v5524
        %5526 = vmatmul.f32.gmra.mxu0 %v1279
        %v5527 = vpop.f32.mrf.mxu0
        %v5528 = vadd.f32 %v5091, %v5527
        %5529 = vmatmul.f32.gmra.mxu0 %v1288
        %v5530 = vpop.f32.mrf.mxu0
        %v5531 = vadd.f32 %v5094, %v5530
        %5532 = vmatmul.f32.gmra.mxu0 %v1297
        %v5533 = vpop.f32.mrf.mxu0
        %v5534 = vadd.f32 %v5097, %v5533
        %5535 = vmatmul.f32.gmra.mxu0 %v1306
        %v5536 = vpop.f32.mrf.mxu0
        %v5537 = vadd.f32 %v5100, %v5536
        %5538 = vmatmul.f32.gmra.mxu0 %v1315
        %v5539 = vpop.f32.mrf.mxu0
        %v5540 = vadd.f32 %v5103, %v5539
        %5541 = vmatmul.f32.gmra.mxu0 %v1324
        %v5542 = vpop.f32.mrf.mxu0
        %v5543 = vadd.f32 %v5106, %v5542
        %5544 = vmatmul.f32.gmra.mxu0 %v1333
        %v5545 = vpop.f32.mrf.mxu0
        %v5546 = vadd.f32 %v5109, %v5545
        %5547 = vmatmul.f32.gmra.mxu0 %v1342
        %v5548 = vpop.f32.mrf.mxu0
        %v5549 = vadd.f32 %v5112, %v5548
        %5550 = vmatmul.f32.gmra.mxu0 %v1351
        %v5551 = vpop.f32.mrf.mxu0
        %v5552 = vadd.f32 %v5115, %v5551
        %5553 = vmatmul.f32.gmra.mxu0 %v1360
        %v5554 = vpop.f32.mrf.mxu0
        %v5555 = vadd.f32 %v5118, %v5554
        %5556 = vmatmul.f32.gmra.mxu0 %v1369
        %v5557 = vpop.f32.mrf.mxu0
        %v5558 = vadd.f32 %v5121, %v5557
        %5559 = vmatmul.f32.gmra.mxu0 %v1378
        %v5560 = vpop.f32.mrf.mxu0
        %v5561 = vadd.f32 %v5124, %v5560
        %5562 = vmatmul.f32.gmra.mxu0 %v1387
        %v5563 = vpop.f32.mrf.mxu0
        %v5564 = vadd.f32 %v5127, %v5563
        %5565 = vmatmul.f32.gmra.mxu0 %v1396
        %v5566 = vpop.f32.mrf.mxu0
        %v5567 = vadd.f32 %v5130, %v5566
        %5568 = vmatmul.f32.gmra.mxu0 %v1405
        %v5569 = vpop.f32.mrf.mxu0
        %v5570 = vadd.f32 %v5133, %v5569
        %5571 = vmatmul.f32.gmra.mxu0 %v1414
        %v5572 = vpop.f32.mrf.mxu0
        %v5573 = vadd.f32 %v5136, %v5572
        %5574 = vmatmul.f32.gmra.mxu0 %v1423
        %v5575 = vpop.f32.mrf.mxu0
        %v5576 = vadd.f32 %v5139, %v5575
        %5577 = vmatmul.f32.gmra.mxu0 %v1432
        %v5578 = vpop.f32.mrf.mxu0
        %v5579 = vadd.f32 %v5142, %v5578
        %5580 = vmatmul.f32.gmra.mxu0 %v1441
        %v5581 = vpop.f32.mrf.mxu0
        %v5582 = vadd.f32 %v5145, %v5581
        %5583 = vmatmul.f32.gmra.mxu0 %v1450
        %v5584 = vpop.f32.mrf.mxu0
        %v5585 = vadd.f32 %v5148, %v5584
        %5586 = vmatmul.f32.gmra.mxu0 %v1459
        %v5587 = vpop.f32.mrf.mxu0
        %v5588 = vadd.f32 %v5151, %v5587
        %5589 = vmatmul.f32.gmra.mxu0 %v1468
        %v5590 = vpop.f32.mrf.mxu0
        %v5591 = vadd.f32 %v5154, %v5590
        %5592 = vmatmul.f32.gmra.mxu0 %v1477
        %v5593 = vpop.f32.mrf.mxu0
        %v5594 = vadd.f32 %v5157, %v5593
        %5595 = vmatmul.f32.gmra.mxu0 %v1486
        %v5596 = vpop.f32.mrf.mxu0
        %v5597 = vadd.f32 %v5160, %v5596
        %5598 = vmatmul.f32.gmra.mxu0 %v1495
        %v5599 = vpop.f32.mrf.mxu0
        %v5600 = vadd.f32 %v5163, %v5599
        %5601 = vmatmul.f32.gmra.mxu0 %v1504
        %v5602 = vpop.f32.mrf.mxu0
        %v5603 = vadd.f32 %v5166, %v5602
        %5604 = vmatmul.f32.gmra.mxu0 %v1513
        %v5605 = vpop.f32.mrf.mxu0
        %v5606 = vadd.f32 %v5169, %v5605
        %5607 = vmatmul.f32.gmra.mxu0 %v1522
        %v5608 = vpop.f32.mrf.mxu0
        %v5609 = vadd.f32 %v5172, %v5608
        %5610 = vmatmul.f32.gmra.mxu0 %v1531
        %v5611 = vpop.f32.mrf.mxu0
        %v5612 = vadd.f32 %v5175, %v5611
        %5613 = vmatmul.f32.gmra.mxu0 %v1540
        %v5614 = vpop.f32.mrf.mxu0
        %v5615 = vadd.f32 %v5178, %v5614
        %5616 = vmatmul.f32.gmra.mxu0 %v1549
        %v5617 = vpop.f32.mrf.mxu0
        %v5618 = vadd.f32 %v5181, %v5617
        %5619 = vmatmul.f32.gmra.mxu0 %v1558
        %v5620 = vpop.f32.mrf.mxu0
        %v5621 = vadd.f32 %v5184, %v5620
        %5622 = vmatmul.f32.gmra.mxu0 %v1567
        %v5623 = vpop.f32.mrf.mxu0
        %v5624 = vadd.f32 %v5187, %v5623
        %5625 = vdwg.mxu0
        %5626 = vmatpush.msra.mxu0 0.0
        %5627 = vmatpush.msra.mxu0 0.0
        %5628 = vmatpush.msra.mxu0 0.0
        %5629 = vmatpush.msra.mxu0 0.0
        %5630 = vmatpush.msra.mxu0 %v1708
        %5631 = vmatpush.msra.mxu0 %v1707
        %5632 = vmatpush.msra.mxu0 %v1706
        %5633 = vmatpush.msra.mxu0 %v1705
        %5634 = vmatpush.msra.mxu0 %v1704
        %5635 = vmatpush.msra.mxu0 %v1703
        %5636 = vmatpush.msra.mxu0 %v1702
        %5637 = vmatpush.msra.mxu0 %v1701
        %5638 = vmatpush.msra.mxu0 %v1700
        %5639 = vmatpush.msra.mxu0 %v1699
        %5640 = vmatpush.msra.mxu0 %v1698
        %5641 = vmatpush.msra.mxu0 %v1697
        %5642 = vmatmul.f32.gmra.mxu0 %v1711
        %v5643 = vpop.f32.mrf.mxu0
        %v5644 = vadd.f32 %v5207, %v5643
        %5645 = vmatmul.f32.gmra.mxu0 %v1714
        %v5646 = vpop.f32.mrf.mxu0
        %v5647 = vadd.f32 %v5210, %v5646
        %5648 = vmatmul.f32.gmra.mxu0 %v1717
        %v5649 = vpop.f32.mrf.mxu0
        %v5650 = vadd.f32 %v5213, %v5649
        %5651 = vmatmul.f32.gmra.mxu0 %v1720
        %v5652 = vpop.f32.mrf.mxu0
        %v5653 = vadd.f32 %v5216, %v5652
        %5654 = vmatmul.f32.gmra.mxu0 %v1723
        %v5655 = vpop.f32.mrf.mxu0
        %v5656 = vadd.f32 %v5219, %v5655
        %5657 = vmatmul.f32.gmra.mxu0 %v1726
        %v5658 = vpop.f32.mrf.mxu0
        %v5659 = vadd.f32 %v5222, %v5658
        %5660 = vmatmul.f32.gmra.mxu0 %v1729
        %v5661 = vpop.f32.mrf.mxu0
        %v5662 = vadd.f32 %v5225, %v5661
        %5663 = vmatmul.f32.gmra.mxu0 %v1732
        %v5664 = vpop.f32.mrf.mxu0
        %v5665 = vadd.f32 %v5228, %v5664
        %5666 = vmatmul.f32.gmra.mxu0 %v1735
        %v5667 = vpop.f32.mrf.mxu0
        %v5668 = vadd.f32 %v5231, %v5667
        %5669 = vmatmul.f32.gmra.mxu0 %v1738
        %v5670 = vpop.f32.mrf.mxu0
        %v5671 = vadd.f32 %v5234, %v5670
        %5672 = vmatmul.f32.gmra.mxu0 %v1741
        %v5673 = vpop.f32.mrf.mxu0
        %v5674 = vadd.f32 %v5237, %v5673
        %5675 = vmatmul.f32.gmra.mxu0 %v1744
        %v5676 = vpop.f32.mrf.mxu0
        %v5677 = vadd.f32 %v5240, %v5676
        %5678 = vmatmul.f32.gmra.mxu0 %v1747
        %v5679 = vpop.f32.mrf.mxu0
        %v5680 = vadd.f32 %v5243, %v5679
        %5681 = vmatmul.f32.gmra.mxu0 %v1750
        %v5682 = vpop.f32.mrf.mxu0
        %v5683 = vadd.f32 %v5246, %v5682
        %5684 = vmatmul.f32.gmra.mxu0 %v1753
        %v5685 = vpop.f32.mrf.mxu0
        %v5686 = vadd.f32 %v5249, %v5685
        %5687 = vmatmul.f32.gmra.mxu0 %v1756
        %v5688 = vpop.f32.mrf.mxu0
        %v5689 = vadd.f32 %v5252, %v5688
        %5690 = vmatmul.f32.gmra.mxu0 %v1759
        %v5691 = vpop.f32.mrf.mxu0
        %v5692 = vadd.f32 %v5255, %v5691
        %5693 = vmatmul.f32.gmra.mxu0 %v1762
        %v5694 = vpop.f32.mrf.mxu0
        %v5695 = vadd.f32 %v5258, %v5694
        %5696 = vmatmul.f32.gmra.mxu0 %v1765
        %v5697 = vpop.f32.mrf.mxu0
        %v5698 = vadd.f32 %v5261, %v5697
        %5699 = vmatmul.f32.gmra.mxu0 %v1768
        %v5700 = vpop.f32.mrf.mxu0
        %v5701 = vadd.f32 %v5264, %v5700
        %5702 = vmatmul.f32.gmra.mxu0 %v1771
        %v5703 = vpop.f32.mrf.mxu0
        %v5704 = vadd.f32 %v5267, %v5703
        %5705 = vmatmul.f32.gmra.mxu0 %v1774
        %v5706 = vpop.f32.mrf.mxu0
        %v5707 = vadd.f32 %v5270, %v5706
        %5708 = vmatmul.f32.gmra.mxu0 %v1777
        %v5709 = vpop.f32.mrf.mxu0
        %v5710 = vadd.f32 %v5273, %v5709
        %5711 = vmatmul.f32.gmra.mxu0 %v1780
        %v5712 = vpop.f32.mrf.mxu0
        %v5713 = vadd.f32 %v5276, %v5712
        %5714 = vmatmul.f32.gmra.mxu0 %v1783
        %v5715 = vpop.f32.mrf.mxu0
        %v5716 = vadd.f32 %v5279, %v5715
        %5717 = vmatmul.f32.gmra.mxu0 %v1786
        %v5718 = vpop.f32.mrf.mxu0
        %v5719 = vadd.f32 %v5282, %v5718
        %5720 = vmatmul.f32.gmra.mxu0 %v1789
        %v5721 = vpop.f32.mrf.mxu0
        %v5722 = vadd.f32 %v5285, %v5721
        %5723 = vmatmul.f32.gmra.mxu0 %v1792
        %v5724 = vpop.f32.mrf.mxu0
        %v5725 = vadd.f32 %v5288, %v5724
        %5726 = vmatmul.f32.gmra.mxu0 %v1795
        %v5727 = vpop.f32.mrf.mxu0
        %v5728 = vadd.f32 %v5291, %v5727
        %5729 = vmatmul.f32.gmra.mxu0 %v1798
        %v5730 = vpop.f32.mrf.mxu0
        %v5731 = vadd.f32 %v5294, %v5730
        %5732 = vmatmul.f32.gmra.mxu0 %v1801
        %v5733 = vpop.f32.mrf.mxu0
        %v5734 = vadd.f32 %v5297, %v5733
        %5735 = vmatmul.f32.gmra.mxu0 %v1804
        %v5736 = vpop.f32.mrf.mxu0
        %v5737 = vadd.f32 %v5300, %v5736
        %5738 = vmatmul.f32.gmra.mxu0 %v1807
        %v5739 = vpop.f32.mrf.mxu0
        %v5740 = vadd.f32 %v5303, %v5739
        %5741 = vmatmul.f32.gmra.mxu0 %v1810
        %v5742 = vpop.f32.mrf.mxu0
        %v5743 = vadd.f32 %v5306, %v5742
        %5744 = vmatmul.f32.gmra.mxu0 %v1813
        %v5745 = vpop.f32.mrf.mxu0
        %v5746 = vadd.f32 %v5309, %v5745
        %5747 = vmatmul.f32.gmra.mxu0 %v1816
        %v5748 = vpop.f32.mrf.mxu0
        %v5749 = vadd.f32 %v5312, %v5748
        %5750 = vmatmul.f32.gmra.mxu0 %v1819
        %v5751 = vpop.f32.mrf.mxu0
        %v5752 = vadd.f32 %v5315, %v5751
        %5753 = vmatmul.f32.gmra.mxu0 %v1822
        %v5754 = vpop.f32.mrf.mxu0
        %v5755 = vadd.f32 %v5318, %v5754
        %5756 = vmatmul.f32.gmra.mxu0 %v1825
        %v5757 = vpop.f32.mrf.mxu0
        %v5758 = vadd.f32 %v5321, %v5757
        %5759 = vmatmul.f32.gmra.mxu0 %v1828
        %v5760 = vpop.f32.mrf.mxu0
        %v5761 = vadd.f32 %v5324, %v5760
        %5762 = vmatmul.f32.gmra.mxu0 %v1831
        %v5763 = vpop.f32.mrf.mxu0
        %v5764 = vadd.f32 %v5327, %v5763
        %5765 = vmatmul.f32.gmra.mxu0 %v1834
        %v5766 = vpop.f32.mrf.mxu0
        %v5767 = vadd.f32 %v5330, %v5766
        %5768 = vmatmul.f32.gmra.mxu0 %v1837
        %v5769 = vpop.f32.mrf.mxu0
        %v5770 = vadd.f32 %v5333, %v5769
        %5771 = vmatmul.f32.gmra.mxu0 %v1840
        %v5772 = vpop.f32.mrf.mxu0
        %v5773 = vadd.f32 %v5336, %v5772
        %5774 = vmatmul.f32.gmra.mxu0 %v1843
        %v5775 = vpop.f32.mrf.mxu0
        %v5776 = vadd.f32 %v5339, %v5775
        %5777 = vmatmul.f32.gmra.mxu0 %v1846
        %v5778 = vpop.f32.mrf.mxu0
        %v5779 = vadd.f32 %v5342, %v5778
        %5780 = vmatmul.f32.gmra.mxu0 %v1849
        %v5781 = vpop.f32.mrf.mxu0
        %v5782 = vadd.f32 %v5345, %v5781
        %5783 = vmatmul.f32.gmra.mxu0 %v1852
        %v5784 = vpop.f32.mrf.mxu0
        %v5785 = vadd.f32 %v5348, %v5784
        %5786 = vmatmul.f32.gmra.mxu0 %v1855
        %v5787 = vpop.f32.mrf.mxu0
        %v5788 = vadd.f32 %v5351, %v5787
        %5789 = vmatmul.f32.gmra.mxu0 %v1858
        %v5790 = vpop.f32.mrf.mxu0
        %v5791 = vadd.f32 %v5354, %v5790
        %5792 = vmatmul.f32.gmra.mxu0 %v1861
        %v5793 = vpop.f32.mrf.mxu0
        %v5794 = vadd.f32 %v5357, %v5793
        %5795 = vmatmul.f32.gmra.mxu0 %v1864
        %v5796 = vpop.f32.mrf.mxu0
        %v5797 = vadd.f32 %v5360, %v5796
        %5798 = vmatmul.f32.gmra.mxu0 %v1867
        %v5799 = vpop.f32.mrf.mxu0
        %v5800 = vadd.f32 %v5363, %v5799
        %5801 = vmatmul.f32.gmra.mxu0 %v1870
        %v5802 = vpop.f32.mrf.mxu0
        %v5803 = vadd.f32 %v5366, %v5802
        %5804 = vmatmul.f32.gmra.mxu0 %v1873
        %v5805 = vpop.f32.mrf.mxu0
        %v5806 = vadd.f32 %v5369, %v5805
        %5807 = vmatmul.f32.gmra.mxu0 %v1876
        %v5808 = vpop.f32.mrf.mxu0
        %v5809 = vadd.f32 %v5372, %v5808
        %5810 = vmatmul.f32.gmra.mxu0 %v1879
        %v5811 = vpop.f32.mrf.mxu0
        %v5812 = vadd.f32 %v5375, %v5811
        %5813 = vmatmul.f32.gmra.mxu0 %v1882
        %v5814 = vpop.f32.mrf.mxu0
        %v5815 = vadd.f32 %v5378, %v5814
        %5816 = vmatmul.f32.gmra.mxu0 %v1885
        %v5817 = vpop.f32.mrf.mxu0
        %v5818 = vadd.f32 %v5381, %v5817
        %5819 = vmatmul.f32.gmra.mxu0 %v1888
        %v5820 = vpop.f32.mrf.mxu0
        %v5821 = vadd.f32 %v5384, %v5820
        %5822 = vmatmul.f32.gmra.mxu0 %v1891
        %v5823 = vpop.f32.mrf.mxu0
        %v5824 = vadd.f32 %v5387, %v5823
        %5825 = vmatmul.f32.gmra.mxu0 %v1894
        %v5826 = vpop.f32.mrf.mxu0
        %v5827 = vadd.f32 %v5390, %v5826
        %5828 = vmatmul.f32.gmra.mxu0 %v1897
        %v5829 = vpop.f32.mrf.mxu0
        %v5830 = vadd.f32 %v5393, %v5829
        %5831 = vmatmul.f32.gmra.mxu0 %v1900
        %v5832 = vpop.f32.mrf.mxu0
        %v5833 = vadd.f32 %v5396, %v5832
        %5834 = vmatmul.f32.gmra.mxu0 %v1903
        %v5835 = vpop.f32.mrf.mxu0
        %v5836 = vadd.f32 %v5399, %v5835
        %5837 = vmatmul.f32.gmra.mxu0 %v1906
        %v5838 = vpop.f32.mrf.mxu0
        %v5839 = vadd.f32 %v5402, %v5838
        %5840 = vmatmul.f32.gmra.mxu0 %v1909
        %v5841 = vpop.f32.mrf.mxu0
        %v5842 = vadd.f32 %v5405, %v5841
        %5843 = vmatmul.f32.gmra.mxu0 %v1912
        %v5844 = vpop.f32.mrf.mxu0
        %v5845 = vadd.f32 %v5408, %v5844
        %5846 = vmatmul.f32.gmra.mxu0 %v1915
        %v5847 = vpop.f32.mrf.mxu0
        %v5848 = vadd.f32 %v5411, %v5847
        %5849 = vmatmul.f32.gmra.mxu0 %v1918
        %v5850 = vpop.f32.mrf.mxu0
        %v5851 = vadd.f32 %v5414, %v5850
        %5852 = vmatmul.f32.gmra.mxu0 %v1921
        %v5853 = vpop.f32.mrf.mxu0
        %v5854 = vadd.f32 %v5417, %v5853
        %5855 = vmatmul.f32.gmra.mxu0 %v1924
        %v5856 = vpop.f32.mrf.mxu0
        %v5857 = vadd.f32 %v5420, %v5856
        %5858 = vmatmul.f32.gmra.mxu0 %v1927
        %v5859 = vpop.f32.mrf.mxu0
        %v5860 = vadd.f32 %v5423, %v5859
        %5861 = vmatmul.f32.gmra.mxu0 %v1930
        %v5862 = vpop.f32.mrf.mxu0
        %v5863 = vadd.f32 %v5426, %v5862
        %5864 = vmatmul.f32.gmra.mxu0 %v1933
        %v5865 = vpop.f32.mrf.mxu0
        %v5866 = vadd.f32 %v5429, %v5865
        %5867 = vmatmul.f32.gmra.mxu0 %v1936
        %v5868 = vpop.f32.mrf.mxu0
        %v5869 = vadd.f32 %v5432, %v5868
        %5870 = vmatmul.f32.gmra.mxu0 %v1939
        %v5871 = vpop.f32.mrf.mxu0
        %v5872 = vadd.f32 %v5435, %v5871
        %5873 = vmatmul.f32.gmra.mxu0 %v1942
        %v5874 = vpop.f32.mrf.mxu0
        %v5875 = vadd.f32 %v5438, %v5874
        %5876 = vmatmul.f32.gmra.mxu0 %v1945
        %v5877 = vpop.f32.mrf.mxu0
        %v5878 = vadd.f32 %v5441, %v5877
        %5879 = vmatmul.f32.gmra.mxu0 %v1948
        %v5880 = vpop.f32.mrf.mxu0
        %v5881 = vadd.f32 %v5444, %v5880
        %5882 = vmatmul.f32.gmra.mxu0 %v1951
        %v5883 = vpop.f32.mrf.mxu0
        %v5884 = vadd.f32 %v5447, %v5883
        %5885 = vmatmul.f32.gmra.mxu0 %v1954
        %v5886 = vpop.f32.mrf.mxu0
        %v5887 = vadd.f32 %v5450, %v5886
        %5888 = vmatmul.f32.gmra.mxu0 %v1957
        %v5889 = vpop.f32.mrf.mxu0
        %v5890 = vadd.f32 %v5453, %v5889
        %5891 = vmatmul.f32.gmra.mxu0 %v1960
        %v5892 = vpop.f32.mrf.mxu0
        %v5893 = vadd.f32 %v5456, %v5892
        %5894 = vmatmul.f32.gmra.mxu0 %v1963
        %v5895 = vpop.f32.mrf.mxu0
        %v5896 = vadd.f32 %v5459, %v5895
        %5897 = vmatmul.f32.gmra.mxu0 %v1966
        %v5898 = vpop.f32.mrf.mxu0
        %v5899 = vadd.f32 %v5462, %v5898
        %5900 = vmatmul.f32.gmra.mxu0 %v1969
        %v5901 = vpop.f32.mrf.mxu0
        %v5902 = vadd.f32 %v5465, %v5901
        %5903 = vmatmul.f32.gmra.mxu0 %v1972
        %v5904 = vpop.f32.mrf.mxu0
        %v5905 = vadd.f32 %v5468, %v5904
        %5906 = vmatmul.f32.gmra.mxu0 %v1975
        %v5907 = vpop.f32.mrf.mxu0
        %v5908 = vadd.f32 %v5471, %v5907
        %5909 = vmatmul.f32.gmra.mxu0 %v1978
        %v5910 = vpop.f32.mrf.mxu0
        %v5911 = vadd.f32 %v5474, %v5910
        %5912 = vmatmul.f32.gmra.mxu0 %v1981
        %v5913 = vpop.f32.mrf.mxu0
        %v5914 = vadd.f32 %v5477, %v5913
        %5915 = vmatmul.f32.gmra.mxu0 %v1984
        %v5916 = vpop.f32.mrf.mxu0
        %v5917 = vadd.f32 %v5480, %v5916
        %5918 = vmatmul.f32.gmra.mxu0 %v1987
        %v5919 = vpop.f32.mrf.mxu0
        %v5920 = vadd.f32 %v5483, %v5919
        %5921 = vmatmul.f32.gmra.mxu0 %v1990
        %v5922 = vpop.f32.mrf.mxu0
        %v5923 = vadd.f32 %v5486, %v5922
        %5924 = vmatmul.f32.gmra.mxu0 %v1993
        %v5925 = vpop.f32.mrf.mxu0
        %v5926 = vadd.f32 %v5489, %v5925
        %5927 = vmatmul.f32.gmra.mxu0 %v1996
        %v5928 = vpop.f32.mrf.mxu0
        %v5929 = vadd.f32 %v5492, %v5928
        %5930 = vmatmul.f32.gmra.mxu0 %v1999
        %v5931 = vpop.f32.mrf.mxu0
        %v5932 = vadd.f32 %v5495, %v5931
        %5933 = vmatmul.f32.gmra.mxu0 %v2002
        %v5934 = vpop.f32.mrf.mxu0
        %v5935 = vadd.f32 %v5498, %v5934
        %5936 = vmatmul.f32.gmra.mxu0 %v2005
        %v5937 = vpop.f32.mrf.mxu0
        %v5938 = vadd.f32 %v5501, %v5937
        %5939 = vmatmul.f32.gmra.mxu0 %v2008
        %v5940 = vpop.f32.mrf.mxu0
        %v5941 = vadd.f32 %v5504, %v5940
        %5942 = vmatmul.f32.gmra.mxu0 %v2011
        %v5943 = vpop.f32.mrf.mxu0
        %v5944 = vadd.f32 %v5507, %v5943
        %5945 = vmatmul.f32.gmra.mxu0 %v2014
        %v5946 = vpop.f32.mrf.mxu0
        %v5947 = vadd.f32 %v5510, %v5946
        %5948 = vmatmul.f32.gmra.mxu0 %v2017
        %v5949 = vpop.f32.mrf.mxu0
        %v5950 = vadd.f32 %v5513, %v5949
        %5951 = vmatmul.f32.gmra.mxu0 %v2020
        %v5952 = vpop.f32.mrf.mxu0
        %v5953 = vadd.f32 %v5516, %v5952
        %5954 = vmatmul.f32.gmra.mxu0 %v2023
        %v5955 = vpop.f32.mrf.mxu0
        %v5956 = vadd.f32 %v5519, %v5955
        %5957 = vmatmul.f32.gmra.mxu0 %v2026
        %v5958 = vpop.f32.mrf.mxu0
        %v5959 = vadd.f32 %v5522, %v5958
        %5960 = vmatmul.f32.gmra.mxu0 %v2029
        %v5961 = vpop.f32.mrf.mxu0
        %v5962 = vadd.f32 %v5525, %v5961
        %5963 = vmatmul.f32.gmra.mxu0 %v2032
        %v5964 = vpop.f32.mrf.mxu0
        %v5965 = vadd.f32 %v5528, %v5964
        %5966 = vmatmul.f32.gmra.mxu0 %v2035
        %v5967 = vpop.f32.mrf.mxu0
        %v5968 = vadd.f32 %v5531, %v5967
        %5969 = vmatmul.f32.gmra.mxu0 %v2038
        %v5970 = vpop.f32.mrf.mxu0
        %v5971 = vadd.f32 %v5534, %v5970
        %5972 = vmatmul.f32.gmra.mxu0 %v2041
        %v5973 = vpop.f32.mrf.mxu0
        %v5974 = vadd.f32 %v5537, %v5973
        %5975 = vmatmul.f32.gmra.mxu0 %v2044
        %v5976 = vpop.f32.mrf.mxu0
        %v5977 = vadd.f32 %v5540, %v5976
        %5978 = vmatmul.f32.gmra.mxu0 %v2047
        %v5979 = vpop.f32.mrf.mxu0
        %v5980 = vadd.f32 %v5543, %v5979
        %5981 = vmatmul.f32.gmra.mxu0 %v2050
        %v5982 = vpop.f32.mrf.mxu0
        %v5983 = vadd.f32 %v5546, %v5982
        %5984 = vmatmul.f32.gmra.mxu0 %v2053
        %v5985 = vpop.f32.mrf.mxu0
        %v5986 = vadd.f32 %v5549, %v5985
        %5987 = vmatmul.f32.gmra.mxu0 %v2056
        %v5988 = vpop.f32.mrf.mxu0
        %v5989 = vadd.f32 %v5552, %v5988
        %5990 = vmatmul.f32.gmra.mxu0 %v2059
        %v5991 = vpop.f32.mrf.mxu0
        %v5992 = vadd.f32 %v5555, %v5991
        %5993 = vmatmul.f32.gmra.mxu0 %v2062
        %v5994 = vpop.f32.mrf.mxu0
        %v5995 = vadd.f32 %v5558, %v5994
        %5996 = vmatmul.f32.gmra.mxu0 %v2065
        %v5997 = vpop.f32.mrf.mxu0
        %v5998 = vadd.f32 %v5561, %v5997
        %5999 = vmatmul.f32.gmra.mxu0 %v2068
        %v6000 = vpop.f32.mrf.mxu0
        %v6001 = vadd.f32 %v5564, %v6000
        %6002 = vmatmul.f32.gmra.mxu0 %v2071
        %v6003 = vpop.f32.mrf.mxu0
        %v6004 = vadd.f32 %v5567, %v6003
        %6005 = vmatmul.f32.gmra.mxu0 %v2074
        %v6006 = vpop.f32.mrf.mxu0
        %v6007 = vadd.f32 %v5570, %v6006
        %6008 = vmatmul.f32.gmra.mxu0 %v2077
        %v6009 = vpop.f32.mrf.mxu0
        %v6010 = vadd.f32 %v5573, %v6009
        %6011 = vmatmul.f32.gmra.mxu0 %v2080
        %v6012 = vpop.f32.mrf.mxu0
        %v6013 = vadd.f32 %v5576, %v6012
        %6014 = vmatmul.f32.gmra.mxu0 %v2083
        %v6015 = vpop.f32.mrf.mxu0
        %v6016 = vadd.f32 %v5579, %v6015
        %6017 = vmatmul.f32.gmra.mxu0 %v2086
        %v6018 = vpop.f32.mrf.mxu0
        %v6019 = vadd.f32 %v5582, %v6018
        %6020 = vmatmul.f32.gmra.mxu0 %v2089
        %v6021 = vpop.f32.mrf.mxu0
        %v6022 = vadd.f32 %v5585, %v6021
        %6023 = vmatmul.f32.gmra.mxu0 %v2092
        %v6024 = vpop.f32.mrf.mxu0
        %v6025 = vadd.f32 %v5588, %v6024
        %6026 = vmatmul.f32.gmra.mxu0 %v2095
        %v6027 = vpop.f32.mrf.mxu0
        %v6028 = vadd.f32 %v5591, %v6027
        %6029 = vmatmul.f32.gmra.mxu0 %v2098
        %v6030 = vpop.f32.mrf.mxu0
        %v6031 = vadd.f32 %v5594, %v6030
        %6032 = vmatmul.f32.gmra.mxu0 %v2101
        %v6033 = vpop.f32.mrf.mxu0
        %v6034 = vadd.f32 %v5597, %v6033
        %6035 = vmatmul.f32.gmra.mxu0 %v2104
        %v6036 = vpop.f32.mrf.mxu0
        %v6037 = vadd.f32 %v5600, %v6036
        %6038 = vmatmul.f32.gmra.mxu0 %v2107
        %v6039 = vpop.f32.mrf.mxu0
        %v6040 = vadd.f32 %v5603, %v6039
        %6041 = vmatmul.f32.gmra.mxu0 %v2110
        %v6042 = vpop.f32.mrf.mxu0
        %v6043 = vadd.f32 %v5606, %v6042
        %6044 = vmatmul.f32.gmra.mxu0 %v2113
        %v6045 = vpop.f32.mrf.mxu0
        %v6046 = vadd.f32 %v5609, %v6045
        %6047 = vmatmul.f32.gmra.mxu0 %v2116
        %v6048 = vpop.f32.mrf.mxu0
        %v6049 = vadd.f32 %v5612, %v6048
        %6050 = vmatmul.f32.gmra.mxu0 %v2119
        %v6051 = vpop.f32.mrf.mxu0
        %v6052 = vadd.f32 %v5615, %v6051
        %6053 = vmatmul.f32.gmra.mxu0 %v2122
        %v6054 = vpop.f32.mrf.mxu0
        %v6055 = vadd.f32 %v5618, %v6054
        %6056 = vmatmul.f32.gmra.mxu0 %v2125
        %v6057 = vpop.f32.mrf.mxu0
        %v6058 = vadd.f32 %v5621, %v6057
        %6059 = vmatmul.f32.gmra.mxu0 %v2128
        %v6060 = vpop.f32.mrf.mxu0
        %v6061 = vadd.f32 %v5624, %v6060
        %6062 = vdwg.mxu0
        %v6063 = vld [vmem:[%s2] sm:$0xff]
        %v6064 = vld [vmem:[%s2 + $0x8] sm:$0xff]
        %v6065 = vld [vmem:[%s2 + $0x10] sm:$0xff]
        %v6066 = vld [vmem:[%s2 + $0x18] sm:$0xff]
        %v6067 = vld [vmem:[%s2 + $0x20] sm:$0xff]
        %v6068 = vld [vmem:[%s2 + $0x28] sm:$0xff]
        %v6069 = vld [vmem:[%s2 + $0x30] sm:$0xff]
        %v6070 = vld [vmem:[%s2 + $0x38] sm:$0xff]
        %v6071 = vld [vmem:[%s2 + $0x40] sm:$0xff]
        %v6072 = vld [vmem:[%s2 + $0x48] sm:$0xff]
        %v6073 = vld [vmem:[%s2 + $0x50] sm:$0xff]
        %v6074 = vld [vmem:[%s2 + $0x58] sm:$0xff]
        %v6075 = vld [vmem:[%s2 + $0x60] sm:$0xff]
        %v6076 = vld [vmem:[%s2 + $0x68] sm:$0xff]
        %v6077 = vld [vmem:[%s2 + $0x70] sm:$0xff]
        %v6078 = vld [vmem:[%s2 + $0x78] sm:$0xff]
        %v6079 = vld [vmem:[%s2 + $0x80] sm:$0xff]
        %v6080 = vld [vmem:[%s2 + $0x88] sm:$0xff]
        %v6081 = vld [vmem:[%s2 + $0x90] sm:$0xff]
        %v6082 = vld [vmem:[%s2 + $0x98] sm:$0xff]
        %v6083 = vld [vmem:[%s2 + $0xa0] sm:$0xff]
        %v6084 = vld [vmem:[%s2 + $0xa8] sm:$0xff]
        %v6085 = vld [vmem:[%s2 + $0xb0] sm:$0xff]
        %v6086 = vld [vmem:[%s2 + $0xb8] sm:$0xff]
        %v6087 = vld [vmem:[%s2 + $0xc0] sm:$0xff]
        %v6088 = vld [vmem:[%s2 + $0xc8] sm:$0xff]
        %v6089 = vld [vmem:[%s2 + $0xd0] sm:$0xff]
        %v6090 = vld [vmem:[%s2 + $0xd8] sm:$0xff]
        %v6091 = vld [vmem:[%s2 + $0xe0] sm:$0xff]
        %v6092 = vld [vmem:[%s2 + $0xe8] sm:$0xff]
        %v6093 = vld [vmem:[%s2 + $0xf0] sm:$0xff]
        %v6094 = vld [vmem:[%s2 + $0xf8] sm:$0xff]
        %v6095 = vld [vmem:[%s2 + $0x100] sm:$0xff]
        %v6096 = vld [vmem:[%s2 + $0x108] sm:$0xff]
        %v6097 = vld [vmem:[%s2 + $0x110] sm:$0xff]
        %v6098 = vld [vmem:[%s2 + $0x118] sm:$0xff]
        %v6099 = vld [vmem:[%s2 + $0x120] sm:$0xff]
        %v6100 = vld [vmem:[%s2 + $0x128] sm:$0xff]
        %v6101 = vld [vmem:[%s2 + $0x130] sm:$0xff]
        %v6102 = vld [vmem:[%s2 + $0x138] sm:$0xff]
        %v6103 = vld [vmem:[%s2 + $0x140] sm:$0xff]
        %v6104 = vld [vmem:[%s2 + $0x148] sm:$0xff]
        %v6105 = vld [vmem:[%s2 + $0x150] sm:$0xff]
        %v6106 = vld [vmem:[%s2 + $0x158] sm:$0xff]
        %v6107 = vld [vmem:[%s2 + $0x160] sm:$0xff]
        %v6108 = vld [vmem:[%s2 + $0x168] sm:$0xff]
        %v6109 = vld [vmem:[%s2 + $0x170] sm:$0xff]
        %v6110 = vld [vmem:[%s2 + $0x178] sm:$0xff]
        %v6111 = vld [vmem:[%s2 + $0x180] sm:$0xff]
        %v6112 = vld [vmem:[%s2 + $0x188] sm:$0xff]
        %v6113 = vld [vmem:[%s2 + $0x190] sm:$0xff]
        %v6114 = vld [vmem:[%s2 + $0x198] sm:$0xff]
        %v6115 = vld [vmem:[%s2 + $0x1a0] sm:$0xff]
        %v6116 = vld [vmem:[%s2 + $0x1a8] sm:$0xff]
        %v6117 = vld [vmem:[%s2 + $0x1b0] sm:$0xff]
        %v6118 = vld [vmem:[%s2 + $0x1b8] sm:$0xff]
        %v6119 = vld [vmem:[%s2 + $0x1c0] sm:$0xff]
        %v6120 = vld [vmem:[%s2 + $0x1c8] sm:$0xff]
        %v6121 = vld [vmem:[%s2 + $0x1d0] sm:$0xff]
        %v6122 = vld [vmem:[%s2 + $0x1d8] sm:$0xff]
        %v6123 = vld [vmem:[%s2 + $0x1e0] sm:$0xff]
        %v6124 = vld [vmem:[%s2 + $0x1e8] sm:$0xff]
        %v6125 = vld [vmem:[%s2 + $0x1f0] sm:$0xff]
        %v6126 = vld [vmem:[%s2 + $0x1f8] sm:$0xff]
        %v6127 = vld [vmem:[%s2 + $0x200] sm:$0xff]
        %v6128 = vld [vmem:[%s2 + $0x208] sm:$0xff]
        %v6129 = vld [vmem:[%s2 + $0x210] sm:$0xff]
        %v6130 = vld [vmem:[%s2 + $0x218] sm:$0xff]
        %v6131 = vld [vmem:[%s2 + $0x220] sm:$0xff]
        %v6132 = vld [vmem:[%s2 + $0x228] sm:$0xff]
        %v6133 = vld [vmem:[%s2 + $0x230] sm:$0xff]
        %v6134 = vld [vmem:[%s2 + $0x238] sm:$0xff]
        %v6135 = vld [vmem:[%s2 + $0x240] sm:$0xff]
        %v6136 = vld [vmem:[%s2 + $0x248] sm:$0xff]
        %v6137 = vld [vmem:[%s2 + $0x250] sm:$0xff]
        %v6138 = vld [vmem:[%s2 + $0x258] sm:$0xff]
        %v6139 = vld [vmem:[%s2 + $0x260] sm:$0xff]
        %v6140 = vld [vmem:[%s2 + $0x268] sm:$0xff]
        %v6141 = vld [vmem:[%s2 + $0x270] sm:$0xff]
        %v6142 = vld [vmem:[%s2 + $0x278] sm:$0xff]
        %v6143 = vld [vmem:[%s2 + $0x280] sm:$0xff]
        %v6144 = vld [vmem:[%s2 + $0x288] sm:$0xff]
        %v6145 = vld [vmem:[%s2 + $0x290] sm:$0xff]
        %v6146 = vld [vmem:[%s2 + $0x298] sm:$0xff]
        %v6147 = vld [vmem:[%s2 + $0x2a0] sm:$0xff]
        %v6148 = vld [vmem:[%s2 + $0x2a8] sm:$0xff]
        %v6149 = vld [vmem:[%s2 + $0x2b0] sm:$0xff]
        %v6150 = vld [vmem:[%s2 + $0x2b8] sm:$0xff]
        %v6151 = vld [vmem:[%s2 + $0x2c0] sm:$0xff]
        %v6152 = vld [vmem:[%s2 + $0x2c8] sm:$0xff]
        %v6153 = vld [vmem:[%s2 + $0x2d0] sm:$0xff]
        %v6154 = vld [vmem:[%s2 + $0x2d8] sm:$0xff]
        %v6155 = vld [vmem:[%s2 + $0x2e0] sm:$0xff]
        %v6156 = vld [vmem:[%s2 + $0x2e8] sm:$0xff]
        %v6157 = vld [vmem:[%s2 + $0x2f0] sm:$0xff]
        %v6158 = vld [vmem:[%s2 + $0x2f8] sm:$0xff]
        %v6159 = vld [vmem:[%s2 + $0x300] sm:$0xff]
        %v6160 = vld [vmem:[%s2 + $0x308] sm:$0xff]
        %v6161 = vld [vmem:[%s2 + $0x310] sm:$0xff]
        %v6162 = vld [vmem:[%s2 + $0x318] sm:$0xff]
        %v6163 = vld [vmem:[%s2 + $0x320] sm:$0xff]
        %v6164 = vld [vmem:[%s2 + $0x328] sm:$0xff]
        %v6165 = vld [vmem:[%s2 + $0x330] sm:$0xff]
        %v6166 = vld [vmem:[%s2 + $0x338] sm:$0xff]
        %v6167 = vld [vmem:[%s2 + $0x340] sm:$0xff]
        %v6168 = vld [vmem:[%s2 + $0x348] sm:$0xff]
        %v6169 = vld [vmem:[%s2 + $0x350] sm:$0xff]
        %v6170 = vld [vmem:[%s2 + $0x358] sm:$0xff]
        %v6171 = vld [vmem:[%s2 + $0x360] sm:$0xff]
        %v6172 = vld [vmem:[%s2 + $0x368] sm:$0xff]
        %v6173 = vld [vmem:[%s2 + $0x370] sm:$0xff]
        %v6174 = vld [vmem:[%s2 + $0x378] sm:$0xff]
        %v6175 = vld [vmem:[%s2 + $0x380] sm:$0xff]
        %v6176 = vld [vmem:[%s2 + $0x388] sm:$0xff]
        %v6177 = vld [vmem:[%s2 + $0x390] sm:$0xff]
        %v6178 = vld [vmem:[%s2 + $0x398] sm:$0xff]
        %v6179 = vld [vmem:[%s2 + $0x3a0] sm:$0xff]
        %v6180 = vld [vmem:[%s2 + $0x3a8] sm:$0xff]
        %v6181 = vld [vmem:[%s2 + $0x3b0] sm:$0xff]
        %v6182 = vld [vmem:[%s2 + $0x3b8] sm:$0xff]
        %v6183 = vld [vmem:[%s2 + $0x3c0] sm:$0xff]
        %v6184 = vld [vmem:[%s2 + $0x3c8] sm:$0xff]
        %v6185 = vld [vmem:[%s2 + $0x3d0] sm:$0xff]
        %v6186 = vld [vmem:[%s2 + $0x3d8] sm:$0xff]
        %v6187 = vld [vmem:[%s2 + $0x3e0] sm:$0xff]
        %v6188 = vld [vmem:[%s2 + $0x3e8] sm:$0xff]
        %v6190 = vsel %vm1709, %v6071, 0
        %v6193 = vsel %vm1709, %v6080, 0
        %v6196 = vsel %vm1709, %v6089, 0
        %v6199 = vsel %vm1709, %v6098, 0
        %v6202 = vsel %vm1709, %v6107, 0
        %v6205 = vsel %vm1709, %v6116, 0
        %v6208 = vsel %vm1709, %v6125, 0
        %v6211 = vsel %vm1709, %v6134, 0
        %v6214 = vsel %vm1709, %v6143, 0
        %v6217 = vsel %vm1709, %v6152, 0
        %v6220 = vsel %vm1709, %v6161, 0
        %v6223 = vsel %vm1709, %v6170, 0
        %v6226 = vsel %vm1709, %v6179, 0
        %v6229 = vsel %vm1709, %v6188, 0
        %6231 = vmatpush.msra.mxu0 %v5689
        %6232 = vmatpush.msra.mxu0 %v5686
        %6233 = vmatpush.msra.mxu0 %v5683
        %6234 = vmatpush.msra.mxu0 %v5680
        %6235 = vmatpush.msra.mxu0 %v5677
        %6236 = vmatpush.msra.mxu0 %v5674
        %6237 = vmatpush.msra.mxu0 %v5671
        %6238 = vmatpush.msra.mxu0 %v5668
        %6239 = vmatpush.msra.mxu0 %v5665
        %6240 = vmatpush.msra.mxu0 %v5662
        %6241 = vmatpush.msra.mxu0 %v5659
        %6242 = vmatpush.msra.mxu0 %v5656
        %6243 = vmatpush.msra.mxu0 %v5653
        %6244 = vmatpush.msra.mxu0 %v5650
        %6245 = vmatpush.msra.mxu0 %v5647
        %6246 = vmatpush.msra.mxu0 %v5644
        %6247 = vmatmul.f32.gmra.mxu0 %v6063
        %v6248 = vpop.f32.mrf.mxu0
        %v6249 = vadd.f32 0.0, %v6248
        %6250 = vmatmul.f32.gmra.mxu0 %v6072
        %v6251 = vpop.f32.mrf.mxu0
        %v6252 = vadd.f32 0.0, %v6251
        %6253 = vmatmul.f32.gmra.mxu0 %v6081
        %v6254 = vpop.f32.mrf.mxu0
        %v6255 = vadd.f32 0.0, %v6254
        %6256 = vmatmul.f32.gmra.mxu0 %v6090
        %v6257 = vpop.f32.mrf.mxu0
        %v6258 = vadd.f32 0.0, %v6257
        %6259 = vmatmul.f32.gmra.mxu0 %v6099
        %v6260 = vpop.f32.mrf.mxu0
        %v6261 = vadd.f32 0.0, %v6260
        %6262 = vmatmul.f32.gmra.mxu0 %v6108
        %v6263 = vpop.f32.mrf.mxu0
        %v6264 = vadd.f32 0.0, %v6263
        %6265 = vmatmul.f32.gmra.mxu0 %v6117
        %v6266 = vpop.f32.mrf.mxu0
        %v6267 = vadd.f32 0.0, %v6266
        %6268 = vmatmul.f32.gmra.mxu0 %v6126
        %v6269 = vpop.f32.mrf.mxu0
        %v6270 = vadd.f32 0.0, %v6269
        %6271 = vmatmul.f32.gmra.mxu0 %v6135
        %v6272 = vpop.f32.mrf.mxu0
        %v6273 = vadd.f32 0.0, %v6272
        %6274 = vmatmul.f32.gmra.mxu0 %v6144
        %v6275 = vpop.f32.mrf.mxu0
        %v6276 = vadd.f32 0.0, %v6275
        %6277 = vmatmul.f32.gmra.mxu0 %v6153
        %v6278 = vpop.f32.mrf.mxu0
        %v6279 = vadd.f32 0.0, %v6278
        %6280 = vmatmul.f32.gmra.mxu0 %v6162
        %v6281 = vpop.f32.mrf.mxu0
        %v6282 = vadd.f32 0.0, %v6281
        %6283 = vmatmul.f32.gmra.mxu0 %v6171
        %v6284 = vpop.f32.mrf.mxu0
        %v6285 = vadd.f32 0.0, %v6284
        %6286 = vmatmul.f32.gmra.mxu0 %v6180
        %v6287 = vpop.f32.mrf.mxu0
        %v6288 = vadd.f32 0.0, %v6287
        %6289 = vdwg.mxu0
        %6290 = vmatpush.msra.mxu0 %v5737
        %6291 = vmatpush.msra.mxu0 %v5734
        %6292 = vmatpush.msra.mxu0 %v5731
        %6293 = vmatpush.msra.mxu0 %v5728
        %6294 = vmatpush.msra.mxu0 %v5725
        %6295 = vmatpush.msra.mxu0 %v5722
        %6296 = vmatpush.msra.mxu0 %v5719
        %6297 = vmatpush.msra.mxu0 %v5716
        %6298 = vmatpush.msra.mxu0 %v5713
        %6299 = vmatpush.msra.mxu0 %v5710
        %6300 = vmatpush.msra.mxu0 %v5707
        %6301 = vmatpush.msra.mxu0 %v5704
        %6302 = vmatpush.msra.mxu0 %v5701
        %6303 = vmatpush.msra.mxu0 %v5698
        %6304 = vmatpush.msra.mxu0 %v5695
        %6305 = vmatpush.msra.mxu0 %v5692
        %6306 = vmatmul.f32.gmra.mxu0 %v6064
        %v6307 = vpop.f32.mrf.mxu0
        %v6308 = vadd.f32 %v6249, %v6307
        %6309 = vmatmul.f32.gmra.mxu0 %v6073
        %v6310 = vpop.f32.mrf.mxu0
        %v6311 = vadd.f32 %v6252, %v6310
        %6312 = vmatmul.f32.gmra.mxu0 %v6082
        %v6313 = vpop.f32.mrf.mxu0
        %v6314 = vadd.f32 %v6255, %v6313
        %6315 = vmatmul.f32.gmra.mxu0 %v6091
        %v6316 = vpop.f32.mrf.mxu0
        %v6317 = vadd.f32 %v6258, %v6316
        %6318 = vmatmul.f32.gmra.mxu0 %v6100
        %v6319 = vpop.f32.mrf.mxu0
        %v6320 = vadd.f32 %v6261, %v6319
        %6321 = vmatmul.f32.gmra.mxu0 %v6109
        %v6322 = vpop.f32.mrf.mxu0
        %v6323 = vadd.f32 %v6264, %v6322
        %6324 = vmatmul.f32.gmra.mxu0 %v6118
        %v6325 = vpop.f32.mrf.mxu0
        %v6326 = vadd.f32 %v6267, %v6325
        %6327 = vmatmul.f32.gmra.mxu0 %v6127
        %v6328 = vpop.f32.mrf.mxu0
        %v6329 = vadd.f32 %v6270, %v6328
        %6330 = vmatmul.f32.gmra.mxu0 %v6136
        %v6331 = vpop.f32.mrf.mxu0
        %v6332 = vadd.f32 %v6273, %v6331
        %6333 = vmatmul.f32.gmra.mxu0 %v6145
        %v6334 = vpop.f32.mrf.mxu0
        %v6335 = vadd.f32 %v6276, %v6334
        %6336 = vmatmul.f32.gmra.mxu0 %v6154
        %v6337 = vpop.f32.mrf.mxu0
        %v6338 = vadd.f32 %v6279, %v6337
        %6339 = vmatmul.f32.gmra.mxu0 %v6163
        %v6340 = vpop.f32.mrf.mxu0
        %v6341 = vadd.f32 %v6282, %v6340
        %6342 = vmatmul.f32.gmra.mxu0 %v6172
        %v6343 = vpop.f32.mrf.mxu0
        %v6344 = vadd.f32 %v6285, %v6343
        %6345 = vmatmul.f32.gmra.mxu0 %v6181
        %v6346 = vpop.f32.mrf.mxu0
        %v6347 = vadd.f32 %v6288, %v6346
        %6348 = vdwg.mxu0
        %6349 = vmatpush.msra.mxu0 %v5785
        %6350 = vmatpush.msra.mxu0 %v5782
        %6351 = vmatpush.msra.mxu0 %v5779
        %6352 = vmatpush.msra.mxu0 %v5776
        %6353 = vmatpush.msra.mxu0 %v5773
        %6354 = vmatpush.msra.mxu0 %v5770
        %6355 = vmatpush.msra.mxu0 %v5767
        %6356 = vmatpush.msra.mxu0 %v5764
        %6357 = vmatpush.msra.mxu0 %v5761
        %6358 = vmatpush.msra.mxu0 %v5758
        %6359 = vmatpush.msra.mxu0 %v5755
        %6360 = vmatpush.msra.mxu0 %v5752
        %6361 = vmatpush.msra.mxu0 %v5749
        %6362 = vmatpush.msra.mxu0 %v5746
        %6363 = vmatpush.msra.mxu0 %v5743
        %6364 = vmatpush.msra.mxu0 %v5740
        %6365 = vmatmul.f32.gmra.mxu0 %v6065
        %v6366 = vpop.f32.mrf.mxu0
        %v6367 = vadd.f32 %v6308, %v6366
        %6368 = vmatmul.f32.gmra.mxu0 %v6074
        %v6369 = vpop.f32.mrf.mxu0
        %v6370 = vadd.f32 %v6311, %v6369
        %6371 = vmatmul.f32.gmra.mxu0 %v6083
        %v6372 = vpop.f32.mrf.mxu0
        %v6373 = vadd.f32 %v6314, %v6372
        %6374 = vmatmul.f32.gmra.mxu0 %v6092
        %v6375 = vpop.f32.mrf.mxu0
        %v6376 = vadd.f32 %v6317, %v6375
        %6377 = vmatmul.f32.gmra.mxu0 %v6101
        %v6378 = vpop.f32.mrf.mxu0
        %v6379 = vadd.f32 %v6320, %v6378
        %6380 = vmatmul.f32.gmra.mxu0 %v6110
        %v6381 = vpop.f32.mrf.mxu0
        %v6382 = vadd.f32 %v6323, %v6381
        %6383 = vmatmul.f32.gmra.mxu0 %v6119
        %v6384 = vpop.f32.mrf.mxu0
        %v6385 = vadd.f32 %v6326, %v6384
        %6386 = vmatmul.f32.gmra.mxu0 %v6128
        %v6387 = vpop.f32.mrf.mxu0
        %v6388 = vadd.f32 %v6329, %v6387
        %6389 = vmatmul.f32.gmra.mxu0 %v6137
        %v6390 = vpop.f32.mrf.mxu0
        %v6391 = vadd.f32 %v6332, %v6390
        %6392 = vmatmul.f32.gmra.mxu0 %v6146
        %v6393 = vpop.f32.mrf.mxu0
        %v6394 = vadd.f32 %v6335, %v6393
        %6395 = vmatmul.f32.gmra.mxu0 %v6155
        %v6396 = vpop.f32.mrf.mxu0
        %v6397 = vadd.f32 %v6338, %v6396
        %6398 = vmatmul.f32.gmra.mxu0 %v6164
        %v6399 = vpop.f32.mrf.mxu0
        %v6400 = vadd.f32 %v6341, %v6399
        %6401 = vmatmul.f32.gmra.mxu0 %v6173
        %v6402 = vpop.f32.mrf.mxu0
        %v6403 = vadd.f32 %v6344, %v6402
        %6404 = vmatmul.f32.gmra.mxu0 %v6182
        %v6405 = vpop.f32.mrf.mxu0
        %v6406 = vadd.f32 %v6347, %v6405
        %6407 = vdwg.mxu0
        %6408 = vmatpush.msra.mxu0 %v5833
        %6409 = vmatpush.msra.mxu0 %v5830
        %6410 = vmatpush.msra.mxu0 %v5827
        %6411 = vmatpush.msra.mxu0 %v5824
        %6412 = vmatpush.msra.mxu0 %v5821
        %6413 = vmatpush.msra.mxu0 %v5818
        %6414 = vmatpush.msra.mxu0 %v5815
        %6415 = vmatpush.msra.mxu0 %v5812
        %6416 = vmatpush.msra.mxu0 %v5809
        %6417 = vmatpush.msra.mxu0 %v5806
        %6418 = vmatpush.msra.mxu0 %v5803
        %6419 = vmatpush.msra.mxu0 %v5800
        %6420 = vmatpush.msra.mxu0 %v5797
        %6421 = vmatpush.msra.mxu0 %v5794
        %6422 = vmatpush.msra.mxu0 %v5791
        %6423 = vmatpush.msra.mxu0 %v5788
        %6424 = vmatmul.f32.gmra.mxu0 %v6066
        %v6425 = vpop.f32.mrf.mxu0
        %v6426 = vadd.f32 %v6367, %v6425
        %6427 = vmatmul.f32.gmra.mxu0 %v6075
        %v6428 = vpop.f32.mrf.mxu0
        %v6429 = vadd.f32 %v6370, %v6428
        %6430 = vmatmul.f32.gmra.mxu0 %v6084
        %v6431 = vpop.f32.mrf.mxu0
        %v6432 = vadd.f32 %v6373, %v6431
        %6433 = vmatmul.f32.gmra.mxu0 %v6093
        %v6434 = vpop.f32.mrf.mxu0
        %v6435 = vadd.f32 %v6376, %v6434
        %6436 = vmatmul.f32.gmra.mxu0 %v6102
        %v6437 = vpop.f32.mrf.mxu0
        %v6438 = vadd.f32 %v6379, %v6437
        %6439 = vmatmul.f32.gmra.mxu0 %v6111
        %v6440 = vpop.f32.mrf.mxu0
        %v6441 = vadd.f32 %v6382, %v6440
        %6442 = vmatmul.f32.gmra.mxu0 %v6120
        %v6443 = vpop.f32.mrf.mxu0
        %v6444 = vadd.f32 %v6385, %v6443
        %6445 = vmatmul.f32.gmra.mxu0 %v6129
        %v6446 = vpop.f32.mrf.mxu0
        %v6447 = vadd.f32 %v6388, %v6446
        %6448 = vmatmul.f32.gmra.mxu0 %v6138
        %v6449 = vpop.f32.mrf.mxu0
        %v6450 = vadd.f32 %v6391, %v6449
        %6451 = vmatmul.f32.gmra.mxu0 %v6147
        %v6452 = vpop.f32.mrf.mxu0
        %v6453 = vadd.f32 %v6394, %v6452
        %6454 = vmatmul.f32.gmra.mxu0 %v6156
        %v6455 = vpop.f32.mrf.mxu0
        %v6456 = vadd.f32 %v6397, %v6455
        %6457 = vmatmul.f32.gmra.mxu0 %v6165
        %v6458 = vpop.f32.mrf.mxu0
        %v6459 = vadd.f32 %v6400, %v6458
        %6460 = vmatmul.f32.gmra.mxu0 %v6174
        %v6461 = vpop.f32.mrf.mxu0
        %v6462 = vadd.f32 %v6403, %v6461
        %6463 = vmatmul.f32.gmra.mxu0 %v6183
        %v6464 = vpop.f32.mrf.mxu0
        %v6465 = vadd.f32 %v6406, %v6464
        %6466 = vdwg.mxu0
        %6467 = vmatpush.msra.mxu0 %v5881
        %6468 = vmatpush.msra.mxu0 %v5878
        %6469 = vmatpush.msra.mxu0 %v5875
        %6470 = vmatpush.msra.mxu0 %v5872
        %6471 = vmatpush.msra.mxu0 %v5869
        %6472 = vmatpush.msra.mxu0 %v5866
        %6473 = vmatpush.msra.mxu0 %v5863
        %6474 = vmatpush.msra.mxu0 %v5860
        %6475 = vmatpush.msra.mxu0 %v5857
        %6476 = vmatpush.msra.mxu0 %v5854
        %6477 = vmatpush.msra.mxu0 %v5851
        %6478 = vmatpush.msra.mxu0 %v5848
        %6479 = vmatpush.msra.mxu0 %v5845
        %6480 = vmatpush.msra.mxu0 %v5842
        %6481 = vmatpush.msra.mxu0 %v5839
        %6482 = vmatpush.msra.mxu0 %v5836
        %6483 = vmatmul.f32.gmra.mxu0 %v6067
        %v6484 = vpop.f32.mrf.mxu0
        %v6485 = vadd.f32 %v6426, %v6484
        %6486 = vmatmul.f32.gmra.mxu0 %v6076
        %v6487 = vpop.f32.mrf.mxu0
        %v6488 = vadd.f32 %v6429, %v6487
        %6489 = vmatmul.f32.gmra.mxu0 %v6085
        %v6490 = vpop.f32.mrf.mxu0
        %v6491 = vadd.f32 %v6432, %v6490
        %6492 = vmatmul.f32.gmra.mxu0 %v6094
        %v6493 = vpop.f32.mrf.mxu0
        %v6494 = vadd.f32 %v6435, %v6493
        %6495 = vmatmul.f32.gmra.mxu0 %v6103
        %v6496 = vpop.f32.mrf.mxu0
        %v6497 = vadd.f32 %v6438, %v6496
        %6498 = vmatmul.f32.gmra.mxu0 %v6112
        %v6499 = vpop.f32.mrf.mxu0
        %v6500 = vadd.f32 %v6441, %v6499
        %6501 = vmatmul.f32.gmra.mxu0 %v6121
        %v6502 = vpop.f32.mrf.mxu0
        %v6503 = vadd.f32 %v6444, %v6502
        %6504 = vmatmul.f32.gmra.mxu0 %v6130
        %v6505 = vpop.f32.mrf.mxu0
        %v6506 = vadd.f32 %v6447, %v6505
        %6507 = vmatmul.f32.gmra.mxu0 %v6139
        %v6508 = vpop.f32.mrf.mxu0
        %v6509 = vadd.f32 %v6450, %v6508
        %6510 = vmatmul.f32.gmra.mxu0 %v6148
        %v6511 = vpop.f32.mrf.mxu0
        %v6512 = vadd.f32 %v6453, %v6511
        %6513 = vmatmul.f32.gmra.mxu0 %v6157
        %v6514 = vpop.f32.mrf.mxu0
        %v6515 = vadd.f32 %v6456, %v6514
        %6516 = vmatmul.f32.gmra.mxu0 %v6166
        %v6517 = vpop.f32.mrf.mxu0
        %v6518 = vadd.f32 %v6459, %v6517
        %6519 = vmatmul.f32.gmra.mxu0 %v6175
        %v6520 = vpop.f32.mrf.mxu0
        %v6521 = vadd.f32 %v6462, %v6520
        %6522 = vmatmul.f32.gmra.mxu0 %v6184
        %v6523 = vpop.f32.mrf.mxu0
        %v6524 = vadd.f32 %v6465, %v6523
        %6525 = vdwg.mxu0
        %6526 = vmatpush.msra.mxu0 %v5929
        %6527 = vmatpush.msra.mxu0 %v5926
        %6528 = vmatpush.msra.mxu0 %v5923
        %6529 = vmatpush.msra.mxu0 %v5920
        %6530 = vmatpush.msra.mxu0 %v5917
        %6531 = vmatpush.msra.mxu0 %v5914
        %6532 = vmatpush.msra.mxu0 %v5911
        %6533 = vmatpush.msra.mxu0 %v5908
        %6534 = vmatpush.msra.mxu0 %v5905
        %6535 = vmatpush.msra.mxu0 %v5902
        %6536 = vmatpush.msra.mxu0 %v5899
        %6537 = vmatpush.msra.mxu0 %v5896
        %6538 = vmatpush.msra.mxu0 %v5893
        %6539 = vmatpush.msra.mxu0 %v5890
        %6540 = vmatpush.msra.mxu0 %v5887
        %6541 = vmatpush.msra.mxu0 %v5884
        %6542 = vmatmul.f32.gmra.mxu0 %v6068
        %v6543 = vpop.f32.mrf.mxu0
        %v6544 = vadd.f32 %v6485, %v6543
        %6545 = vmatmul.f32.gmra.mxu0 %v6077
        %v6546 = vpop.f32.mrf.mxu0
        %v6547 = vadd.f32 %v6488, %v6546
        %6548 = vmatmul.f32.gmra.mxu0 %v6086
        %v6549 = vpop.f32.mrf.mxu0
        %v6550 = vadd.f32 %v6491, %v6549
        %6551 = vmatmul.f32.gmra.mxu0 %v6095
        %v6552 = vpop.f32.mrf.mxu0
        %v6553 = vadd.f32 %v6494, %v6552
        %6554 = vmatmul.f32.gmra.mxu0 %v6104
        %v6555 = vpop.f32.mrf.mxu0
        %v6556 = vadd.f32 %v6497, %v6555
        %6557 = vmatmul.f32.gmra.mxu0 %v6113
        %v6558 = vpop.f32.mrf.mxu0
        %v6559 = vadd.f32 %v6500, %v6558
        %6560 = vmatmul.f32.gmra.mxu0 %v6122
        %v6561 = vpop.f32.mrf.mxu0
        %v6562 = vadd.f32 %v6503, %v6561
        %6563 = vmatmul.f32.gmra.mxu0 %v6131
        %v6564 = vpop.f32.mrf.mxu0
        %v6565 = vadd.f32 %v6506, %v6564
        %6566 = vmatmul.f32.gmra.mxu0 %v6140
        %v6567 = vpop.f32.mrf.mxu0
        %v6568 = vadd.f32 %v6509, %v6567
        %6569 = vmatmul.f32.gmra.mxu0 %v6149
        %v6570 = vpop.f32.mrf.mxu0
        %v6571 = vadd.f32 %v6512, %v6570
        %6572 = vmatmul.f32.gmra.mxu0 %v6158
        %v6573 = vpop.f32.mrf.mxu0
        %v6574 = vadd.f32 %v6515, %v6573
        %6575 = vmatmul.f32.gmra.mxu0 %v6167
        %v6576 = vpop.f32.mrf.mxu0
        %v6577 = vadd.f32 %v6518, %v6576
        %6578 = vmatmul.f32.gmra.mxu0 %v6176
        %v6579 = vpop.f32.mrf.mxu0
        %v6580 = vadd.f32 %v6521, %v6579
        %6581 = vmatmul.f32.gmra.mxu0 %v6185
        %v6582 = vpop.f32.mrf.mxu0
        %v6583 = vadd.f32 %v6524, %v6582
        %6584 = vdwg.mxu0
        %6585 = vmatpush.msra.mxu0 %v5977
        %6586 = vmatpush.msra.mxu0 %v5974
        %6587 = vmatpush.msra.mxu0 %v5971
        %6588 = vmatpush.msra.mxu0 %v5968
        %6589 = vmatpush.msra.mxu0 %v5965
        %6590 = vmatpush.msra.mxu0 %v5962
        %6591 = vmatpush.msra.mxu0 %v5959
        %6592 = vmatpush.msra.mxu0 %v5956
        %6593 = vmatpush.msra.mxu0 %v5953
        %6594 = vmatpush.msra.mxu0 %v5950
        %6595 = vmatpush.msra.mxu0 %v5947
        %6596 = vmatpush.msra.mxu0 %v5944
        %6597 = vmatpush.msra.mxu0 %v5941
        %6598 = vmatpush.msra.mxu0 %v5938
        %6599 = vmatpush.msra.mxu0 %v5935
        %6600 = vmatpush.msra.mxu0 %v5932
        %6601 = vmatmul.f32.gmra.mxu0 %v6069
        %v6602 = vpop.f32.mrf.mxu0
        %v6603 = vadd.f32 %v6544, %v6602
        %6604 = vmatmul.f32.gmra.mxu0 %v6078
        %v6605 = vpop.f32.mrf.mxu0
        %v6606 = vadd.f32 %v6547, %v6605
        %6607 = vmatmul.f32.gmra.mxu0 %v6087
        %v6608 = vpop.f32.mrf.mxu0
        %v6609 = vadd.f32 %v6550, %v6608
        %6610 = vmatmul.f32.gmra.mxu0 %v6096
        %v6611 = vpop.f32.mrf.mxu0
        %v6612 = vadd.f32 %v6553, %v6611
        %6613 = vmatmul.f32.gmra.mxu0 %v6105
        %v6614 = vpop.f32.mrf.mxu0
        %v6615 = vadd.f32 %v6556, %v6614
        %6616 = vmatmul.f32.gmra.mxu0 %v6114
        %v6617 = vpop.f32.mrf.mxu0
        %v6618 = vadd.f32 %v6559, %v6617
        %6619 = vmatmul.f32.gmra.mxu0 %v6123
        %v6620 = vpop.f32.mrf.mxu0
        %v6621 = vadd.f32 %v6562, %v6620
        %6622 = vmatmul.f32.gmra.mxu0 %v6132
        %v6623 = vpop.f32.mrf.mxu0
        %v6624 = vadd.f32 %v6565, %v6623
        %6625 = vmatmul.f32.gmra.mxu0 %v6141
        %v6626 = vpop.f32.mrf.mxu0
        %v6627 = vadd.f32 %v6568, %v6626
        %6628 = vmatmul.f32.gmra.mxu0 %v6150
        %v6629 = vpop.f32.mrf.mxu0
        %v6630 = vadd.f32 %v6571, %v6629
        %6631 = vmatmul.f32.gmra.mxu0 %v6159
        %v6632 = vpop.f32.mrf.mxu0
        %v6633 = vadd.f32 %v6574, %v6632
        %6634 = vmatmul.f32.gmra.mxu0 %v6168
        %v6635 = vpop.f32.mrf.mxu0
        %v6636 = vadd.f32 %v6577, %v6635
        %6637 = vmatmul.f32.gmra.mxu0 %v6177
        %v6638 = vpop.f32.mrf.mxu0
        %v6639 = vadd.f32 %v6580, %v6638
        %6640 = vmatmul.f32.gmra.mxu0 %v6186
        %v6641 = vpop.f32.mrf.mxu0
        %v6642 = vadd.f32 %v6583, %v6641
        %6643 = vdwg.mxu0
        %6644 = vmatpush.msra.mxu0 %v6025
        %6645 = vmatpush.msra.mxu0 %v6022
        %6646 = vmatpush.msra.mxu0 %v6019
        %6647 = vmatpush.msra.mxu0 %v6016
        %6648 = vmatpush.msra.mxu0 %v6013
        %6649 = vmatpush.msra.mxu0 %v6010
        %6650 = vmatpush.msra.mxu0 %v6007
        %6651 = vmatpush.msra.mxu0 %v6004
        %6652 = vmatpush.msra.mxu0 %v6001
        %6653 = vmatpush.msra.mxu0 %v5998
        %6654 = vmatpush.msra.mxu0 %v5995
        %6655 = vmatpush.msra.mxu0 %v5992
        %6656 = vmatpush.msra.mxu0 %v5989
        %6657 = vmatpush.msra.mxu0 %v5986
        %6658 = vmatpush.msra.mxu0 %v5983
        %6659 = vmatpush.msra.mxu0 %v5980
        %6660 = vmatmul.f32.gmra.mxu0 %v6070
        %v6661 = vpop.f32.mrf.mxu0
        %v6662 = vadd.f32 %v6603, %v6661
        %6663 = vmatmul.f32.gmra.mxu0 %v6079
        %v6664 = vpop.f32.mrf.mxu0
        %v6665 = vadd.f32 %v6606, %v6664
        %6666 = vmatmul.f32.gmra.mxu0 %v6088
        %v6667 = vpop.f32.mrf.mxu0
        %v6668 = vadd.f32 %v6609, %v6667
        %6669 = vmatmul.f32.gmra.mxu0 %v6097
        %v6670 = vpop.f32.mrf.mxu0
        %v6671 = vadd.f32 %v6612, %v6670
        %6672 = vmatmul.f32.gmra.mxu0 %v6106
        %v6673 = vpop.f32.mrf.mxu0
        %v6674 = vadd.f32 %v6615, %v6673
        %6675 = vmatmul.f32.gmra.mxu0 %v6115
        %v6676 = vpop.f32.mrf.mxu0
        %v6677 = vadd.f32 %v6618, %v6676
        %6678 = vmatmul.f32.gmra.mxu0 %v6124
        %v6679 = vpop.f32.mrf.mxu0
        %v6680 = vadd.f32 %v6621, %v6679
        %6681 = vmatmul.f32.gmra.mxu0 %v6133
        %v6682 = vpop.f32.mrf.mxu0
        %v6683 = vadd.f32 %v6624, %v6682
        %6684 = vmatmul.f32.gmra.mxu0 %v6142
        %v6685 = vpop.f32.mrf.mxu0
        %v6686 = vadd.f32 %v6627, %v6685
        %6687 = vmatmul.f32.gmra.mxu0 %v6151
        %v6688 = vpop.f32.mrf.mxu0
        %v6689 = vadd.f32 %v6630, %v6688
        %6690 = vmatmul.f32.gmra.mxu0 %v6160
        %v6691 = vpop.f32.mrf.mxu0
        %v6692 = vadd.f32 %v6633, %v6691
        %6693 = vmatmul.f32.gmra.mxu0 %v6169
        %v6694 = vpop.f32.mrf.mxu0
        %v6695 = vadd.f32 %v6636, %v6694
        %6696 = vmatmul.f32.gmra.mxu0 %v6178
        %v6697 = vpop.f32.mrf.mxu0
        %v6698 = vadd.f32 %v6639, %v6697
        %6699 = vmatmul.f32.gmra.mxu0 %v6187
        %v6700 = vpop.f32.mrf.mxu0
        %v6701 = vadd.f32 %v6642, %v6700
        %6702 = vdwg.mxu0
        %6703 = vmatpush.msra.mxu0 0.0
        %6704 = vmatpush.msra.mxu0 0.0
        %6705 = vmatpush.msra.mxu0 0.0
        %6706 = vmatpush.msra.mxu0 0.0
        %6707 = vmatpush.msra.mxu0 %v6061
        %6708 = vmatpush.msra.mxu0 %v6058
        %6709 = vmatpush.msra.mxu0 %v6055
        %6710 = vmatpush.msra.mxu0 %v6052
        %6711 = vmatpush.msra.mxu0 %v6049
        %6712 = vmatpush.msra.mxu0 %v6046
        %6713 = vmatpush.msra.mxu0 %v6043
        %6714 = vmatpush.msra.mxu0 %v6040
        %6715 = vmatpush.msra.mxu0 %v6037
        %6716 = vmatpush.msra.mxu0 %v6034
        %6717 = vmatpush.msra.mxu0 %v6031
        %6718 = vmatpush.msra.mxu0 %v6028
        %6719 = vmatmul.f32.gmra.mxu0 %v6190
        %v6720 = vpop.f32.mrf.mxu0
        %v6721 = vadd.f32 %v6662, %v6720
        %6722 = vmatmul.f32.gmra.mxu0 %v6193
        %v6723 = vpop.f32.mrf.mxu0
        %v6724 = vadd.f32 %v6665, %v6723
        %6725 = vmatmul.f32.gmra.mxu0 %v6196
        %v6726 = vpop.f32.mrf.mxu0
        %v6727 = vadd.f32 %v6668, %v6726
        %6728 = vmatmul.f32.gmra.mxu0 %v6199
        %v6729 = vpop.f32.mrf.mxu0
        %v6730 = vadd.f32 %v6671, %v6729
        %6731 = vmatmul.f32.gmra.mxu0 %v6202
        %v6732 = vpop.f32.mrf.mxu0
        %v6733 = vadd.f32 %v6674, %v6732
        %6734 = vmatmul.f32.gmra.mxu0 %v6205
        %v6735 = vpop.f32.mrf.mxu0
        %v6736 = vadd.f32 %v6677, %v6735
        %6737 = vmatmul.f32.gmra.mxu0 %v6208
        %v6738 = vpop.f32.mrf.mxu0
        %v6739 = vadd.f32 %v6680, %v6738
        %6740 = vmatmul.f32.gmra.mxu0 %v6211
        %v6741 = vpop.f32.mrf.mxu0
        %v6742 = vadd.f32 %v6683, %v6741
        %6743 = vmatmul.f32.gmra.mxu0 %v6214
        %v6744 = vpop.f32.mrf.mxu0
        %v6745 = vadd.f32 %v6686, %v6744
        %6746 = vmatmul.f32.gmra.mxu0 %v6217
        %v6747 = vpop.f32.mrf.mxu0
        %v6748 = vadd.f32 %v6689, %v6747
        %6749 = vmatmul.f32.gmra.mxu0 %v6220
        %v6750 = vpop.f32.mrf.mxu0
        %v6751 = vadd.f32 %v6692, %v6750
        %6752 = vmatmul.f32.gmra.mxu0 %v6223
        %v6753 = vpop.f32.mrf.mxu0
        %v6754 = vadd.f32 %v6695, %v6753
        %6755 = vmatmul.f32.gmra.mxu0 %v6226
        %v6756 = vpop.f32.mrf.mxu0
        %v6757 = vadd.f32 %v6698, %v6756
        %6758 = vmatmul.f32.gmra.mxu0 %v6229
        %v6759 = vpop.f32.mrf.mxu0
        %v6760 = vadd.f32 %v6701, %v6759
        %6761 = vdwg.mxu0
        %v6762 = vld [vmem:[%s3] sm:$0xff]
        %v6763 = vld [vmem:[%s3 + $0x8] sm:$0xff]
        %v6764 = vld [vmem:[%s3 + $0x10] sm:$0xff]
        %v6765 = vld [vmem:[%s3 + $0x18] sm:$0xff]
        %v6766 = vld [vmem:[%s3 + $0x20] sm:$0xff]
        %v6767 = vld [vmem:[%s3 + $0x28] sm:$0xff]
        %v6768 = vld [vmem:[%s3 + $0x30] sm:$0xff]
        %v6769 = vld [vmem:[%s3 + $0x38] sm:$0xff]
        %v6770 = vld [vmem:[%s3 + $0x40] sm:$0xff]
        %v6771 = vld [vmem:[%s3 + $0x48] sm:$0xf]
        %v6772 = vld [vmem:[%s3 + $0x50] sm:$0xf]
        %v6773 = vld [vmem:[%s3 + $0x58] sm:$0xf]
        %vm6774 = vcmask 228352
        %v6776 = vsel %vm6774, %v6721, 0
        %v6779 = vsel %vm6774, %v6724, 0
        %v6782 = vsel %vm6774, %v6727, 0
        %v6785 = vsel %vm6774, %v6730, 0
        %v6788 = vsel %vm6774, %v6733, 0
        %v6791 = vsel %vm6774, %v6736, 0
        %v6794 = vsel %vm6774, %v6739, 0
        %v6797 = vsel %vm6774, %v6742, 0
        %v6800 = vsel %vm6774, %v6745, 0
        %v6803 = vsel %vm6774, %v6748, 0
        %v6806 = vsel %vm6774, %v6751, 0
        %v6809 = vsel %vm6774, %v6754, 0
        %v6812 = vsel %vm6774, %v6757, 0
        %v6815 = vsel %vm6774, %v6760, 0
        %vm6817 = vcmask 1043456
        %v6819 = vsel %vm6817, %v6771, 0
        %v6822 = vsel %vm6817, %v6772, 0
        %v6825 = vsel %vm6817, %v6773, 0
        %6827 = vmatpush.msra.mxu0 0.0
        %6828 = vmatpush.msra.mxu0 0.0
        %6829 = vmatpush.msra.mxu0 0.0
        %6830 = vmatpush.msra.mxu0 0.0
        %6831 = vmatpush.msra.mxu0 0.0
        %6832 = vmatpush.msra.mxu0 0.0
        %6833 = vmatpush.msra.mxu0 0.0
        %6834 = vmatpush.msra.mxu0 0.0
        %6835 = vmatpush.msra.mxu0 0.0
        %6836 = vmatpush.msra.mxu0 0.0
        %6837 = vmatpush.msra.mxu0 0.0
        %6838 = vmatpush.msra.mxu0 0.0
        %6839 = vmatpush.msra.mxu0 %v6819
        %6840 = vmatpush.msra.mxu0 %v6768
        %6841 = vmatpush.msra.mxu0 %v6765
        %6842 = vmatpush.msra.mxu0 %v6762
        %6843 = vmatmul.f32.gmra.mxu0 %v6776
        %v6844 = vpop.f32.mrf.mxu0
        %v6845 = vadd.f32 0.0, %v6844
        %6846 = vmatmul.f32.gmra.mxu0 %v6779
        %v6847 = vpop.f32.mrf.mxu0
        %v6848 = vadd.f32 0.0, %v6847
        %6849 = vmatmul.f32.gmra.mxu0 %v6782
        %v6850 = vpop.f32.mrf.mxu0
        %v6851 = vadd.f32 0.0, %v6850
        %6852 = vmatmul.f32.gmra.mxu0 %v6785
        %v6853 = vpop.f32.mrf.mxu0
        %v6854 = vadd.f32 0.0, %v6853
        %6855 = vmatmul.f32.gmra.mxu0 %v6788
        %v6856 = vpop.f32.mrf.mxu0
        %v6857 = vadd.f32 0.0, %v6856
        %6858 = vmatmul.f32.gmra.mxu0 %v6791
        %v6859 = vpop.f32.mrf.mxu0
        %v6860 = vadd.f32 0.0, %v6859
        %6861 = vmatmul.f32.gmra.mxu0 %v6794
        %v6862 = vpop.f32.mrf.mxu0
        %v6863 = vadd.f32 0.0, %v6862
        %6864 = vmatmul.f32.gmra.mxu0 %v6797
        %v6865 = vpop.f32.mrf.mxu0
        %v6866 = vadd.f32 0.0, %v6865
        %6867 = vmatmul.f32.gmra.mxu0 %v6800
        %v6868 = vpop.f32.mrf.mxu0
        %v6869 = vadd.f32 0.0, %v6868
        %6870 = vmatmul.f32.gmra.mxu0 %v6803
        %v6871 = vpop.f32.mrf.mxu0
        %v6872 = vadd.f32 0.0, %v6871
        %6873 = vmatmul.f32.gmra.mxu0 %v6806
        %v6874 = vpop.f32.mrf.mxu0
        %v6875 = vadd.f32 0.0, %v6874
        %6876 = vmatmul.f32.gmra.mxu0 %v6809
        %v6877 = vpop.f32.mrf.mxu0
        %v6878 = vadd.f32 0.0, %v6877
        %6879 = vmatmul.f32.gmra.mxu0 %v6812
        %v6880 = vpop.f32.mrf.mxu0
        %v6881 = vadd.f32 0.0, %v6880
        %6882 = vmatmul.f32.gmra.mxu0 %v6815
        %v6883 = vpop.f32.mrf.mxu0
        %v6884 = vadd.f32 0.0, %v6883
        %6885 = vdwg.mxu0
        %6886 = vmatpush.msra.mxu0 0.0
        %6887 = vmatpush.msra.mxu0 0.0
        %6888 = vmatpush.msra.mxu0 0.0
        %6889 = vmatpush.msra.mxu0 0.0
        %6890 = vmatpush.msra.mxu0 0.0
        %6891 = vmatpush.msra.mxu0 0.0
        %6892 = vmatpush.msra.mxu0 0.0
        %6893 = vmatpush.msra.mxu0 0.0
        %6894 = vmatpush.msra.mxu0 0.0
        %6895 = vmatpush.msra.mxu0 0.0
        %6896 = vmatpush.msra.mxu0 0.0
        %6897 = vmatpush.msra.mxu0 0.0
        %6898 = vmatpush.msra.mxu0 %v6822
        %6899 = vmatpush.msra.mxu0 %v6769
        %6900 = vmatpush.msra.mxu0 %v6766
        %6901 = vmatpush.msra.mxu0 %v6763
        %6902 = vmatmul.f32.gmra.mxu0 %v6776
        %v6903 = vpop.f32.mrf.mxu0
        %v6904 = vadd.f32 0.0, %v6903
        %6905 = vmatmul.f32.gmra.mxu0 %v6779
        %v6906 = vpop.f32.mrf.mxu0
        %v6907 = vadd.f32 0.0, %v6906
        %6908 = vmatmul.f32.gmra.mxu0 %v6782
        %v6909 = vpop.f32.mrf.mxu0
        %v6910 = vadd.f32 0.0, %v6909
        %6911 = vmatmul.f32.gmra.mxu0 %v6785
        %v6912 = vpop.f32.mrf.mxu0
        %v6913 = vadd.f32 0.0, %v6912
        %6914 = vmatmul.f32.gmra.mxu0 %v6788
        %v6915 = vpop.f32.mrf.mxu0
        %v6916 = vadd.f32 0.0, %v6915
        %6917 = vmatmul.f32.gmra.mxu0 %v6791
        %v6918 = vpop.f32.mrf.mxu0
        %v6919 = vadd.f32 0.0, %v6918
        %6920 = vmatmul.f32.gmra.mxu0 %v6794
        %v6921 = vpop.f32.mrf.mxu0
        %v6922 = vadd.f32 0.0, %v6921
        %6923 = vmatmul.f32.gmra.mxu0 %v6797
        %v6924 = vpop.f32.mrf.mxu0
        %v6925 = vadd.f32 0.0, %v6924
        %6926 = vmatmul.f32.gmra.mxu0 %v6800
        %v6927 = vpop.f32.mrf.mxu0
        %v6928 = vadd.f32 0.0, %v6927
        %6929 = vmatmul.f32.gmra.mxu0 %v6803
        %v6930 = vpop.f32.mrf.mxu0
        %v6931 = vadd.f32 0.0, %v6930
        %6932 = vmatmul.f32.gmra.mxu0 %v6806
        %v6933 = vpop.f32.mrf.mxu0
        %v6934 = vadd.f32 0.0, %v6933
        %6935 = vmatmul.f32.gmra.mxu0 %v6809
        %v6936 = vpop.f32.mrf.mxu0
        %v6937 = vadd.f32 0.0, %v6936
        %6938 = vmatmul.f32.gmra.mxu0 %v6812
        %v6939 = vpop.f32.mrf.mxu0
        %v6940 = vadd.f32 0.0, %v6939
        %6941 = vmatmul.f32.gmra.mxu0 %v6815
        %v6942 = vpop.f32.mrf.mxu0
        %v6943 = vadd.f32 0.0, %v6942
        %6944 = vdwg.mxu0
        %6945 = vmatpush.msra.mxu0 0.0
        %6946 = vmatpush.msra.mxu0 0.0
        %6947 = vmatpush.msra.mxu0 0.0
        %6948 = vmatpush.msra.mxu0 0.0
        %6949 = vmatpush.msra.mxu0 0.0
        %6950 = vmatpush.msra.mxu0 0.0
        %6951 = vmatpush.msra.mxu0 0.0
        %6952 = vmatpush.msra.mxu0 0.0
        %6953 = vmatpush.msra.mxu0 0.0
        %6954 = vmatpush.msra.mxu0 0.0
        %6955 = vmatpush.msra.mxu0 0.0
        %6956 = vmatpush.msra.mxu0 0.0
        %6957 = vmatpush.msra.mxu0 %v6825
        %6958 = vmatpush.msra.mxu0 %v6770
        %6959 = vmatpush.msra.mxu0 %v6767
        %6960 = vmatpush.msra.mxu0 %v6764
        %6961 = vmatmul.f32.gmra.mxu0 %v6776
        %v6962 = vpop.f32.mrf.mxu0
        %v6963 = vadd.f32 0.0, %v6962
        %6964 = vmatmul.f32.gmra.mxu0 %v6779
        %v6965 = vpop.f32.mrf.mxu0
        %v6966 = vadd.f32 0.0, %v6965
        %6967 = vmatmul.f32.gmra.mxu0 %v6782
        %v6968 = vpop.f32.mrf.mxu0
        %v6969 = vadd.f32 0.0, %v6968
        %6970 = vmatmul.f32.gmra.mxu0 %v6785
        %v6971 = vpop.f32.mrf.mxu0
        %v6972 = vadd.f32 0.0, %v6971
        %6973 = vmatmul.f32.gmra.mxu0 %v6788
        %v6974 = vpop.f32.mrf.mxu0
        %v6975 = vadd.f32 0.0, %v6974
        %6976 = vmatmul.f32.gmra.mxu0 %v6791
        %v6977 = vpop.f32.mrf.mxu0
        %v6978 = vadd.f32 0.0, %v6977
        %6979 = vmatmul.f32.gmra.mxu0 %v6794
        %v6980 = vpop.f32.mrf.mxu0
        %v6981 = vadd.f32 0.0, %v6980
        %6982 = vmatmul.f32.gmra.mxu0 %v6797
        %v6983 = vpop.f32.mrf.mxu0
        %v6984 = vadd.f32 0.0, %v6983
        %6985 = vmatmul.f32.gmra.mxu0 %v6800
        %v6986 = vpop.f32.mrf.mxu0
        %v6987 = vadd.f32 0.0, %v6986
        %6988 = vmatmul.f32.gmra.mxu0 %v6803
        %v6989 = vpop.f32.mrf.mxu0
        %v6990 = vadd.f32 0.0, %v6989
        %6991 = vmatmul.f32.gmra.mxu0 %v6806
        %v6992 = vpop.f32.mrf.mxu0
        %v6993 = vadd.f32 0.0, %v6992
        %6994 = vmatmul.f32.gmra.mxu0 %v6809
        %v6995 = vpop.f32.mrf.mxu0
        %v6996 = vadd.f32 0.0, %v6995
        %6997 = vmatmul.f32.gmra.mxu0 %v6812
        %v6998 = vpop.f32.mrf.mxu0
        %v6999 = vadd.f32 0.0, %v6998
        %7000 = vmatmul.f32.gmra.mxu0 %v6815
        %v7001 = vpop.f32.mrf.mxu0
        %v7002 = vadd.f32 0.0, %v7001
        %7003 = vdwg.mxu0
        %v7004 = vld [vmem:[%s4] sm:$0xff]
        %v7005 = vld [vmem:[%s4 + $0x8] sm:$0xff]
        %v7006 = vld [vmem:[%s4 + $0x10] sm:$0xff]
        %v7007 = vld [vmem:[%s4 + $0x18] sm:$0xff]
        %v7008 = vld [vmem:[%s4 + $0x20] sm:$0xff]
        %v7009 = vld [vmem:[%s4 + $0x28] sm:$0xff]
        %v7010 = vld [vmem:[%s4 + $0x30] sm:$0xff]
        %v7011 = vld [vmem:[%s4 + $0x38] sm:$0xff]
        %v7012 = vld [vmem:[%s4 + $0x40] sm:$0xff]
        %v7013 = vld [vmem:[%s4 + $0x48] sm:$0xff]
        %v7014 = vld [vmem:[%s4 + $0x50] sm:$0xff]
        %v7015 = vld [vmem:[%s4 + $0x58] sm:$0xff]
        %v7016 = vld [vmem:[%s4 + $0x60] sm:$0xff]
        %v7017 = vld [vmem:[%s4 + $0x68] sm:$0xff]
        %v7018 = vld [vmem:[%s4 + $0x70] sm:$0xff]
        %v7019 = vld [vmem:[%s4 + $0x78] sm:$0xff]
        %v7020 = vld [vmem:[%s4 + $0x80] sm:$0xff]
        %v7021 = vld [vmem:[%s4 + $0x88] sm:$0xff]
        %v7022 = vld [vmem:[%s4 + $0x90] sm:$0xff]
        %v7023 = vld [vmem:[%s4 + $0x98] sm:$0xff]
        %v7024 = vld [vmem:[%s4 + $0xa0] sm:$0xff]
        %v7025 = vld [vmem:[%s4 + $0xa8] sm:$0xff]
        %v7026 = vld [vmem:[%s4 + $0xb0] sm:$0xff]
        %v7027 = vld [vmem:[%s4 + $0xb8] sm:$0xff]
        %v7028 = vld [vmem:[%s4 + $0xc0] sm:$0xff]
        %v7029 = vld [vmem:[%s4 + $0xc8] sm:$0xff]
        %v7030 = vld [vmem:[%s4 + $0xd0] sm:$0xff]
        %v7031 = vld [vmem:[%s4 + $0xd8] sm:$0xff]
        %v7032 = vld [vmem:[%s4 + $0xe0] sm:$0xff]
        %v7033 = vld [vmem:[%s4 + $0xe8] sm:$0xff]
        %v7034 = vld [vmem:[%s4 + $0xf0] sm:$0xff]
        %v7035 = vld [vmem:[%s4 + $0xf8] sm:$0xff]
        %v7036 = vld [vmem:[%s4 + $0x100] sm:$0xff]
        %v7037 = vld [vmem:[%s4 + $0x108] sm:$0xff]
        %v7038 = vld [vmem:[%s4 + $0x110] sm:$0xff]
        %v7039 = vld [vmem:[%s4 + $0x118] sm:$0xff]
        %v7040 = vld [vmem:[%s4 + $0x120] sm:$0xff]
        %v7041 = vld [vmem:[%s4 + $0x128] sm:$0xff]
        %v7042 = vld [vmem:[%s4 + $0x130] sm:$0xff]
        %v7043 = vld [vmem:[%s4 + $0x138] sm:$0xff]
        %v7044 = vld [vmem:[%s4 + $0x140] sm:$0xff]
        %v7045 = vld [vmem:[%s4 + $0x148] sm:$0xff]
        %v7046 = vmul.f32 %v6845, %v7004
        %v7047 = vmul.f32 %v6904, %v7005
        %v7048 = vmul.f32 %v6963, %v7006
        %v7049 = vmul.f32 %v6848, %v7007
        %v7050 = vmul.f32 %v6907, %v7008
        %v7051 = vmul.f32 %v6966, %v7009
        %v7052 = vmul.f32 %v6851, %v7010
        %v7053 = vmul.f32 %v6910, %v7011
        %v7054 = vmul.f32 %v6969, %v7012
        %v7055 = vmul.f32 %v6854, %v7013
        %v7056 = vmul.f32 %v6913, %v7014
        %v7057 = vmul.f32 %v6972, %v7015
        %v7058 = vmul.f32 %v6857, %v7016
        %v7059 = vmul.f32 %v6916, %v7017
        %v7060 = vmul.f32 %v6975, %v7018
        %v7061 = vmul.f32 %v6860, %v7019
        %v7062 = vmul.f32 %v6919, %v7020
        %v7063 = vmul.f32 %v6978, %v7021
        %v7064 = vmul.f32 %v6863, %v7022
        %v7065 = vmul.f32 %v6922, %v7023
        %v7066 = vmul.f32 %v6981, %v7024
        %v7067 = vmul.f32 %v6866, %v7025
        %v7068 = vmul.f32 %v6925, %v7026
        %v7069 = vmul.f32 %v6984, %v7027
        %v7070 = vmul.f32 %v6869, %v7028
        %v7071 = vmul.f32 %v6928, %v7029
        %v7072 = vmul.f32 %v6987, %v7030
        %v7073 = vmul.f32 %v6872, %v7031
        %v7074 = vmul.f32 %v6931, %v7032
        %v7075 = vmul.f32 %v6990, %v7033
        %v7076 = vmul.f32 %v6875, %v7034
        %v7077 = vmul.f32 %v6934, %v7035
        %v7078 = vmul.f32 %v6993, %v7036
        %v7079 = vmul.f32 %v6878, %v7037
        %v7080 = vmul.f32 %v6937, %v7038
        %v7081 = vmul.f32 %v6996, %v7039
        %v7082 = vmul.f32 %v6881, %v7040
        %v7083 = vmul.f32 %v6940, %v7041
        %v7084 = vmul.f32 %v6999, %v7042
        %v7085 = vmul.f32 %v6884, %v7043
        %v7086 = vmul.f32 %v6943, %v7044
        %v7087 = vmul.f32 %v7002, %v7045
        %v7088 = vld [vmem:[%s5] sm:$0xff]
        %v7089 = vld [vmem:[%s5 + $0x8] sm:$0xff]
        %v7090 = vld [vmem:[%s5 + $0x10] sm:$0xff]
        %v7091 = vld [vmem:[%s5 + $0x18] sm:$0xff]
        %v7092 = vld [vmem:[%s5 + $0x20] sm:$0xff]
        %v7093 = vld [vmem:[%s5 + $0x28] sm:$0xff]
        %v7094 = vld [vmem:[%s5 + $0x30] sm:$0xff]
        %v7095 = vld [vmem:[%s5 + $0x38] sm:$0xff]
        %v7096 = vld [vmem:[%s5 + $0x40] sm:$0xff]
        %v7097 = vld [vmem:[%s5 + $0x48] sm:$0xff]
        %v7098 = vld [vmem:[%s5 + $0x50] sm:$0xff]
        %v7099 = vld [vmem:[%s5 + $0x58] sm:$0xff]
        %v7100 = vld [vmem:[%s5 + $0x60] sm:$0xff]
        %v7101 = vld [vmem:[%s5 + $0x68] sm:$0xff]
        %v7102 = vld [vmem:[%s5 + $0x70] sm:$0xff]
        %v7103 = vld [vmem:[%s5 + $0x78] sm:$0xff]
        %v7104 = vld [vmem:[%s5 + $0x80] sm:$0xff]
        %v7105 = vld [vmem:[%s5 + $0x88] sm:$0xff]
        %v7106 = vld [vmem:[%s5 + $0x90] sm:$0xff]
        %v7107 = vld [vmem:[%s5 + $0x98] sm:$0xff]
        %v7108 = vld [vmem:[%s5 + $0xa0] sm:$0xff]
        %v7109 = vld [vmem:[%s5 + $0xa8] sm:$0xff]
        %v7110 = vld [vmem:[%s5 + $0xb0] sm:$0xff]
        %v7111 = vld [vmem:[%s5 + $0xb8] sm:$0xff]
        %v7112 = vld [vmem:[%s5 + $0xc0] sm:$0xff]
        %v7113 = vld [vmem:[%s5 + $0xc8] sm:$0xff]
        %v7114 = vld [vmem:[%s5 + $0xd0] sm:$0xff]
        %v7115 = vld [vmem:[%s5 + $0xd8] sm:$0xff]
        %v7116 = vld [vmem:[%s5 + $0xe0] sm:$0xff]
        %v7117 = vld [vmem:[%s5 + $0xe8] sm:$0xff]
        %v7118 = vld [vmem:[%s5 + $0xf0] sm:$0xff]
        %v7119 = vld [vmem:[%s5 + $0xf8] sm:$0xff]
        %v7120 = vld [vmem:[%s5 + $0x100] sm:$0xff]
        %v7121 = vld [vmem:[%s5 + $0x108] sm:$0xff]
        %v7122 = vld [vmem:[%s5 + $0x110] sm:$0xff]
        %vm7123 = vcmask 195584
        %v7125 = vsel %vm7123, %v7048, 0
        %v7128 = vsel %vm7123, %v7051, 0
        %v7131 = vsel %vm7123, %v7054, 0
        %v7134 = vsel %vm7123, %v7057, 0
        %v7137 = vsel %vm7123, %v7060, 0
        %v7140 = vsel %vm7123, %v7063, 0
        %v7143 = vsel %vm7123, %v7066, 0
        %v7146 = vsel %vm7123, %v7069, 0
        %v7149 = vsel %vm7123, %v7072, 0
        %v7152 = vsel %vm7123, %v7075, 0
        %v7155 = vsel %vm7123, %v7078, 0
        %v7158 = vsel %vm7123, %v7081, 0
        %v7161 = vsel %vm7123, %v7084, 0
        %v7164 = vsel %vm7123, %v7087, 0
        %7166 = vmatpush.msra.mxu0 %v7103
        %7167 = vmatpush.msra.mxu0 %v7102
        %7168 = vmatpush.msra.mxu0 %v7101
        %7169 = vmatpush.msra.mxu0 %v7100
        %7170 = vmatpush.msra.mxu0 %v7099
        %7171 = vmatpush.msra.mxu0 %v7098
        %7172 = vmatpush.msra.mxu0 %v7097
        %7173 = vmatpush.msra.mxu0 %v7096
        %7174 = vmatpush.msra.mxu0 %v7095
        %7175 = vmatpush.msra.mxu0 %v7094
        %7176 = vmatpush.msra.mxu0 %v7093
        %7177 = vmatpush.msra.mxu0 %v7092
        %7178 = vmatpush.msra.mxu0 %v7091
        %7179 = vmatpush.msra.mxu0 %v7090
        %7180 = vmatpush.msra.mxu0 %v7089
        %7181 = vmatpush.msra.mxu0 %v7088
        %7182 = vmatmul.f32.gmra.mxu0 %v7046
        %v7183 = vpop.f32.mrf.mxu0
        %v7184 = vadd.f32 0.0, %v7183
        %7185 = vmatmul.f32.gmra.mxu0 %v7049
        %v7186 = vpop.f32.mrf.mxu0
        %v7187 = vadd.f32 0.0, %v7186
        %7188 = vmatmul.f32.gmra.mxu0 %v7052
        %v7189 = vpop.f32.mrf.mxu0
        %v7190 = vadd.f32 0.0, %v7189
        %7191 = vmatmul.f32.gmra.mxu0 %v7055
        %v7192 = vpop.f32.mrf.mxu0
        %v7193 = vadd.f32 0.0, %v7192
        %7194 = vmatmul.f32.gmra.mxu0 %v7058
        %v7195 = vpop.f32.mrf.mxu0
        %v7196 = vadd.f32 0.0, %v7195
        %7197 = vmatmul.f32.gmra.mxu0 %v7061
        %v7198 = vpop.f32.mrf.mxu0
        %v7199 = vadd.f32 0.0, %v7198
        %7200 = vmatmul.f32.gmra.mxu0 %v7064
        %v7201 = vpop.f32.mrf.mxu0
        %v7202 = vadd.f32 0.0, %v7201
        %7203 = vmatmul.f32.gmra.mxu0 %v7067
        %v7204 = vpop.f32.mrf.mxu0
        %v7205 = vadd.f32 0.0, %v7204
        %7206 = vmatmul.f32.gmra.mxu0 %v7070
        %v7207 = vpop.f32.mrf.mxu0
        %v7208 = vadd.f32 0.0, %v7207
        %7209 = vmatmul.f32.gmra.mxu0 %v7073
        %v7210 = vpop.f32.mrf.mxu0
        %v7211 = vadd.f32 0.0, %v7210
        %7212 = vmatmul.f32.gmra.mxu0 %v7076
        %v7213 = vpop.f32.mrf.mxu0
        %v7214 = vadd.f32 0.0, %v7213
        %7215 = vmatmul.f32.gmra.mxu0 %v7079
        %v7216 = vpop.f32.mrf.mxu0
        %v7217 = vadd.f32 0.0, %v7216
        %7218 = vmatmul.f32.gmra.mxu0 %v7082
        %v7219 = vpop.f32.mrf.mxu0
        %v7220 = vadd.f32 0.0, %v7219
        %7221 = vmatmul.f32.gmra.mxu0 %v7085
        %v7222 = vpop.f32.mrf.mxu0
        %v7223 = vadd.f32 0.0, %v7222
        %7224 = vdwg.mxu0
        %7225 = vmatpush.msra.mxu0 %v7119
        %7226 = vmatpush.msra.mxu0 %v7118
        %7227 = vmatpush.msra.mxu0 %v7117
        %7228 = vmatpush.msra.mxu0 %v7116
        %7229 = vmatpush.msra.mxu0 %v7115
        %7230 = vmatpush.msra.mxu0 %v7114
        %7231 = vmatpush.msra.mxu0 %v7113
        %7232 = vmatpush.msra.mxu0 %v7112
        %7233 = vmatpush.msra.mxu0 %v7111
        %7234 = vmatpush.msra.mxu0 %v7110
        %7235 = vmatpush.msra.mxu0 %v7109
        %7236 = vmatpush.msra.mxu0 %v7108
        %7237 = vmatpush.msra.mxu0 %v7107
        %7238 = vmatpush.msra.mxu0 %v7106
        %7239 = vmatpush.msra.mxu0 %v7105
        %7240 = vmatpush.msra.mxu0 %v7104
        %7241 = vmatmul.f32.gmra.mxu0 %v7047
        %v7242 = vpop.f32.mrf.mxu0
        %v7243 = vadd.f32 %v7184, %v7242
        %7244 = vmatmul.f32.gmra.mxu0 %v7050
        %v7245 = vpop.f32.mrf.mxu0
        %v7246 = vadd.f32 %v7187, %v7245
        %7247 = vmatmul.f32.gmra.mxu0 %v7053
        %v7248 = vpop.f32.mrf.mxu0
        %v7249 = vadd.f32 %v7190, %v7248
        %7250 = vmatmul.f32.gmra.mxu0 %v7056
        %v7251 = vpop.f32.mrf.mxu0
        %v7252 = vadd.f32 %v7193, %v7251
        %7253 = vmatmul.f32.gmra.mxu0 %v7059
        %v7254 = vpop.f32.mrf.mxu0
        %v7255 = vadd.f32 %v7196, %v7254
        %7256 = vmatmul.f32.gmra.mxu0 %v7062
        %v7257 = vpop.f32.mrf.mxu0
        %v7258 = vadd.f32 %v7199, %v7257
        %7259 = vmatmul.f32.gmra.mxu0 %v7065
        %v7260 = vpop.f32.mrf.mxu0
        %v7261 = vadd.f32 %v7202, %v7260
        %7262 = vmatmul.f32.gmra.mxu0 %v7068
        %v7263 = vpop.f32.mrf.mxu0
        %v7264 = vadd.f32 %v7205, %v7263
        %7265 = vmatmul.f32.gmra.mxu0 %v7071
        %v7266 = vpop.f32.mrf.mxu0
        %v7267 = vadd.f32 %v7208, %v7266
        %7268 = vmatmul.f32.gmra.mxu0 %v7074
        %v7269 = vpop.f32.mrf.mxu0
        %v7270 = vadd.f32 %v7211, %v7269
        %7271 = vmatmul.f32.gmra.mxu0 %v7077
        %v7272 = vpop.f32.mrf.mxu0
        %v7273 = vadd.f32 %v7214, %v7272
        %7274 = vmatmul.f32.gmra.mxu0 %v7080
        %v7275 = vpop.f32.mrf.mxu0
        %v7276 = vadd.f32 %v7217, %v7275
        %7277 = vmatmul.f32.gmra.mxu0 %v7083
        %v7278 = vpop.f32.mrf.mxu0
        %v7279 = vadd.f32 %v7220, %v7278
        %7280 = vmatmul.f32.gmra.mxu0 %v7086
        %v7281 = vpop.f32.mrf.mxu0
        %v7282 = vadd.f32 %v7223, %v7281
        %7283 = vdwg.mxu0
        %7284 = vmatpush.msra.mxu0 0.0
        %7285 = vmatpush.msra.mxu0 0.0
        %7286 = vmatpush.msra.mxu0 0.0
        %7287 = vmatpush.msra.mxu0 0.0
        %7288 = vmatpush.msra.mxu0 0.0
        %7289 = vmatpush.msra.mxu0 0.0
        %7290 = vmatpush.msra.mxu0 0.0
        %7291 = vmatpush.msra.mxu0 0.0
        %7292 = vmatpush.msra.mxu0 0.0
        %7293 = vmatpush.msra.mxu0 0.0
        %7294 = vmatpush.msra.mxu0 0.0
        %7295 = vmatpush.msra.mxu0 0.0
        %7296 = vmatpush.msra.mxu0 0.0
        %7297 = vmatpush.msra.mxu0 %v7122
        %7298 = vmatpush.msra.mxu0 %v7121
        %7299 = vmatpush.msra.mxu0 %v7120
        %7300 = vmatmul.f32.gmra.mxu0 %v7125
        %v7301 = vpop.f32.mrf.mxu0
        %v7302 = vadd.f32 %v7243, %v7301
        %7303 = vmatmul.f32.gmra.mxu0 %v7128
        %v7304 = vpop.f32.mrf.mxu0
        %v7305 = vadd.f32 %v7246, %v7304
        %7306 = vmatmul.f32.gmra.mxu0 %v7131
        %v7307 = vpop.f32.mrf.mxu0
        %v7308 = vadd.f32 %v7249, %v7307
        %7309 = vmatmul.f32.gmra.mxu0 %v7134
        %v7310 = vpop.f32.mrf.mxu0
        %v7311 = vadd.f32 %v7252, %v7310
        %7312 = vmatmul.f32.gmra.mxu0 %v7137
        %v7313 = vpop.f32.mrf.mxu0
        %v7314 = vadd.f32 %v7255, %v7313
        %7315 = vmatmul.f32.gmra.mxu0 %v7140
        %v7316 = vpop.f32.mrf.mxu0
        %v7317 = vadd.f32 %v7258, %v7316
        %7318 = vmatmul.f32.gmra.mxu0 %v7143
        %v7319 = vpop.f32.mrf.mxu0
        %v7320 = vadd.f32 %v7261, %v7319
        %7321 = vmatmul.f32.gmra.mxu0 %v7146
        %v7322 = vpop.f32.mrf.mxu0
        %v7323 = vadd.f32 %v7264, %v7322
        %7324 = vmatmul.f32.gmra.mxu0 %v7149
        %v7325 = vpop.f32.mrf.mxu0
        %v7326 = vadd.f32 %v7267, %v7325
        %7327 = vmatmul.f32.gmra.mxu0 %v7152
        %v7328 = vpop.f32.mrf.mxu0
        %v7329 = vadd.f32 %v7270, %v7328
        %7330 = vmatmul.f32.gmra.mxu0 %v7155
        %v7331 = vpop.f32.mrf.mxu0
        %v7332 = vadd.f32 %v7273, %v7331
        %7333 = vmatmul.f32.gmra.mxu0 %v7158
        %v7334 = vpop.f32.mrf.mxu0
        %v7335 = vadd.f32 %v7276, %v7334
        %7336 = vmatmul.f32.gmra.mxu0 %v7161
        %v7337 = vpop.f32.mrf.mxu0
        %v7338 = vadd.f32 %v7279, %v7337
        %7339 = vmatmul.f32.gmra.mxu0 %v7164
        %v7340 = vpop.f32.mrf.mxu0
        %v7341 = vadd.f32 %v7282, %v7340
        %7342 = vdwg.mxu0
        %v7343 = vld [vmem:[%s6] sm:$0xf]
        %v7344 = vld [vmem:[%s7] sm:$0x1]
        %v7346 = vperm.slane %v7344, 0
        %vm7348 = vcmask 916480
        %v7350 = vsel %vm7348, %v7343, 0
        %7352 = vmatpush.msra.mxu0 0.0
        %7353 = vmatpush.msra.mxu0 0.0
        %7354 = vmatpush.msra.mxu0 %v7341
        %7355 = vmatpush.msra.mxu0 %v7338
        %7356 = vmatpush.msra.mxu0 %v7335
        %7357 = vmatpush.msra.mxu0 %v7332
        %7358 = vmatpush.msra.mxu0 %v7329
        %7359 = vmatpush.msra.mxu0 %v7326
        %7360 = vmatpush.msra.mxu0 %v7323
        %7361 = vmatpush.msra.mxu0 %v7320
        %7362 = vmatpush.msra.mxu0 %v7317
        %7363 = vmatpush.msra.mxu0 %v7314
        %7364 = vmatpush.msra.mxu0 %v7311
        %7365 = vmatpush.msra.mxu0 %v7308
        %7366 = vmatpush.msra.mxu0 %v7305
        %7367 = vmatpush.msra.mxu0 %v7302
        %7368 = vmatmul.f32.gmra.mxu0 %v7350
        %v7369 = vpop.f32.mrf.mxu0
        %v7370 = vadd.f32 %v7346, %v7369
        %7371 = vdwg.mxu0
        %vm7372 = vcmask 76800
        %v7373 = vsel %vm7372, %v7370, -inf
        %7374 = vmax.xlane.f32.xlu0 %v7373
        %v7375 = vpop.xlane.xlu0 %7374
        %v7376 = vsub.f32 %v7370, %v7375
        %v7377 = vmul.f32 %v7376, 1.442695
        %v7378 = vpow.pop %v7377
        %v7379 = vsel %vm7372, %v7378, 0.0
        %7380 = vadd.xlane.f32.xlu0 %v7379
        %v7381 = vpop.xlane.xlu0 %7380
        %v7382 = vrcp.pop %v7381
        %v7383 = vmul.f32 %v7381, %v7382
        %v7384 = vsub.f32 1.0, %v7383
        %v7385 = vmul.f32 %v7382, %v7384
        %v7386 = vadd.f32 %v7382, %v7385
        %vm7387 = vweird.f32 %v7381
        %vm7388 = vweird.f32 %v7382
        %vm7389 = vmor %vm7387, %vm7388
        %v7390 = vsel %vm7389, %v7382, %v7386
        %v7391 = vand.u32 2147483647, %v7381
        %vm7392 = vcmp.eq.f32.partialorder %v7391, 8.507059e+37
        %v7393 = vand.u32 %v7381, 2147483648
        %v7394 = vor.u32 1.1754944e-38, %v7393
        %v7395 = vsel %vm7392, %v7394, %v7390
        %v7396 = vmul.f32 %v7378, %v7395
        %7397 = vst.msk [vmem:[%s301] sm:$0xf] %vm7372, %v7396
        %s7398 = sand.u32 %s203, 1
        %s7399 = scalar_lea.sflag [#allocation3], %s7398
        %s7400 = sand.u32 %s203, 1
        %s7401 = smul.addr %s7400, 4
        %s7402 = scalar_lea.vmem [#allocation2], %s7401
        // Predicated region
        $region53: #{_forward_impl.1} parent=51 // pred_check
          %p7403 = pneg %p213
        $region54: #{_forward_impl.1} parent=51 // pred_check_branch
          %7405 = sbr.rel (%p7403) target = $region56
        $region55: #{_forward_impl.1} parent=51 // pred_region
          %7407 = vsyncadd %s7399, 0
          %s7408 = smul.addr %s22, 4
          %s7409 = scalar_lea.hbm %s8, %s7408
          %s7411 = sshll.u32 %s7402, 4
          %s7412 = int_to_ptr.vmem [resolvable:$true] %s7411
          %s7413 = sshll.u32 %s7409, 4
          %s7414 = int_to_ptr.hbm [resolvable:$true] %s7413
          %7416 = dma.vmem_to_hbm [thread:$0]  %s7412, 64, %s7414, %s7399
        $region56: #{_forward_impl.1} parent=51 // pred_fallthru
          _
      $region52: #{_forward_impl.1} parent=5 // pred_fallthru
        _
      %p7417 = scmp.le.s32.totalorder 2, %s17
      // Predicated region
      $region57: #{_forward_impl.1} parent=5 // pred_check
        %p7418 = pneg %p7417
      $region58: #{_forward_impl.1} parent=5 // pred_check_branch
        %7420 = sbr.rel (%p7418) target = $region60
      $region59: #{_forward_impl.1} parent=5 // pred_region
        %s7421 = ssub.s32 %s17, 2
        // Predicated region
        $region61: #{_forward_impl.1} parent=59 // pred_check
          %p7422 = pneg %p219
        $region62: #{_forward_impl.1} parent=59 // pred_check_branch
          %7424 = sbr.rel (%p7422) target = $region64
        $region63: #{_forward_impl.1} parent=59 // pred_region
          %s7425 = sand.u32 %s204, 1
          %s7426 = scalar_lea.sflag [#allocation3], %s7425
          %s7427 = sand.u32 %s204, 1
          %s7428 = smul.addr %s7427, 4
          %s7429 = scalar_lea.vmem [#allocation2], %s7428
          %7431 = dma.done %s7426, 64
        $region64: #{_forward_impl.1} parent=59 // pred_fallthru
          _
      $region60: #{_forward_impl.1} parent=5 // pred_fallthru
        _
    $region6: #{_forward_impl.1} parent=1 // loop_footer
      %s21 = sadd.s32 1, %s17
    $region7: #{_forward_impl.1} parent=1 // loop_footer_branch
      %16 = sbr.rel target = $region3
    $region8: #{_forward_impl.1} parent=1 // loop_exit
      _
    %7432 = vsyncpa [#allocation3], 1
    %s7433 = scalar_lea.sflag [#allocation3], 1
    %7434 = vsyncpa %s7433, 1

</llo_original>
